<compile_context>
chip_gen: v7x
topology: tpu7x:2x2x1
jax: 0.10.0
libtpu: 0.0.40
codegen_flags: <defaults>
</compile_context>

<pallas_src>
import math

import jax
import jax.numpy as jnp
from jax.experimental import pallas as pl
from jax.experimental.pallas import tpu as pltpu

INF = 1e9  # matches `infinity` in the PyTorch module


def _qmul(a, b):
    """Hamilton quaternion product on component tuples (w, x, y, z)."""
    aw, ax, ay, az = a
    bw, bx, by, bz = b
    return (
        aw * bw - ax * bx - ay * by - az * bz,
        aw * bx + ax * bw + ay * bz - az * by,
        aw * by - ax * bz + ay * bw + az * bx,
        aw * bz + ax * by - ay * bx + az * bw,
    )


def _pair_cols(flat, N, K):
    """(N*K, C) matmul output -> list of C lane-dense (N, K) arrays.

    The per-column squeeze is spelled as a reduction over the singleton minor
    axis so it lowers through the standard reduce path.
    """
    C = flat.shape[-1]
    x3 = flat.reshape(N, K, C)
    return [jnp.sum(x3[:, :, c:c + 1], axis=-1) for c in range(C)]


def _stack_pairs(cols, N, K):
    """Stack lane-dense (N, K) pair scalars into an (N*K, C) matrix.

    Built with a lane-iota select chain (instead of an unaligned lane
    concatenation) for robust lowering; C is tiny (2 or 4).
    """
    C = len(cols)
    lane = jax.lax.broadcasted_iota(jnp.int32, (N, K, C), 2)
    out = cols[-1][:, :, None]
    for c in range(C - 2, -1, -1):
        out = jnp.where(lane == c, cols[c][:, :, None], out)
    return out.reshape(N * K, C)


def _egnn_kernel(
    # --- data (one batch element per grid step) ---
    q_ref, t_ref, tsin_ref, tcos_ref, tflat_ref, h_ref, e_ref,
    hj_ref, nqT_ref, ntT_ref, pm_ref, nb_ref,
    # --- message MLP ---
    wm1_hi_ref, wm1_hj_ref, wm1_e_ref, bm1_ref, wm2_ref, bm2_ref,
    # --- fused first-layer weights of the four msg2-consuming heads ---
    wh1_ref, bh1_ref,
    # --- attention head ---
    wa1_dq_ref, wa2_ref, ba2_ref,
    # --- rotation head ---
    wr1_q_ref, wr2_ref, br2_ref,
    # --- torsion head ---
    wt1_t_ref, wt2_ref, bt2_ref,
    # --- translation head ---
    wx2_ref, bx2_ref,
    # --- feature MLP ---
    wf1_h_ref, wf1_m_ref, bf1_ref, wf2_ref, bf2_ref,
    # --- packed output (quat | trans | sin | cos | node features) ---
    out_ref,
):
    N = h_ref.shape[1]
    K = nqT_ref.shape[2]
    P = K - N
    E = e_ref.shape[3]
    T = bm1_ref.shape[1]          # transition size (64)
    M = wm2_ref.shape[1]          # message size
    O = wf2_ref.shape[1]
    NK = N * K

    dot = lambda a, b: jnp.dot(a, b, preferred_element_type=jnp.float32)
    relu = lambda v: jnp.maximum(v, 0.0)

    q = q_ref[0]            # (N, 4)
    t = t_ref[0]            # (N, 3)
    tsin = tsin_ref[0]      # (N, 7)
    tcos = tcos_ref[0]      # (N, 7)
    tflat = tflat_ref[0]    # (N, 14)
    h = h_ref[0]            # (N, H)
    e = e_ref[0]            # (N, N, E)   peptide-peptide edges only
    hj = hj_ref[0]          # (K, H)
    nqT = nqT_ref[0]        # (4, K)      neighbour quats, K on lanes
    ntT = ntT_ref[0]        # (3, K)      neighbour trans, K on lanes
    pm = pm_ref[0]          # (N, 1)      peptide node mask (column)
    nb = nb_ref[0]          # (1, K)      neighbour mask (row: pep ++ pocket)

    # ------------- pair mask, built in-kernel (lane-dense (N, K)) -------------
    row_id = jax.lax.broadcasted_iota(jnp.int32, (N, K), 0)
    col_id = jax.lax.broadcasted_iota(jnp.int32, (N, K), 1)
    mask = pm * nb                                    # (N, K)
    mask = jnp.where(row_id == col_id, 0.0, mask)     # drop peptide self-edges

    # ------------------ message MLP (no zero pocket edges) ------------------
    pre_hi = dot(h, wm1_hi_ref[...])                                  # (N, T)
    pre_hj = dot(hj, wm1_hj_ref[...])                                 # (K, T)
    bm1 = bm1_ref[...]
    pre_pep = pre_hi[:, None, :] + pre_hj[None, :N, :] + bm1          # (N, N, T)
    pre_pep = pre_pep + dot(e.reshape(N * N, E), wm1_e_ref[...]).reshape(N, N, T)
    if P > 0:
        pre_pok = pre_hi[:, None, :] + pre_hj[None, N:, :] + bm1      # (N, P, T)
        pre1 = jnp.concatenate([pre_pep, pre_pok], axis=1)            # (N, K, T)
    else:
        pre1 = pre_pep
    msg2 = dot(relu(pre1).reshape(NK, T), wm2_ref[...]) + bm2_ref[...]  # (NK, M)
    msg3 = msg2.reshape(N, K, M)

    # ------------------ lane-dense pair geometry ------------------
    qi = [q[:, c:c + 1] for c in range(4)]            # (N, 1) columns
    nj = [nqT[c:c + 1, :] for c in range(4)]          # (1, K) rows
    ti = [t[:, c:c + 1] for c in range(3)]
    ntj = [ntT[c:c + 1, :] for c in range(3)]
    diff = [ti[c] - ntj[c] for c in range(3)]         # (N, K)
    d2 = diff[0] * diff[0] + diff[1] * diff[1] + diff[2] * diff[2]
    qdot = qi[0] * nj[0] + qi[1] * nj[1] + qi[2] * nj[2] + qi[3] * nj[3]
    qdot2 = qdot * qdot

    # local quats = inv(nq_j) * q_i * nq_j, all lane-dense (N, K)
    nq_norm2 = nj[0] * nj[0] + nj[1] * nj[1] + nj[2] * nj[2] + nj[3] * nj[3]
    inv_s = 1.0 / nq_norm2
    inv_nj = (nj[0] * inv_s, -nj[1] * inv_s, -nj[2] * inv_s, -nj[3] * inv_s)
    local = _qmul(inv_nj, _qmul(tuple(qi), tuple(nj)))                # 4 x (N, K)

    # ------------- fused first layer of the 4 heads on msg2 (one MXU pass) ----
    fused = dot(msg2, wh1_ref[...]) + bh1_ref[...]    # (NK, 4T)
    att_m = fused[:, 0:T]
    rot_m = fused[:, T:2 * T]
    tor_m = fused[:, 2 * T:3 * T]
    tra_m = fused[:, 3 * T:4 * T]

    # ------------------ attention (lane-dense softmax) ------------------
    ext = _stack_pairs([-d2, qdot2], N, K)                            # (NK, 2)
    att_act = relu(att_m + dot(ext, wa1_dq_ref[...]))                 # (NK, T)
    logits_flat = dot(att_act, wa2_ref[...]) + ba2_ref[...]           # (NK, 1)
    logits = _pair_cols(logits_flat, N, K)[0]                         # (N, K)
    masked = logits - (1.0 - mask) * INF
    mx = jnp.max(masked, axis=-1, keepdims=True)
    ex = jnp.exp(masked - mx)
    w = ex * pl.reciprocal(jnp.sum(ex, axis=-1, keepdims=True), approx=True)

    # ------------------ feature MLP ------------------
    msg_sum = jnp.sum(msg3, axis=1)                                   # (N, M)
    f_pre = dot(h, wf1_h_ref[...]) + dot(msg_sum, wf1_m_ref[...]) + bf1_ref[...]
    o = dot(relu(f_pre), wf2_ref[...]) + bf2_ref[...]                 # (N, O)

    # ------------------ rotation update ------------------
    local_stack = _stack_pairs(list(local), N, K)                     # (NK, 4)
    rot_act = relu(rot_m + dot(local_stack, wr1_q_ref[...]))          # (NK, T)
    ldq_flat = jax.nn.sigmoid(dot(rot_act, wr2_ref[...]) + br2_ref[...])   # (NK, 4)
    ldq = _pair_cols(ldq_flat, N, K)                                  # 4 x (N, K)
    # (torch F.normalize(local_delta_quats) result is discarded -> no-op)
    m_gd = _qmul(tuple(nj), _qmul(tuple(ldq), inv_nj))                # 4 x (N, K)
    gd = [jnp.sum(c_ * w, axis=-1, keepdims=True) for c_ in m_gd]     # (N, 1)
    has_nb = jnp.sum(mask, axis=-1, keepdims=True) > 0.0              # (N, 1)
    identity = (1.0, 0.0, 0.0, 0.0)
    gd = [jnp.where(has_nb, g, iv) for g, iv in zip(gd, identity)]
    inv_gn = jax.lax.rsqrt(jnp.maximum(
        gd[0] ** 2 + gd[1] ** 2 + gd[2] ** 2 + gd[3] ** 2, 1e-24))
    gd = [g * inv_gn for g in gd]
    uq = _qmul(tuple(gd), tuple(qi))                                  # (N, 1) each
    inv_un = jax.lax.rsqrt(jnp.maximum(
        uq[0] ** 2 + uq[1] ** 2 + uq[2] ** 2 + uq[3] ** 2, 1e-24))
    for c in range(4):                  # returned Rigid uses normalize_quats=True
        out_ref[0, :, c:c + 1] = uq[c] * inv_un

    # ------------------ translation update ------------------
    tra_act = relu(tra_m)
    m_tr_flat = dot(tra_act, wx2_ref[...]) + bx2_ref[...]             # (NK, 1)
    m_tr = _pair_cols(m_tr_flat, N, K)[0]                             # (N, K)
    wm = w * m_tr
    for c in range(3):
        out_ref[0, :, 4 + c:5 + c] = ti[c] + jnp.sum(
            wm * diff[c], axis=-1, keepdims=True)

    # ------------------ torsion update ------------------
    tor_row = dot(tflat, wt1_t_ref[...])                              # (N, T)
    t_pre3 = tor_m.reshape(N, K, T) + tor_row[:, None, :]
    tor_act = relu(t_pre3).reshape(NK, T)
    mda3 = (dot(tor_act, wt2_ref[...]) + bt2_ref[...]).reshape(N, K, 7)
    delta_a = jnp.sum(mda3 * w[:, :, None], axis=1)                   # (N, 7)
    dsin = jnp.sin(delta_a)
    dcos = jnp.cos(delta_a)
    # multiply_sin_cos == angle addition on (sin, cos)
    out_ref[0, :, 7:14] = dsin * tcos + dcos * tsin
    out_ref[0, :, 14:21] = dcos * tcos - dsin * tsin
    out_ref[0, :, 21:21 + O] = o


def _data_spec(tail):
    zeros = (0,) * len(tail)
    return pl.BlockSpec((1,) + tuple(tail), lambda b, z=zeros: (b,) + z)


def _param_spec(shape):
    zeros = (0,) * len(shape)
    return pl.BlockSpec(tuple(shape), lambda b, z=zeros: z)


def init_params(key, H, E, M, O, T=64, n_torsions=7):
    """Deterministic synthetic parameters.  Weights stored as [in, out]."""
    ks = jax.random.split(key, 12)

    def lin(k, fi, fo):
        kw, kb = jax.random.split(k)
        W = (jax.random.normal(kw, (fi, fo), jnp.float32) / math.sqrt(fi))
        b = 0.01 * jax.random.normal(kb, (1, fo), jnp.float32)
        return W.astype(jnp.float32), b

    Wm1, bm1 = lin(ks[0], 2 * H + E, T); Wm2, bm2 = lin(ks[1], T, M)
    Wa1, ba1 = lin(ks[2], M + 2, T);     Wa2, ba2 = lin(ks[3], T, 1)
    Wf1, bf1 = lin(ks[4], H + M, T);     Wf2, bf2 = lin(ks[5], T, O)
    Wr1, br1 = lin(ks[6], M + 4, T);     Wr2, br2 = lin(ks[7], T, 4)
    Wt1, bt1 = lin(ks[8], M + 2 * n_torsions, T); Wt2, bt2 = lin(ks[9], T, n_torsions)
    Wx1, bx1 = lin(ks[10], M, T);        Wx2, bx2 = lin(ks[11], T, 1)
    return dict(
        Wm1_hi=Wm1[:H], Wm1_hj=Wm1[H:2 * H], Wm1_e=Wm1[2 * H:], bm1=bm1, Wm2=Wm2, bm2=bm2,
        Wa1_m=Wa1[:M], Wa1_d2=Wa1[M:M + 1], Wa1_q=Wa1[M + 1:M + 2], ba1=ba1, Wa2=Wa2, ba2=ba2,
        Wf1_h=Wf1[:H], Wf1_m=Wf1[H:], bf1=bf1, Wf2=Wf2, bf2=bf2,
        Wr1_m=Wr1[:M], Wr1_q=Wr1[M:], br1=br1, Wr2=Wr2, br2=br2,
        Wt1_m=Wt1[:M], Wt1_t=Wt1[M:], bt1=bt1, Wt2=Wt2, bt2=bt2,
        Wx1=Wx1, bx1=bx1, Wx2=Wx2, bx2=bx2,
    )


def egnn_layer_forward(params, pep_quats, pep_trans, torsions, pep_h, pep_e,
                       pep_mask, pocket_h, pocket_quats, pocket_trans, pocket_mask):
    """Returns ((updated_quats, updated_trans), updated_torsions, node_features_out)."""
    B, N, H = pep_h.shape
    P = pocket_h.shape[1]
    K = N + P
    # Keep N and N+P multiples of 8 so in-kernel reshapes/concat stay tile aligned.
    assert N % 8 == 0 and K % 8 == 0, "N and N+P must be multiples of 8"

    f32 = jnp.float32
    tor_sin = torsions[..., 0]
    tor_cos = torsions[..., 1]
    tor_flat = torsions.reshape(B, N, -1)
    hj = jnp.concatenate([pep_h, pocket_h], axis=1)                           # (B,K,H)
    nqT = jnp.swapaxes(jnp.concatenate([pep_quats, pocket_quats], axis=1), 1, 2)  # (B,4,K)
    ntT = jnp.swapaxes(jnp.concatenate([pep_trans, pocket_trans], axis=1), 1, 2)  # (B,3,K)
    pm_col = pep_mask.astype(f32)[..., None]                                   # (B,N,1)
    nb_row = jnp.concatenate([pep_mask, pocket_mask], axis=-1).astype(f32)[:, None, :]  # (B,1,K)

    # Fuse the four first-layer weights consuming msg2 into one (M, 4T) matmul.
    W_heads1 = jnp.concatenate(
        [params["Wa1_m"], params["Wr1_m"], params["Wt1_m"], params["Wx1"]], axis=1)
    b_heads1 = jnp.concatenate(
        [params["ba1"], params["br1"], params["bt1"], params["bx1"]], axis=1)
    Wa1_dq = jnp.concatenate([params["Wa1_d2"], params["Wa1_q"]], axis=0)      # (2, T)

    data = [pep_quats, pep_trans, tor_sin, tor_cos, tor_flat, pep_h, pep_e,
            hj, nqT, ntT, pm_col, nb_row]
    param_arrs = [
        params["Wm1_hi"], params["Wm1_hj"], params["Wm1_e"], params["bm1"],
        params["Wm2"], params["bm2"],
        W_heads1, b_heads1,
        Wa1_dq, params["Wa2"], params["ba2"],
        params["Wr1_q"], params["Wr2"], params["br2"],
        params["Wt1_t"], params["Wt2"], params["bt2"],
        params["Wx2"], params["bx2"],
        params["Wf1_h"], params["Wf1_m"], params["bf1"],
        params["Wf2"], params["bf2"],
    ]

    O = params["Wf2"].shape[1]
    D = 4 + 3 + 7 + 7 + O           # packed lane-contiguous output width

    in_specs = ([_data_spec(a.shape[1:]) for a in data]
                + [_param_spec(p.shape) for p in param_arrs])
    out_shape = jax.ShapeDtypeStruct((B, N, D), jnp.float32)
    out_spec = _data_spec((N, D))

    packed = pl.pallas_call(
        _egnn_kernel,
        grid=(B,),
        in_specs=in_specs,
        out_specs=out_spec,
        out_shape=out_shape,
        compiler_params=pltpu.CompilerParams(
            dimension_semantics=("parallel",),      # batch axis is independent
            vmem_limit_bytes=48 * 1024 * 1024,
        ),
    )(*data, *param_arrs)

    upd_q = packed[..., 0:4]
    upd_x = packed[..., 4:7]
    new_sin = packed[..., 7:14]
    new_cos = packed[..., 14:21]
    o = packed[..., 21:]
    upd_torsions = jnp.stack([new_sin, new_cos], axis=-1)
    return (upd_q, upd_x), upd_torsions, o


if __name__ == "__main__":
    B, N, P = 2, 8, 8
    H, E, M, O = 16, 8, 16, 16

    root = jax.random.PRNGKey(0)
    keys = jax.random.split(root, 12)

    def unit_quats(k, shape):
        q = jax.random.normal(k, shape, jnp.float32)
        return q / jnp.linalg.norm(q, axis=-1, keepdims=True)

    pep_quats = unit_quats(keys[0], (B, N, 4))
    pep_trans = jax.random.normal(keys[1], (B, N, 3), jnp.float32)
    pocket_quats = unit_quats(keys[2], (B, P, 4))
    pocket_trans = jax.random.normal(keys[3], (B, P, 3), jnp.float32)
    angles = jax.random.uniform(keys[4], (B, N, 7), jnp.float32,
                                minval=0.0, maxval=2.0 * math.pi)
    torsions = jnp.stack([jnp.sin(angles), jnp.cos(angles)], axis=-1)
    pep_h = jax.random.normal(keys[5], (B, N, H), jnp.float32)
    pocket_h = jax.random.normal(keys[6], (B, P, H), jnp.float32)
    pep_e = jax.random.normal(keys[7], (B, N, N, E), jnp.float32)

    pep_mask = jnp.ones((B, N), dtype=bool).at[0, -1].set(False)
    pocket_mask = jnp.ones((B, P), dtype=bool).at[1, -1].set(False)

    params = init_params(keys[8], H, E, M, O)

    (upd_q, upd_x), upd_torsions, o = egnn_layer_forward(
        params, pep_quats, pep_trans, torsions, pep_h, pep_e, pep_mask,
        pocket_h, pocket_quats, pocket_trans, pocket_mask)

    jax.block_until_ready((upd_q, upd_x, upd_torsions, o))
    assert upd_q.shape == (B, N, 4)
    assert upd_x.shape == (B, N, 3)
    assert upd_torsions.shape == (B, N, 7, 2)
    assert o.shape == (B, N, O)
    print("KERNEL_OK")
</pallas_src>

<mosaic_0001>
module attributes {stable_mosaic.version = 11 : i64} {
  func.func @_egnn_kernel(%arg0: i32, %arg1: memref<1x8x4xf32, #tpu.memory_space<vmem>>, %arg2: memref<1x8x3xf32, #tpu.memory_space<vmem>>, %arg3: memref<1x8x7xf32, #tpu.memory_space<vmem>>, %arg4: memref<1x8x7xf32, #tpu.memory_space<vmem>>, %arg5: memref<1x8x14xf32, #tpu.memory_space<vmem>>, %arg6: memref<1x8x16xf32, #tpu.memory_space<vmem>>, %arg7: memref<1x8x8x8xf32, #tpu.memory_space<vmem>>, %arg8: memref<1x16x16xf32, #tpu.memory_space<vmem>>, %arg9: memref<1x4x16xf32, #tpu.memory_space<vmem>>, %arg10: memref<1x3x16xf32, #tpu.memory_space<vmem>>, %arg11: memref<1x8x1xf32, #tpu.memory_space<vmem>>, %arg12: memref<1x1x16xf32, #tpu.memory_space<vmem>>, %arg13: memref<16x64xf32, #tpu.memory_space<vmem>>, %arg14: memref<16x64xf32, #tpu.memory_space<vmem>>, %arg15: memref<8x64xf32, #tpu.memory_space<vmem>>, %arg16: memref<1x64xf32, #tpu.memory_space<vmem>>, %arg17: memref<64x16xf32, #tpu.memory_space<vmem>>, %arg18: memref<1x16xf32, #tpu.memory_space<vmem>>, %arg19: memref<16x256xf32, #tpu.memory_space<vmem>>, %arg20: memref<1x256xf32, #tpu.memory_space<vmem>>, %arg21: memref<2x64xf32, #tpu.memory_space<vmem>>, %arg22: memref<64x1xf32, #tpu.memory_space<vmem>>, %arg23: memref<1x1xf32, #tpu.memory_space<vmem>>, %arg24: memref<4x64xf32, #tpu.memory_space<vmem>>, %arg25: memref<64x4xf32, #tpu.memory_space<vmem>>, %arg26: memref<1x4xf32, #tpu.memory_space<vmem>>, %arg27: memref<14x64xf32, #tpu.memory_space<vmem>>, %arg28: memref<64x7xf32, #tpu.memory_space<vmem>>, %arg29: memref<1x7xf32, #tpu.memory_space<vmem>>, %arg30: memref<64x1xf32, #tpu.memory_space<vmem>>, %arg31: memref<1x1xf32, #tpu.memory_space<vmem>>, %arg32: memref<16x64xf32, #tpu.memory_space<vmem>>, %arg33: memref<16x64xf32, #tpu.memory_space<vmem>>, %arg34: memref<1x64xf32, #tpu.memory_space<vmem>>, %arg35: memref<64x16xf32, #tpu.memory_space<vmem>>, %arg36: memref<1x16xf32, #tpu.memory_space<vmem>>, %arg37: memref<1x8x37xf32, #tpu.memory_space<vmem>>) attributes {dimension_semantics = [#tpu.dimension_semantics<parallel>], iteration_bounds = array<i64: 2>, scalar_prefetch = 0 : i64, scratch_operands = 0 : i64, tpu.core_type = #tpu.core_type<tc>, window_params = [{transform_indices = @transform_0, window_bounds = array<i64: 1, 8, 4>}, {transform_indices = @transform_1, window_bounds = array<i64: 1, 8, 3>}, {transform_indices = @transform_2, window_bounds = array<i64: 1, 8, 7>}, {transform_indices = @transform_3, window_bounds = array<i64: 1, 8, 7>}, {transform_indices = @transform_4, window_bounds = array<i64: 1, 8, 14>}, {transform_indices = @transform_5, window_bounds = array<i64: 1, 8, 16>}, {transform_indices = @transform_6, window_bounds = array<i64: 1, 8, 8, 8>}, {transform_indices = @transform_7, window_bounds = array<i64: 1, 16, 16>}, {transform_indices = @transform_8, window_bounds = array<i64: 1, 4, 16>}, {transform_indices = @transform_9, window_bounds = array<i64: 1, 3, 16>}, {transform_indices = @transform_10, window_bounds = array<i64: 1, 8, 1>}, {transform_indices = @transform_11, window_bounds = array<i64: 1, 1, 16>}, {pipeline_mode = #tpu.pipeline_mode<synchronous>, transform_indices = @transform_12, window_bounds = array<i64: 16, 64>}, {pipeline_mode = #tpu.pipeline_mode<synchronous>, transform_indices = @transform_13, window_bounds = array<i64: 16, 64>}, {pipeline_mode = #tpu.pipeline_mode<synchronous>, transform_indices = @transform_14, window_bounds = array<i64: 8, 64>}, {pipeline_mode = #tpu.pipeline_mode<synchronous>, transform_indices = @transform_15, window_bounds = array<i64: 1, 64>}, {pipeline_mode = #tpu.pipeline_mode<synchronous>, transform_indices = @transform_16, window_bounds = array<i64: 64, 16>}, {pipeline_mode = #tpu.pipeline_mode<synchronous>, transform_indices = @transform_17, window_bounds = array<i64: 1, 16>}, {pipeline_mode = #tpu.pipeline_mode<synchronous>, transform_indices = @transform_18, window_bounds = array<i64: 16, 256>}, {pipeline_mode = #tpu.pipeline_mode<synchronous>, transform_indices = @transform_19, window_bounds = array<i64: 1, 256>}, {pipeline_mode = #tpu.pipeline_mode<synchronous>, transform_indices = @transform_20, window_bounds = array<i64: 2, 64>}, {pipeline_mode = #tpu.pipeline_mode<synchronous>, transform_indices = @transform_21, window_bounds = array<i64: 64, 1>}, {pipeline_mode = #tpu.pipeline_mode<synchronous>, transform_indices = @transform_22, window_bounds = array<i64: 1, 1>}, {pipeline_mode = #tpu.pipeline_mode<synchronous>, transform_indices = @transform_23, window_bounds = array<i64: 4, 64>}, {pipeline_mode = #tpu.pipeline_mode<synchronous>, transform_indices = @transform_24, window_bounds = array<i64: 64, 4>}, {pipeline_mode = #tpu.pipeline_mode<synchronous>, transform_indices = @transform_25, window_bounds = array<i64: 1, 4>}, {pipeline_mode = #tpu.pipeline_mode<synchronous>, transform_indices = @transform_26, window_bounds = array<i64: 14, 64>}, {pipeline_mode = #tpu.pipeline_mode<synchronous>, transform_indices = @transform_27, window_bounds = array<i64: 64, 7>}, {pipeline_mode = #tpu.pipeline_mode<synchronous>, transform_indices = @transform_28, window_bounds = array<i64: 1, 7>}, {pipeline_mode = #tpu.pipeline_mode<synchronous>, transform_indices = @transform_29, window_bounds = array<i64: 64, 1>}, {pipeline_mode = #tpu.pipeline_mode<synchronous>, transform_indices = @transform_30, window_bounds = array<i64: 1, 1>}, {pipeline_mode = #tpu.pipeline_mode<synchronous>, transform_indices = @transform_31, window_bounds = array<i64: 16, 64>}, {pipeline_mode = #tpu.pipeline_mode<synchronous>, transform_indices = @transform_32, window_bounds = array<i64: 16, 64>}, {pipeline_mode = #tpu.pipeline_mode<synchronous>, transform_indices = @transform_33, window_bounds = array<i64: 1, 64>}, {pipeline_mode = #tpu.pipeline_mode<synchronous>, transform_indices = @transform_34, window_bounds = array<i64: 64, 16>}, {pipeline_mode = #tpu.pipeline_mode<synchronous>, transform_indices = @transform_35, window_bounds = array<i64: 1, 16>}, {transform_indices = @transform_36, window_bounds = array<i64: 1, 8, 37>}]} {
    %c0 = arith.constant 0 : index
    %c0_0 = arith.constant 0 : index
    %c0_1 = arith.constant 0 : index
    %0 = vector.load %arg1[%c0, %c0_0, %c0_1] : memref<1x8x4xf32, #tpu.memory_space<vmem>>, vector<1x8x4xf32>
    %1 = vector.shape_cast %0 : vector<1x8x4xf32> to vector<8x4xf32>
    %c0_2 = arith.constant 0 : index
    %c0_3 = arith.constant 0 : index
    %c0_4 = arith.constant 0 : index
    %2 = vector.load %arg2[%c0_2, %c0_3, %c0_4] : memref<1x8x3xf32, #tpu.memory_space<vmem>>, vector<1x8x3xf32>
    %3 = vector.shape_cast %2 : vector<1x8x3xf32> to vector<8x3xf32>
    %c0_5 = arith.constant 0 : index
    %c0_6 = arith.constant 0 : index
    %c0_7 = arith.constant 0 : index
    %4 = vector.load %arg3[%c0_5, %c0_6, %c0_7] : memref<1x8x7xf32, #tpu.memory_space<vmem>>, vector<1x8x7xf32>
    %5 = vector.shape_cast %4 : vector<1x8x7xf32> to vector<8x7xf32>
    %c0_8 = arith.constant 0 : index
    %c0_9 = arith.constant 0 : index
    %c0_10 = arith.constant 0 : index
    %6 = vector.load %arg4[%c0_8, %c0_9, %c0_10] : memref<1x8x7xf32, #tpu.memory_space<vmem>>, vector<1x8x7xf32>
    %7 = vector.shape_cast %6 : vector<1x8x7xf32> to vector<8x7xf32>
    %c0_11 = arith.constant 0 : index
    %c0_12 = arith.constant 0 : index
    %c0_13 = arith.constant 0 : index
    %8 = vector.load %arg5[%c0_11, %c0_12, %c0_13] : memref<1x8x14xf32, #tpu.memory_space<vmem>>, vector<1x8x14xf32>
    %9 = vector.shape_cast %8 : vector<1x8x14xf32> to vector<8x14xf32>
    %c0_14 = arith.constant 0 : index
    %c0_15 = arith.constant 0 : index
    %c0_16 = arith.constant 0 : index
    %10 = vector.load %arg6[%c0_14, %c0_15, %c0_16] : memref<1x8x16xf32, #tpu.memory_space<vmem>>, vector<1x8x16xf32>
    %11 = vector.shape_cast %10 : vector<1x8x16xf32> to vector<8x16xf32>
    %c0_17 = arith.constant 0 : index
    %c0_18 = arith.constant 0 : index
    %c0_19 = arith.constant 0 : index
    %c0_20 = arith.constant 0 : index
    %12 = vector.load %arg7[%c0_17, %c0_18, %c0_19, %c0_20] : memref<1x8x8x8xf32, #tpu.memory_space<vmem>>, vector<1x8x8x8xf32>
    %13 = vector.shape_cast %12 : vector<1x8x8x8xf32> to vector<8x8x8xf32>
    %c0_21 = arith.constant 0 : index
    %c0_22 = arith.constant 0 : index
    %c0_23 = arith.constant 0 : index
    %14 = vector.load %arg8[%c0_21, %c0_22, %c0_23] : memref<1x16x16xf32, #tpu.memory_space<vmem>>, vector<1x16x16xf32>
    %15 = vector.shape_cast %14 : vector<1x16x16xf32> to vector<16x16xf32>
    %c0_24 = arith.constant 0 : index
    %c0_25 = arith.constant 0 : index
    %c0_26 = arith.constant 0 : index
    %16 = vector.load %arg9[%c0_24, %c0_25, %c0_26] : memref<1x4x16xf32, #tpu.memory_space<vmem>>, vector<1x4x16xf32>
    %17 = vector.shape_cast %16 : vector<1x4x16xf32> to vector<4x16xf32>
    %c0_27 = arith.constant 0 : index
    %c0_28 = arith.constant 0 : index
    %c0_29 = arith.constant 0 : index
    %18 = vector.load %arg10[%c0_27, %c0_28, %c0_29] : memref<1x3x16xf32, #tpu.memory_space<vmem>>, vector<1x3x16xf32>
    %19 = vector.shape_cast %18 : vector<1x3x16xf32> to vector<3x16xf32>
    %c0_30 = arith.constant 0 : index
    %c0_31 = arith.constant 0 : index
    %c0_32 = arith.constant 0 : index
    %20 = vector.load %arg11[%c0_30, %c0_31, %c0_32] : memref<1x8x1xf32, #tpu.memory_space<vmem>>, vector<1x8x1xf32>
    %21 = vector.shape_cast %20 : vector<1x8x1xf32> to vector<8x1xf32>
    %c0_33 = arith.constant 0 : index
    %c0_34 = arith.constant 0 : index
    %c0_35 = arith.constant 0 : index
    %22 = vector.load %arg12[%c0_33, %c0_34, %c0_35] : memref<1x1x16xf32, #tpu.memory_space<vmem>>, vector<1x1x16xf32>
    %23 = vector.shape_cast %22 : vector<1x1x16xf32> to vector<1x16xf32>
    %24 = tpu.iota {dimensions = array<i32: 0>} : vector<8x16xi32>
    %25 = tpu.iota {dimensions = array<i32: 1>} : vector<8x16xi32>
    %26 = vector.broadcast %21 : vector<8x1xf32> to vector<8x16xf32>
    %27 = vector.broadcast %23 : vector<1x16xf32> to vector<8x16xf32>
    %28 = arith.mulf %26, %27 : vector<8x16xf32>
    %29 = arith.cmpi eq, %24, %25 : vector<8x16xi32>
    %cst = arith.constant 0.000000e+00 : f32
    %30 = vector.broadcast %cst : f32 to vector<8x16xf32>
    %31 = arith.select %29, %30, %28 : vector<8x16xi1>, vector<8x16xf32>
    %c0_36 = arith.constant 0 : index
    %c0_37 = arith.constant 0 : index
    %32 = vector.load %arg13[%c0_36, %c0_37] : memref<16x64xf32, #tpu.memory_space<vmem>>, vector<16x64xf32>
    %cst_38 = arith.constant dense<0.000000e+00> : vector<8x64xf32>
    %33 = tpu.matmul %11, %32, %cst_38 {dimension_numbers = #tpu.dot_dimension_numbers<[1], [0], [0], [1], [0, 0, 1, 1], [], []>} : vector<8x16xf32>, vector<16x64xf32>, vector<8x64xf32> -> vector<8x64xf32>
    %c0_39 = arith.constant 0 : index
    %c0_40 = arith.constant 0 : index
    %34 = vector.load %arg14[%c0_39, %c0_40] : memref<16x64xf32, #tpu.memory_space<vmem>>, vector<16x64xf32>
    %cst_41 = arith.constant dense<0.000000e+00> : vector<16x64xf32>
    %35 = tpu.matmul %15, %34, %cst_41 {dimension_numbers = #tpu.dot_dimension_numbers<[1], [0], [0], [1], [0, 0, 1, 1], [], []>} : vector<16x16xf32>, vector<16x64xf32>, vector<16x64xf32> -> vector<16x64xf32>
    %c0_42 = arith.constant 0 : index
    %c0_43 = arith.constant 0 : index
    %36 = vector.load %arg16[%c0_42, %c0_43] : memref<1x64xf32, #tpu.memory_space<vmem>>, vector<1x64xf32>
    %37 = vector.shape_cast %33 : vector<8x64xf32> to vector<8x1x64xf32>
    %38 = vector.extract_strided_slice %35 {offsets = [0, 0], sizes = [8, 64], strides = [1, 1]} : vector<16x64xf32> to vector<8x64xf32>
    %39 = vector.shape_cast %38 : vector<8x64xf32> to vector<1x8x64xf32>
    %40 = vector.broadcast %37 : vector<8x1x64xf32> to vector<8x8x64xf32>
    %41 = vector.broadcast %39 : vector<1x8x64xf32> to vector<8x8x64xf32>
    %42 = arith.addf %40, %41 : vector<8x8x64xf32>
    %43 = vector.shape_cast %36 : vector<1x64xf32> to vector<1x1x64xf32>
    %44 = vector.broadcast %43 : vector<1x1x64xf32> to vector<8x8x64xf32>
    %45 = arith.addf %42, %44 : vector<8x8x64xf32>
    %46 = vector.shape_cast %13 : vector<8x8x8xf32> to vector<64x8xf32>
    %c0_44 = arith.constant 0 : index
    %c0_45 = arith.constant 0 : index
    %47 = vector.load %arg15[%c0_44, %c0_45] : memref<8x64xf32, #tpu.memory_space<vmem>>, vector<8x64xf32>
    %cst_46 = arith.constant dense<0.000000e+00> : vector<64x64xf32>
    %48 = tpu.matmul %46, %47, %cst_46 {dimension_numbers = #tpu.dot_dimension_numbers<[1], [0], [0], [1], [0, 0, 1, 1], [], []>} : vector<64x8xf32>, vector<8x64xf32>, vector<64x64xf32> -> vector<64x64xf32>
    %49 = vector.shape_cast %48 : vector<64x64xf32> to vector<8x8x64xf32>
    %50 = arith.addf %45, %49 : vector<8x8x64xf32>
    %51 = vector.shape_cast %33 : vector<8x64xf32> to vector<8x1x64xf32>
    %52 = vector.extract_strided_slice %35 {offsets = [8, 0], sizes = [8, 64], strides = [1, 1]} : vector<16x64xf32> to vector<8x64xf32>
    %53 = vector.shape_cast %52 : vector<8x64xf32> to vector<1x8x64xf32>
    %54 = vector.broadcast %51 : vector<8x1x64xf32> to vector<8x8x64xf32>
    %55 = vector.broadcast %53 : vector<1x8x64xf32> to vector<8x8x64xf32>
    %56 = arith.addf %54, %55 : vector<8x8x64xf32>
    %57 = vector.shape_cast %36 : vector<1x64xf32> to vector<1x1x64xf32>
    %58 = vector.broadcast %57 : vector<1x1x64xf32> to vector<8x8x64xf32>
    %59 = arith.addf %56, %58 : vector<8x8x64xf32>
    %60 = tpu.concatenate %50, %59 in 1 : vector<8x8x64xf32>, vector<8x8x64xf32> -> vector<8x16x64xf32>
    %cst_47 = arith.constant 0.000000e+00 : f32
    %61 = vector.broadcast %cst_47 : f32 to vector<8x16x64xf32>
    %62 = arith.maximumf %60, %61 : vector<8x16x64xf32>
    %63 = vector.shape_cast %62 : vector<8x16x64xf32> to vector<128x64xf32>
    %c0_48 = arith.constant 0 : index
    %c0_49 = arith.constant 0 : index
    %64 = vector.load %arg17[%c0_48, %c0_49] : memref<64x16xf32, #tpu.memory_space<vmem>>, vector<64x16xf32>
    %cst_50 = arith.constant dense<0.000000e+00> : vector<128x16xf32>
    %65 = tpu.matmul %63, %64, %cst_50 {dimension_numbers = #tpu.dot_dimension_numbers<[1], [0], [0], [1], [0, 0, 1, 1], [], []>} : vector<128x64xf32>, vector<64x16xf32>, vector<128x16xf32> -> vector<128x16xf32>
    %c0_51 = arith.constant 0 : index
    %c0_52 = arith.constant 0 : index
    %66 = vector.load %arg18[%c0_51, %c0_52] : memref<1x16xf32, #tpu.memory_space<vmem>>, vector<1x16xf32>
    %67 = vector.broadcast %66 : vector<1x16xf32> to vector<128x16xf32>
    %68 = arith.addf %65, %67 : vector<128x16xf32>
    %69 = vector.shape_cast %68 : vector<128x16xf32> to vector<8x16x16xf32>
    %70 = vector.extract_strided_slice %1 {offsets = [0, 0], sizes = [8, 1], strides = [1, 1]} : vector<8x4xf32> to vector<8x1xf32>
    %71 = vector.extract_strided_slice %1 {offsets = [0, 1], sizes = [8, 1], strides = [1, 1]} : vector<8x4xf32> to vector<8x1xf32>
    %72 = vector.extract_strided_slice %1 {offsets = [0, 2], sizes = [8, 1], strides = [1, 1]} : vector<8x4xf32> to vector<8x1xf32>
    %73 = vector.extract_strided_slice %1 {offsets = [0, 3], sizes = [8, 1], strides = [1, 1]} : vector<8x4xf32> to vector<8x1xf32>
    %74 = vector.extract_strided_slice %17 {offsets = [0, 0], sizes = [1, 16], strides = [1, 1]} : vector<4x16xf32> to vector<1x16xf32>
    %75 = vector.extract_strided_slice %17 {offsets = [1, 0], sizes = [1, 16], strides = [1, 1]} : vector<4x16xf32> to vector<1x16xf32>
    %76 = vector.extract_strided_slice %17 {offsets = [2, 0], sizes = [1, 16], strides = [1, 1]} : vector<4x16xf32> to vector<1x16xf32>
    %77 = vector.extract_strided_slice %17 {offsets = [3, 0], sizes = [1, 16], strides = [1, 1]} : vector<4x16xf32> to vector<1x16xf32>
    %78 = vector.extract_strided_slice %3 {offsets = [0, 0], sizes = [8, 1], strides = [1, 1]} : vector<8x3xf32> to vector<8x1xf32>
    %79 = vector.extract_strided_slice %3 {offsets = [0, 1], sizes = [8, 1], strides = [1, 1]} : vector<8x3xf32> to vector<8x1xf32>
    %80 = vector.extract_strided_slice %3 {offsets = [0, 2], sizes = [8, 1], strides = [1, 1]} : vector<8x3xf32> to vector<8x1xf32>
    %81 = vector.extract_strided_slice %19 {offsets = [0, 0], sizes = [1, 16], strides = [1, 1]} : vector<3x16xf32> to vector<1x16xf32>
    %82 = vector.extract_strided_slice %19 {offsets = [1, 0], sizes = [1, 16], strides = [1, 1]} : vector<3x16xf32> to vector<1x16xf32>
    %83 = vector.extract_strided_slice %19 {offsets = [2, 0], sizes = [1, 16], strides = [1, 1]} : vector<3x16xf32> to vector<1x16xf32>
    %84 = vector.broadcast %78 : vector<8x1xf32> to vector<8x16xf32>
    %85 = vector.broadcast %81 : vector<1x16xf32> to vector<8x16xf32>
    %86 = arith.subf %84, %85 : vector<8x16xf32>
    %87 = vector.broadcast %79 : vector<8x1xf32> to vector<8x16xf32>
    %88 = vector.broadcast %82 : vector<1x16xf32> to vector<8x16xf32>
    %89 = arith.subf %87, %88 : vector<8x16xf32>
    %90 = vector.broadcast %80 : vector<8x1xf32> to vector<8x16xf32>
    %91 = vector.broadcast %83 : vector<1x16xf32> to vector<8x16xf32>
    %92 = arith.subf %90, %91 : vector<8x16xf32>
    %93 = arith.mulf %86, %86 : vector<8x16xf32>
    %94 = arith.mulf %89, %89 : vector<8x16xf32>
    %95 = arith.addf %93, %94 : vector<8x16xf32>
    %96 = arith.mulf %92, %92 : vector<8x16xf32>
    %97 = arith.addf %95, %96 : vector<8x16xf32>
    %98 = vector.broadcast %70 : vector<8x1xf32> to vector<8x16xf32>
    %99 = vector.broadcast %74 : vector<1x16xf32> to vector<8x16xf32>
    %100 = arith.mulf %98, %99 : vector<8x16xf32>
    %101 = vector.broadcast %71 : vector<8x1xf32> to vector<8x16xf32>
    %102 = vector.broadcast %75 : vector<1x16xf32> to vector<8x16xf32>
    %103 = arith.mulf %101, %102 : vector<8x16xf32>
    %104 = arith.addf %100, %103 : vector<8x16xf32>
    %105 = vector.broadcast %72 : vector<8x1xf32> to vector<8x16xf32>
    %106 = vector.broadcast %76 : vector<1x16xf32> to vector<8x16xf32>
    %107 = arith.mulf %105, %106 : vector<8x16xf32>
    %108 = arith.addf %104, %107 : vector<8x16xf32>
    %109 = vector.broadcast %73 : vector<8x1xf32> to vector<8x16xf32>
    %110 = vector.broadcast %77 : vector<1x16xf32> to vector<8x16xf32>
    %111 = arith.mulf %109, %110 : vector<8x16xf32>
    %112 = arith.addf %108, %111 : vector<8x16xf32>
    %113 = arith.mulf %112, %112 : vector<8x16xf32>
    %114 = arith.mulf %74, %74 : vector<1x16xf32>
    %115 = arith.mulf %75, %75 : vector<1x16xf32>
    %116 = arith.addf %114, %115 : vector<1x16xf32>
    %117 = arith.mulf %76, %76 : vector<1x16xf32>
    %118 = arith.addf %116, %117 : vector<1x16xf32>
    %119 = arith.mulf %77, %77 : vector<1x16xf32>
    %120 = arith.addf %118, %119 : vector<1x16xf32>
    %cst_53 = arith.constant 1.000000e+00 : f32
    %121 = vector.broadcast %cst_53 : f32 to vector<1x16xf32>
    %122 = arith.divf %121, %120 : vector<1x16xf32>
    %123 = arith.mulf %74, %122 : vector<1x16xf32>
    %cst_54 = arith.constant 0.000000e+00 : f32
    %124 = vector.broadcast %cst_54 : f32 to vector<1x16xf32>
    %125 = arith.subf %124, %75 : vector<1x16xf32>
    %126 = arith.mulf %125, %122 : vector<1x16xf32>
    %cst_55 = arith.constant 0.000000e+00 : f32
    %127 = vector.broadcast %cst_55 : f32 to vector<1x16xf32>
    %128 = arith.subf %127, %76 : vector<1x16xf32>
    %129 = arith.mulf %128, %122 : vector<1x16xf32>
    %cst_56 = arith.constant 0.000000e+00 : f32
    %130 = vector.broadcast %cst_56 : f32 to vector<1x16xf32>
    %131 = arith.subf %130, %77 : vector<1x16xf32>
    %132 = arith.mulf %131, %122 : vector<1x16xf32>
    %133 = vector.broadcast %70 : vector<8x1xf32> to vector<8x16xf32>
    %134 = vector.broadcast %74 : vector<1x16xf32> to vector<8x16xf32>
    %135 = arith.mulf %133, %134 : vector<8x16xf32>
    %136 = vector.broadcast %71 : vector<8x1xf32> to vector<8x16xf32>
    %137 = vector.broadcast %75 : vector<1x16xf32> to vector<8x16xf32>
    %138 = arith.mulf %136, %137 : vector<8x16xf32>
    %139 = arith.subf %135, %138 : vector<8x16xf32>
    %140 = vector.broadcast %72 : vector<8x1xf32> to vector<8x16xf32>
    %141 = vector.broadcast %76 : vector<1x16xf32> to vector<8x16xf32>
    %142 = arith.mulf %140, %141 : vector<8x16xf32>
    %143 = arith.subf %139, %142 : vector<8x16xf32>
    %144 = vector.broadcast %73 : vector<8x1xf32> to vector<8x16xf32>
    %145 = vector.broadcast %77 : vector<1x16xf32> to vector<8x16xf32>
    %146 = arith.mulf %144, %145 : vector<8x16xf32>
    %147 = arith.subf %143, %146 : vector<8x16xf32>
    %148 = vector.broadcast %70 : vector<8x1xf32> to vector<8x16xf32>
    %149 = vector.broadcast %75 : vector<1x16xf32> to vector<8x16xf32>
    %150 = arith.mulf %148, %149 : vector<8x16xf32>
    %151 = vector.broadcast %71 : vector<8x1xf32> to vector<8x16xf32>
    %152 = vector.broadcast %74 : vector<1x16xf32> to vector<8x16xf32>
    %153 = arith.mulf %151, %152 : vector<8x16xf32>
    %154 = arith.addf %150, %153 : vector<8x16xf32>
    %155 = vector.broadcast %72 : vector<8x1xf32> to vector<8x16xf32>
    %156 = vector.broadcast %77 : vector<1x16xf32> to vector<8x16xf32>
    %157 = arith.mulf %155, %156 : vector<8x16xf32>
    %158 = arith.addf %154, %157 : vector<8x16xf32>
    %159 = vector.broadcast %73 : vector<8x1xf32> to vector<8x16xf32>
    %160 = vector.broadcast %76 : vector<1x16xf32> to vector<8x16xf32>
    %161 = arith.mulf %159, %160 : vector<8x16xf32>
    %162 = arith.subf %158, %161 : vector<8x16xf32>
    %163 = vector.broadcast %70 : vector<8x1xf32> to vector<8x16xf32>
    %164 = vector.broadcast %76 : vector<1x16xf32> to vector<8x16xf32>
    %165 = arith.mulf %163, %164 : vector<8x16xf32>
    %166 = vector.broadcast %71 : vector<8x1xf32> to vector<8x16xf32>
    %167 = vector.broadcast %77 : vector<1x16xf32> to vector<8x16xf32>
    %168 = arith.mulf %166, %167 : vector<8x16xf32>
    %169 = arith.subf %165, %168 : vector<8x16xf32>
    %170 = vector.broadcast %72 : vector<8x1xf32> to vector<8x16xf32>
    %171 = vector.broadcast %74 : vector<1x16xf32> to vector<8x16xf32>
    %172 = arith.mulf %170, %171 : vector<8x16xf32>
    %173 = arith.addf %169, %172 : vector<8x16xf32>
    %174 = vector.broadcast %73 : vector<8x1xf32> to vector<8x16xf32>
    %175 = vector.broadcast %75 : vector<1x16xf32> to vector<8x16xf32>
    %176 = arith.mulf %174, %175 : vector<8x16xf32>
    %177 = arith.addf %173, %176 : vector<8x16xf32>
    %178 = vector.broadcast %70 : vector<8x1xf32> to vector<8x16xf32>
    %179 = vector.broadcast %77 : vector<1x16xf32> to vector<8x16xf32>
    %180 = arith.mulf %178, %179 : vector<8x16xf32>
    %181 = vector.broadcast %71 : vector<8x1xf32> to vector<8x16xf32>
    %182 = vector.broadcast %76 : vector<1x16xf32> to vector<8x16xf32>
    %183 = arith.mulf %181, %182 : vector<8x16xf32>
    %184 = arith.addf %180, %183 : vector<8x16xf32>
    %185 = vector.broadcast %72 : vector<8x1xf32> to vector<8x16xf32>
    %186 = vector.broadcast %75 : vector<1x16xf32> to vector<8x16xf32>
    %187 = arith.mulf %185, %186 : vector<8x16xf32>
    %188 = arith.subf %184, %187 : vector<8x16xf32>
    %189 = vector.broadcast %73 : vector<8x1xf32> to vector<8x16xf32>
    %190 = vector.broadcast %74 : vector<1x16xf32> to vector<8x16xf32>
    %191 = arith.mulf %189, %190 : vector<8x16xf32>
    %192 = arith.addf %188, %191 : vector<8x16xf32>
    %193 = vector.broadcast %123 : vector<1x16xf32> to vector<8x16xf32>
    %194 = arith.mulf %193, %147 : vector<8x16xf32>
    %195 = vector.broadcast %126 : vector<1x16xf32> to vector<8x16xf32>
    %196 = arith.mulf %195, %162 : vector<8x16xf32>
    %197 = arith.subf %194, %196 : vector<8x16xf32>
    %198 = vector.broadcast %129 : vector<1x16xf32> to vector<8x16xf32>
    %199 = arith.mulf %198, %177 : vector<8x16xf32>
    %200 = arith.subf %197, %199 : vector<8x16xf32>
    %201 = vector.broadcast %132 : vector<1x16xf32> to vector<8x16xf32>
    %202 = arith.mulf %201, %192 : vector<8x16xf32>
    %203 = arith.subf %200, %202 : vector<8x16xf32>
    %204 = vector.broadcast %123 : vector<1x16xf32> to vector<8x16xf32>
    %205 = arith.mulf %204, %162 : vector<8x16xf32>
    %206 = vector.broadcast %126 : vector<1x16xf32> to vector<8x16xf32>
    %207 = arith.mulf %206, %147 : vector<8x16xf32>
    %208 = arith.addf %205, %207 : vector<8x16xf32>
    %209 = vector.broadcast %129 : vector<1x16xf32> to vector<8x16xf32>
    %210 = arith.mulf %209, %192 : vector<8x16xf32>
    %211 = arith.addf %208, %210 : vector<8x16xf32>
    %212 = vector.broadcast %132 : vector<1x16xf32> to vector<8x16xf32>
    %213 = arith.mulf %212, %177 : vector<8x16xf32>
    %214 = arith.subf %211, %213 : vector<8x16xf32>
    %215 = vector.broadcast %123 : vector<1x16xf32> to vector<8x16xf32>
    %216 = arith.mulf %215, %177 : vector<8x16xf32>
    %217 = vector.broadcast %126 : vector<1x16xf32> to vector<8x16xf32>
    %218 = arith.mulf %217, %192 : vector<8x16xf32>
    %219 = arith.subf %216, %218 : vector<8x16xf32>
    %220 = vector.broadcast %129 : vector<1x16xf32> to vector<8x16xf32>
    %221 = arith.mulf %220, %147 : vector<8x16xf32>
    %222 = arith.addf %219, %221 : vector<8x16xf32>
    %223 = vector.broadcast %132 : vector<1x16xf32> to vector<8x16xf32>
    %224 = arith.mulf %223, %162 : vector<8x16xf32>
    %225 = arith.addf %222, %224 : vector<8x16xf32>
    %226 = vector.broadcast %123 : vector<1x16xf32> to vector<8x16xf32>
    %227 = arith.mulf %226, %192 : vector<8x16xf32>
    %228 = vector.broadcast %126 : vector<1x16xf32> to vector<8x16xf32>
    %229 = arith.mulf %228, %177 : vector<8x16xf32>
    %230 = arith.addf %227, %229 : vector<8x16xf32>
    %231 = vector.broadcast %129 : vector<1x16xf32> to vector<8x16xf32>
    %232 = arith.mulf %231, %162 : vector<8x16xf32>
    %233 = arith.subf %230, %232 : vector<8x16xf32>
    %234 = vector.broadcast %132 : vector<1x16xf32> to vector<8x16xf32>
    %235 = arith.mulf %234, %147 : vector<8x16xf32>
    %236 = arith.addf %233, %235 : vector<8x16xf32>
    %c0_57 = arith.constant 0 : index
    %c0_58 = arith.constant 0 : index
    %237 = vector.load %arg19[%c0_57, %c0_58] : memref<16x256xf32, #tpu.memory_space<vmem>>, vector<16x256xf32>
    %cst_59 = arith.constant dense<0.000000e+00> : vector<128x256xf32>
    %238 = tpu.matmul %68, %237, %cst_59 {dimension_numbers = #tpu.dot_dimension_numbers<[1], [0], [0], [1], [0, 0, 1, 1], [], []>} : vector<128x16xf32>, vector<16x256xf32>, vector<128x256xf32> -> vector<128x256xf32>
    %c0_60 = arith.constant 0 : index
    %c0_61 = arith.constant 0 : index
    %239 = vector.load %arg20[%c0_60, %c0_61] : memref<1x256xf32, #tpu.memory_space<vmem>>, vector<1x256xf32>
    %240 = vector.broadcast %239 : vector<1x256xf32> to vector<128x256xf32>
    %241 = arith.addf %238, %240 : vector<128x256xf32>
    %242 = vector.extract_strided_slice %241 {offsets = [0, 0], sizes = [128, 64], strides = [1, 1]} : vector<128x256xf32> to vector<128x64xf32>
    %243 = vector.extract_strided_slice %241 {offsets = [0, 64], sizes = [128, 64], strides = [1, 1]} : vector<128x256xf32> to vector<128x64xf32>
    %244 = vector.extract_strided_slice %241 {offsets = [0, 128], sizes = [128, 64], strides = [1, 1]} : vector<128x256xf32> to vector<128x64xf32>
    %245 = vector.extract_strided_slice %241 {offsets = [0, 192], sizes = [128, 64], strides = [1, 1]} : vector<128x256xf32> to vector<128x64xf32>
    %cst_62 = arith.constant 0.000000e+00 : f32
    %246 = vector.broadcast %cst_62 : f32 to vector<8x16xf32>
    %247 = arith.subf %246, %97 : vector<8x16xf32>
    %248 = tpu.iota {dimensions = array<i32: 2>} : vector<8x16x2xi32>
    %249 = vector.shape_cast %113 : vector<8x16xf32> to vector<8x16x1xf32>
    %c0_i32 = arith.constant 0 : i32
    %250 = vector.broadcast %c0_i32 : i32 to vector<8x16x2xi32>
    %251 = arith.cmpi eq, %248, %250 : vector<8x16x2xi32>
    %252 = vector.shape_cast %247 : vector<8x16xf32> to vector<8x16x1xf32>
    %253 = vector.shape_cast %252 : vector<8x16x1xf32> to vector<8x16x1xf32>
    %254 = vector.broadcast %253 : vector<8x16x1xf32> to vector<8x16x2xf32>
    %255 = vector.shape_cast %249 : vector<8x16x1xf32> to vector<8x16x1xf32>
    %256 = vector.broadcast %255 : vector<8x16x1xf32> to vector<8x16x2xf32>
    %257 = arith.select %251, %254, %256 : vector<8x16x2xi1>, vector<8x16x2xf32>
    %258 = vector.shape_cast %257 : vector<8x16x2xf32> to vector<128x2xf32>
    %c0_63 = arith.constant 0 : index
    %c0_64 = arith.constant 0 : index
    %259 = vector.load %arg21[%c0_63, %c0_64] : memref<2x64xf32, #tpu.memory_space<vmem>>, vector<2x64xf32>
    %cst_65 = arith.constant dense<0.000000e+00> : vector<128x64xf32>
    %260 = tpu.matmul %258, %259, %cst_65 {dimension_numbers = #tpu.dot_dimension_numbers<[1], [0], [0], [1], [0, 0, 1, 1], [], []>} : vector<128x2xf32>, vector<2x64xf32>, vector<128x64xf32> -> vector<128x64xf32>
    %261 = arith.addf %242, %260 : vector<128x64xf32>
    %cst_66 = arith.constant 0.000000e+00 : f32
    %262 = vector.broadcast %cst_66 : f32 to vector<128x64xf32>
    %263 = arith.maximumf %261, %262 : vector<128x64xf32>
    %c0_67 = arith.constant 0 : index
    %c0_68 = arith.constant 0 : index
    %264 = vector.load %arg22[%c0_67, %c0_68] : memref<64x1xf32, #tpu.memory_space<vmem>>, vector<64x1xf32>
    %cst_69 = arith.constant dense<0.000000e+00> : vector<128x1xf32>
    %265 = tpu.matmul %263, %264, %cst_69 {dimension_numbers = #tpu.dot_dimension_numbers<[1], [0], [0], [1], [0, 0, 1, 1], [], []>} : vector<128x64xf32>, vector<64x1xf32>, vector<128x1xf32> -> vector<128x1xf32>
    %c0_70 = arith.constant 0 : index
    %c0_71 = arith.constant 0 : index
    %266 = vector.load %arg23[%c0_70, %c0_71] : memref<1x1xf32, #tpu.memory_space<vmem>>, vector<1x1xf32>
    %267 = vector.broadcast %266 : vector<1x1xf32> to vector<128x1xf32>
    %268 = arith.addf %265, %267 : vector<128x1xf32>
    %269 = vector.shape_cast %268 : vector<128x1xf32> to vector<8x16x1xf32>
    %cst_72 = arith.constant dense<0.000000e+00> : vector<8x16xf32>
    %270 = vector.multi_reduction <add>, %269, %cst_72 [2] : vector<8x16x1xf32> to vector<8x16xf32>
    %cst_73 = arith.constant 1.000000e+00 : f32
    %271 = vector.broadcast %cst_73 : f32 to vector<8x16xf32>
    %272 = arith.subf %271, %31 : vector<8x16xf32>
    %cst_74 = arith.constant 1.000000e+09 : f32
    %273 = vector.broadcast %cst_74 : f32 to vector<8x16xf32>
    %274 = arith.mulf %272, %273 : vector<8x16xf32>
    %275 = arith.subf %270, %274 : vector<8x16xf32>
    %cst_75 = arith.constant dense<0xFF800000> : vector<8xf32>
    %276 = vector.multi_reduction <maximumf>, %275, %cst_75 [1] : vector<8x16xf32> to vector<8xf32>
    %277 = vector.shape_cast %276 : vector<8xf32> to vector<8x1xf32>
    %278 = vector.broadcast %277 : vector<8x1xf32> to vector<8x16xf32>
    %279 = arith.subf %275, %278 : vector<8x16xf32>
    %280 = math.exp %279 : vector<8x16xf32>
    %cst_76 = arith.constant dense<0.000000e+00> : vector<8xf32>
    %281 = vector.multi_reduction <add>, %280, %cst_76 [1] : vector<8x16xf32> to vector<8xf32>
    %282 = vector.shape_cast %281 : vector<8xf32> to vector<8x1xf32>
    %283 = tpu.reciprocal %282 {approx = true} : vector<8x1xf32> -> vector<8x1xf32>
    %284 = vector.broadcast %283 : vector<8x1xf32> to vector<8x16xf32>
    %285 = arith.mulf %280, %284 : vector<8x16xf32>
    %cst_77 = arith.constant dense<0.000000e+00> : vector<8x16xf32>
    %286 = vector.multi_reduction <add>, %69, %cst_77 [1] : vector<8x16x16xf32> to vector<8x16xf32>
    %c0_78 = arith.constant 0 : index
    %c0_79 = arith.constant 0 : index
    %287 = vector.load %arg32[%c0_78, %c0_79] : memref<16x64xf32, #tpu.memory_space<vmem>>, vector<16x64xf32>
    %cst_80 = arith.constant dense<0.000000e+00> : vector<8x64xf32>
    %288 = tpu.matmul %11, %287, %cst_80 {dimension_numbers = #tpu.dot_dimension_numbers<[1], [0], [0], [1], [0, 0, 1, 1], [], []>} : vector<8x16xf32>, vector<16x64xf32>, vector<8x64xf32> -> vector<8x64xf32>
    %c0_81 = arith.constant 0 : index
    %c0_82 = arith.constant 0 : index
    %289 = vector.load %arg33[%c0_81, %c0_82] : memref<16x64xf32, #tpu.memory_space<vmem>>, vector<16x64xf32>
    %cst_83 = arith.constant dense<0.000000e+00> : vector<8x64xf32>
    %290 = tpu.matmul %286, %289, %cst_83 {dimension_numbers = #tpu.dot_dimension_numbers<[1], [0], [0], [1], [0, 0, 1, 1], [], []>} : vector<8x16xf32>, vector<16x64xf32>, vector<8x64xf32> -> vector<8x64xf32>
    %291 = arith.addf %288, %290 : vector<8x64xf32>
    %c0_84 = arith.constant 0 : index
    %c0_85 = arith.constant 0 : index
    %292 = vector.load %arg34[%c0_84, %c0_85] : memref<1x64xf32, #tpu.memory_space<vmem>>, vector<1x64xf32>
    %293 = vector.broadcast %292 : vector<1x64xf32> to vector<8x64xf32>
    %294 = arith.addf %291, %293 : vector<8x64xf32>
    %cst_86 = arith.constant 0.000000e+00 : f32
    %295 = vector.broadcast %cst_86 : f32 to vector<8x64xf32>
    %296 = arith.maximumf %294, %295 : vector<8x64xf32>
    %c0_87 = arith.constant 0 : index
    %c0_88 = arith.constant 0 : index
    %297 = vector.load %arg35[%c0_87, %c0_88] : memref<64x16xf32, #tpu.memory_space<vmem>>, vector<64x16xf32>
    %cst_89 = arith.constant dense<0.000000e+00> : vector<8x16xf32>
    %298 = tpu.matmul %296, %297, %cst_89 {dimension_numbers = #tpu.dot_dimension_numbers<[1], [0], [0], [1], [0, 0, 1, 1], [], []>} : vector<8x64xf32>, vector<64x16xf32>, vector<8x16xf32> -> vector<8x16xf32>
    %c0_90 = arith.constant 0 : index
    %c0_91 = arith.constant 0 : index
    %299 = vector.load %arg36[%c0_90, %c0_91] : memref<1x16xf32, #tpu.memory_space<vmem>>, vector<1x16xf32>
    %300 = vector.broadcast %299 : vector<1x16xf32> to vector<8x16xf32>
    %301 = arith.addf %298, %300 : vector<8x16xf32>
    %302 = tpu.iota {dimensions = array<i32: 2>} : vector<8x16x4xi32>
    %303 = vector.shape_cast %236 : vector<8x16xf32> to vector<8x16x1xf32>
    %c2_i32 = arith.constant 2 : i32
    %304 = vector.broadcast %c2_i32 : i32 to vector<8x16x4xi32>
    %305 = arith.cmpi eq, %302, %304 : vector<8x16x4xi32>
    %306 = vector.shape_cast %225 : vector<8x16xf32> to vector<8x16x1xf32>
    %307 = vector.shape_cast %306 : vector<8x16x1xf32> to vector<8x16x1xf32>
    %308 = vector.broadcast %307 : vector<8x16x1xf32> to vector<8x16x4xf32>
    %309 = vector.shape_cast %303 : vector<8x16x1xf32> to vector<8x16x1xf32>
    %310 = vector.broadcast %309 : vector<8x16x1xf32> to vector<8x16x4xf32>
    %311 = arith.select %305, %308, %310 : vector<8x16x4xi1>, vector<8x16x4xf32>
    %c1_i32 = arith.constant 1 : i32
    %312 = vector.broadcast %c1_i32 : i32 to vector<8x16x4xi32>
    %313 = arith.cmpi eq, %302, %312 : vector<8x16x4xi32>
    %314 = vector.shape_cast %214 : vector<8x16xf32> to vector<8x16x1xf32>
    %315 = vector.shape_cast %314 : vector<8x16x1xf32> to vector<8x16x1xf32>
    %316 = vector.broadcast %315 : vector<8x16x1xf32> to vector<8x16x4xf32>
    %317 = arith.select %313, %316, %311 : vector<8x16x4xi1>, vector<8x16x4xf32>
    %c0_i32_92 = arith.constant 0 : i32
    %318 = vector.broadcast %c0_i32_92 : i32 to vector<8x16x4xi32>
    %319 = arith.cmpi eq, %302, %318 : vector<8x16x4xi32>
    %320 = vector.shape_cast %203 : vector<8x16xf32> to vector<8x16x1xf32>
    %321 = vector.shape_cast %320 : vector<8x16x1xf32> to vector<8x16x1xf32>
    %322 = vector.broadcast %321 : vector<8x16x1xf32> to vector<8x16x4xf32>
    %323 = arith.select %319, %322, %317 : vector<8x16x4xi1>, vector<8x16x4xf32>
    %324 = vector.shape_cast %323 : vector<8x16x4xf32> to vector<128x4xf32>
    %c0_93 = arith.constant 0 : index
    %c0_94 = arith.constant 0 : index
    %325 = vector.load %arg24[%c0_93, %c0_94] : memref<4x64xf32, #tpu.memory_space<vmem>>, vector<4x64xf32>
    %cst_95 = arith.constant dense<0.000000e+00> : vector<128x64xf32>
    %326 = tpu.matmul %324, %325, %cst_95 {dimension_numbers = #tpu.dot_dimension_numbers<[1], [0], [0], [1], [0, 0, 1, 1], [], []>} : vector<128x4xf32>, vector<4x64xf32>, vector<128x64xf32> -> vector<128x64xf32>
    %327 = arith.addf %243, %326 : vector<128x64xf32>
    %cst_96 = arith.constant 0.000000e+00 : f32
    %328 = vector.broadcast %cst_96 : f32 to vector<128x64xf32>
    %329 = arith.maximumf %327, %328 : vector<128x64xf32>
    %c0_97 = arith.constant 0 : index
    %c0_98 = arith.constant 0 : index
    %330 = vector.load %arg25[%c0_97, %c0_98] : memref<64x4xf32, #tpu.memory_space<vmem>>, vector<64x4xf32>
    %cst_99 = arith.constant dense<0.000000e+00> : vector<128x4xf32>
    %331 = tpu.matmul %329, %330, %cst_99 {dimension_numbers = #tpu.dot_dimension_numbers<[1], [0], [0], [1], [0, 0, 1, 1], [], []>} : vector<128x64xf32>, vector<64x4xf32>, vector<128x4xf32> -> vector<128x4xf32>
    %c0_100 = arith.constant 0 : index
    %c0_101 = arith.constant 0 : index
    %332 = vector.load %arg26[%c0_100, %c0_101] : memref<1x4xf32, #tpu.memory_space<vmem>>, vector<1x4xf32>
    %333 = vector.broadcast %332 : vector<1x4xf32> to vector<128x4xf32>
    %334 = arith.addf %331, %333 : vector<128x4xf32>
    %335 = arith.negf %334 : vector<128x4xf32>
    %336 = math.exp %335 : vector<128x4xf32>
    %cst_102 = arith.constant 1.000000e+00 : f32
    %337 = vector.broadcast %cst_102 : f32 to vector<128x4xf32>
    %338 = arith.addf %337, %336 : vector<128x4xf32>
    %339 = arith.divf %337, %338 : vector<128x4xf32>
    %340 = vector.shape_cast %339 : vector<128x4xf32> to vector<8x16x4xf32>
    %341 = vector.extract_strided_slice %340 {offsets = [0, 0, 0], sizes = [8, 16, 1], strides = [1, 1, 1]} : vector<8x16x4xf32> to vector<8x16x1xf32>
    %cst_103 = arith.constant dense<0.000000e+00> : vector<8x16xf32>
    %342 = vector.multi_reduction <add>, %341, %cst_103 [2] : vector<8x16x1xf32> to vector<8x16xf32>
    %343 = vector.extract_strided_slice %340 {offsets = [0, 0, 1], sizes = [8, 16, 1], strides = [1, 1, 1]} : vector<8x16x4xf32> to vector<8x16x1xf32>
    %cst_104 = arith.constant dense<0.000000e+00> : vector<8x16xf32>
    %344 = vector.multi_reduction <add>, %343, %cst_104 [2] : vector<8x16x1xf32> to vector<8x16xf32>
    %345 = vector.extract_strided_slice %340 {offsets = [0, 0, 2], sizes = [8, 16, 1], strides = [1, 1, 1]} : vector<8x16x4xf32> to vector<8x16x1xf32>
    %cst_105 = arith.constant dense<0.000000e+00> : vector<8x16xf32>
    %346 = vector.multi_reduction <add>, %345, %cst_105 [2] : vector<8x16x1xf32> to vector<8x16xf32>
    %347 = vector.extract_strided_slice %340 {offsets = [0, 0, 3], sizes = [8, 16, 1], strides = [1, 1, 1]} : vector<8x16x4xf32> to vector<8x16x1xf32>
    %cst_106 = arith.constant dense<0.000000e+00> : vector<8x16xf32>
    %348 = vector.multi_reduction <add>, %347, %cst_106 [2] : vector<8x16x1xf32> to vector<8x16xf32>
    %349 = vector.broadcast %123 : vector<1x16xf32> to vector<8x16xf32>
    %350 = arith.mulf %342, %349 : vector<8x16xf32>
    %351 = vector.broadcast %126 : vector<1x16xf32> to vector<8x16xf32>
    %352 = arith.mulf %344, %351 : vector<8x16xf32>
    %353 = arith.subf %350, %352 : vector<8x16xf32>
    %354 = vector.broadcast %129 : vector<1x16xf32> to vector<8x16xf32>
    %355 = arith.mulf %346, %354 : vector<8x16xf32>
    %356 = arith.subf %353, %355 : vector<8x16xf32>
    %357 = vector.broadcast %132 : vector<1x16xf32> to vector<8x16xf32>
    %358 = arith.mulf %348, %357 : vector<8x16xf32>
    %359 = arith.subf %356, %358 : vector<8x16xf32>
    %360 = vector.broadcast %126 : vector<1x16xf32> to vector<8x16xf32>
    %361 = arith.mulf %342, %360 : vector<8x16xf32>
    %362 = vector.broadcast %123 : vector<1x16xf32> to vector<8x16xf32>
    %363 = arith.mulf %344, %362 : vector<8x16xf32>
    %364 = arith.addf %361, %363 : vector<8x16xf32>
    %365 = vector.broadcast %132 : vector<1x16xf32> to vector<8x16xf32>
    %366 = arith.mulf %346, %365 : vector<8x16xf32>
    %367 = arith.addf %364, %366 : vector<8x16xf32>
    %368 = vector.broadcast %129 : vector<1x16xf32> to vector<8x16xf32>
    %369 = arith.mulf %348, %368 : vector<8x16xf32>
    %370 = arith.subf %367, %369 : vector<8x16xf32>
    %371 = vector.broadcast %129 : vector<1x16xf32> to vector<8x16xf32>
    %372 = arith.mulf %342, %371 : vector<8x16xf32>
    %373 = vector.broadcast %132 : vector<1x16xf32> to vector<8x16xf32>
    %374 = arith.mulf %344, %373 : vector<8x16xf32>
    %375 = arith.subf %372, %374 : vector<8x16xf32>
    %376 = vector.broadcast %123 : vector<1x16xf32> to vector<8x16xf32>
    %377 = arith.mulf %346, %376 : vector<8x16xf32>
    %378 = arith.addf %375, %377 : vector<8x16xf32>
    %379 = vector.broadcast %126 : vector<1x16xf32> to vector<8x16xf32>
    %380 = arith.mulf %348, %379 : vector<8x16xf32>
    %381 = arith.addf %378, %380 : vector<8x16xf32>
    %382 = vector.broadcast %132 : vector<1x16xf32> to vector<8x16xf32>
    %383 = arith.mulf %342, %382 : vector<8x16xf32>
    %384 = vector.broadcast %129 : vector<1x16xf32> to vector<8x16xf32>
    %385 = arith.mulf %344, %384 : vector<8x16xf32>
    %386 = arith.addf %383, %385 : vector<8x16xf32>
    %387 = vector.broadcast %126 : vector<1x16xf32> to vector<8x16xf32>
    %388 = arith.mulf %346, %387 : vector<8x16xf32>
    %389 = arith.subf %386, %388 : vector<8x16xf32>
    %390 = vector.broadcast %123 : vector<1x16xf32> to vector<8x16xf32>
    %391 = arith.mulf %348, %390 : vector<8x16xf32>
    %392 = arith.addf %389, %391 : vector<8x16xf32>
    %393 = vector.broadcast %74 : vector<1x16xf32> to vector<8x16xf32>
    %394 = arith.mulf %393, %359 : vector<8x16xf32>
    %395 = vector.broadcast %75 : vector<1x16xf32> to vector<8x16xf32>
    %396 = arith.mulf %395, %370 : vector<8x16xf32>
    %397 = arith.subf %394, %396 : vector<8x16xf32>
    %398 = vector.broadcast %76 : vector<1x16xf32> to vector<8x16xf32>
    %399 = arith.mulf %398, %381 : vector<8x16xf32>
    %400 = arith.subf %397, %399 : vector<8x16xf32>
    %401 = vector.broadcast %77 : vector<1x16xf32> to vector<8x16xf32>
    %402 = arith.mulf %401, %392 : vector<8x16xf32>
    %403 = arith.subf %400, %402 : vector<8x16xf32>
    %404 = vector.broadcast %74 : vector<1x16xf32> to vector<8x16xf32>
    %405 = arith.mulf %404, %370 : vector<8x16xf32>
    %406 = vector.broadcast %75 : vector<1x16xf32> to vector<8x16xf32>
    %407 = arith.mulf %406, %359 : vector<8x16xf32>
    %408 = arith.addf %405, %407 : vector<8x16xf32>
    %409 = vector.broadcast %76 : vector<1x16xf32> to vector<8x16xf32>
    %410 = arith.mulf %409, %392 : vector<8x16xf32>
    %411 = arith.addf %408, %410 : vector<8x16xf32>
    %412 = vector.broadcast %77 : vector<1x16xf32> to vector<8x16xf32>
    %413 = arith.mulf %412, %381 : vector<8x16xf32>
    %414 = arith.subf %411, %413 : vector<8x16xf32>
    %415 = vector.broadcast %74 : vector<1x16xf32> to vector<8x16xf32>
    %416 = arith.mulf %415, %381 : vector<8x16xf32>
    %417 = vector.broadcast %75 : vector<1x16xf32> to vector<8x16xf32>
    %418 = arith.mulf %417, %392 : vector<8x16xf32>
    %419 = arith.subf %416, %418 : vector<8x16xf32>
    %420 = vector.broadcast %76 : vector<1x16xf32> to vector<8x16xf32>
    %421 = arith.mulf %420, %359 : vector<8x16xf32>
    %422 = arith.addf %419, %421 : vector<8x16xf32>
    %423 = vector.broadcast %77 : vector<1x16xf32> to vector<8x16xf32>
    %424 = arith.mulf %423, %370 : vector<8x16xf32>
    %425 = arith.addf %422, %424 : vector<8x16xf32>
    %426 = vector.broadcast %74 : vector<1x16xf32> to vector<8x16xf32>
    %427 = arith.mulf %426, %392 : vector<8x16xf32>
    %428 = vector.broadcast %75 : vector<1x16xf32> to vector<8x16xf32>
    %429 = arith.mulf %428, %381 : vector<8x16xf32>
    %430 = arith.addf %427, %429 : vector<8x16xf32>
    %431 = vector.broadcast %76 : vector<1x16xf32> to vector<8x16xf32>
    %432 = arith.mulf %431, %370 : vector<8x16xf32>
    %433 = arith.subf %430, %432 : vector<8x16xf32>
    %434 = vector.broadcast %77 : vector<1x16xf32> to vector<8x16xf32>
    %435 = arith.mulf %434, %359 : vector<8x16xf32>
    %436 = arith.addf %433, %435 : vector<8x16xf32>
    %437 = arith.mulf %403, %285 : vector<8x16xf32>
    %cst_107 = arith.constant dense<0.000000e+00> : vector<8xf32>
    %438 = vector.multi_reduction <add>, %437, %cst_107 [1] : vector<8x16xf32> to vector<8xf32>
    %439 = vector.shape_cast %438 : vector<8xf32> to vector<8x1xf32>
    %440 = arith.mulf %414, %285 : vector<8x16xf32>
    %cst_108 = arith.constant dense<0.000000e+00> : vector<8xf32>
    %441 = vector.multi_reduction <add>, %440, %cst_108 [1] : vector<8x16xf32> to vector<8xf32>
    %442 = vector.shape_cast %441 : vector<8xf32> to vector<8x1xf32>
    %443 = arith.mulf %425, %285 : vector<8x16xf32>
    %cst_109 = arith.constant dense<0.000000e+00> : vector<8xf32>
    %444 = vector.multi_reduction <add>, %443, %cst_109 [1] : vector<8x16xf32> to vector<8xf32>
    %445 = vector.shape_cast %444 : vector<8xf32> to vector<8x1xf32>
    %446 = arith.mulf %436, %285 : vector<8x16xf32>
    %cst_110 = arith.constant dense<0.000000e+00> : vector<8xf32>
    %447 = vector.multi_reduction <add>, %446, %cst_110 [1] : vector<8x16xf32> to vector<8xf32>
    %448 = vector.shape_cast %447 : vector<8xf32> to vector<8x1xf32>
    %cst_111 = arith.constant dense<0.000000e+00> : vector<8xf32>
    %449 = vector.multi_reduction <add>, %31, %cst_111 [1] : vector<8x16xf32> to vector<8xf32>
    %450 = vector.shape_cast %449 : vector<8xf32> to vector<8x1xf32>
    %cst_112 = arith.constant 0.000000e+00 : f32
    %451 = vector.broadcast %cst_112 : f32 to vector<8x1xf32>
    %452 = arith.cmpf ogt, %450, %451 : vector<8x1xf32>
    %cst_113 = arith.constant 1.000000e+00 : f32
    %453 = vector.broadcast %cst_113 : f32 to vector<8x1xf32>
    %454 = arith.select %452, %439, %453 : vector<8x1xi1>, vector<8x1xf32>
    %cst_114 = arith.constant 0.000000e+00 : f32
    %455 = vector.broadcast %cst_114 : f32 to vector<8x1xf32>
    %456 = arith.select %452, %442, %455 : vector<8x1xi1>, vector<8x1xf32>
    %cst_115 = arith.constant 0.000000e+00 : f32
    %457 = vector.broadcast %cst_115 : f32 to vector<8x1xf32>
    %458 = arith.select %452, %445, %457 : vector<8x1xi1>, vector<8x1xf32>
    %cst_116 = arith.constant 0.000000e+00 : f32
    %459 = vector.broadcast %cst_116 : f32 to vector<8x1xf32>
    %460 = arith.select %452, %448, %459 : vector<8x1xi1>, vector<8x1xf32>
    %461 = arith.mulf %454, %454 : vector<8x1xf32>
    %462 = arith.mulf %456, %456 : vector<8x1xf32>
    %463 = arith.addf %461, %462 : vector<8x1xf32>
    %464 = arith.mulf %458, %458 : vector<8x1xf32>
    %465 = arith.addf %463, %464 : vector<8x1xf32>
    %466 = arith.mulf %460, %460 : vector<8x1xf32>
    %467 = arith.addf %465, %466 : vector<8x1xf32>
    %cst_117 = arith.constant 1.000000e-24 : f32
    %468 = vector.broadcast %cst_117 : f32 to vector<8x1xf32>
    %469 = arith.maximumf %467, %468 : vector<8x1xf32>
    %470 = math.rsqrt %469 : vector<8x1xf32>
    %471 = arith.mulf %454, %470 : vector<8x1xf32>
    %472 = arith.mulf %456, %470 : vector<8x1xf32>
    %473 = arith.mulf %458, %470 : vector<8x1xf32>
    %474 = arith.mulf %460, %470 : vector<8x1xf32>
    %475 = arith.mulf %471, %70 : vector<8x1xf32>
    %476 = arith.mulf %472, %71 : vector<8x1xf32>
    %477 = arith.subf %475, %476 : vector<8x1xf32>
    %478 = arith.mulf %473, %72 : vector<8x1xf32>
    %479 = arith.subf %477, %478 : vector<8x1xf32>
    %480 = arith.mulf %474, %73 : vector<8x1xf32>
    %481 = arith.subf %479, %480 : vector<8x1xf32>
    %482 = arith.mulf %471, %71 : vector<8x1xf32>
    %483 = arith.mulf %472, %70 : vector<8x1xf32>
    %484 = arith.addf %482, %483 : vector<8x1xf32>
    %485 = arith.mulf %473, %73 : vector<8x1xf32>
    %486 = arith.addf %484, %485 : vector<8x1xf32>
    %487 = arith.mulf %474, %72 : vector<8x1xf32>
    %488 = arith.subf %486, %487 : vector<8x1xf32>
    %489 = arith.mulf %471, %72 : vector<8x1xf32>
    %490 = arith.mulf %472, %73 : vector<8x1xf32>
    %491 = arith.subf %489, %490 : vector<8x1xf32>
    %492 = arith.mulf %473, %70 : vector<8x1xf32>
    %493 = arith.addf %491, %492 : vector<8x1xf32>
    %494 = arith.mulf %474, %71 : vector<8x1xf32>
    %495 = arith.addf %493, %494 : vector<8x1xf32>
    %496 = arith.mulf %471, %73 : vector<8x1xf32>
    %497 = arith.mulf %472, %72 : vector<8x1xf32>
    %498 = arith.addf %496, %497 : vector<8x1xf32>
    %499 = arith.mulf %473, %71 : vector<8x1xf32>
    %500 = arith.subf %498, %499 : vector<8x1xf32>
    %501 = arith.mulf %474, %70 : vector<8x1xf32>
    %502 = arith.addf %500, %501 : vector<8x1xf32>
    %503 = arith.mulf %481, %481 : vector<8x1xf32>
    %504 = arith.mulf %488, %488 : vector<8x1xf32>
    %505 = arith.addf %503, %504 : vector<8x1xf32>
    %506 = arith.mulf %495, %495 : vector<8x1xf32>
    %507 = arith.addf %505, %506 : vector<8x1xf32>
    %508 = arith.mulf %502, %502 : vector<8x1xf32>
    %509 = arith.addf %507, %508 : vector<8x1xf32>
    %cst_118 = arith.constant 1.000000e-24 : f32
    %510 = vector.broadcast %cst_118 : f32 to vector<8x1xf32>
    %511 = arith.maximumf %509, %510 : vector<8x1xf32>
    %512 = math.rsqrt %511 : vector<8x1xf32>
    %513 = arith.mulf %481, %512 : vector<8x1xf32>
    %c0_119 = arith.constant 0 : index
    %c0_120 = arith.constant 0 : index
    %c0_121 = arith.constant 0 : index
    %514 = vector.load %arg37[%c0_119, %c0_120, %c0_121] : memref<1x8x37xf32, #tpu.memory_space<vmem>>, vector<1x8x1xf32>
    %515 = vector.shape_cast %514 : vector<1x8x1xf32> to vector<8x1xf32>
    %516 = vector.shape_cast %513 : vector<8x1xf32> to vector<1x8x1xf32>
    tpu.vector_store %arg37[%c0_119, %c0_120, %c0_121], %516 {strides = array<i32>} : memref<1x8x37xf32, #tpu.memory_space<vmem>>, vector<1x8x1xf32>,
    %517 = arith.mulf %488, %512 : vector<8x1xf32>
    %c0_122 = arith.constant 0 : index
    %c0_123 = arith.constant 0 : index
    %c1 = arith.constant 1 : index
    %518 = vector.load %arg37[%c0_122, %c0_123, %c1] : memref<1x8x37xf32, #tpu.memory_space<vmem>>, vector<1x8x1xf32>
    %519 = vector.shape_cast %518 : vector<1x8x1xf32> to vector<8x1xf32>
    %520 = vector.shape_cast %517 : vector<8x1xf32> to vector<1x8x1xf32>
    tpu.vector_store %arg37[%c0_122, %c0_123, %c1], %520 {strides = array<i32>} : memref<1x8x37xf32, #tpu.memory_space<vmem>>, vector<1x8x1xf32>,
    %521 = arith.mulf %495, %512 : vector<8x1xf32>
    %c0_124 = arith.constant 0 : index
    %c0_125 = arith.constant 0 : index
    %c2 = arith.constant 2 : index
    %522 = vector.load %arg37[%c0_124, %c0_125, %c2] : memref<1x8x37xf32, #tpu.memory_space<vmem>>, vector<1x8x1xf32>
    %523 = vector.shape_cast %522 : vector<1x8x1xf32> to vector<8x1xf32>
    %524 = vector.shape_cast %521 : vector<8x1xf32> to vector<1x8x1xf32>
    tpu.vector_store %arg37[%c0_124, %c0_125, %c2], %524 {strides = array<i32>} : memref<1x8x37xf32, #tpu.memory_space<vmem>>, vector<1x8x1xf32>,
    %525 = arith.mulf %502, %512 : vector<8x1xf32>
    %c0_126 = arith.constant 0 : index
    %c0_127 = arith.constant 0 : index
    %c3 = arith.constant 3 : index
    %526 = vector.load %arg37[%c0_126, %c0_127, %c3] : memref<1x8x37xf32, #tpu.memory_space<vmem>>, vector<1x8x1xf32>
    %527 = vector.shape_cast %526 : vector<1x8x1xf32> to vector<8x1xf32>
    %528 = vector.shape_cast %525 : vector<8x1xf32> to vector<1x8x1xf32>
    tpu.vector_store %arg37[%c0_126, %c0_127, %c3], %528 {strides = array<i32>} : memref<1x8x37xf32, #tpu.memory_space<vmem>>, vector<1x8x1xf32>,
    %cst_128 = arith.constant 0.000000e+00 : f32
    %529 = vector.broadcast %cst_128 : f32 to vector<128x64xf32>
    %530 = arith.maximumf %245, %529 : vector<128x64xf32>
    %c0_129 = arith.constant 0 : index
    %c0_130 = arith.constant 0 : index
    %531 = vector.load %arg30[%c0_129, %c0_130] : memref<64x1xf32, #tpu.memory_space<vmem>>, vector<64x1xf32>
    %cst_131 = arith.constant dense<0.000000e+00> : vector<128x1xf32>
    %532 = tpu.matmul %530, %531, %cst_131 {dimension_numbers = #tpu.dot_dimension_numbers<[1], [0], [0], [1], [0, 0, 1, 1], [], []>} : vector<128x64xf32>, vector<64x1xf32>, vector<128x1xf32> -> vector<128x1xf32>
    %c0_132 = arith.constant 0 : index
    %c0_133 = arith.constant 0 : index
    %533 = vector.load %arg31[%c0_132, %c0_133] : memref<1x1xf32, #tpu.memory_space<vmem>>, vector<1x1xf32>
    %534 = vector.broadcast %533 : vector<1x1xf32> to vector<128x1xf32>
    %535 = arith.addf %532, %534 : vector<128x1xf32>
    %536 = vector.shape_cast %535 : vector<128x1xf32> to vector<8x16x1xf32>
    %cst_134 = arith.constant dense<0.000000e+00> : vector<8x16xf32>
    %537 = vector.multi_reduction <add>, %536, %cst_134 [2] : vector<8x16x1xf32> to vector<8x16xf32>
    %538 = arith.mulf %285, %537 : vector<8x16xf32>
    %539 = arith.mulf %538, %86 : vector<8x16xf32>
    %cst_135 = arith.constant dense<0.000000e+00> : vector<8xf32>
    %540 = vector.multi_reduction <add>, %539, %cst_135 [1] : vector<8x16xf32> to vector<8xf32>
    %541 = vector.shape_cast %540 : vector<8xf32> to vector<8x1xf32>
    %542 = arith.addf %78, %541 : vector<8x1xf32>
    %c0_136 = arith.constant 0 : index
    %c0_137 = arith.constant 0 : index
    %c4 = arith.constant 4 : index
    %543 = vector.load %arg37[%c0_136, %c0_137, %c4] : memref<1x8x37xf32, #tpu.memory_space<vmem>>, vector<1x8x1xf32>
    %544 = vector.shape_cast %543 : vector<1x8x1xf32> to vector<8x1xf32>
    %545 = vector.shape_cast %542 : vector<8x1xf32> to vector<1x8x1xf32>
    tpu.vector_store %arg37[%c0_136, %c0_137, %c4], %545 {strides = array<i32>} : memref<1x8x37xf32, #tpu.memory_space<vmem>>, vector<1x8x1xf32>,
    %546 = arith.mulf %538, %89 : vector<8x16xf32>
    %cst_138 = arith.constant dense<0.000000e+00> : vector<8xf32>
    %547 = vector.multi_reduction <add>, %546, %cst_138 [1] : vector<8x16xf32> to vector<8xf32>
    %548 = vector.shape_cast %547 : vector<8xf32> to vector<8x1xf32>
    %549 = arith.addf %79, %548 : vector<8x1xf32>
    %c0_139 = arith.constant 0 : index
    %c0_140 = arith.constant 0 : index
    %c5 = arith.constant 5 : index
    %550 = vector.load %arg37[%c0_139, %c0_140, %c5] : memref<1x8x37xf32, #tpu.memory_space<vmem>>, vector<1x8x1xf32>
    %551 = vector.shape_cast %550 : vector<1x8x1xf32> to vector<8x1xf32>
    %552 = vector.shape_cast %549 : vector<8x1xf32> to vector<1x8x1xf32>
    tpu.vector_store %arg37[%c0_139, %c0_140, %c5], %552 {strides = array<i32>} : memref<1x8x37xf32, #tpu.memory_space<vmem>>, vector<1x8x1xf32>,
    %553 = arith.mulf %538, %92 : vector<8x16xf32>
    %cst_141 = arith.constant dense<0.000000e+00> : vector<8xf32>
    %554 = vector.multi_reduction <add>, %553, %cst_141 [1] : vector<8x16xf32> to vector<8xf32>
    %555 = vector.shape_cast %554 : vector<8xf32> to vector<8x1xf32>
    %556 = arith.addf %80, %555 : vector<8x1xf32>
    %c0_142 = arith.constant 0 : index
    %c0_143 = arith.constant 0 : index
    %c6 = arith.constant 6 : index
    %557 = vector.load %arg37[%c0_142, %c0_143, %c6] : memref<1x8x37xf32, #tpu.memory_space<vmem>>, vector<1x8x1xf32>
    %558 = vector.shape_cast %557 : vector<1x8x1xf32> to vector<8x1xf32>
    %559 = vector.shape_cast %556 : vector<8x1xf32> to vector<1x8x1xf32>
    tpu.vector_store %arg37[%c0_142, %c0_143, %c6], %559 {strides = array<i32>} : memref<1x8x37xf32, #tpu.memory_space<vmem>>, vector<1x8x1xf32>,
    %c0_144 = arith.constant 0 : index
    %c0_145 = arith.constant 0 : index
    %560 = vector.load %arg27[%c0_144, %c0_145] : memref<14x64xf32, #tpu.memory_space<vmem>>, vector<14x64xf32>
    %cst_146 = arith.constant dense<0.000000e+00> : vector<8x64xf32>
    %561 = tpu.matmul %9, %560, %cst_146 {dimension_numbers = #tpu.dot_dimension_numbers<[1], [0], [0], [1], [0, 0, 1, 1], [], []>} : vector<8x14xf32>, vector<14x64xf32>, vector<8x64xf32> -> vector<8x64xf32>
    %562 = vector.shape_cast %244 : vector<128x64xf32> to vector<8x16x64xf32>
    %563 = vector.shape_cast %561 : vector<8x64xf32> to vector<8x1x64xf32>
    %564 = vector.broadcast %563 : vector<8x1x64xf32> to vector<8x16x64xf32>
    %565 = arith.addf %562, %564 : vector<8x16x64xf32>
    %cst_147 = arith.constant 0.000000e+00 : f32
    %566 = vector.broadcast %cst_147 : f32 to vector<8x16x64xf32>
    %567 = arith.maximumf %565, %566 : vector<8x16x64xf32>
    %568 = vector.shape_cast %567 : vector<8x16x64xf32> to vector<128x64xf32>
    %c0_148 = arith.constant 0 : index
    %c0_149 = arith.constant 0 : index
    %569 = vector.load %arg28[%c0_148, %c0_149] : memref<64x7xf32, #tpu.memory_space<vmem>>, vector<64x7xf32>
    %cst_150 = arith.constant dense<0.000000e+00> : vector<128x7xf32>
    %570 = tpu.matmul %568, %569, %cst_150 {dimension_numbers = #tpu.dot_dimension_numbers<[1], [0], [0], [1], [0, 0, 1, 1], [], []>} : vector<128x64xf32>, vector<64x7xf32>, vector<128x7xf32> -> vector<128x7xf32>
    %c0_151 = arith.constant 0 : index
    %c0_152 = arith.constant 0 : index
    %571 = vector.load %arg29[%c0_151, %c0_152] : memref<1x7xf32, #tpu.memory_space<vmem>>, vector<1x7xf32>
    %572 = vector.broadcast %571 : vector<1x7xf32> to vector<128x7xf32>
    %573 = arith.addf %570, %572 : vector<128x7xf32>
    %574 = vector.shape_cast %573 : vector<128x7xf32> to vector<8x16x7xf32>
    %575 = vector.shape_cast %285 : vector<8x16xf32> to vector<8x16x1xf32>
    %576 = vector.broadcast %575 : vector<8x16x1xf32> to vector<8x16x7xf32>
    %577 = arith.mulf %574, %576 : vector<8x16x7xf32>
    %cst_153 = arith.constant dense<0.000000e+00> : vector<8x7xf32>
    %578 = vector.multi_reduction <add>, %577, %cst_153 [1] : vector<8x16x7xf32> to vector<8x7xf32>
    %579 = math.sin %578 : vector<8x7xf32>
    %580 = math.cos %578 : vector<8x7xf32>
    %581 = arith.mulf %579, %7 : vector<8x7xf32>
    %582 = arith.mulf %580, %5 : vector<8x7xf32>
    %583 = arith.addf %581, %582 : vector<8x7xf32>
    %c0_154 = arith.constant 0 : index
    %c0_155 = arith.constant 0 : index
    %c7 = arith.constant 7 : index
    %584 = vector.load %arg37[%c0_154, %c0_155, %c7] : memref<1x8x37xf32, #tpu.memory_space<vmem>>, vector<1x8x7xf32>
    %585 = vector.shape_cast %584 : vector<1x8x7xf32> to vector<8x7xf32>
    %586 = vector.shape_cast %583 : vector<8x7xf32> to vector<1x8x7xf32>
    tpu.vector_store %arg37[%c0_154, %c0_155, %c7], %586 {strides = array<i32>} : memref<1x8x37xf32, #tpu.memory_space<vmem>>, vector<1x8x7xf32>,
    %587 = arith.mulf %580, %7 : vector<8x7xf32>
    %588 = arith.mulf %579, %5 : vector<8x7xf32>
    %589 = arith.subf %587, %588 : vector<8x7xf32>
    %c0_156 = arith.constant 0 : index
    %c0_157 = arith.constant 0 : index
    %c14 = arith.constant 14 : index
    %590 = vector.load %arg37[%c0_156, %c0_157, %c14] : memref<1x8x37xf32, #tpu.memory_space<vmem>>, vector<1x8x7xf32>
    %591 = vector.shape_cast %590 : vector<1x8x7xf32> to vector<8x7xf32>
    %592 = vector.shape_cast %589 : vector<8x7xf32> to vector<1x8x7xf32>
    tpu.vector_store %arg37[%c0_156, %c0_157, %c14], %592 {strides = array<i32>} : memref<1x8x37xf32, #tpu.memory_space<vmem>>, vector<1x8x7xf32>,
    %c0_158 = arith.constant 0 : index
    %c0_159 = arith.constant 0 : index
    %c21 = arith.constant 21 : index
    %593 = vector.load %arg37[%c0_158, %c0_159, %c21] : memref<1x8x37xf32, #tpu.memory_space<vmem>>, vector<1x8x16xf32>
    %594 = vector.shape_cast %593 : vector<1x8x16xf32> to vector<8x16xf32>
    %595 = vector.shape_cast %301 : vector<8x16xf32> to vector<1x8x16xf32>
    tpu.vector_store %arg37[%c0_158, %c0_159, %c21], %595 {strides = array<i32>} : memref<1x8x37xf32, #tpu.memory_space<vmem>>, vector<1x8x16xf32>,
    return
  }
  func.func @transform_0(%arg0: i32) -> (i32, i32, i32) {
    %c0_i32 = arith.constant 0 : i32
    %c0_i32_0 = arith.constant 0 : i32
    %c0_i32_1 = arith.constant 0 : i32
    return %arg0, %c0_i32, %c0_i32_0 : i32, i32, i32
  }
  func.func @transform_1(%arg0: i32) -> (i32, i32, i32) {
    %c0_i32 = arith.constant 0 : i32
    %c0_i32_0 = arith.constant 0 : i32
    %c0_i32_1 = arith.constant 0 : i32
    return %arg0, %c0_i32, %c0_i32_0 : i32, i32, i32
  }
  func.func @transform_2(%arg0: i32) -> (i32, i32, i32) {
    %c0_i32 = arith.constant 0 : i32
    %c0_i32_0 = arith.constant 0 : i32
    %c0_i32_1 = arith.constant 0 : i32
    return %arg0, %c0_i32, %c0_i32_0 : i32, i32, i32
  }
  func.func @transform_3(%arg0: i32) -> (i32, i32, i32) {
    %c0_i32 = arith.constant 0 : i32
    %c0_i32_0 = arith.constant 0 : i32
    %c0_i32_1 = arith.constant 0 : i32
    return %arg0, %c0_i32, %c0_i32_0 : i32, i32, i32
  }
  func.func @transform_4(%arg0: i32) -> (i32, i32, i32) {
    %c0_i32 = arith.constant 0 : i32
    %c0_i32_0 = arith.constant 0 : i32
    %c0_i32_1 = arith.constant 0 : i32
    return %arg0, %c0_i32, %c0_i32_0 : i32, i32, i32
  }
  func.func @transform_5(%arg0: i32) -> (i32, i32, i32) {
    %c0_i32 = arith.constant 0 : i32
    %c0_i32_0 = arith.constant 0 : i32
    %c0_i32_1 = arith.constant 0 : i32
    return %arg0, %c0_i32, %c0_i32_0 : i32, i32, i32
  }
  func.func @transform_6(%arg0: i32) -> (i32, i32, i32, i32) {
    %c0_i32 = arith.constant 0 : i32
    %c0_i32_0 = arith.constant 0 : i32
    %c0_i32_1 = arith.constant 0 : i32
    %c0_i32_2 = arith.constant 0 : i32
    return %arg0, %c0_i32, %c0_i32_0, %c0_i32_1 : i32, i32, i32, i32
  }
  func.func @transform_7(%arg0: i32) -> (i32, i32, i32) {
    %c0_i32 = arith.constant 0 : i32
    %c0_i32_0 = arith.constant 0 : i32
    %c0_i32_1 = arith.constant 0 : i32
    return %arg0, %c0_i32, %c0_i32_0 : i32, i32, i32
  }
  func.func @transform_8(%arg0: i32) -> (i32, i32, i32) {
    %c0_i32 = arith.constant 0 : i32
    %c0_i32_0 = arith.constant 0 : i32
    %c0_i32_1 = arith.constant 0 : i32
    return %arg0, %c0_i32, %c0_i32_0 : i32, i32, i32
  }
  func.func @transform_9(%arg0: i32) -> (i32, i32, i32) {
    %c0_i32 = arith.constant 0 : i32
    %c0_i32_0 = arith.constant 0 : i32
    %c0_i32_1 = arith.constant 0 : i32
    return %arg0, %c0_i32, %c0_i32_0 : i32, i32, i32
  }
  func.func @transform_10(%arg0: i32) -> (i32, i32, i32) {
    %c0_i32 = arith.constant 0 : i32
    %c0_i32_0 = arith.constant 0 : i32
    %c0_i32_1 = arith.constant 0 : i32
    return %arg0, %c0_i32, %c0_i32_0 : i32, i32, i32
  }
  func.func @transform_11(%arg0: i32) -> (i32, i32, i32) {
    %c0_i32 = arith.constant 0 : i32
    %c0_i32_0 = arith.constant 0 : i32
    %c0_i32_1 = arith.constant 0 : i32
    return %arg0, %c0_i32, %c0_i32_0 : i32, i32, i32
  }
  func.func @transform_12(%arg0: i32) -> (i32, i32) {
    %c0_i32 = arith.constant 0 : i32
    %c0_i32_0 = arith.constant 0 : i32
    %c0_i32_1 = arith.constant 0 : i32
    return %c0_i32, %c0_i32_0 : i32, i32
  }
  func.func @transform_13(%arg0: i32) -> (i32, i32) {
    %c0_i32 = arith.constant 0 : i32
    %c0_i32_0 = arith.constant 0 : i32
    %c0_i32_1 = arith.constant 0 : i32
    return %c0_i32, %c0_i32_0 : i32, i32
  }
  func.func @transform_14(%arg0: i32) -> (i32, i32) {
    %c0_i32 = arith.constant 0 : i32
    %c0_i32_0 = arith.constant 0 : i32
    %c0_i32_1 = arith.constant 0 : i32
    return %c0_i32, %c0_i32_0 : i32, i32
  }
  func.func @transform_15(%arg0: i32) -> (i32, i32) {
    %c0_i32 = arith.constant 0 : i32
    %c0_i32_0 = arith.constant 0 : i32
    %c0_i32_1 = arith.constant 0 : i32
    return %c0_i32, %c0_i32_0 : i32, i32
  }
  func.func @transform_16(%arg0: i32) -> (i32, i32) {
    %c0_i32 = arith.constant 0 : i32
    %c0_i32_0 = arith.constant 0 : i32
    %c0_i32_1 = arith.constant 0 : i32
    return %c0_i32, %c0_i32_0 : i32, i32
  }
  func.func @transform_17(%arg0: i32) -> (i32, i32) {
    %c0_i32 = arith.constant 0 : i32
    %c0_i32_0 = arith.constant 0 : i32
    %c0_i32_1 = arith.constant 0 : i32
    return %c0_i32, %c0_i32_0 : i32, i32
  }
  func.func @transform_18(%arg0: i32) -> (i32, i32) {
    %c0_i32 = arith.constant 0 : i32
    %c0_i32_0 = arith.constant 0 : i32
    %c0_i32_1 = arith.constant 0 : i32
    return %c0_i32, %c0_i32_0 : i32, i32
  }
  func.func @transform_19(%arg0: i32) -> (i32, i32) {
    %c0_i32 = arith.constant 0 : i32
    %c0_i32_0 = arith.constant 0 : i32
    %c0_i32_1 = arith.constant 0 : i32
    return %c0_i32, %c0_i32_0 : i32, i32
  }
  func.func @transform_20(%arg0: i32) -> (i32, i32) {
    %c0_i32 = arith.constant 0 : i32
    %c0_i32_0 = arith.constant 0 : i32
    %c0_i32_1 = arith.constant 0 : i32
    return %c0_i32, %c0_i32_0 : i32, i32
  }
  func.func @transform_21(%arg0: i32) -> (i32, i32) {
    %c0_i32 = arith.constant 0 : i32
    %c0_i32_0 = arith.constant 0 : i32
    %c0_i32_1 = arith.constant 0 : i32
    return %c0_i32, %c0_i32_0 : i32, i32
  }
  func.func @transform_22(%arg0: i32) -> (i32, i32) {
    %c0_i32 = arith.constant 0 : i32
    %c0_i32_0 = arith.constant 0 : i32
    %c0_i32_1 = arith.constant 0 : i32
    return %c0_i32, %c0_i32_0 : i32, i32
  }
  func.func @transform_23(%arg0: i32) -> (i32, i32) {
    %c0_i32 = arith.constant 0 : i32
    %c0_i32_0 = arith.constant 0 : i32
    %c0_i32_1 = arith.constant 0 : i32
    return %c0_i32, %c0_i32_0 : i32, i32
  }
  func.func @transform_24(%arg0: i32) -> (i32, i32) {
    %c0_i32 = arith.constant 0 : i32
    %c0_i32_0 = arith.constant 0 : i32
    %c0_i32_1 = arith.constant 0 : i32
    return %c0_i32, %c0_i32_0 : i32, i32
  }
  func.func @transform_25(%arg0: i32) -> (i32, i32) {
    %c0_i32 = arith.constant 0 : i32
    %c0_i32_0 = arith.constant 0 : i32
    %c0_i32_1 = arith.constant 0 : i32
    return %c0_i32, %c0_i32_0 : i32, i32
  }
  func.func @transform_26(%arg0: i32) -> (i32, i32) {
    %c0_i32 = arith.constant 0 : i32
    %c0_i32_0 = arith.constant 0 : i32
    %c0_i32_1 = arith.constant 0 : i32
    return %c0_i32, %c0_i32_0 : i32, i32
  }
  func.func @transform_27(%arg0: i32) -> (i32, i32) {
    %c0_i32 = arith.constant 0 : i32
    %c0_i32_0 = arith.constant 0 : i32
    %c0_i32_1 = arith.constant 0 : i32
    return %c0_i32, %c0_i32_0 : i32, i32
  }
  func.func @transform_28(%arg0: i32) -> (i32, i32) {
    %c0_i32 = arith.constant 0 : i32
    %c0_i32_0 = arith.constant 0 : i32
    %c0_i32_1 = arith.constant 0 : i32
    return %c0_i32, %c0_i32_0 : i32, i32
  }
  func.func @transform_29(%arg0: i32) -> (i32, i32) {
    %c0_i32 = arith.constant 0 : i32
    %c0_i32_0 = arith.constant 0 : i32
    %c0_i32_1 = arith.constant 0 : i32
    return %c0_i32, %c0_i32_0 : i32, i32
  }
  func.func @transform_30(%arg0: i32) -> (i32, i32) {
    %c0_i32 = arith.constant 0 : i32
    %c0_i32_0 = arith.constant 0 : i32
    %c0_i32_1 = arith.constant 0 : i32
    return %c0_i32, %c0_i32_0 : i32, i32
  }
  func.func @transform_31(%arg0: i32) -> (i32, i32) {
    %c0_i32 = arith.constant 0 : i32
    %c0_i32_0 = arith.constant 0 : i32
    %c0_i32_1 = arith.constant 0 : i32
    return %c0_i32, %c0_i32_0 : i32, i32
  }
  func.func @transform_32(%arg0: i32) -> (i32, i32) {
    %c0_i32 = arith.constant 0 : i32
    %c0_i32_0 = arith.constant 0 : i32
    %c0_i32_1 = arith.constant 0 : i32
    return %c0_i32, %c0_i32_0 : i32, i32
  }
  func.func @transform_33(%arg0: i32) -> (i32, i32) {
    %c0_i32 = arith.constant 0 : i32
    %c0_i32_0 = arith.constant 0 : i32
    %c0_i32_1 = arith.constant 0 : i32
    return %c0_i32, %c0_i32_0 : i32, i32
  }
  func.func @transform_34(%arg0: i32) -> (i32, i32) {
    %c0_i32 = arith.constant 0 : i32
    %c0_i32_0 = arith.constant 0 : i32
    %c0_i32_1 = arith.constant 0 : i32
    return %c0_i32, %c0_i32_0 : i32, i32
  }
  func.func @transform_35(%arg0: i32) -> (i32, i32) {
    %c0_i32 = arith.constant 0 : i32
    %c0_i32_0 = arith.constant 0 : i32
    %c0_i32_1 = arith.constant 0 : i32
    return %c0_i32, %c0_i32_0 : i32, i32
  }
  func.func @transform_36(%arg0: i32) -> (i32, i32, i32) {
    %c0_i32 = arith.constant 0 : i32
    %c0_i32_0 = arith.constant 0 : i32
    %c0_i32_1 = arith.constant 0 : i32
    return %arg0, %c0_i32, %c0_i32_0 : i32, i32, i32
  }
}

</mosaic_0001>

<llo_original>
// kernel: tpu_custom_call.1
$region0: #{tpu_custom_call.1}
  #allocation0 [shape = 'u32[]', space=smem, size = 0x4, offset = 0x4, fixed_abs, tag = 'smem constant byte address 0x4 - core index']
  #allocation1 [shape = 'u32[144,128]{1,0:T(1,128)}', space=vmem, size = 0x12000, scoped, tag = 'internal scratch']
  #allocation2 [shape = 'f32[1,1]{1,0:T(1,128)S(1)}', space=vmem, size = 0x200, scoped, tag = 'scoped memory for tpu_custom_call.1']
  #allocation3 [shape = 'f32[1,1]{1,0:T(1,128)S(1)}', space=vmem, size = 0x200, scoped, tag = 'scoped memory for tpu_custom_call.1']
  %s0 = inlined_call_operand.smem [shape: u32[37], index: -1, kind: input, shape index: {}]
  %s1 = sld [smem:[%s0]]
  %s2 = scalar_lea.smem %s0, 1
  %s3 = sld [smem:[%s2]]
  %s4 = scalar_lea.smem %s0, 2
  %s5 = sld [smem:[%s4]]
  %s6 = scalar_lea.smem %s0, 3
  %s7 = sld [smem:[%s6]]
  %s8 = scalar_lea.smem %s0, 4
  %s9 = sld [smem:[%s8]]
  %s10 = scalar_lea.smem %s0, 5
  %s11 = sld [smem:[%s10]]
  %s12 = scalar_lea.smem %s0, 6
  %s13 = sld [smem:[%s12]]
  %s14 = scalar_lea.smem %s0, 7
  %s15 = sld [smem:[%s14]]
  %s16 = scalar_lea.smem %s0, 8
  %s17 = sld [smem:[%s16]]
  %s18 = scalar_lea.smem %s0, 9
  %s19 = sld [smem:[%s18]]
  %s20 = scalar_lea.smem %s0, 10
  %s21 = sld [smem:[%s20]]
  %s22 = scalar_lea.smem %s0, 11
  %s23 = sld [smem:[%s22]]
  %s24 = scalar_lea.smem %s0, 12
  %s25 = sld [smem:[%s24]]
  %s26 = scalar_lea.smem %s0, 13
  %s27 = sld [smem:[%s26]]
  %s28 = scalar_lea.smem %s0, 14
  %s29 = sld [smem:[%s28]]
  %s30 = scalar_lea.smem %s0, 15
  %s31 = sld [smem:[%s30]]
  %s32 = scalar_lea.smem %s0, 16
  %s33 = sld [smem:[%s32]]
  %s34 = scalar_lea.smem %s0, 17
  %s35 = sld [smem:[%s34]]
  %s36 = scalar_lea.smem %s0, 18
  %s37 = sld [smem:[%s36]]
  %s38 = scalar_lea.smem %s0, 19
  %s39 = sld [smem:[%s38]]
  %s40 = scalar_lea.smem %s0, 20
  %s41 = sld [smem:[%s40]]
  %s42 = scalar_lea.smem %s0, 21
  %s43 = sld [smem:[%s42]]
  %s44 = scalar_lea.smem %s0, 22
  %s45 = sld [smem:[%s44]]
  %s46 = scalar_lea.smem %s0, 23
  %s47 = sld [smem:[%s46]]
  %s48 = scalar_lea.smem %s0, 24
  %s49 = sld [smem:[%s48]]
  %s50 = scalar_lea.smem %s0, 25
  %s51 = sld [smem:[%s50]]
  %s52 = scalar_lea.smem %s0, 26
  %s53 = sld [smem:[%s52]]
  %s54 = scalar_lea.smem %s0, 27
  %s55 = sld [smem:[%s54]]
  %s56 = scalar_lea.smem %s0, 28
  %s57 = sld [smem:[%s56]]
  %s58 = scalar_lea.smem %s0, 29
  %s59 = sld [smem:[%s58]]
  %s60 = scalar_lea.smem %s0, 30
  %s61 = sld [smem:[%s60]]
  %s62 = scalar_lea.smem %s0, 31
  %s63 = sld [smem:[%s62]]
  %s64 = scalar_lea.smem %s0, 32
  %s65 = sld [smem:[%s64]]
  %s66 = scalar_lea.smem %s0, 33
  %s67 = sld [smem:[%s66]]
  %s68 = scalar_lea.smem %s0, 34
  %s69 = sld [smem:[%s68]]
  %s70 = scalar_lea.smem %s0, 35
  %s71 = sld [smem:[%s70]]
  %s72 = scalar_lea.smem %s0, 36
  %s73 = sld [smem:[%s72]]
  %s74 = sld [smem:[#allocation0]]
  $region177: #{tpu_custom_call.1} parent=0
    _
  %s76 = ssub.s32 1, %s74
  %s77 = scalar_select 0, %s76, %s74
  %v78 = vstv %s45
  %79 = vst [vmem:[#allocation2] sm:$0x1] %v78
  %v80 = vstv %s61
  %81 = vst [vmem:[#allocation3] sm:$0x1] %v80
  $region1: #{tpu_custom_call.1} parent=0
    #allocation4 [shape = 'u8[8192]{0}', space=vmem, size = 0x2000, scoped, tag = 'output window, operand 0']
    #allocation5 [shape = 's32[2]{0}', space=sflag, size = 0x8, scoped, tag = 'scoped memory for tpu_custom_call.1']
    %82 = vsyncpa [#allocation5], 0
    %s83 = scalar_lea.sflag [#allocation5], 1
    %84 = vsyncpa %s83, 0
    loop: start=0, step=1, limit=4
    $region2: #{tpu_custom_call.1} parent=1 // loop_pre_header
      _
    $region3: #{tpu_custom_call.1} parent=1 // loop_header
      %s86 = sphi 0, %s90
      %p87 = scmp.ge.s32.totalorder %s86, 4
      %s96 = sphi 0, %s98
      %s99 = sphi 0, %s96
      %s100 = sphi 0, %s99
      %s116 = sphi 0, %s100
      %s122 = sphi 0, %s124
      %s125 = sphi 0, %s122
      %s126 = sphi 0, %s125
      %s142 = sphi 0, %s126
      %s148 = sphi 0, %s150
      %s151 = sphi 0, %s148
      %s152 = sphi 0, %s151
      %s168 = sphi 0, %s152
      %s174 = sphi 0, %s176
      %s177 = sphi 0, %s174
      %s178 = sphi 0, %s177
      %s194 = sphi 0, %s178
      %s200 = sphi 0, %s202
      %s203 = sphi 0, %s200
      %s204 = sphi 0, %s203
      %s220 = sphi 0, %s204
      %s226 = sphi 0, %s228
      %s229 = sphi 0, %s226
      %s230 = sphi 0, %s229
      %s246 = sphi 0, %s230
      %s252 = sphi 0, %s254
      %s255 = sphi 0, %s252
      %s256 = sphi 0, %s255
      %s272 = sphi 0, %s256
      %s278 = sphi 0, %s280
      %s281 = sphi 0, %s278
      %s282 = sphi 0, %s281
      %s298 = sphi 0, %s282
      %s304 = sphi 0, %s306
      %s307 = sphi 0, %s304
      %s308 = sphi 0, %s307
      %s324 = sphi 0, %s308
      %s330 = sphi 0, %s332
      %s333 = sphi 0, %s330
      %s334 = sphi 0, %s333
      %s350 = sphi 0, %s334
      %s356 = sphi 0, %s358
      %s359 = sphi 0, %s356
      %s360 = sphi 0, %s359
      %s376 = sphi 0, %s360
      %s382 = sphi 0, %s384
      %s385 = sphi 0, %s382
      %s386 = sphi 0, %s385
      %s402 = sphi 0, %s386
      %s406 = sphi 0, %s406
      %s408 = sphi 0, %s406
      %s409 = sphi 0, %s408
      %s423 = sphi 0, %s409
      %s427 = sphi 0, %s427
      %s429 = sphi 0, %s427
      %s430 = sphi 0, %s429
      %s444 = sphi 0, %s430
      %s448 = sphi 0, %s448
      %s450 = sphi 0, %s448
      %s451 = sphi 0, %s450
      %s465 = sphi 0, %s451
      %s469 = sphi 0, %s469
      %s471 = sphi 0, %s469
      %s472 = sphi 0, %s471
      %s486 = sphi 0, %s472
      %s490 = sphi 0, %s490
      %s492 = sphi 0, %s490
      %s493 = sphi 0, %s492
      %s507 = sphi 0, %s493
      %s511 = sphi 0, %s511
      %s513 = sphi 0, %s511
      %s514 = sphi 0, %s513
      %s528 = sphi 0, %s514
      %s532 = sphi 0, %s532
      %s534 = sphi 0, %s532
      %s535 = sphi 0, %s534
      %s549 = sphi 0, %s535
      %s553 = sphi 0, %s553
      %s555 = sphi 0, %s553
      %s556 = sphi 0, %s555
      %s570 = sphi 0, %s556
      %s574 = sphi 0, %s574
      %s576 = sphi 0, %s574
      %s577 = sphi 0, %s576
      %s591 = sphi 0, %s577
      %s595 = sphi 0, %s595
      %s597 = sphi 0, %s595
      %s598 = sphi 0, %s597
      %s612 = sphi 0, %s598
      %s616 = sphi 0, %s616
      %s618 = sphi 0, %s616
      %s619 = sphi 0, %s618
      %s633 = sphi 0, %s619
      %s637 = sphi 0, %s637
      %s639 = sphi 0, %s637
      %s640 = sphi 0, %s639
      %s654 = sphi 0, %s640
      %s658 = sphi 0, %s658
      %s660 = sphi 0, %s658
      %s661 = sphi 0, %s660
      %s675 = sphi 0, %s661
      %s679 = sphi 0, %s679
      %s681 = sphi 0, %s679
      %s682 = sphi 0, %s681
      %s696 = sphi 0, %s682
      %s700 = sphi 0, %s700
      %s702 = sphi 0, %s700
      %s703 = sphi 0, %s702
      %s717 = sphi 0, %s703
      %s721 = sphi 0, %s721
      %s723 = sphi 0, %s721
      %s724 = sphi 0, %s723
      %s738 = sphi 0, %s724
      %s742 = sphi 0, %s742
      %s744 = sphi 0, %s742
      %s745 = sphi 0, %s744
      %s759 = sphi 0, %s745
      %s763 = sphi 0, %s763
      %s765 = sphi 0, %s763
      %s766 = sphi 0, %s765
      %s780 = sphi 0, %s766
      %s784 = sphi 0, %s784
      %s786 = sphi 0, %s784
      %s787 = sphi 0, %s786
      %s801 = sphi 0, %s787
      %s805 = sphi 0, %s805
      %s807 = sphi 0, %s805
      %s808 = sphi 0, %s807
      %s822 = sphi 0, %s808
      %s826 = sphi 0, %s826
      %s828 = sphi 0, %s826
      %s829 = sphi 0, %s828
      %s843 = sphi 0, %s829
      %s847 = sphi 0, %s847
      %s849 = sphi 0, %s847
      %s850 = sphi 0, %s849
      %s864 = sphi 0, %s850
      %s868 = sphi 0, %s868
      %s870 = sphi 0, %s868
      %s871 = sphi 0, %s870
      %s885 = sphi 0, %s871
      %s889 = sphi 0, %s889
      %s891 = sphi 0, %s889
      %s892 = sphi 0, %s891
      %s906 = sphi 0, %s892
      %s912 = sphi 0, %s914
      %s915 = sphi 0, %s912
      %s916 = sphi 0, %s915
      %s932 = sphi 0, %s916
    $region4: #{tpu_custom_call.1} parent=1 // loop_header_branch
      %89 = sbr.rel (%p87) target = $region8
    $region5: #{tpu_custom_call.1} parent=1 // loop_body
      %s91 = ssub.s32 %s86, 1
      %s92 = ssub.s32 %s86, 2
      %s93 = sadd.s32 %s86, 1
      %s94 = ssub.s32 %s86, %s93
      %p95 = scmp.eq.s32.totalorder %s94, 0
      %s97 = sadd.s32 %s96, 1
      %s98 = scalar_select %p95, %s96, %s97
      %p101 = pneg %p95
      %p102 = scmp.eq.s32.totalorder %s86, 1
      %p103 = por %p101, %p102
      %p104 = scmp.ne.s32.totalorder %s96, %s99
      %p105 = scmp.eq.s32.totalorder %s86, 0
      %p106 = por %p104, %p105
      %p107 = scmp.ne.s32.totalorder %s96, %s99
      %p108 = scmp.eq.s32.totalorder %s91, 1
      %p109 = por %p107, %p108
      %p110 = scmp.ne.s32.totalorder %s99, %s100
      %p111 = scmp.eq.s32.totalorder %s91, 0
      %p112 = por %p110, %p111
      %p113 = scmp.ne.s32.totalorder %s99, %s100
      %p114 = scmp.eq.s32.totalorder %s92, 1
      %p115 = por %p113, %p114
      %p117 = scmp.ne.s32.totalorder %s100, %s116
      %p118 = scmp.eq.s32.totalorder %s92, 0
      %p119 = por %p117, %p118
      %s120 = ssub.s32 %s86, %s93
      %p121 = scmp.eq.s32.totalorder %s120, 0
      %s123 = sadd.s32 %s122, 1
      %s124 = scalar_select %p121, %s122, %s123
      %p127 = pneg %p121
      %p128 = scmp.eq.s32.totalorder %s86, 1
      %p129 = por %p127, %p128
      %p130 = scmp.ne.s32.totalorder %s122, %s125
      %p131 = scmp.eq.s32.totalorder %s86, 0
      %p132 = por %p130, %p131
      %p133 = scmp.ne.s32.totalorder %s122, %s125
      %p134 = scmp.eq.s32.totalorder %s91, 1
      %p135 = por %p133, %p134
      %p136 = scmp.ne.s32.totalorder %s125, %s126
      %p137 = scmp.eq.s32.totalorder %s91, 0
      %p138 = por %p136, %p137
      %p139 = scmp.ne.s32.totalorder %s125, %s126
      %p140 = scmp.eq.s32.totalorder %s92, 1
      %p141 = por %p139, %p140
      %p143 = scmp.ne.s32.totalorder %s126, %s142
      %p144 = scmp.eq.s32.totalorder %s92, 0
      %p145 = por %p143, %p144
      %s146 = ssub.s32 %s86, %s93
      %p147 = scmp.eq.s32.totalorder %s146, 0
      %s149 = sadd.s32 %s148, 1
      %s150 = scalar_select %p147, %s148, %s149
      %p153 = pneg %p147
      %p154 = scmp.eq.s32.totalorder %s86, 1
      %p155 = por %p153, %p154
      %p156 = scmp.ne.s32.totalorder %s148, %s151
      %p157 = scmp.eq.s32.totalorder %s86, 0
      %p158 = por %p156, %p157
      %p159 = scmp.ne.s32.totalorder %s148, %s151
      %p160 = scmp.eq.s32.totalorder %s91, 1
      %p161 = por %p159, %p160
      %p162 = scmp.ne.s32.totalorder %s151, %s152
      %p163 = scmp.eq.s32.totalorder %s91, 0
      %p164 = por %p162, %p163
      %p165 = scmp.ne.s32.totalorder %s151, %s152
      %p166 = scmp.eq.s32.totalorder %s92, 1
      %p167 = por %p165, %p166
      %p169 = scmp.ne.s32.totalorder %s152, %s168
      %p170 = scmp.eq.s32.totalorder %s92, 0
      %p171 = por %p169, %p170
      %s172 = ssub.s32 %s86, %s93
      %p173 = scmp.eq.s32.totalorder %s172, 0
      %s175 = sadd.s32 %s174, 1
      %s176 = scalar_select %p173, %s174, %s175
      %p179 = pneg %p173
      %p180 = scmp.eq.s32.totalorder %s86, 1
      %p181 = por %p179, %p180
      %p182 = scmp.ne.s32.totalorder %s174, %s177
      %p183 = scmp.eq.s32.totalorder %s86, 0
      %p184 = por %p182, %p183
      %p185 = scmp.ne.s32.totalorder %s174, %s177
      %p186 = scmp.eq.s32.totalorder %s91, 1
      %p187 = por %p185, %p186
      %p188 = scmp.ne.s32.totalorder %s177, %s178
      %p189 = scmp.eq.s32.totalorder %s91, 0
      %p190 = por %p188, %p189
      %p191 = scmp.ne.s32.totalorder %s177, %s178
      %p192 = scmp.eq.s32.totalorder %s92, 1
      %p193 = por %p191, %p192
      %p195 = scmp.ne.s32.totalorder %s178, %s194
      %p196 = scmp.eq.s32.totalorder %s92, 0
      %p197 = por %p195, %p196
      %s198 = ssub.s32 %s86, %s93
      %p199 = scmp.eq.s32.totalorder %s198, 0
      %s201 = sadd.s32 %s200, 1
      %s202 = scalar_select %p199, %s200, %s201
      %p205 = pneg %p199
      %p206 = scmp.eq.s32.totalorder %s86, 1
      %p207 = por %p205, %p206
      %p208 = scmp.ne.s32.totalorder %s200, %s203
      %p209 = scmp.eq.s32.totalorder %s86, 0
      %p210 = por %p208, %p209
      %p211 = scmp.ne.s32.totalorder %s200, %s203
      %p212 = scmp.eq.s32.totalorder %s91, 1
      %p213 = por %p211, %p212
      %p214 = scmp.ne.s32.totalorder %s203, %s204
      %p215 = scmp.eq.s32.totalorder %s91, 0
      %p216 = por %p214, %p215
      %p217 = scmp.ne.s32.totalorder %s203, %s204
      %p218 = scmp.eq.s32.totalorder %s92, 1
      %p219 = por %p217, %p218
      %p221 = scmp.ne.s32.totalorder %s204, %s220
      %p222 = scmp.eq.s32.totalorder %s92, 0
      %p223 = por %p221, %p222
      %s224 = ssub.s32 %s86, %s93
      %p225 = scmp.eq.s32.totalorder %s224, 0
      %s227 = sadd.s32 %s226, 1
      %s228 = scalar_select %p225, %s226, %s227
      %p231 = pneg %p225
      %p232 = scmp.eq.s32.totalorder %s86, 1
      %p233 = por %p231, %p232
      %p234 = scmp.ne.s32.totalorder %s226, %s229
      %p235 = scmp.eq.s32.totalorder %s86, 0
      %p236 = por %p234, %p235
      %p237 = scmp.ne.s32.totalorder %s226, %s229
      %p238 = scmp.eq.s32.totalorder %s91, 1
      %p239 = por %p237, %p238
      %p240 = scmp.ne.s32.totalorder %s229, %s230
      %p241 = scmp.eq.s32.totalorder %s91, 0
      %p242 = por %p240, %p241
      %p243 = scmp.ne.s32.totalorder %s229, %s230
      %p244 = scmp.eq.s32.totalorder %s92, 1
      %p245 = por %p243, %p244
      %p247 = scmp.ne.s32.totalorder %s230, %s246
      %p248 = scmp.eq.s32.totalorder %s92, 0
      %p249 = por %p247, %p248
      %s250 = ssub.s32 %s86, %s93
      %p251 = scmp.eq.s32.totalorder %s250, 0
      %s253 = sadd.s32 %s252, 1
      %s254 = scalar_select %p251, %s252, %s253
      %p257 = pneg %p251
      %p258 = scmp.eq.s32.totalorder %s86, 1
      %p259 = por %p257, %p258
      %p260 = scmp.ne.s32.totalorder %s252, %s255
      %p261 = scmp.eq.s32.totalorder %s86, 0
      %p262 = por %p260, %p261
      %p263 = scmp.ne.s32.totalorder %s252, %s255
      %p264 = scmp.eq.s32.totalorder %s91, 1
      %p265 = por %p263, %p264
      %p266 = scmp.ne.s32.totalorder %s255, %s256
      %p267 = scmp.eq.s32.totalorder %s91, 0
      %p268 = por %p266, %p267
      %p269 = scmp.ne.s32.totalorder %s255, %s256
      %p270 = scmp.eq.s32.totalorder %s92, 1
      %p271 = por %p269, %p270
      %p273 = scmp.ne.s32.totalorder %s256, %s272
      %p274 = scmp.eq.s32.totalorder %s92, 0
      %p275 = por %p273, %p274
      %s276 = ssub.s32 %s86, %s93
      %p277 = scmp.eq.s32.totalorder %s276, 0
      %s279 = sadd.s32 %s278, 1
      %s280 = scalar_select %p277, %s278, %s279
      %p283 = pneg %p277
      %p284 = scmp.eq.s32.totalorder %s86, 1
      %p285 = por %p283, %p284
      %p286 = scmp.ne.s32.totalorder %s278, %s281
      %p287 = scmp.eq.s32.totalorder %s86, 0
      %p288 = por %p286, %p287
      %p289 = scmp.ne.s32.totalorder %s278, %s281
      %p290 = scmp.eq.s32.totalorder %s91, 1
      %p291 = por %p289, %p290
      %p292 = scmp.ne.s32.totalorder %s281, %s282
      %p293 = scmp.eq.s32.totalorder %s91, 0
      %p294 = por %p292, %p293
      %p295 = scmp.ne.s32.totalorder %s281, %s282
      %p296 = scmp.eq.s32.totalorder %s92, 1
      %p297 = por %p295, %p296
      %p299 = scmp.ne.s32.totalorder %s282, %s298
      %p300 = scmp.eq.s32.totalorder %s92, 0
      %p301 = por %p299, %p300
      %s302 = ssub.s32 %s86, %s93
      %p303 = scmp.eq.s32.totalorder %s302, 0
      %s305 = sadd.s32 %s304, 1
      %s306 = scalar_select %p303, %s304, %s305
      %p309 = pneg %p303
      %p310 = scmp.eq.s32.totalorder %s86, 1
      %p311 = por %p309, %p310
      %p312 = scmp.ne.s32.totalorder %s304, %s307
      %p313 = scmp.eq.s32.totalorder %s86, 0
      %p314 = por %p312, %p313
      %p315 = scmp.ne.s32.totalorder %s304, %s307
      %p316 = scmp.eq.s32.totalorder %s91, 1
      %p317 = por %p315, %p316
      %p318 = scmp.ne.s32.totalorder %s307, %s308
      %p319 = scmp.eq.s32.totalorder %s91, 0
      %p320 = por %p318, %p319
      %p321 = scmp.ne.s32.totalorder %s307, %s308
      %p322 = scmp.eq.s32.totalorder %s92, 1
      %p323 = por %p321, %p322
      %p325 = scmp.ne.s32.totalorder %s308, %s324
      %p326 = scmp.eq.s32.totalorder %s92, 0
      %p327 = por %p325, %p326
      %s328 = ssub.s32 %s86, %s93
      %p329 = scmp.eq.s32.totalorder %s328, 0
      %s331 = sadd.s32 %s330, 1
      %s332 = scalar_select %p329, %s330, %s331
      %p335 = pneg %p329
      %p336 = scmp.eq.s32.totalorder %s86, 1
      %p337 = por %p335, %p336
      %p338 = scmp.ne.s32.totalorder %s330, %s333
      %p339 = scmp.eq.s32.totalorder %s86, 0
      %p340 = por %p338, %p339
      %p341 = scmp.ne.s32.totalorder %s330, %s333
      %p342 = scmp.eq.s32.totalorder %s91, 1
      %p343 = por %p341, %p342
      %p344 = scmp.ne.s32.totalorder %s333, %s334
      %p345 = scmp.eq.s32.totalorder %s91, 0
      %p346 = por %p344, %p345
      %p347 = scmp.ne.s32.totalorder %s333, %s334
      %p348 = scmp.eq.s32.totalorder %s92, 1
      %p349 = por %p347, %p348
      %p351 = scmp.ne.s32.totalorder %s334, %s350
      %p352 = scmp.eq.s32.totalorder %s92, 0
      %p353 = por %p351, %p352
      %s354 = ssub.s32 %s86, %s93
      %p355 = scmp.eq.s32.totalorder %s354, 0
      %s357 = sadd.s32 %s356, 1
      %s358 = scalar_select %p355, %s356, %s357
      %p361 = pneg %p355
      %p362 = scmp.eq.s32.totalorder %s86, 1
      %p363 = por %p361, %p362
      %p364 = scmp.ne.s32.totalorder %s356, %s359
      %p365 = scmp.eq.s32.totalorder %s86, 0
      %p366 = por %p364, %p365
      %p367 = scmp.ne.s32.totalorder %s356, %s359
      %p368 = scmp.eq.s32.totalorder %s91, 1
      %p369 = por %p367, %p368
      %p370 = scmp.ne.s32.totalorder %s359, %s360
      %p371 = scmp.eq.s32.totalorder %s91, 0
      %p372 = por %p370, %p371
      %p373 = scmp.ne.s32.totalorder %s359, %s360
      %p374 = scmp.eq.s32.totalorder %s92, 1
      %p375 = por %p373, %p374
      %p377 = scmp.ne.s32.totalorder %s360, %s376
      %p378 = scmp.eq.s32.totalorder %s92, 0
      %p379 = por %p377, %p378
      %s380 = ssub.s32 %s86, %s93
      %p381 = scmp.eq.s32.totalorder %s380, 0
      %s383 = sadd.s32 %s382, 1
      %s384 = scalar_select %p381, %s382, %s383
      %p387 = pneg %p381
      %p388 = scmp.eq.s32.totalorder %s86, 1
      %p389 = por %p387, %p388
      %p390 = scmp.ne.s32.totalorder %s382, %s385
      %p391 = scmp.eq.s32.totalorder %s86, 0
      %p392 = por %p390, %p391
      %p393 = scmp.ne.s32.totalorder %s382, %s385
      %p394 = scmp.eq.s32.totalorder %s91, 1
      %p395 = por %p393, %p394
      %p396 = scmp.ne.s32.totalorder %s385, %s386
      %p397 = scmp.eq.s32.totalorder %s91, 0
      %p398 = por %p396, %p397
      %p399 = scmp.ne.s32.totalorder %s385, %s386
      %p400 = scmp.eq.s32.totalorder %s92, 1
      %p401 = por %p399, %p400
      %p403 = scmp.ne.s32.totalorder %s386, %s402
      %p404 = scmp.eq.s32.totalorder %s92, 0
      %p405 = por %p403, %p404
      %s407 = sadd.s32 %s406, 1
      %p410 = scmp.eq.s32.totalorder %s86, 1
      %p411 = scmp.ne.s32.totalorder %s406, %s408
      %p412 = scmp.eq.s32.totalorder %s86, 0
      %p413 = por %p411, %p412
      %p414 = scmp.ne.s32.totalorder %s406, %s408
      %p415 = scmp.eq.s32.totalorder %s91, 1
      %p416 = por %p414, %p415
      %p417 = scmp.ne.s32.totalorder %s408, %s409
      %p418 = scmp.eq.s32.totalorder %s91, 0
      %p419 = por %p417, %p418
      %p420 = scmp.ne.s32.totalorder %s408, %s409
      %p421 = scmp.eq.s32.totalorder %s92, 1
      %p422 = por %p420, %p421
      %p424 = scmp.ne.s32.totalorder %s409, %s423
      %p425 = scmp.eq.s32.totalorder %s92, 0
      %p426 = por %p424, %p425
      %s428 = sadd.s32 %s427, 1
      %p431 = scmp.eq.s32.totalorder %s86, 1
      %p432 = scmp.ne.s32.totalorder %s427, %s429
      %p433 = scmp.eq.s32.totalorder %s86, 0
      %p434 = por %p432, %p433
      %p435 = scmp.ne.s32.totalorder %s427, %s429
      %p436 = scmp.eq.s32.totalorder %s91, 1
      %p437 = por %p435, %p436
      %p438 = scmp.ne.s32.totalorder %s429, %s430
      %p439 = scmp.eq.s32.totalorder %s91, 0
      %p440 = por %p438, %p439
      %p441 = scmp.ne.s32.totalorder %s429, %s430
      %p442 = scmp.eq.s32.totalorder %s92, 1
      %p443 = por %p441, %p442
      %p445 = scmp.ne.s32.totalorder %s430, %s444
      %p446 = scmp.eq.s32.totalorder %s92, 0
      %p447 = por %p445, %p446
      %s449 = sadd.s32 %s448, 1
      %p452 = scmp.eq.s32.totalorder %s86, 1
      %p453 = scmp.ne.s32.totalorder %s448, %s450
      %p454 = scmp.eq.s32.totalorder %s86, 0
      %p455 = por %p453, %p454
      %p456 = scmp.ne.s32.totalorder %s448, %s450
      %p457 = scmp.eq.s32.totalorder %s91, 1
      %p458 = por %p456, %p457
      %p459 = scmp.ne.s32.totalorder %s450, %s451
      %p460 = scmp.eq.s32.totalorder %s91, 0
      %p461 = por %p459, %p460
      %p462 = scmp.ne.s32.totalorder %s450, %s451
      %p463 = scmp.eq.s32.totalorder %s92, 1
      %p464 = por %p462, %p463
      %p466 = scmp.ne.s32.totalorder %s451, %s465
      %p467 = scmp.eq.s32.totalorder %s92, 0
      %p468 = por %p466, %p467
      %s470 = sadd.s32 %s469, 1
      %p473 = scmp.eq.s32.totalorder %s86, 1
      %p474 = scmp.ne.s32.totalorder %s469, %s471
      %p475 = scmp.eq.s32.totalorder %s86, 0
      %p476 = por %p474, %p475
      %p477 = scmp.ne.s32.totalorder %s469, %s471
      %p478 = scmp.eq.s32.totalorder %s91, 1
      %p479 = por %p477, %p478
      %p480 = scmp.ne.s32.totalorder %s471, %s472
      %p481 = scmp.eq.s32.totalorder %s91, 0
      %p482 = por %p480, %p481
      %p483 = scmp.ne.s32.totalorder %s471, %s472
      %p484 = scmp.eq.s32.totalorder %s92, 1
      %p485 = por %p483, %p484
      %p487 = scmp.ne.s32.totalorder %s472, %s486
      %p488 = scmp.eq.s32.totalorder %s92, 0
      %p489 = por %p487, %p488
      %s491 = sadd.s32 %s490, 1
      %p494 = scmp.eq.s32.totalorder %s86, 1
      %p495 = scmp.ne.s32.totalorder %s490, %s492
      %p496 = scmp.eq.s32.totalorder %s86, 0
      %p497 = por %p495, %p496
      %p498 = scmp.ne.s32.totalorder %s490, %s492
      %p499 = scmp.eq.s32.totalorder %s91, 1
      %p500 = por %p498, %p499
      %p501 = scmp.ne.s32.totalorder %s492, %s493
      %p502 = scmp.eq.s32.totalorder %s91, 0
      %p503 = por %p501, %p502
      %p504 = scmp.ne.s32.totalorder %s492, %s493
      %p505 = scmp.eq.s32.totalorder %s92, 1
      %p506 = por %p504, %p505
      %p508 = scmp.ne.s32.totalorder %s493, %s507
      %p509 = scmp.eq.s32.totalorder %s92, 0
      %p510 = por %p508, %p509
      %s512 = sadd.s32 %s511, 1
      %p515 = scmp.eq.s32.totalorder %s86, 1
      %p516 = scmp.ne.s32.totalorder %s511, %s513
      %p517 = scmp.eq.s32.totalorder %s86, 0
      %p518 = por %p516, %p517
      %p519 = scmp.ne.s32.totalorder %s511, %s513
      %p520 = scmp.eq.s32.totalorder %s91, 1
      %p521 = por %p519, %p520
      %p522 = scmp.ne.s32.totalorder %s513, %s514
      %p523 = scmp.eq.s32.totalorder %s91, 0
      %p524 = por %p522, %p523
      %p525 = scmp.ne.s32.totalorder %s513, %s514
      %p526 = scmp.eq.s32.totalorder %s92, 1
      %p527 = por %p525, %p526
      %p529 = scmp.ne.s32.totalorder %s514, %s528
      %p530 = scmp.eq.s32.totalorder %s92, 0
      %p531 = por %p529, %p530
      %s533 = sadd.s32 %s532, 1
      %p536 = scmp.eq.s32.totalorder %s86, 1
      %p537 = scmp.ne.s32.totalorder %s532, %s534
      %p538 = scmp.eq.s32.totalorder %s86, 0
      %p539 = por %p537, %p538
      %p540 = scmp.ne.s32.totalorder %s532, %s534
      %p541 = scmp.eq.s32.totalorder %s91, 1
      %p542 = por %p540, %p541
      %p543 = scmp.ne.s32.totalorder %s534, %s535
      %p544 = scmp.eq.s32.totalorder %s91, 0
      %p545 = por %p543, %p544
      %p546 = scmp.ne.s32.totalorder %s534, %s535
      %p547 = scmp.eq.s32.totalorder %s92, 1
      %p548 = por %p546, %p547
      %p550 = scmp.ne.s32.totalorder %s535, %s549
      %p551 = scmp.eq.s32.totalorder %s92, 0
      %p552 = por %p550, %p551
      %s554 = sadd.s32 %s553, 1
      %p557 = scmp.eq.s32.totalorder %s86, 1
      %p558 = scmp.ne.s32.totalorder %s553, %s555
      %p559 = scmp.eq.s32.totalorder %s86, 0
      %p560 = por %p558, %p559
      %p561 = scmp.ne.s32.totalorder %s553, %s555
      %p562 = scmp.eq.s32.totalorder %s91, 1
      %p563 = por %p561, %p562
      %p564 = scmp.ne.s32.totalorder %s555, %s556
      %p565 = scmp.eq.s32.totalorder %s91, 0
      %p566 = por %p564, %p565
      %p567 = scmp.ne.s32.totalorder %s555, %s556
      %p568 = scmp.eq.s32.totalorder %s92, 1
      %p569 = por %p567, %p568
      %p571 = scmp.ne.s32.totalorder %s556, %s570
      %p572 = scmp.eq.s32.totalorder %s92, 0
      %p573 = por %p571, %p572
      %s575 = sadd.s32 %s574, 1
      %p578 = scmp.eq.s32.totalorder %s86, 1
      %p579 = scmp.ne.s32.totalorder %s574, %s576
      %p580 = scmp.eq.s32.totalorder %s86, 0
      %p581 = por %p579, %p580
      %p582 = scmp.ne.s32.totalorder %s574, %s576
      %p583 = scmp.eq.s32.totalorder %s91, 1
      %p584 = por %p582, %p583
      %p585 = scmp.ne.s32.totalorder %s576, %s577
      %p586 = scmp.eq.s32.totalorder %s91, 0
      %p587 = por %p585, %p586
      %p588 = scmp.ne.s32.totalorder %s576, %s577
      %p589 = scmp.eq.s32.totalorder %s92, 1
      %p590 = por %p588, %p589
      %p592 = scmp.ne.s32.totalorder %s577, %s591
      %p593 = scmp.eq.s32.totalorder %s92, 0
      %p594 = por %p592, %p593
      %s596 = sadd.s32 %s595, 1
      %p599 = scmp.eq.s32.totalorder %s86, 1
      %p600 = scmp.ne.s32.totalorder %s595, %s597
      %p601 = scmp.eq.s32.totalorder %s86, 0
      %p602 = por %p600, %p601
      %p603 = scmp.ne.s32.totalorder %s595, %s597
      %p604 = scmp.eq.s32.totalorder %s91, 1
      %p605 = por %p603, %p604
      %p606 = scmp.ne.s32.totalorder %s597, %s598
      %p607 = scmp.eq.s32.totalorder %s91, 0
      %p608 = por %p606, %p607
      %p609 = scmp.ne.s32.totalorder %s597, %s598
      %p610 = scmp.eq.s32.totalorder %s92, 1
      %p611 = por %p609, %p610
      %p613 = scmp.ne.s32.totalorder %s598, %s612
      %p614 = scmp.eq.s32.totalorder %s92, 0
      %p615 = por %p613, %p614
      %s617 = sadd.s32 %s616, 1
      %p620 = scmp.eq.s32.totalorder %s86, 1
      %p621 = scmp.ne.s32.totalorder %s616, %s618
      %p622 = scmp.eq.s32.totalorder %s86, 0
      %p623 = por %p621, %p622
      %p624 = scmp.ne.s32.totalorder %s616, %s618
      %p625 = scmp.eq.s32.totalorder %s91, 1
      %p626 = por %p624, %p625
      %p627 = scmp.ne.s32.totalorder %s618, %s619
      %p628 = scmp.eq.s32.totalorder %s91, 0
      %p629 = por %p627, %p628
      %p630 = scmp.ne.s32.totalorder %s618, %s619
      %p631 = scmp.eq.s32.totalorder %s92, 1
      %p632 = por %p630, %p631
      %p634 = scmp.ne.s32.totalorder %s619, %s633
      %p635 = scmp.eq.s32.totalorder %s92, 0
      %p636 = por %p634, %p635
      %s638 = sadd.s32 %s637, 1
      %p641 = scmp.eq.s32.totalorder %s86, 1
      %p642 = scmp.ne.s32.totalorder %s637, %s639
      %p643 = scmp.eq.s32.totalorder %s86, 0
      %p644 = por %p642, %p643
      %p645 = scmp.ne.s32.totalorder %s637, %s639
      %p646 = scmp.eq.s32.totalorder %s91, 1
      %p647 = por %p645, %p646
      %p648 = scmp.ne.s32.totalorder %s639, %s640
      %p649 = scmp.eq.s32.totalorder %s91, 0
      %p650 = por %p648, %p649
      %p651 = scmp.ne.s32.totalorder %s639, %s640
      %p652 = scmp.eq.s32.totalorder %s92, 1
      %p653 = por %p651, %p652
      %p655 = scmp.ne.s32.totalorder %s640, %s654
      %p656 = scmp.eq.s32.totalorder %s92, 0
      %p657 = por %p655, %p656
      %s659 = sadd.s32 %s658, 1
      %p662 = scmp.eq.s32.totalorder %s86, 1
      %p663 = scmp.ne.s32.totalorder %s658, %s660
      %p664 = scmp.eq.s32.totalorder %s86, 0
      %p665 = por %p663, %p664
      %p666 = scmp.ne.s32.totalorder %s658, %s660
      %p667 = scmp.eq.s32.totalorder %s91, 1
      %p668 = por %p666, %p667
      %p669 = scmp.ne.s32.totalorder %s660, %s661
      %p670 = scmp.eq.s32.totalorder %s91, 0
      %p671 = por %p669, %p670
      %p672 = scmp.ne.s32.totalorder %s660, %s661
      %p673 = scmp.eq.s32.totalorder %s92, 1
      %p674 = por %p672, %p673
      %p676 = scmp.ne.s32.totalorder %s661, %s675
      %p677 = scmp.eq.s32.totalorder %s92, 0
      %p678 = por %p676, %p677
      %s680 = sadd.s32 %s679, 1
      %p683 = scmp.eq.s32.totalorder %s86, 1
      %p684 = scmp.ne.s32.totalorder %s679, %s681
      %p685 = scmp.eq.s32.totalorder %s86, 0
      %p686 = por %p684, %p685
      %p687 = scmp.ne.s32.totalorder %s679, %s681
      %p688 = scmp.eq.s32.totalorder %s91, 1
      %p689 = por %p687, %p688
      %p690 = scmp.ne.s32.totalorder %s681, %s682
      %p691 = scmp.eq.s32.totalorder %s91, 0
      %p692 = por %p690, %p691
      %p693 = scmp.ne.s32.totalorder %s681, %s682
      %p694 = scmp.eq.s32.totalorder %s92, 1
      %p695 = por %p693, %p694
      %p697 = scmp.ne.s32.totalorder %s682, %s696
      %p698 = scmp.eq.s32.totalorder %s92, 0
      %p699 = por %p697, %p698
      %s701 = sadd.s32 %s700, 1
      %p704 = scmp.eq.s32.totalorder %s86, 1
      %p705 = scmp.ne.s32.totalorder %s700, %s702
      %p706 = scmp.eq.s32.totalorder %s86, 0
      %p707 = por %p705, %p706
      %p708 = scmp.ne.s32.totalorder %s700, %s702
      %p709 = scmp.eq.s32.totalorder %s91, 1
      %p710 = por %p708, %p709
      %p711 = scmp.ne.s32.totalorder %s702, %s703
      %p712 = scmp.eq.s32.totalorder %s91, 0
      %p713 = por %p711, %p712
      %p714 = scmp.ne.s32.totalorder %s702, %s703
      %p715 = scmp.eq.s32.totalorder %s92, 1
      %p716 = por %p714, %p715
      %p718 = scmp.ne.s32.totalorder %s703, %s717
      %p719 = scmp.eq.s32.totalorder %s92, 0
      %p720 = por %p718, %p719
      %s722 = sadd.s32 %s721, 1
      %p725 = scmp.eq.s32.totalorder %s86, 1
      %p726 = scmp.ne.s32.totalorder %s721, %s723
      %p727 = scmp.eq.s32.totalorder %s86, 0
      %p728 = por %p726, %p727
      %p729 = scmp.ne.s32.totalorder %s721, %s723
      %p730 = scmp.eq.s32.totalorder %s91, 1
      %p731 = por %p729, %p730
      %p732 = scmp.ne.s32.totalorder %s723, %s724
      %p733 = scmp.eq.s32.totalorder %s91, 0
      %p734 = por %p732, %p733
      %p735 = scmp.ne.s32.totalorder %s723, %s724
      %p736 = scmp.eq.s32.totalorder %s92, 1
      %p737 = por %p735, %p736
      %p739 = scmp.ne.s32.totalorder %s724, %s738
      %p740 = scmp.eq.s32.totalorder %s92, 0
      %p741 = por %p739, %p740
      %s743 = sadd.s32 %s742, 1
      %p746 = scmp.eq.s32.totalorder %s86, 1
      %p747 = scmp.ne.s32.totalorder %s742, %s744
      %p748 = scmp.eq.s32.totalorder %s86, 0
      %p749 = por %p747, %p748
      %p750 = scmp.ne.s32.totalorder %s742, %s744
      %p751 = scmp.eq.s32.totalorder %s91, 1
      %p752 = por %p750, %p751
      %p753 = scmp.ne.s32.totalorder %s744, %s745
      %p754 = scmp.eq.s32.totalorder %s91, 0
      %p755 = por %p753, %p754
      %p756 = scmp.ne.s32.totalorder %s744, %s745
      %p757 = scmp.eq.s32.totalorder %s92, 1
      %p758 = por %p756, %p757
      %p760 = scmp.ne.s32.totalorder %s745, %s759
      %p761 = scmp.eq.s32.totalorder %s92, 0
      %p762 = por %p760, %p761
      %s764 = sadd.s32 %s763, 1
      %p767 = scmp.eq.s32.totalorder %s86, 1
      %p768 = scmp.ne.s32.totalorder %s763, %s765
      %p769 = scmp.eq.s32.totalorder %s86, 0
      %p770 = por %p768, %p769
      %p771 = scmp.ne.s32.totalorder %s763, %s765
      %p772 = scmp.eq.s32.totalorder %s91, 1
      %p773 = por %p771, %p772
      %p774 = scmp.ne.s32.totalorder %s765, %s766
      %p775 = scmp.eq.s32.totalorder %s91, 0
      %p776 = por %p774, %p775
      %p777 = scmp.ne.s32.totalorder %s765, %s766
      %p778 = scmp.eq.s32.totalorder %s92, 1
      %p779 = por %p777, %p778
      %p781 = scmp.ne.s32.totalorder %s766, %s780
      %p782 = scmp.eq.s32.totalorder %s92, 0
      %p783 = por %p781, %p782
      %s785 = sadd.s32 %s784, 1
      %p788 = scmp.eq.s32.totalorder %s86, 1
      %p789 = scmp.ne.s32.totalorder %s784, %s786
      %p790 = scmp.eq.s32.totalorder %s86, 0
      %p791 = por %p789, %p790
      %p792 = scmp.ne.s32.totalorder %s784, %s786
      %p793 = scmp.eq.s32.totalorder %s91, 1
      %p794 = por %p792, %p793
      %p795 = scmp.ne.s32.totalorder %s786, %s787
      %p796 = scmp.eq.s32.totalorder %s91, 0
      %p797 = por %p795, %p796
      %p798 = scmp.ne.s32.totalorder %s786, %s787
      %p799 = scmp.eq.s32.totalorder %s92, 1
      %p800 = por %p798, %p799
      %p802 = scmp.ne.s32.totalorder %s787, %s801
      %p803 = scmp.eq.s32.totalorder %s92, 0
      %p804 = por %p802, %p803
      %s806 = sadd.s32 %s805, 1
      %p809 = scmp.eq.s32.totalorder %s86, 1
      %p810 = scmp.ne.s32.totalorder %s805, %s807
      %p811 = scmp.eq.s32.totalorder %s86, 0
      %p812 = por %p810, %p811
      %p813 = scmp.ne.s32.totalorder %s805, %s807
      %p814 = scmp.eq.s32.totalorder %s91, 1
      %p815 = por %p813, %p814
      %p816 = scmp.ne.s32.totalorder %s807, %s808
      %p817 = scmp.eq.s32.totalorder %s91, 0
      %p818 = por %p816, %p817
      %p819 = scmp.ne.s32.totalorder %s807, %s808
      %p820 = scmp.eq.s32.totalorder %s92, 1
      %p821 = por %p819, %p820
      %p823 = scmp.ne.s32.totalorder %s808, %s822
      %p824 = scmp.eq.s32.totalorder %s92, 0
      %p825 = por %p823, %p824
      %s827 = sadd.s32 %s826, 1
      %p830 = scmp.eq.s32.totalorder %s86, 1
      %p831 = scmp.ne.s32.totalorder %s826, %s828
      %p832 = scmp.eq.s32.totalorder %s86, 0
      %p833 = por %p831, %p832
      %p834 = scmp.ne.s32.totalorder %s826, %s828
      %p835 = scmp.eq.s32.totalorder %s91, 1
      %p836 = por %p834, %p835
      %p837 = scmp.ne.s32.totalorder %s828, %s829
      %p838 = scmp.eq.s32.totalorder %s91, 0
      %p839 = por %p837, %p838
      %p840 = scmp.ne.s32.totalorder %s828, %s829
      %p841 = scmp.eq.s32.totalorder %s92, 1
      %p842 = por %p840, %p841
      %p844 = scmp.ne.s32.totalorder %s829, %s843
      %p845 = scmp.eq.s32.totalorder %s92, 0
      %p846 = por %p844, %p845
      %s848 = sadd.s32 %s847, 1
      %p851 = scmp.eq.s32.totalorder %s86, 1
      %p852 = scmp.ne.s32.totalorder %s847, %s849
      %p853 = scmp.eq.s32.totalorder %s86, 0
      %p854 = por %p852, %p853
      %p855 = scmp.ne.s32.totalorder %s847, %s849
      %p856 = scmp.eq.s32.totalorder %s91, 1
      %p857 = por %p855, %p856
      %p858 = scmp.ne.s32.totalorder %s849, %s850
      %p859 = scmp.eq.s32.totalorder %s91, 0
      %p860 = por %p858, %p859
      %p861 = scmp.ne.s32.totalorder %s849, %s850
      %p862 = scmp.eq.s32.totalorder %s92, 1
      %p863 = por %p861, %p862
      %p865 = scmp.ne.s32.totalorder %s850, %s864
      %p866 = scmp.eq.s32.totalorder %s92, 0
      %p867 = por %p865, %p866
      %s869 = sadd.s32 %s868, 1
      %p872 = scmp.eq.s32.totalorder %s86, 1
      %p873 = scmp.ne.s32.totalorder %s868, %s870
      %p874 = scmp.eq.s32.totalorder %s86, 0
      %p875 = por %p873, %p874
      %p876 = scmp.ne.s32.totalorder %s868, %s870
      %p877 = scmp.eq.s32.totalorder %s91, 1
      %p878 = por %p876, %p877
      %p879 = scmp.ne.s32.totalorder %s870, %s871
      %p880 = scmp.eq.s32.totalorder %s91, 0
      %p881 = por %p879, %p880
      %p882 = scmp.ne.s32.totalorder %s870, %s871
      %p883 = scmp.eq.s32.totalorder %s92, 1
      %p884 = por %p882, %p883
      %p886 = scmp.ne.s32.totalorder %s871, %s885
      %p887 = scmp.eq.s32.totalorder %s92, 0
      %p888 = por %p886, %p887
      %s890 = sadd.s32 %s889, 1
      %p893 = scmp.eq.s32.totalorder %s86, 1
      %p894 = scmp.ne.s32.totalorder %s889, %s891
      %p895 = scmp.eq.s32.totalorder %s86, 0
      %p896 = por %p894, %p895
      %p897 = scmp.ne.s32.totalorder %s889, %s891
      %p898 = scmp.eq.s32.totalorder %s91, 1
      %p899 = por %p897, %p898
      %p900 = scmp.ne.s32.totalorder %s891, %s892
      %p901 = scmp.eq.s32.totalorder %s91, 0
      %p902 = por %p900, %p901
      %p903 = scmp.ne.s32.totalorder %s891, %s892
      %p904 = scmp.eq.s32.totalorder %s92, 1
      %p905 = por %p903, %p904
      %p907 = scmp.ne.s32.totalorder %s892, %s906
      %p908 = scmp.eq.s32.totalorder %s92, 0
      %p909 = por %p907, %p908
      %s910 = ssub.s32 %s86, %s93
      %p911 = scmp.eq.s32.totalorder %s910, 0
      %s913 = sadd.s32 %s912, 1
      %s914 = scalar_select %p911, %s912, %s913
      %p917 = pneg %p911
      %p918 = scmp.eq.s32.totalorder %s86, 1
      %p919 = por %p917, %p918
      %p920 = scmp.ne.s32.totalorder %s912, %s915
      %p921 = scmp.eq.s32.totalorder %s86, 0
      %p922 = por %p920, %p921
      %p923 = scmp.ne.s32.totalorder %s912, %s915
      %p924 = scmp.eq.s32.totalorder %s91, 1
      %p925 = por %p923, %p924
      %p926 = scmp.ne.s32.totalorder %s915, %s916
      %p927 = scmp.eq.s32.totalorder %s91, 0
      %p928 = por %p926, %p927
      %p929 = scmp.ne.s32.totalorder %s915, %s916
      %p930 = scmp.eq.s32.totalorder %s92, 1
      %p931 = por %p929, %p930
      %p933 = scmp.ne.s32.totalorder %s916, %s932
      %p934 = scmp.eq.s32.totalorder %s92, 0
      %p935 = por %p933, %p934
      %p936 = scmp.le.s32.totalorder 1, %s86
      %p937 = scmp.lt.s32.totalorder %s86, 3
      %p938 = pnand %p936, %p937
      %p939 = pneg %p938
      // Predicated region
      $region9: #{tpu_custom_call.1} parent=5 // pred_check
        _
      $region10: #{tpu_custom_call.1} parent=5 // pred_check_branch
        %941 = sbr.rel (%p938) target = $region12
      $region11: #{tpu_custom_call.1} parent=5 // pred_region
        %s942 = ssub.s32 %s86, 1
        // Predicated region
        $region13: #{tpu_custom_call.1} parent=11 // pred_check
          %p943 = pneg %p419
        $region14: #{tpu_custom_call.1} parent=11 // pred_check_branch
          %945 = sbr.rel (%p943) target = $region16
        $region15: #{tpu_custom_call.1} parent=11 // pred_region
          _
        $region16: #{tpu_custom_call.1} parent=11 // pred_fallthru
          _
        // Predicated region
        $region17: #{tpu_custom_call.1} parent=11 // pred_check
          %p946 = pneg %p440
        $region18: #{tpu_custom_call.1} parent=11 // pred_check_branch
          %948 = sbr.rel (%p946) target = $region20
        $region19: #{tpu_custom_call.1} parent=11 // pred_region
          _
        $region20: #{tpu_custom_call.1} parent=11 // pred_fallthru
          _
        // Predicated region
        $region21: #{tpu_custom_call.1} parent=11 // pred_check
          %p949 = pneg %p461
        $region22: #{tpu_custom_call.1} parent=11 // pred_check_branch
          %951 = sbr.rel (%p949) target = $region24
        $region23: #{tpu_custom_call.1} parent=11 // pred_region
          _
        $region24: #{tpu_custom_call.1} parent=11 // pred_fallthru
          _
        // Predicated region
        $region25: #{tpu_custom_call.1} parent=11 // pred_check
          %p952 = pneg %p482
        $region26: #{tpu_custom_call.1} parent=11 // pred_check_branch
          %954 = sbr.rel (%p952) target = $region28
        $region27: #{tpu_custom_call.1} parent=11 // pred_region
          _
        $region28: #{tpu_custom_call.1} parent=11 // pred_fallthru
          _
        // Predicated region
        $region29: #{tpu_custom_call.1} parent=11 // pred_check
          %p955 = pneg %p503
        $region30: #{tpu_custom_call.1} parent=11 // pred_check_branch
          %957 = sbr.rel (%p955) target = $region32
        $region31: #{tpu_custom_call.1} parent=11 // pred_region
          _
        $region32: #{tpu_custom_call.1} parent=11 // pred_fallthru
          _
        // Predicated region
        $region33: #{tpu_custom_call.1} parent=11 // pred_check
          %p958 = pneg %p524
        $region34: #{tpu_custom_call.1} parent=11 // pred_check_branch
          %960 = sbr.rel (%p958) target = $region36
        $region35: #{tpu_custom_call.1} parent=11 // pred_region
          _
        $region36: #{tpu_custom_call.1} parent=11 // pred_fallthru
          _
        // Predicated region
        $region37: #{tpu_custom_call.1} parent=11 // pred_check
          %p961 = pneg %p545
        $region38: #{tpu_custom_call.1} parent=11 // pred_check_branch
          %963 = sbr.rel (%p961) target = $region40
        $region39: #{tpu_custom_call.1} parent=11 // pred_region
          _
        $region40: #{tpu_custom_call.1} parent=11 // pred_fallthru
          _
        // Predicated region
        $region41: #{tpu_custom_call.1} parent=11 // pred_check
          %p964 = pneg %p566
        $region42: #{tpu_custom_call.1} parent=11 // pred_check_branch
          %966 = sbr.rel (%p964) target = $region44
        $region43: #{tpu_custom_call.1} parent=11 // pred_region
          _
        $region44: #{tpu_custom_call.1} parent=11 // pred_fallthru
          _
        // Predicated region
        $region45: #{tpu_custom_call.1} parent=11 // pred_check
          %p967 = pneg %p587
        $region46: #{tpu_custom_call.1} parent=11 // pred_check_branch
          %969 = sbr.rel (%p967) target = $region48
        $region47: #{tpu_custom_call.1} parent=11 // pred_region
          _
        $region48: #{tpu_custom_call.1} parent=11 // pred_fallthru
          _
        // Predicated region
        $region49: #{tpu_custom_call.1} parent=11 // pred_check
          %p970 = pneg %p608
        $region50: #{tpu_custom_call.1} parent=11 // pred_check_branch
          %972 = sbr.rel (%p970) target = $region52
        $region51: #{tpu_custom_call.1} parent=11 // pred_region
          _
        $region52: #{tpu_custom_call.1} parent=11 // pred_fallthru
          _
        // Predicated region
        $region53: #{tpu_custom_call.1} parent=11 // pred_check
          %p973 = pneg %p629
        $region54: #{tpu_custom_call.1} parent=11 // pred_check_branch
          %975 = sbr.rel (%p973) target = $region56
        $region55: #{tpu_custom_call.1} parent=11 // pred_region
          _
        $region56: #{tpu_custom_call.1} parent=11 // pred_fallthru
          _
        // Predicated region
        $region57: #{tpu_custom_call.1} parent=11 // pred_check
          %p976 = pneg %p650
        $region58: #{tpu_custom_call.1} parent=11 // pred_check_branch
          %978 = sbr.rel (%p976) target = $region60
        $region59: #{tpu_custom_call.1} parent=11 // pred_region
          _
        $region60: #{tpu_custom_call.1} parent=11 // pred_fallthru
          _
        // Predicated region
        $region61: #{tpu_custom_call.1} parent=11 // pred_check
          %p979 = pneg %p671
        $region62: #{tpu_custom_call.1} parent=11 // pred_check_branch
          %981 = sbr.rel (%p979) target = $region64
        $region63: #{tpu_custom_call.1} parent=11 // pred_region
          _
        $region64: #{tpu_custom_call.1} parent=11 // pred_fallthru
          _
        // Predicated region
        $region65: #{tpu_custom_call.1} parent=11 // pred_check
          %p982 = pneg %p692
        $region66: #{tpu_custom_call.1} parent=11 // pred_check_branch
          %984 = sbr.rel (%p982) target = $region68
        $region67: #{tpu_custom_call.1} parent=11 // pred_region
          _
        $region68: #{tpu_custom_call.1} parent=11 // pred_fallthru
          _
        // Predicated region
        $region69: #{tpu_custom_call.1} parent=11 // pred_check
          %p985 = pneg %p713
        $region70: #{tpu_custom_call.1} parent=11 // pred_check_branch
          %987 = sbr.rel (%p985) target = $region72
        $region71: #{tpu_custom_call.1} parent=11 // pred_region
          _
        $region72: #{tpu_custom_call.1} parent=11 // pred_fallthru
          _
        // Predicated region
        $region73: #{tpu_custom_call.1} parent=11 // pred_check
          %p988 = pneg %p734
        $region74: #{tpu_custom_call.1} parent=11 // pred_check_branch
          %990 = sbr.rel (%p988) target = $region76
        $region75: #{tpu_custom_call.1} parent=11 // pred_region
          _
        $region76: #{tpu_custom_call.1} parent=11 // pred_fallthru
          _
        // Predicated region
        $region77: #{tpu_custom_call.1} parent=11 // pred_check
          %p991 = pneg %p755
        $region78: #{tpu_custom_call.1} parent=11 // pred_check_branch
          %993 = sbr.rel (%p991) target = $region80
        $region79: #{tpu_custom_call.1} parent=11 // pred_region
          _
        $region80: #{tpu_custom_call.1} parent=11 // pred_fallthru
          _
        // Predicated region
        $region81: #{tpu_custom_call.1} parent=11 // pred_check
          %p994 = pneg %p776
        $region82: #{tpu_custom_call.1} parent=11 // pred_check_branch
          %996 = sbr.rel (%p994) target = $region84
        $region83: #{tpu_custom_call.1} parent=11 // pred_region
          _
        $region84: #{tpu_custom_call.1} parent=11 // pred_fallthru
          _
        // Predicated region
        $region85: #{tpu_custom_call.1} parent=11 // pred_check
          %p997 = pneg %p797
        $region86: #{tpu_custom_call.1} parent=11 // pred_check_branch
          %999 = sbr.rel (%p997) target = $region88
        $region87: #{tpu_custom_call.1} parent=11 // pred_region
          _
        $region88: #{tpu_custom_call.1} parent=11 // pred_fallthru
          _
        // Predicated region
        $region89: #{tpu_custom_call.1} parent=11 // pred_check
          %p1000 = pneg %p818
        $region90: #{tpu_custom_call.1} parent=11 // pred_check_branch
          %1002 = sbr.rel (%p1000) target = $region92
        $region91: #{tpu_custom_call.1} parent=11 // pred_region
          _
        $region92: #{tpu_custom_call.1} parent=11 // pred_fallthru
          _
        // Predicated region
        $region93: #{tpu_custom_call.1} parent=11 // pred_check
          %p1003 = pneg %p839
        $region94: #{tpu_custom_call.1} parent=11 // pred_check_branch
          %1005 = sbr.rel (%p1003) target = $region96
        $region95: #{tpu_custom_call.1} parent=11 // pred_region
          _
        $region96: #{tpu_custom_call.1} parent=11 // pred_fallthru
          _
        // Predicated region
        $region97: #{tpu_custom_call.1} parent=11 // pred_check
          %p1006 = pneg %p860
        $region98: #{tpu_custom_call.1} parent=11 // pred_check_branch
          %1008 = sbr.rel (%p1006) target = $region100
        $region99: #{tpu_custom_call.1} parent=11 // pred_region
          _
        $region100: #{tpu_custom_call.1} parent=11 // pred_fallthru
          _
        // Predicated region
        $region101: #{tpu_custom_call.1} parent=11 // pred_check
          %p1009 = pneg %p881
        $region102: #{tpu_custom_call.1} parent=11 // pred_check_branch
          %1011 = sbr.rel (%p1009) target = $region104
        $region103: #{tpu_custom_call.1} parent=11 // pred_region
          _
        $region104: #{tpu_custom_call.1} parent=11 // pred_fallthru
          _
        // Predicated region
        $region105: #{tpu_custom_call.1} parent=11 // pred_check
          %p1012 = pneg %p902
        $region106: #{tpu_custom_call.1} parent=11 // pred_check_branch
          %1014 = sbr.rel (%p1012) target = $region108
        $region107: #{tpu_custom_call.1} parent=11 // pred_region
          _
        $region108: #{tpu_custom_call.1} parent=11 // pred_fallthru
          _
      $region12: #{tpu_custom_call.1} parent=5 // pred_fallthru
        _
      %p1015 = scmp.lt.s32.totalorder %s86, 2
      // Predicated region
      $region109: #{tpu_custom_call.1} parent=5 // pred_check
        %p1016 = pneg %p1015
      $region110: #{tpu_custom_call.1} parent=5 // pred_check_branch
        %1018 = sbr.rel (%p1016) target = $region112
      $region111: #{tpu_custom_call.1} parent=5 // pred_region
        // Predicated region
        $region113: #{tpu_custom_call.1} parent=111 // pred_check
          %p1019 = pneg %p106
        $region114: #{tpu_custom_call.1} parent=111 // pred_check_branch
          %1021 = sbr.rel (%p1019) target = $region116
        $region115: #{tpu_custom_call.1} parent=111 // pred_region
          %p1022 = scmp.lt.s32.totalorder %s86, 1
          %s1023 = scalar_select %p1022, %s86, 1
          %s1024 = smul.addr %s1023, 8
          %s1025 = scalar_lea.vmem %s1, %s1024
        $region116: #{tpu_custom_call.1} parent=111 // pred_fallthru
          _
        // Predicated region
        $region117: #{tpu_custom_call.1} parent=111 // pred_check
          %p1026 = pneg %p132
        $region118: #{tpu_custom_call.1} parent=111 // pred_check_branch
          %1028 = sbr.rel (%p1026) target = $region120
        $region119: #{tpu_custom_call.1} parent=111 // pred_region
          %p1029 = scmp.lt.s32.totalorder %s86, 1
          %s1030 = scalar_select %p1029, %s86, 1
          %s1031 = smul.addr %s1030, 8
          %s1032 = scalar_lea.vmem %s3, %s1031
        $region120: #{tpu_custom_call.1} parent=111 // pred_fallthru
          _
        // Predicated region
        $region121: #{tpu_custom_call.1} parent=111 // pred_check
          %p1033 = pneg %p158
        $region122: #{tpu_custom_call.1} parent=111 // pred_check_branch
          %1035 = sbr.rel (%p1033) target = $region124
        $region123: #{tpu_custom_call.1} parent=111 // pred_region
          %p1036 = scmp.lt.s32.totalorder %s86, 1
          %s1037 = scalar_select %p1036, %s86, 1
          %s1038 = smul.addr %s1037, 8
          %s1039 = scalar_lea.vmem %s5, %s1038
        $region124: #{tpu_custom_call.1} parent=111 // pred_fallthru
          _
        // Predicated region
        $region125: #{tpu_custom_call.1} parent=111 // pred_check
          %p1040 = pneg %p184
        $region126: #{tpu_custom_call.1} parent=111 // pred_check_branch
          %1042 = sbr.rel (%p1040) target = $region128
        $region127: #{tpu_custom_call.1} parent=111 // pred_region
          %p1043 = scmp.lt.s32.totalorder %s86, 1
          %s1044 = scalar_select %p1043, %s86, 1
          %s1045 = smul.addr %s1044, 8
          %s1046 = scalar_lea.vmem %s7, %s1045
        $region128: #{tpu_custom_call.1} parent=111 // pred_fallthru
          _
        // Predicated region
        $region129: #{tpu_custom_call.1} parent=111 // pred_check
          %p1047 = pneg %p210
        $region130: #{tpu_custom_call.1} parent=111 // pred_check_branch
          %1049 = sbr.rel (%p1047) target = $region132
        $region131: #{tpu_custom_call.1} parent=111 // pred_region
          %p1050 = scmp.lt.s32.totalorder %s86, 1
          %s1051 = scalar_select %p1050, %s86, 1
          %s1052 = smul.addr %s1051, 8
          %s1053 = scalar_lea.vmem %s9, %s1052
        $region132: #{tpu_custom_call.1} parent=111 // pred_fallthru
          _
        // Predicated region
        $region133: #{tpu_custom_call.1} parent=111 // pred_check
          %p1054 = pneg %p236
        $region134: #{tpu_custom_call.1} parent=111 // pred_check_branch
          %1056 = sbr.rel (%p1054) target = $region136
        $region135: #{tpu_custom_call.1} parent=111 // pred_region
          %p1057 = scmp.lt.s32.totalorder %s86, 1
          %s1058 = scalar_select %p1057, %s86, 1
          %s1059 = smul.addr %s1058, 8
          %s1060 = scalar_lea.vmem %s11, %s1059
        $region136: #{tpu_custom_call.1} parent=111 // pred_fallthru
          _
        // Predicated region
        $region137: #{tpu_custom_call.1} parent=111 // pred_check
          %p1061 = pneg %p262
        $region138: #{tpu_custom_call.1} parent=111 // pred_check_branch
          %1063 = sbr.rel (%p1061) target = $region140
        $region139: #{tpu_custom_call.1} parent=111 // pred_region
          %p1064 = scmp.lt.s32.totalorder %s86, 1
          %s1065 = scalar_select %p1064, %s86, 1
          %s1066 = smul.addr %s1065, 8
          %s1067 = smul.addr %s1066, 8
          %s1068 = scalar_lea.vmem %s13, %s1067
        $region140: #{tpu_custom_call.1} parent=111 // pred_fallthru
          _
        // Predicated region
        $region141: #{tpu_custom_call.1} parent=111 // pred_check
          %p1069 = pneg %p288
        $region142: #{tpu_custom_call.1} parent=111 // pred_check_branch
          %1071 = sbr.rel (%p1069) target = $region144
        $region143: #{tpu_custom_call.1} parent=111 // pred_region
          %p1072 = scmp.lt.s32.totalorder %s86, 1
          %s1073 = scalar_select %p1072, %s86, 1
          %s1074 = smul.addr %s1073, 2
          %s1075 = smul.addr %s1074, 8
          %s1076 = scalar_lea.vmem %s15, %s1075
        $region144: #{tpu_custom_call.1} parent=111 // pred_fallthru
          _
        // Predicated region
        $region145: #{tpu_custom_call.1} parent=111 // pred_check
          %p1077 = pneg %p314
        $region146: #{tpu_custom_call.1} parent=111 // pred_check_branch
          %1079 = sbr.rel (%p1077) target = $region148
        $region147: #{tpu_custom_call.1} parent=111 // pred_region
          %p1080 = scmp.lt.s32.totalorder %s86, 1
          %s1081 = scalar_select %p1080, %s86, 1
          %s1082 = smul.addr %s1081, 4
          %s1083 = scalar_lea.vmem %s17, %s1082
        $region148: #{tpu_custom_call.1} parent=111 // pred_fallthru
          _
        // Predicated region
        $region149: #{tpu_custom_call.1} parent=111 // pred_check
          %p1084 = pneg %p340
        $region150: #{tpu_custom_call.1} parent=111 // pred_check_branch
          %1086 = sbr.rel (%p1084) target = $region152
        $region151: #{tpu_custom_call.1} parent=111 // pred_region
          %p1087 = scmp.lt.s32.totalorder %s86, 1
          %s1088 = scalar_select %p1087, %s86, 1
          %s1089 = smul.addr %s1088, 4
          %s1090 = scalar_lea.vmem %s19, %s1089
        $region152: #{tpu_custom_call.1} parent=111 // pred_fallthru
          _
        // Predicated region
        $region153: #{tpu_custom_call.1} parent=111 // pred_check
          %p1091 = pneg %p366
        $region154: #{tpu_custom_call.1} parent=111 // pred_check_branch
          %1093 = sbr.rel (%p1091) target = $region156
        $region155: #{tpu_custom_call.1} parent=111 // pred_region
          %p1094 = scmp.lt.s32.totalorder %s86, 1
          %s1095 = scalar_select %p1094, %s86, 1
          %s1096 = smul.addr %s1095, 8
          %s1097 = scalar_lea.vmem %s21, %s1096
        $region156: #{tpu_custom_call.1} parent=111 // pred_fallthru
          _
        // Predicated region
        $region157: #{tpu_custom_call.1} parent=111 // pred_check
          %p1098 = pneg %p392
        $region158: #{tpu_custom_call.1} parent=111 // pred_check_branch
          %1100 = sbr.rel (%p1098) target = $region160
        $region159: #{tpu_custom_call.1} parent=111 // pred_region
          %p1101 = scmp.lt.s32.totalorder %s86, 1
          %s1102 = scalar_select %p1101, %s86, 1
          %s1103 = scalar_lea.vmem %s23, %s1102
        $region160: #{tpu_custom_call.1} parent=111 // pred_fallthru
          _
      $region112: #{tpu_custom_call.1} parent=5 // pred_fallthru
        _
      %p1104 = scmp.le.s32.totalorder 1, %s86
      %p1105 = scmp.lt.s32.totalorder %s86, 3
      %p1106 = pnand %p1104, %p1105
      %p1107 = pneg %p1106
      // Predicated region
      $region161: #{tpu_custom_call.1} parent=5 // pred_check
        _
      $region162: #{tpu_custom_call.1} parent=5 // pred_check_branch
        %1109 = sbr.rel (%p1106) target = $region164
      $region163: #{tpu_custom_call.1} parent=5 // pred_region
        %s1110 = ssub.s32 %s86, 1
        %p1111 = scmp.lt.s32.totalorder %s91, 1
        %s1112 = scalar_select %p1111, %s91, 1
        %s1113 = smul.addr %s1112, 8
        %s1114 = scalar_lea.vmem %s1, %s1113
        %p1115 = pneg %p112
        %p1116 = pneg %p109
        %p1117 = scmp.lt.s32.totalorder %s91, 1
        %s1118 = scalar_select %p1117, %s91, 1
        %s1119 = smul.addr %s1118, 8
        %s1120 = scalar_lea.vmem %s3, %s1119
        %p1121 = pneg %p138
        %p1122 = pneg %p135
        %p1123 = scmp.lt.s32.totalorder %s91, 1
        %s1124 = scalar_select %p1123, %s91, 1
        %s1125 = smul.addr %s1124, 8
        %s1126 = scalar_lea.vmem %s5, %s1125
        %p1127 = pneg %p164
        %p1128 = pneg %p161
        %p1129 = scmp.lt.s32.totalorder %s91, 1
        %s1130 = scalar_select %p1129, %s91, 1
        %s1131 = smul.addr %s1130, 8
        %s1132 = scalar_lea.vmem %s7, %s1131
        %p1133 = pneg %p190
        %p1134 = pneg %p187
        %p1135 = scmp.lt.s32.totalorder %s91, 1
        %s1136 = scalar_select %p1135, %s91, 1
        %s1137 = smul.addr %s1136, 8
        %s1138 = scalar_lea.vmem %s9, %s1137
        %p1139 = pneg %p216
        %p1140 = pneg %p213
        %p1141 = scmp.lt.s32.totalorder %s91, 1
        %s1142 = scalar_select %p1141, %s91, 1
        %s1143 = smul.addr %s1142, 8
        %s1144 = scalar_lea.vmem %s11, %s1143
        %p1145 = pneg %p242
        %p1146 = pneg %p239
        %p1147 = scmp.lt.s32.totalorder %s91, 1
        %s1148 = scalar_select %p1147, %s91, 1
        %s1149 = smul.addr %s1148, 8
        %s1150 = smul.addr %s1149, 8
        %s1151 = scalar_lea.vmem %s13, %s1150
        %p1152 = pneg %p268
        %p1153 = pneg %p265
        %p1154 = scmp.lt.s32.totalorder %s91, 1
        %s1155 = scalar_select %p1154, %s91, 1
        %s1156 = smul.addr %s1155, 2
        %s1157 = smul.addr %s1156, 8
        %s1158 = scalar_lea.vmem %s15, %s1157
        %p1159 = pneg %p294
        %p1160 = pneg %p291
        %p1161 = scmp.lt.s32.totalorder %s91, 1
        %s1162 = scalar_select %p1161, %s91, 1
        %s1163 = smul.addr %s1162, 4
        %s1164 = scalar_lea.vmem %s17, %s1163
        %p1165 = pneg %p320
        %p1166 = pneg %p317
        %p1167 = scmp.lt.s32.totalorder %s91, 1
        %s1168 = scalar_select %p1167, %s91, 1
        %s1169 = smul.addr %s1168, 4
        %s1170 = scalar_lea.vmem %s19, %s1169
        %p1171 = pneg %p346
        %p1172 = pneg %p343
        %p1173 = scmp.lt.s32.totalorder %s91, 1
        %s1174 = scalar_select %p1173, %s91, 1
        %s1175 = smul.addr %s1174, 8
        %s1176 = scalar_lea.vmem %s21, %s1175
        %p1177 = pneg %p372
        %p1178 = pneg %p369
        %p1179 = scmp.lt.s32.totalorder %s91, 1
        %s1180 = scalar_select %p1179, %s91, 1
        %s1181 = scalar_lea.vmem %s23, %s1180
        %p1182 = pneg %p398
        %p1183 = pneg %p395
        %p1184 = pneg %p419
        %p1185 = pneg %p416
        %p1186 = pneg %p440
        %p1187 = pneg %p437
        %p1188 = pneg %p461
        %p1189 = pneg %p458
        %p1190 = pneg %p482
        %p1191 = pneg %p479
        %p1192 = pneg %p503
        %p1193 = pneg %p500
        %p1194 = pneg %p524
        %p1195 = pneg %p521
        %p1196 = pneg %p545
        %p1197 = pneg %p542
        %p1198 = pneg %p566
        %p1199 = pneg %p563
        %p1200 = pneg %p587
        %p1201 = pneg %p584
        %p1202 = pneg %p608
        %p1203 = pneg %p605
        %p1204 = pneg %p629
        %p1205 = pneg %p626
        %p1206 = pneg %p650
        %p1207 = pneg %p647
        %p1208 = pneg %p671
        %p1209 = pneg %p668
        %p1210 = pneg %p692
        %p1211 = pneg %p689
        %p1212 = pneg %p713
        %p1213 = pneg %p710
        %p1214 = pneg %p734
        %p1215 = pneg %p731
        %p1216 = pneg %p755
        %p1217 = pneg %p752
        %p1218 = pneg %p776
        %p1219 = pneg %p773
        %p1220 = pneg %p797
        %p1221 = pneg %p794
        %p1222 = pneg %p818
        %p1223 = pneg %p815
        %p1224 = pneg %p839
        %p1225 = pneg %p836
        %p1226 = pneg %p860
        %p1227 = pneg %p857
        %p1228 = pneg %p881
        %p1229 = pneg %p878
        %p1230 = pneg %p902
        %p1231 = pneg %p899
        %p1232 = pneg %p928
        %p1233 = pneg %p925
        %s1234 = sand.u32 %s915, 1
        %s1235 = scalar_lea.sflag [#allocation5], %s1234
        %s1236 = sand.u32 %s915, 1
        %s1237 = smul.addr %s1236, 8
        %s1238 = scalar_lea.vmem [#allocation4], %s1237
        %p1239 = scmp.lt.s32.totalorder %s91, 1
        %s1240 = scalar_select %p1239, %s91, 1
        %s1241 = smul.addr %s1240, 8
        %s1242 = scalar_lea.vmem %s1, %s1241
        %p1243 = scmp.lt.s32.totalorder %s91, 1
        %s1244 = scalar_select %p1243, %s91, 1
        %s1245 = smul.addr %s1244, 8
        %s1246 = scalar_lea.vmem %s3, %s1245
        %p1247 = scmp.lt.s32.totalorder %s91, 1
        %s1248 = scalar_select %p1247, %s91, 1
        %s1249 = smul.addr %s1248, 8
        %s1250 = scalar_lea.vmem %s5, %s1249
        %p1251 = scmp.lt.s32.totalorder %s91, 1
        %s1252 = scalar_select %p1251, %s91, 1
        %s1253 = smul.addr %s1252, 8
        %s1254 = scalar_lea.vmem %s7, %s1253
        %p1255 = scmp.lt.s32.totalorder %s91, 1
        %s1256 = scalar_select %p1255, %s91, 1
        %s1257 = smul.addr %s1256, 8
        %s1258 = scalar_lea.vmem %s9, %s1257
        %p1259 = scmp.lt.s32.totalorder %s91, 1
        %s1260 = scalar_select %p1259, %s91, 1
        %s1261 = smul.addr %s1260, 8
        %s1262 = scalar_lea.vmem %s11, %s1261
        %p1263 = scmp.lt.s32.totalorder %s91, 1
        %s1264 = scalar_select %p1263, %s91, 1
        %s1265 = smul.addr %s1264, 8
        %s1266 = smul.addr %s1265, 8
        %s1267 = scalar_lea.vmem %s13, %s1266
        %p1268 = scmp.lt.s32.totalorder %s91, 1
        %s1269 = scalar_select %p1268, %s91, 1
        %s1270 = smul.addr %s1269, 2
        %s1271 = smul.addr %s1270, 8
        %s1272 = scalar_lea.vmem %s15, %s1271
        %p1273 = scmp.lt.s32.totalorder %s91, 1
        %s1274 = scalar_select %p1273, %s91, 1
        %s1275 = smul.addr %s1274, 4
        %s1276 = scalar_lea.vmem %s17, %s1275
        %p1277 = scmp.lt.s32.totalorder %s91, 1
        %s1278 = scalar_select %p1277, %s91, 1
        %s1279 = smul.addr %s1278, 4
        %s1280 = scalar_lea.vmem %s19, %s1279
        %p1281 = scmp.lt.s32.totalorder %s91, 1
        %s1282 = scalar_select %p1281, %s91, 1
        %s1283 = smul.addr %s1282, 8
        %s1284 = scalar_lea.vmem %s21, %s1283
        %p1285 = scmp.lt.s32.totalorder %s91, 1
        %s1286 = scalar_select %p1285, %s91, 1
        %s1287 = scalar_lea.vmem %s23, %s1286
        %v1288 = vld [vmem:[%s1242] sm:$0xff]
        %v1289 = vld [vmem:[%s1246] sm:$0xff]
        %v1290 = vld [vmem:[%s1250] sm:$0xff]
        %v1291 = vld [vmem:[%s1254] sm:$0xff]
        %v1292 = vld [vmem:[%s1258] sm:$0xff]
        %v1293 = vld [vmem:[%s1262] sm:$0xff]
        %v1294 = vld [vmem:[%s1267] sm:$0xff]
        %v1295 = vld [vmem:[%s1267 + $0x8] sm:$0xff]
        %v1296 = vld [vmem:[%s1267 + $0x10] sm:$0xff]
        %v1297 = vld [vmem:[%s1267 + $0x18] sm:$0xff]
        %v1298 = vld [vmem:[%s1267 + $0x20] sm:$0xff]
        %v1299 = vld [vmem:[%s1267 + $0x28] sm:$0xff]
        %v1300 = vld [vmem:[%s1267 + $0x30] sm:$0xff]
        %v1301 = vld [vmem:[%s1267 + $0x38] sm:$0xff]
        %v1302 = vld [vmem:[%s1272] sm:$0xff]
        %v1303 = vld [vmem:[%s1272 + $0x8] sm:$0xff]
        %v1304 = vld [vmem:[%s1276] sm:$0xf]
        %v1305 = vld [vmem:[%s1280] sm:$0x7]
        %v1306 = vld [vmem:[%s1284] sm:$0xff]
        %v1307 = vld [vmem:[%s1287] sm:$0x1]
        %v1308 = vlaneseq
        %v1309 = vshrl.u32 %v1308, 7
        %v1310 = vlaneseq
        %v1311 = vand.u32 %v1310, 127
        %1313 = vset.pattern.permute.xlu0 0
        %1314 = vperm.xlu0 %1313, %v1306
        %v1315 = vpop.permute.xlu0 %1314
        %v1318 = vlaneseq
        %v1319 = vshrl.u32 %v1318, 7
        %v1320 = vsub.s32 0, %v1319
        %v1321 = vrot.slane %v1307, %v1320
        %v1323 = vmul.f32 %v1315, %v1321
        %vm1324 = vcmp.eq.s32.totalorder %v1309, %v1311
        %v1325 = vsel %vm1324, 0.0, %v1323
        %v1326 = vld [vmem:[%s25] sm:$0xff]
        %v1327 = vld [vmem:[%s25 + $0x8] sm:$0xff]
        %vm1328 = vcmask 130048
        %v1330 = vsel %vm1328, %v1293, 0
        %1332 = vmatprep.subr.mxu0 0.0
        %1333 = vmatpush1.msra.mxu0 %v1326
        %1334 = vmatprep.subr.mxu0 0.0
        %1335 = vmatpush1.msra.mxu0 %v1327
        %1336 = vmatprep.subr.mxu0 0.0
        %1337 = vmatpush1.msra.mxu0 0.0
        %1338 = vmatprep.subr.mxu0 0.0
        %1339 = vmatpush1.msra.mxu0 0.0
        %1340 = vmatprep.subr.mxu0 0.0
        %1341 = vmatpush1.msra.mxu0 0.0
        %1342 = vmatprep.subr.mxu0 0.0
        %1343 = vmatpush1.msra.mxu0 0.0
        %1344 = vmatprep.subr.mxu0 0.0
        %1345 = vmatpush1.msra.mxu0 0.0
        %1346 = vmatprep.subr.mxu0 0.0
        %1347 = vmatpush1.msra.mxu0 0.0
        %1348 = vmatprep.subr.mxu0 0.0
        %1349 = vmatpush1.msra.mxu0 0.0
        %1350 = vmatprep.subr.mxu0 0.0
        %1351 = vmatpush1.msra.mxu0 0.0
        %1352 = vmatprep.subr.mxu0 0.0
        %1353 = vmatpush1.msra.mxu0 0.0
        %1354 = vmatprep.subr.mxu0 0.0
        %1355 = vmatpush1.msra.mxu0 0.0
        %1356 = vmatprep.subr.mxu0 0.0
        %1357 = vmatpush1.msra.mxu0 0.0
        %1358 = vmatprep.subr.mxu0 0.0
        %1359 = vmatpush1.msra.mxu0 0.0
        %1360 = vmatprep.subr.mxu0 0.0
        %1361 = vmatpush1.msra.mxu0 0.0
        %1362 = vmatprep.subr.mxu0 0.0
        %1363 = vmatpush1.msra.mxu0 0.0
        %1364 = vmatprep.subr.mxu0 0.0
        %1365 = vmatpush1.msra.mxu0 0.0
        %1366 = vmatprep.subr.mxu0 0.0
        %1367 = vmatpush1.msra.mxu0 0.0
        %1368 = vmatprep.subr.mxu0 0.0
        %1369 = vmatpush1.msra.mxu0 0.0
        %1370 = vmatprep.subr.mxu0 0.0
        %1371 = vmatpush1.msra.mxu0 0.0
        %1372 = vmatprep.subr.mxu0 0.0
        %1373 = vmatpush1.msra.mxu0 0.0
        %1374 = vmatprep.subr.mxu0 0.0
        %1375 = vmatpush1.msra.mxu0 0.0
        %1376 = vmatprep.subr.mxu0 0.0
        %1377 = vmatpush1.msra.mxu0 0.0
        %1378 = vmatprep.subr.mxu0 0.0
        %1379 = vmatpush1.msra.mxu0 0.0
        %1380 = vmatprep.subr.mxu0 0.0
        %1381 = vmatpush1.msra.mxu0 0.0
        %1382 = vmatprep.subr.mxu0 0.0
        %1383 = vmatpush1.msra.mxu0 0.0
        %1384 = vmatprep.subr.mxu0 0.0
        %1385 = vmatpush1.msra.mxu0 0.0
        %1386 = vmatprep.subr.mxu0 0.0
        %1387 = vmatpush1.msra.mxu0 0.0
        %1388 = vmatprep.subr.mxu0 0.0
        %1389 = vmatpush1.msra.mxu0 0.0
        %1390 = vmatprep.subr.mxu0 0.0
        %1391 = vmatpush1.msra.mxu0 0.0
        %1392 = vmatprep.subr.mxu0 0.0
        %1393 = vmatpush1.msra.mxu0 0.0
        %1394 = vmatprep.subr.mxu0 0.0
        %1395 = vmatpush1.msra.mxu0 0.0
        %1396 = vmatprep.mubr.f32.mxu0 0.0
        %1397 = vmatmul.mubr.f32.gmra.mrb[0].mxu0 %v1330
        %v1398 = vpop.f32.mrb[0].mxu0
        %v1399 = vadd.f32 0.0, %v1398
        %v1400 = vpop.f32.mrb[0].mxu0
        %1401 = vdwg.mxu0
        %v1402 = vld [vmem:[%s27] sm:$0xff]
        %v1403 = vld [vmem:[%s27 + $0x8] sm:$0xff]
        %v1405 = vsel %vm1328, %v1302, 0
        %v1408 = vsel %vm1328, %v1303, 0
        %1410 = vmatprep.subr.mxu0 0.0
        %1411 = vmatpush1.msra.mxu0 %v1402
        %1412 = vmatprep.subr.mxu0 0.0
        %1413 = vmatpush1.msra.mxu0 %v1403
        %1414 = vmatprep.subr.mxu0 0.0
        %1415 = vmatpush1.msra.mxu0 0.0
        %1416 = vmatprep.subr.mxu0 0.0
        %1417 = vmatpush1.msra.mxu0 0.0
        %1418 = vmatprep.subr.mxu0 0.0
        %1419 = vmatpush1.msra.mxu0 0.0
        %1420 = vmatprep.subr.mxu0 0.0
        %1421 = vmatpush1.msra.mxu0 0.0
        %1422 = vmatprep.subr.mxu0 0.0
        %1423 = vmatpush1.msra.mxu0 0.0
        %1424 = vmatprep.subr.mxu0 0.0
        %1425 = vmatpush1.msra.mxu0 0.0
        %1426 = vmatprep.subr.mxu0 0.0
        %1427 = vmatpush1.msra.mxu0 0.0
        %1428 = vmatprep.subr.mxu0 0.0
        %1429 = vmatpush1.msra.mxu0 0.0
        %1430 = vmatprep.subr.mxu0 0.0
        %1431 = vmatpush1.msra.mxu0 0.0
        %1432 = vmatprep.subr.mxu0 0.0
        %1433 = vmatpush1.msra.mxu0 0.0
        %1434 = vmatprep.subr.mxu0 0.0
        %1435 = vmatpush1.msra.mxu0 0.0
        %1436 = vmatprep.subr.mxu0 0.0
        %1437 = vmatpush1.msra.mxu0 0.0
        %1438 = vmatprep.subr.mxu0 0.0
        %1439 = vmatpush1.msra.mxu0 0.0
        %1440 = vmatprep.subr.mxu0 0.0
        %1441 = vmatpush1.msra.mxu0 0.0
        %1442 = vmatprep.subr.mxu0 0.0
        %1443 = vmatpush1.msra.mxu0 0.0
        %1444 = vmatprep.subr.mxu0 0.0
        %1445 = vmatpush1.msra.mxu0 0.0
        %1446 = vmatprep.subr.mxu0 0.0
        %1447 = vmatpush1.msra.mxu0 0.0
        %1448 = vmatprep.subr.mxu0 0.0
        %1449 = vmatpush1.msra.mxu0 0.0
        %1450 = vmatprep.subr.mxu0 0.0
        %1451 = vmatpush1.msra.mxu0 0.0
        %1452 = vmatprep.subr.mxu0 0.0
        %1453 = vmatpush1.msra.mxu0 0.0
        %1454 = vmatprep.subr.mxu0 0.0
        %1455 = vmatpush1.msra.mxu0 0.0
        %1456 = vmatprep.subr.mxu0 0.0
        %1457 = vmatpush1.msra.mxu0 0.0
        %1458 = vmatprep.subr.mxu0 0.0
        %1459 = vmatpush1.msra.mxu0 0.0
        %1460 = vmatprep.subr.mxu0 0.0
        %1461 = vmatpush1.msra.mxu0 0.0
        %1462 = vmatprep.subr.mxu0 0.0
        %1463 = vmatpush1.msra.mxu0 0.0
        %1464 = vmatprep.subr.mxu0 0.0
        %1465 = vmatpush1.msra.mxu0 0.0
        %1466 = vmatprep.subr.mxu0 0.0
        %1467 = vmatpush1.msra.mxu0 0.0
        %1468 = vmatprep.subr.mxu0 0.0
        %1469 = vmatpush1.msra.mxu0 0.0
        %1470 = vmatprep.subr.mxu0 0.0
        %1471 = vmatpush1.msra.mxu0 0.0
        %1472 = vmatprep.subr.mxu0 0.0
        %1473 = vmatpush1.msra.mxu0 0.0
        %1474 = vmatprep.mubr.f32.mxu0 0.0
        %1475 = vmatmul.mubr.f32.gmra.mrb[0].mxu0 %v1405
        %v1476 = vpop.f32.mrb[0].mxu0
        %v1477 = vadd.f32 0.0, %v1476
        %v1478 = vpop.f32.mrb[0].mxu0
        %1479 = vmatprep.mubr.f32.mxu0 0.0
        %1480 = vmatmul.mubr.f32.gmra.mrb[0].mxu0 %v1408
        %v1481 = vpop.f32.mrb[0].mxu0
        %v1482 = vadd.f32 0.0, %v1481
        %v1483 = vpop.f32.mrb[0].mxu0
        %1484 = vdwg.mxu0
        %v1485 = vld [vmem:[%s31] sm:$0x1]
        %v1487 = vcombine.high %v1399, %v1399
        %v1489 = vunpack.c.l.s4 1966171168
        %v1490 = vunpack.c.0.s8 %v1489
        %v1491 = vlaneseq
        %v1492 = vshrl.u32 %v1491, 7
        %v1493 = vsub.s32 %v1490, %v1492
        %v1494 = vrot.slane %v1399, %v1493
        %v1496 = vunpack.c.l.s4 1966171168
        %v1497 = vunpack.c.0.s8 %v1496
        %v1498 = vlaneseq
        %v1499 = vshrl.u32 %v1498, 7
        %v1500 = vsub.s32 %v1497, %v1499
        %v1501 = vrot.slane %v1487, %v1500
        %v1502 = vcombine.high %v1494, %v1494
        %v1503 = vcombine.high %v1501, %v1501
        %v1505 = vunpack.c.l.s4 1966171168
        %v1506 = vunpack.c.0.s8 %v1505
        %v1507 = vlaneseq
        %v1508 = vshrl.u32 %v1507, 7
        %v1509 = vsub.s32 %v1506, %v1508
        %v1510 = vrot.slane %v1494, %v1509
        %v1512 = vunpack.c.l.s4 1966171168
        %v1513 = vunpack.c.0.s8 %v1512
        %v1514 = vlaneseq
        %v1515 = vshrl.u32 %v1514, 7
        %v1516 = vsub.s32 %v1513, %v1515
        %v1517 = vrot.slane %v1501, %v1516
        %v1519 = vunpack.c.l.s4 1966171168
        %v1520 = vunpack.c.0.s8 %v1519
        %v1521 = vlaneseq
        %v1522 = vshrl.u32 %v1521, 7
        %v1523 = vsub.s32 %v1520, %v1522
        %v1524 = vrot.slane %v1502, %v1523
        %v1526 = vunpack.c.l.s4 1966171168
        %v1527 = vunpack.c.0.s8 %v1526
        %v1528 = vlaneseq
        %v1529 = vshrl.u32 %v1528, 7
        %v1530 = vsub.s32 %v1527, %v1529
        %v1531 = vrot.slane %v1503, %v1530
        %v1532 = vcombine.high %v1510, %v1510
        %v1533 = vcombine.high %v1517, %v1517
        %v1534 = vcombine.high %v1524, %v1524
        %v1535 = vcombine.high %v1531, %v1531
        %v1536 = vlaneseq
        %v1537 = vshrl.u32 %v1536, 7
        %v1538 = vsub.s32 0, %v1537
        %v1539 = vrot.slane %v1510, %v1538
        %v1540 = vlaneseq
        %v1541 = vshrl.u32 %v1540, 7
        %v1542 = vsub.s32 0, %v1541
        %v1543 = vrot.slane %v1524, %v1542
        %v1544 = vlaneseq
        %v1545 = vshrl.u32 %v1544, 7
        %v1546 = vsub.s32 0, %v1545
        %v1547 = vrot.slane %v1532, %v1546
        %v1548 = vlaneseq
        %v1549 = vshrl.u32 %v1548, 7
        %v1550 = vsub.s32 0, %v1549
        %v1551 = vrot.slane %v1534, %v1550
        %v1552 = vlaneseq
        %v1553 = vshrl.u32 %v1552, 7
        %v1554 = vsub.s32 0, %v1553
        %v1555 = vrot.slane %v1517, %v1554
        %v1556 = vlaneseq
        %v1557 = vshrl.u32 %v1556, 7
        %v1558 = vsub.s32 0, %v1557
        %v1559 = vrot.slane %v1531, %v1558
        %v1560 = vlaneseq
        %v1561 = vshrl.u32 %v1560, 7
        %v1562 = vsub.s32 0, %v1561
        %v1563 = vrot.slane %v1533, %v1562
        %v1564 = vlaneseq
        %v1565 = vshrl.u32 %v1564, 7
        %v1566 = vsub.s32 0, %v1565
        %v1567 = vrot.slane %v1535, %v1566
        %v1576 = vadd.f32 %v1539, %v1477
        %v1577 = vadd.f32 %v1543, %v1477
        %v1578 = vadd.f32 %v1547, %v1477
        %v1579 = vadd.f32 %v1551, %v1477
        %v1580 = vadd.f32 %v1555, %v1477
        %v1581 = vadd.f32 %v1559, %v1477
        %v1582 = vadd.f32 %v1563, %v1477
        %v1583 = vadd.f32 %v1567, %v1477
        %v1585 = vlaneseq
        %v1586 = vshrl.u32 %v1585, 7
        %v1587 = vsub.s32 0, %v1586
        %v1588 = vrot.slane %v1485, %v1587
        %v1590 = vadd.f32 %v1576, %v1588
        %v1591 = vadd.f32 %v1577, %v1588
        %v1592 = vadd.f32 %v1578, %v1588
        %v1593 = vadd.f32 %v1579, %v1588
        %v1594 = vadd.f32 %v1580, %v1588
        %v1595 = vadd.f32 %v1581, %v1588
        %v1596 = vadd.f32 %v1582, %v1588
        %v1597 = vadd.f32 %v1583, %v1588
        %v1598 = vld [vmem:[%s29] sm:$0xff]
        %vm1599 = vcmask 64512
        %v1601 = vsel %vm1599, %v1294, 0
        %v1604 = vsel %vm1599, %v1295, 0
        %v1607 = vsel %vm1599, %v1296, 0
        %v1610 = vsel %vm1599, %v1297, 0
        %v1613 = vsel %vm1599, %v1298, 0
        %v1616 = vsel %vm1599, %v1299, 0
        %v1619 = vsel %vm1599, %v1300, 0
        %v1622 = vsel %vm1599, %v1301, 0
        %1624 = vmatprep.subr.mxu0 0.0
        %1625 = vmatpush1.msra.mxu0 %v1598
        %1626 = vmatprep.subr.mxu0 0.0
        %1627 = vmatpush1.msra.mxu0 0.0
        %1628 = vmatprep.subr.mxu0 0.0
        %1629 = vmatpush1.msra.mxu0 0.0
        %1630 = vmatprep.subr.mxu0 0.0
        %1631 = vmatpush1.msra.mxu0 0.0
        %1632 = vmatprep.subr.mxu0 0.0
        %1633 = vmatpush1.msra.mxu0 0.0
        %1634 = vmatprep.subr.mxu0 0.0
        %1635 = vmatpush1.msra.mxu0 0.0
        %1636 = vmatprep.subr.mxu0 0.0
        %1637 = vmatpush1.msra.mxu0 0.0
        %1638 = vmatprep.subr.mxu0 0.0
        %1639 = vmatpush1.msra.mxu0 0.0
        %1640 = vmatprep.subr.mxu0 0.0
        %1641 = vmatpush1.msra.mxu0 0.0
        %1642 = vmatprep.subr.mxu0 0.0
        %1643 = vmatpush1.msra.mxu0 0.0
        %1644 = vmatprep.subr.mxu0 0.0
        %1645 = vmatpush1.msra.mxu0 0.0
        %1646 = vmatprep.subr.mxu0 0.0
        %1647 = vmatpush1.msra.mxu0 0.0
        %1648 = vmatprep.subr.mxu0 0.0
        %1649 = vmatpush1.msra.mxu0 0.0
        %1650 = vmatprep.subr.mxu0 0.0
        %1651 = vmatpush1.msra.mxu0 0.0
        %1652 = vmatprep.subr.mxu0 0.0
        %1653 = vmatpush1.msra.mxu0 0.0
        %1654 = vmatprep.subr.mxu0 0.0
        %1655 = vmatpush1.msra.mxu0 0.0
        %1656 = vmatprep.subr.mxu0 0.0
        %1657 = vmatpush1.msra.mxu0 0.0
        %1658 = vmatprep.subr.mxu0 0.0
        %1659 = vmatpush1.msra.mxu0 0.0
        %1660 = vmatprep.subr.mxu0 0.0
        %1661 = vmatpush1.msra.mxu0 0.0
        %1662 = vmatprep.subr.mxu0 0.0
        %1663 = vmatpush1.msra.mxu0 0.0
        %1664 = vmatprep.subr.mxu0 0.0
        %1665 = vmatpush1.msra.mxu0 0.0
        %1666 = vmatprep.subr.mxu0 0.0
        %1667 = vmatpush1.msra.mxu0 0.0
        %1668 = vmatprep.subr.mxu0 0.0
        %1669 = vmatpush1.msra.mxu0 0.0
        %1670 = vmatprep.subr.mxu0 0.0
        %1671 = vmatpush1.msra.mxu0 0.0
        %1672 = vmatprep.subr.mxu0 0.0
        %1673 = vmatpush1.msra.mxu0 0.0
        %1674 = vmatprep.subr.mxu0 0.0
        %1675 = vmatpush1.msra.mxu0 0.0
        %1676 = vmatprep.subr.mxu0 0.0
        %1677 = vmatpush1.msra.mxu0 0.0
        %1678 = vmatprep.subr.mxu0 0.0
        %1679 = vmatpush1.msra.mxu0 0.0
        %1680 = vmatprep.subr.mxu0 0.0
        %1681 = vmatpush1.msra.mxu0 0.0
        %1682 = vmatprep.subr.mxu0 0.0
        %1683 = vmatpush1.msra.mxu0 0.0
        %1684 = vmatprep.subr.mxu0 0.0
        %1685 = vmatpush1.msra.mxu0 0.0
        %1686 = vmatprep.subr.mxu0 0.0
        %1687 = vmatpush1.msra.mxu0 0.0
        %1688 = vmatprep.mubr.f32.mxu0 0.0
        %1689 = vmatmul.mubr.f32.gmra.mrb[0].mxu0 %v1601
        %v1690 = vpop.f32.mrb[0].mxu0
        %v1691 = vadd.f32 0.0, %v1690
        %v1692 = vpop.f32.mrb[0].mxu0
        %1693 = vmatprep.mubr.f32.mxu0 0.0
        %1694 = vmatmul.mubr.f32.gmra.mrb[0].mxu0 %v1604
        %v1695 = vpop.f32.mrb[0].mxu0
        %v1696 = vadd.f32 0.0, %v1695
        %v1697 = vpop.f32.mrb[0].mxu0
        %1698 = vmatprep.mubr.f32.mxu0 0.0
        %1699 = vmatmul.mubr.f32.gmra.mrb[0].mxu0 %v1607
        %v1700 = vpop.f32.mrb[0].mxu0
        %v1701 = vadd.f32 0.0, %v1700
        %v1702 = vpop.f32.mrb[0].mxu0
        %1703 = vmatprep.mubr.f32.mxu0 0.0
        %1704 = vmatmul.mubr.f32.gmra.mrb[0].mxu0 %v1610
        %v1705 = vpop.f32.mrb[0].mxu0
        %v1706 = vadd.f32 0.0, %v1705
        %v1707 = vpop.f32.mrb[0].mxu0
        %1708 = vmatprep.mubr.f32.mxu0 0.0
        %1709 = vmatmul.mubr.f32.gmra.mrb[0].mxu0 %v1613
        %v1710 = vpop.f32.mrb[0].mxu0
        %v1711 = vadd.f32 0.0, %v1710
        %v1712 = vpop.f32.mrb[0].mxu0
        %1713 = vmatprep.mubr.f32.mxu0 0.0
        %1714 = vmatmul.mubr.f32.gmra.mrb[0].mxu0 %v1616
        %v1715 = vpop.f32.mrb[0].mxu0
        %v1716 = vadd.f32 0.0, %v1715
        %v1717 = vpop.f32.mrb[0].mxu0
        %1718 = vmatprep.mubr.f32.mxu0 0.0
        %1719 = vmatmul.mubr.f32.gmra.mrb[0].mxu0 %v1619
        %v1720 = vpop.f32.mrb[0].mxu0
        %v1721 = vadd.f32 0.0, %v1720
        %v1722 = vpop.f32.mrb[0].mxu0
        %1723 = vmatprep.mubr.f32.mxu0 0.0
        %1724 = vmatmul.mubr.f32.gmra.mrb[0].mxu0 %v1622
        %v1725 = vpop.f32.mrb[0].mxu0
        %v1726 = vadd.f32 0.0, %v1725
        %v1727 = vpop.f32.mrb[0].mxu0
        %1728 = vdwg.mxu0
        %v1729 = vadd.f32 %v1590, %v1691
        %v1730 = vadd.f32 %v1591, %v1696
        %v1731 = vadd.f32 %v1592, %v1701
        %v1732 = vadd.f32 %v1593, %v1706
        %v1733 = vadd.f32 %v1594, %v1711
        %v1734 = vadd.f32 %v1595, %v1716
        %v1735 = vadd.f32 %v1596, %v1721
        %v1736 = vadd.f32 %v1597, %v1726
        %v1737 = vadd.f32 %v1539, %v1482
        %v1738 = vadd.f32 %v1543, %v1482
        %v1739 = vadd.f32 %v1547, %v1482
        %v1740 = vadd.f32 %v1551, %v1482
        %v1741 = vadd.f32 %v1555, %v1482
        %v1742 = vadd.f32 %v1559, %v1482
        %v1743 = vadd.f32 %v1563, %v1482
        %v1744 = vadd.f32 %v1567, %v1482
        %v1745 = vadd.f32 %v1737, %v1588
        %v1746 = vadd.f32 %v1738, %v1588
        %v1747 = vadd.f32 %v1739, %v1588
        %v1748 = vadd.f32 %v1740, %v1588
        %v1749 = vadd.f32 %v1741, %v1588
        %v1750 = vadd.f32 %v1742, %v1588
        %v1751 = vadd.f32 %v1743, %v1588
        %v1752 = vadd.f32 %v1744, %v1588
        %v1753 = vmax.f32 %v1729, 0.0
        %v1754 = vmax.f32 %v1745, 0.0
        %v1755 = vmax.f32 %v1730, 0.0
        %v1756 = vmax.f32 %v1746, 0.0
        %v1757 = vmax.f32 %v1731, 0.0
        %v1758 = vmax.f32 %v1747, 0.0
        %v1759 = vmax.f32 %v1732, 0.0
        %v1760 = vmax.f32 %v1748, 0.0
        %v1761 = vmax.f32 %v1733, 0.0
        %v1762 = vmax.f32 %v1749, 0.0
        %v1763 = vmax.f32 %v1734, 0.0
        %v1764 = vmax.f32 %v1750, 0.0
        %v1765 = vmax.f32 %v1735, 0.0
        %v1766 = vmax.f32 %v1751, 0.0
        %v1767 = vmax.f32 %v1736, 0.0
        %v1768 = vmax.f32 %v1752, 0.0
        %v1769 = vld [vmem:[%s33] sm:$0xff]
        %v1770 = vld [vmem:[%s33 + $0x8] sm:$0xff]
        %v1771 = vld [vmem:[%s33 + $0x10] sm:$0xff]
        %v1772 = vld [vmem:[%s33 + $0x18] sm:$0xff]
        %v1773 = vld [vmem:[%s33 + $0x20] sm:$0xff]
        %v1774 = vld [vmem:[%s33 + $0x28] sm:$0xff]
        %v1775 = vld [vmem:[%s33 + $0x30] sm:$0xff]
        %v1776 = vld [vmem:[%s33 + $0x38] sm:$0xff]
        %v1777 = vld [vmem:[%s35] sm:$0x1]
        %v1779 = vlaneseq
        %v1780 = vshrl.u32 %v1779, 7
        %v1781 = vsub.s32 0, %v1780
        %v1782 = vrot.slane %v1777, %v1781
        %vm1784 = vcmask 523264
        %v1786 = vsel %vm1784, %v1753, 0
        %v1789 = vsel %vm1784, %v1754, 0
        %v1792 = vsel %vm1784, %v1755, 0
        %v1795 = vsel %vm1784, %v1756, 0
        %v1798 = vsel %vm1784, %v1757, 0
        %v1801 = vsel %vm1784, %v1758, 0
        %v1804 = vsel %vm1784, %v1759, 0
        %v1807 = vsel %vm1784, %v1760, 0
        %v1810 = vsel %vm1784, %v1761, 0
        %v1813 = vsel %vm1784, %v1762, 0
        %v1816 = vsel %vm1784, %v1763, 0
        %v1819 = vsel %vm1784, %v1764, 0
        %v1822 = vsel %vm1784, %v1765, 0
        %v1825 = vsel %vm1784, %v1766, 0
        %v1828 = vsel %vm1784, %v1767, 0
        %v1831 = vsel %vm1784, %v1768, 0
        %1833 = vmatprep.subr.mxu0 0.0
        %1834 = vmatpush1.msra.mxu0 %v1769
        %1835 = vmatprep.subr.mxu0 0.0
        %1836 = vmatpush1.msra.mxu0 %v1770
        %1837 = vmatprep.subr.mxu0 0.0
        %1838 = vmatpush1.msra.mxu0 %v1771
        %1839 = vmatprep.subr.mxu0 0.0
        %1840 = vmatpush1.msra.mxu0 %v1772
        %1841 = vmatprep.subr.mxu0 0.0
        %1842 = vmatpush1.msra.mxu0 %v1773
        %1843 = vmatprep.subr.mxu0 0.0
        %1844 = vmatpush1.msra.mxu0 %v1774
        %1845 = vmatprep.subr.mxu0 0.0
        %1846 = vmatpush1.msra.mxu0 %v1775
        %1847 = vmatprep.subr.mxu0 0.0
        %1848 = vmatpush1.msra.mxu0 %v1776
        %1849 = vmatprep.subr.mxu0 0.0
        %1850 = vmatpush1.msra.mxu0 0.0
        %1851 = vmatprep.subr.mxu0 0.0
        %1852 = vmatpush1.msra.mxu0 0.0
        %1853 = vmatprep.subr.mxu0 0.0
        %1854 = vmatpush1.msra.mxu0 0.0
        %1855 = vmatprep.subr.mxu0 0.0
        %1856 = vmatpush1.msra.mxu0 0.0
        %1857 = vmatprep.subr.mxu0 0.0
        %1858 = vmatpush1.msra.mxu0 0.0
        %1859 = vmatprep.subr.mxu0 0.0
        %1860 = vmatpush1.msra.mxu0 0.0
        %1861 = vmatprep.subr.mxu0 0.0
        %1862 = vmatpush1.msra.mxu0 0.0
        %1863 = vmatprep.subr.mxu0 0.0
        %1864 = vmatpush1.msra.mxu0 0.0
        %1865 = vmatprep.subr.mxu0 0.0
        %1866 = vmatpush1.msra.mxu0 0.0
        %1867 = vmatprep.subr.mxu0 0.0
        %1868 = vmatpush1.msra.mxu0 0.0
        %1869 = vmatprep.subr.mxu0 0.0
        %1870 = vmatpush1.msra.mxu0 0.0
        %1871 = vmatprep.subr.mxu0 0.0
        %1872 = vmatpush1.msra.mxu0 0.0
        %1873 = vmatprep.subr.mxu0 0.0
        %1874 = vmatpush1.msra.mxu0 0.0
        %1875 = vmatprep.subr.mxu0 0.0
        %1876 = vmatpush1.msra.mxu0 0.0
        %1877 = vmatprep.subr.mxu0 0.0
        %1878 = vmatpush1.msra.mxu0 0.0
        %1879 = vmatprep.subr.mxu0 0.0
        %1880 = vmatpush1.msra.mxu0 0.0
        %1881 = vmatprep.subr.mxu0 0.0
        %1882 = vmatpush1.msra.mxu0 0.0
        %1883 = vmatprep.subr.mxu0 0.0
        %1884 = vmatpush1.msra.mxu0 0.0
        %1885 = vmatprep.subr.mxu0 0.0
        %1886 = vmatpush1.msra.mxu0 0.0
        %1887 = vmatprep.subr.mxu0 0.0
        %1888 = vmatpush1.msra.mxu0 0.0
        %1889 = vmatprep.subr.mxu0 0.0
        %1890 = vmatpush1.msra.mxu0 0.0
        %1891 = vmatprep.subr.mxu0 0.0
        %1892 = vmatpush1.msra.mxu0 0.0
        %1893 = vmatprep.subr.mxu0 0.0
        %1894 = vmatpush1.msra.mxu0 0.0
        %1895 = vmatprep.subr.mxu0 0.0
        %1896 = vmatpush1.msra.mxu0 0.0
        %1897 = vmatprep.mubr.f32.mxu0 0.0
        %1898 = vmatmul.mubr.f32.gmra.mrb[0].mxu0 %v1786
        %v1899 = vpop.f32.mrb[0].mxu0
        %v1900 = vadd.f32 %v1782, %v1899
        %v1901 = vpop.f32.mrb[0].mxu0
        %1902 = vmatprep.mubr.f32.mxu0 0.0
        %1903 = vmatmul.mubr.f32.gmra.mrb[0].mxu0 %v1789
        %v1904 = vpop.f32.mrb[0].mxu0
        %v1905 = vadd.f32 %v1782, %v1904
        %v1906 = vpop.f32.mrb[0].mxu0
        %1907 = vmatprep.mubr.f32.mxu0 0.0
        %1908 = vmatmul.mubr.f32.gmra.mrb[0].mxu0 %v1792
        %v1909 = vpop.f32.mrb[0].mxu0
        %v1910 = vadd.f32 %v1782, %v1909
        %v1911 = vpop.f32.mrb[0].mxu0
        %1912 = vmatprep.mubr.f32.mxu0 0.0
        %1913 = vmatmul.mubr.f32.gmra.mrb[0].mxu0 %v1795
        %v1914 = vpop.f32.mrb[0].mxu0
        %v1915 = vadd.f32 %v1782, %v1914
        %v1916 = vpop.f32.mrb[0].mxu0
        %1917 = vmatprep.mubr.f32.mxu0 0.0
        %1918 = vmatmul.mubr.f32.gmra.mrb[0].mxu0 %v1798
        %v1919 = vpop.f32.mrb[0].mxu0
        %v1920 = vadd.f32 %v1782, %v1919
        %v1921 = vpop.f32.mrb[0].mxu0
        %1922 = vmatprep.mubr.f32.mxu0 0.0
        %1923 = vmatmul.mubr.f32.gmra.mrb[0].mxu0 %v1801
        %v1924 = vpop.f32.mrb[0].mxu0
        %v1925 = vadd.f32 %v1782, %v1924
        %v1926 = vpop.f32.mrb[0].mxu0
        %1927 = vmatprep.mubr.f32.mxu0 0.0
        %1928 = vmatmul.mubr.f32.gmra.mrb[0].mxu0 %v1804
        %v1929 = vpop.f32.mrb[0].mxu0
        %v1930 = vadd.f32 %v1782, %v1929
        %v1931 = vpop.f32.mrb[0].mxu0
        %1932 = vmatprep.mubr.f32.mxu0 0.0
        %1933 = vmatmul.mubr.f32.gmra.mrb[0].mxu0 %v1807
        %v1934 = vpop.f32.mrb[0].mxu0
        %v1935 = vadd.f32 %v1782, %v1934
        %v1936 = vpop.f32.mrb[0].mxu0
        %1937 = vmatprep.mubr.f32.mxu0 0.0
        %1938 = vmatmul.mubr.f32.gmra.mrb[0].mxu0 %v1810
        %v1939 = vpop.f32.mrb[0].mxu0
        %v1940 = vadd.f32 %v1782, %v1939
        %v1941 = vpop.f32.mrb[0].mxu0
        %1942 = vmatprep.mubr.f32.mxu0 0.0
        %1943 = vmatmul.mubr.f32.gmra.mrb[0].mxu0 %v1813
        %v1944 = vpop.f32.mrb[0].mxu0
        %v1945 = vadd.f32 %v1782, %v1944
        %v1946 = vpop.f32.mrb[0].mxu0
        %1947 = vmatprep.mubr.f32.mxu0 0.0
        %1948 = vmatmul.mubr.f32.gmra.mrb[0].mxu0 %v1816
        %v1949 = vpop.f32.mrb[0].mxu0
        %v1950 = vadd.f32 %v1782, %v1949
        %v1951 = vpop.f32.mrb[0].mxu0
        %1952 = vmatprep.mubr.f32.mxu0 0.0
        %1953 = vmatmul.mubr.f32.gmra.mrb[0].mxu0 %v1819
        %v1954 = vpop.f32.mrb[0].mxu0
        %v1955 = vadd.f32 %v1782, %v1954
        %v1956 = vpop.f32.mrb[0].mxu0
        %1957 = vmatprep.mubr.f32.mxu0 0.0
        %1958 = vmatmul.mubr.f32.gmra.mrb[0].mxu0 %v1822
        %v1959 = vpop.f32.mrb[0].mxu0
        %v1960 = vadd.f32 %v1782, %v1959
        %v1961 = vpop.f32.mrb[0].mxu0
        %1962 = vmatprep.mubr.f32.mxu0 0.0
        %1963 = vmatmul.mubr.f32.gmra.mrb[0].mxu0 %v1825
        %v1964 = vpop.f32.mrb[0].mxu0
        %v1965 = vadd.f32 %v1782, %v1964
        %v1966 = vpop.f32.mrb[0].mxu0
        %1967 = vmatprep.mubr.f32.mxu0 0.0
        %1968 = vmatmul.mubr.f32.gmra.mrb[0].mxu0 %v1828
        %v1969 = vpop.f32.mrb[0].mxu0
        %v1970 = vadd.f32 %v1782, %v1969
        %v1971 = vpop.f32.mrb[0].mxu0
        %1972 = vmatprep.mubr.f32.mxu0 0.0
        %1973 = vmatmul.mubr.f32.gmra.mrb[0].mxu0 %v1831
        %v1974 = vpop.f32.mrb[0].mxu0
        %v1975 = vadd.f32 %v1782, %v1974
        %v1976 = vpop.f32.mrb[0].mxu0
        %1977 = vdwg.mxu0
        %1979 = vset.pattern.permute.xlu0 0
        %1980 = vperm.xlu0 %1979, %v1289
        %v1981 = vpop.permute.xlu0 %1980
        %v1983 = vlaneseq
        %v1984 = vshrl.u32 %v1983, 7
        %v1985 = vsub.s32 0, %v1984
        %v1986 = vrot.slane %v1305, %v1985
        %v1987 = vsub.f32 %v1981, %v1986
        %1988 = vset.pattern.permute.xlu0 1
        %1989 = vperm.xlu0 %1988, %v1289
        %v1990 = vpop.permute.xlu0 %1989
        %v1992 = vlaneseq
        %v1993 = vshrl.u32 %v1992, 7
        %v1994 = vsub.s32 1, %v1993
        %v1995 = vrot.slane %v1305, %v1994
        %v1996 = vsub.f32 %v1990, %v1995
        %1997 = vset.pattern.permute.xlu0 2
        %1998 = vperm.xlu0 %1997, %v1289
        %v1999 = vpop.permute.xlu0 %1998
        %v2001 = vlaneseq
        %v2002 = vshrl.u32 %v2001, 7
        %v2003 = vsub.s32 2, %v2002
        %v2004 = vrot.slane %v1305, %v2003
        %v2005 = vsub.f32 %v1999, %v2004
        %v2006 = vmul.f32 %v1987, %v1987
        %v2007 = vmul.f32 %v1996, %v1996
        %v2008 = vadd.f32 %v2006, %v2007
        %v2009 = vmul.f32 %v2005, %v2005
        %v2010 = vadd.f32 %v2008, %v2009
        %2012 = vset.pattern.permute.xlu0 0
        %2013 = vperm.xlu0 %2012, %v1288
        %v2014 = vpop.permute.xlu0 %2013
        %v2016 = vlaneseq
        %v2017 = vshrl.u32 %v2016, 7
        %v2018 = vsub.s32 0, %v2017
        %v2019 = vrot.slane %v1304, %v2018
        %v2020 = vmul.f32 %v2014, %v2019
        %2021 = vset.pattern.permute.xlu0 1
        %2022 = vperm.xlu0 %2021, %v1288
        %v2023 = vpop.permute.xlu0 %2022
        %v2025 = vlaneseq
        %v2026 = vshrl.u32 %v2025, 7
        %v2027 = vsub.s32 1, %v2026
        %v2028 = vrot.slane %v1304, %v2027
        %v2029 = vmul.f32 %v2023, %v2028
        %v2030 = vadd.f32 %v2020, %v2029
        %2031 = vset.pattern.permute.xlu0 2
        %2032 = vperm.xlu0 %2031, %v1288
        %v2033 = vpop.permute.xlu0 %2032
        %v2035 = vlaneseq
        %v2036 = vshrl.u32 %v2035, 7
        %v2037 = vsub.s32 2, %v2036
        %v2038 = vrot.slane %v1304, %v2037
        %v2039 = vmul.f32 %v2033, %v2038
        %v2040 = vadd.f32 %v2030, %v2039
        %2041 = vset.pattern.permute.xlu0 3
        %2042 = vperm.xlu0 %2041, %v1288
        %v2043 = vpop.permute.xlu0 %2042
        %v2045 = vlaneseq
        %v2046 = vshrl.u32 %v2045, 7
        %v2047 = vsub.s32 3, %v2046
        %v2048 = vrot.slane %v1304, %v2047
        %v2049 = vmul.f32 %v2043, %v2048
        %v2050 = vadd.f32 %v2040, %v2049
        %v2051 = vmul.f32 %v2050, %v2050
        %v2052 = vmul.f32 %v1304, %v1304
        %v2054 = vrot.slane %v2052, 1
        %v2056 = vadd.f32 %v2052, %v2054
        %v2057 = vrot.slane %v2052, 2
        %v2059 = vadd.f32 %v2056, %v2057
        %v2060 = vrot.slane %v2052, 3
        %v2062 = vadd.f32 %v2059, %v2060
        %v2063 = vrcp.pop %v2062
        %v2064 = vmul.f32 1.0, %v2063
        %v2065 = vmul.f32 %v1304, %v2064
        %v2066 = vsub.f32 0.0, %v1304
        %v2068 = vrot.slane %v2064, 7
        %v2070 = vmul.f32 %v2066, %v2068
        %v2071 = vrot.slane %v2064, 6
        %v2073 = vmul.f32 %v2066, %v2071
        %v2074 = vrot.slane %v2064, 5
        %v2076 = vmul.f32 %v2066, %v2074
        %v2077 = vsub.f32 %v2020, %v2029
        %v2078 = vsub.f32 %v2077, %v2039
        %v2079 = vsub.f32 %v2078, %v2049
        %v2080 = vmul.f32 %v2014, %v2028
        %v2081 = vmul.f32 %v2023, %v2019
        %v2082 = vadd.f32 %v2080, %v2081
        %v2083 = vmul.f32 %v2033, %v2048
        %v2084 = vadd.f32 %v2082, %v2083
        %v2085 = vmul.f32 %v2043, %v2038
        %v2086 = vsub.f32 %v2084, %v2085
        %v2087 = vmul.f32 %v2014, %v2038
        %v2088 = vmul.f32 %v2023, %v2048
        %v2089 = vsub.f32 %v2087, %v2088
        %v2090 = vmul.f32 %v2033, %v2019
        %v2091 = vadd.f32 %v2089, %v2090
        %v2092 = vmul.f32 %v2043, %v2028
        %v2093 = vadd.f32 %v2091, %v2092
        %v2094 = vmul.f32 %v2014, %v2048
        %v2095 = vmul.f32 %v2023, %v2038
        %v2096 = vadd.f32 %v2094, %v2095
        %v2097 = vmul.f32 %v2033, %v2028
        %v2098 = vsub.f32 %v2096, %v2097
        %v2099 = vmul.f32 %v2043, %v2019
        %v2100 = vadd.f32 %v2098, %v2099
        %v2101 = vlaneseq
        %v2102 = vshrl.u32 %v2101, 7
        %v2103 = vsub.s32 0, %v2102
        %v2104 = vrot.slane %v2065, %v2103
        %v2105 = vmul.f32 %v2104, %v2079
        %v2106 = vlaneseq
        %v2107 = vshrl.u32 %v2106, 7
        %v2108 = vsub.s32 1, %v2107
        %v2109 = vrot.slane %v2070, %v2108
        %v2110 = vmul.f32 %v2109, %v2086
        %v2111 = vsub.f32 %v2105, %v2110
        %v2112 = vlaneseq
        %v2113 = vshrl.u32 %v2112, 7
        %v2114 = vsub.s32 2, %v2113
        %v2115 = vrot.slane %v2073, %v2114
        %v2116 = vmul.f32 %v2115, %v2093
        %v2117 = vsub.f32 %v2111, %v2116
        %v2118 = vlaneseq
        %v2119 = vshrl.u32 %v2118, 7
        %v2120 = vsub.s32 3, %v2119
        %v2121 = vrot.slane %v2076, %v2120
        %v2122 = vmul.f32 %v2121, %v2100
        %v2123 = vsub.f32 %v2117, %v2122
        %v2124 = vmul.f32 %v2104, %v2086
        %v2125 = vmul.f32 %v2109, %v2079
        %v2126 = vadd.f32 %v2124, %v2125
        %v2127 = vmul.f32 %v2115, %v2100
        %v2128 = vadd.f32 %v2126, %v2127
        %v2129 = vmul.f32 %v2121, %v2093
        %v2130 = vsub.f32 %v2128, %v2129
        %v2131 = vmul.f32 %v2104, %v2093
        %v2132 = vmul.f32 %v2109, %v2100
        %v2133 = vsub.f32 %v2131, %v2132
        %v2134 = vmul.f32 %v2115, %v2079
        %v2135 = vadd.f32 %v2133, %v2134
        %v2136 = vmul.f32 %v2121, %v2086
        %v2137 = vadd.f32 %v2135, %v2136
        %v2138 = vmul.f32 %v2104, %v2100
        %v2139 = vmul.f32 %v2109, %v2093
        %v2140 = vadd.f32 %v2138, %v2139
        %v2141 = vmul.f32 %v2115, %v2086
        %v2142 = vsub.f32 %v2140, %v2141
        %v2143 = vmul.f32 %v2121, %v2079
        %v2144 = vadd.f32 %v2142, %v2143
        %v2145 = vld [vmem:[%s37] sm:$0xff]
        %v2146 = vld [vmem:[%s37 + $0x8] sm:$0xff]
        %v2147 = vld [vmem:[%s37 + $0x10] sm:$0xff]
        %v2148 = vld [vmem:[%s37 + $0x18] sm:$0xff]
        %v2149 = vld [vmem:[%s39] sm:$0x3]
        %v2151 = vlaneseq
        %v2152 = vshrl.u32 %v2151, 7
        %v2153 = vsub.s32 0, %v2152
        %v2154 = vrot.slane %v2149, %v2153
        %v2155 = vlaneseq
        %v2156 = vshrl.u32 %v2155, 7
        %v2157 = vsub.s32 1, %v2156
        %v2158 = vrot.slane %v2149, %v2157
        %v2162 = vsel %vm1328, %v1900, 0
        %v2165 = vsel %vm1328, %v1905, 0
        %v2168 = vsel %vm1328, %v1910, 0
        %v2171 = vsel %vm1328, %v1915, 0
        %v2174 = vsel %vm1328, %v1920, 0
        %v2177 = vsel %vm1328, %v1925, 0
        %v2180 = vsel %vm1328, %v1930, 0
        %v2183 = vsel %vm1328, %v1935, 0
        %v2186 = vsel %vm1328, %v1940, 0
        %v2189 = vsel %vm1328, %v1945, 0
        %v2192 = vsel %vm1328, %v1950, 0
        %v2195 = vsel %vm1328, %v1955, 0
        %v2198 = vsel %vm1328, %v1960, 0
        %v2201 = vsel %vm1328, %v1965, 0
        %v2204 = vsel %vm1328, %v1970, 0
        %v2207 = vsel %vm1328, %v1975, 0
        %2209 = vmatprep.subr.mxu0 %v2146
        %2210 = vmatpush1.msra.mxu0 %v2145
        %2211 = vmatprep.subr.mxu0 %v2148
        %2212 = vmatpush1.msra.mxu0 %v2147
        %2213 = vmatprep.subr.mxu0 0.0
        %2214 = vmatpush1.msra.mxu0 0.0
        %2215 = vmatprep.subr.mxu0 0.0
        %2216 = vmatpush1.msra.mxu0 0.0
        %2217 = vmatprep.subr.mxu0 0.0
        %2218 = vmatpush1.msra.mxu0 0.0
        %2219 = vmatprep.subr.mxu0 0.0
        %2220 = vmatpush1.msra.mxu0 0.0
        %2221 = vmatprep.subr.mxu0 0.0
        %2222 = vmatpush1.msra.mxu0 0.0
        %2223 = vmatprep.subr.mxu0 0.0
        %2224 = vmatpush1.msra.mxu0 0.0
        %2225 = vmatprep.subr.mxu0 0.0
        %2226 = vmatpush1.msra.mxu0 0.0
        %2227 = vmatprep.subr.mxu0 0.0
        %2228 = vmatpush1.msra.mxu0 0.0
        %2229 = vmatprep.subr.mxu0 0.0
        %2230 = vmatpush1.msra.mxu0 0.0
        %2231 = vmatprep.subr.mxu0 0.0
        %2232 = vmatpush1.msra.mxu0 0.0
        %2233 = vmatprep.subr.mxu0 0.0
        %2234 = vmatpush1.msra.mxu0 0.0
        %2235 = vmatprep.subr.mxu0 0.0
        %2236 = vmatpush1.msra.mxu0 0.0
        %2237 = vmatprep.subr.mxu0 0.0
        %2238 = vmatpush1.msra.mxu0 0.0
        %2239 = vmatprep.subr.mxu0 0.0
        %2240 = vmatpush1.msra.mxu0 0.0
        %2241 = vmatprep.subr.mxu0 0.0
        %2242 = vmatpush1.msra.mxu0 0.0
        %2243 = vmatprep.subr.mxu0 0.0
        %2244 = vmatpush1.msra.mxu0 0.0
        %2245 = vmatprep.subr.mxu0 0.0
        %2246 = vmatpush1.msra.mxu0 0.0
        %2247 = vmatprep.subr.mxu0 0.0
        %2248 = vmatpush1.msra.mxu0 0.0
        %2249 = vmatprep.subr.mxu0 0.0
        %2250 = vmatpush1.msra.mxu0 0.0
        %2251 = vmatprep.subr.mxu0 0.0
        %2252 = vmatpush1.msra.mxu0 0.0
        %2253 = vmatprep.subr.mxu0 0.0
        %2254 = vmatpush1.msra.mxu0 0.0
        %2255 = vmatprep.subr.mxu0 0.0
        %2256 = vmatpush1.msra.mxu0 0.0
        %2257 = vmatprep.subr.mxu0 0.0
        %2258 = vmatpush1.msra.mxu0 0.0
        %2259 = vmatprep.subr.mxu0 0.0
        %2260 = vmatpush1.msra.mxu0 0.0
        %2261 = vmatprep.subr.mxu0 0.0
        %2262 = vmatpush1.msra.mxu0 0.0
        %2263 = vmatprep.subr.mxu0 0.0
        %2264 = vmatpush1.msra.mxu0 0.0
        %2265 = vmatprep.subr.mxu0 0.0
        %2266 = vmatpush1.msra.mxu0 0.0
        %2267 = vmatprep.subr.mxu0 0.0
        %2268 = vmatpush1.msra.mxu0 0.0
        %2269 = vmatprep.subr.mxu0 0.0
        %2270 = vmatpush1.msra.mxu0 0.0
        %2271 = vmatprep.subr.mxu0 0.0
        %2272 = vmatpush1.msra.mxu0 0.0
        %2273 = vmatprep.mubr.f32.mxu0 0.0
        %2274 = vmatmul.mubr.f32.gmra.mrb[0].mxu0 %v2162
        %v2275 = vpop.f32.mrb[0].mxu0
        %v2276 = vadd.f32 %v2154, %v2275
        %v2277 = vpop.f32.mrb[0].mxu0
        %v2278 = vadd.f32 %v2158, %v2277
        %2279 = vmatprep.mubr.f32.mxu0 0.0
        %2280 = vmatmul.mubr.f32.gmra.mrb[0].mxu0 %v2165
        %v2281 = vpop.f32.mrb[0].mxu0
        %v2282 = vadd.f32 %v2154, %v2281
        %v2283 = vpop.f32.mrb[0].mxu0
        %v2284 = vadd.f32 %v2158, %v2283
        %2285 = vmatprep.mubr.f32.mxu0 0.0
        %2286 = vmatmul.mubr.f32.gmra.mrb[0].mxu0 %v2168
        %v2287 = vpop.f32.mrb[0].mxu0
        %v2288 = vadd.f32 %v2154, %v2287
        %v2289 = vpop.f32.mrb[0].mxu0
        %v2290 = vadd.f32 %v2158, %v2289
        %2291 = vmatprep.mubr.f32.mxu0 0.0
        %2292 = vmatmul.mubr.f32.gmra.mrb[0].mxu0 %v2171
        %v2293 = vpop.f32.mrb[0].mxu0
        %v2294 = vadd.f32 %v2154, %v2293
        %v2295 = vpop.f32.mrb[0].mxu0
        %v2296 = vadd.f32 %v2158, %v2295
        %2297 = vmatprep.mubr.f32.mxu0 0.0
        %2298 = vmatmul.mubr.f32.gmra.mrb[0].mxu0 %v2174
        %v2299 = vpop.f32.mrb[0].mxu0
        %v2300 = vadd.f32 %v2154, %v2299
        %v2301 = vpop.f32.mrb[0].mxu0
        %v2302 = vadd.f32 %v2158, %v2301
        %2303 = vmatprep.mubr.f32.mxu0 0.0
        %2304 = vmatmul.mubr.f32.gmra.mrb[0].mxu0 %v2177
        %v2305 = vpop.f32.mrb[0].mxu0
        %v2306 = vadd.f32 %v2154, %v2305
        %v2307 = vpop.f32.mrb[0].mxu0
        %v2308 = vadd.f32 %v2158, %v2307
        %2309 = vmatprep.mubr.f32.mxu0 0.0
        %2310 = vmatmul.mubr.f32.gmra.mrb[0].mxu0 %v2180
        %v2311 = vpop.f32.mrb[0].mxu0
        %v2312 = vadd.f32 %v2154, %v2311
        %v2313 = vpop.f32.mrb[0].mxu0
        %v2314 = vadd.f32 %v2158, %v2313
        %2315 = vmatprep.mubr.f32.mxu0 0.0
        %2316 = vmatmul.mubr.f32.gmra.mrb[0].mxu0 %v2183
        %v2317 = vpop.f32.mrb[0].mxu0
        %v2318 = vadd.f32 %v2154, %v2317
        %v2319 = vpop.f32.mrb[0].mxu0
        %v2320 = vadd.f32 %v2158, %v2319
        %2321 = vmatprep.mubr.f32.mxu0 0.0
        %2322 = vmatmul.mubr.f32.gmra.mrb[0].mxu0 %v2186
        %v2323 = vpop.f32.mrb[0].mxu0
        %v2324 = vadd.f32 %v2154, %v2323
        %v2325 = vpop.f32.mrb[0].mxu0
        %v2326 = vadd.f32 %v2158, %v2325
        %2327 = vmatprep.mubr.f32.mxu0 0.0
        %2328 = vmatmul.mubr.f32.gmra.mrb[0].mxu0 %v2189
        %v2329 = vpop.f32.mrb[0].mxu0
        %v2330 = vadd.f32 %v2154, %v2329
        %v2331 = vpop.f32.mrb[0].mxu0
        %v2332 = vadd.f32 %v2158, %v2331
        %2333 = vmatprep.mubr.f32.mxu0 0.0
        %2334 = vmatmul.mubr.f32.gmra.mrb[0].mxu0 %v2192
        %v2335 = vpop.f32.mrb[0].mxu0
        %v2336 = vadd.f32 %v2154, %v2335
        %v2337 = vpop.f32.mrb[0].mxu0
        %v2338 = vadd.f32 %v2158, %v2337
        %2339 = vmatprep.mubr.f32.mxu0 0.0
        %2340 = vmatmul.mubr.f32.gmra.mrb[0].mxu0 %v2195
        %v2341 = vpop.f32.mrb[0].mxu0
        %v2342 = vadd.f32 %v2154, %v2341
        %v2343 = vpop.f32.mrb[0].mxu0
        %v2344 = vadd.f32 %v2158, %v2343
        %2345 = vmatprep.mubr.f32.mxu0 0.0
        %2346 = vmatmul.mubr.f32.gmra.mrb[0].mxu0 %v2198
        %v2347 = vpop.f32.mrb[0].mxu0
        %v2348 = vadd.f32 %v2154, %v2347
        %v2349 = vpop.f32.mrb[0].mxu0
        %v2350 = vadd.f32 %v2158, %v2349
        %2351 = vmatprep.mubr.f32.mxu0 0.0
        %2352 = vmatmul.mubr.f32.gmra.mrb[0].mxu0 %v2201
        %v2353 = vpop.f32.mrb[0].mxu0
        %v2354 = vadd.f32 %v2154, %v2353
        %v2355 = vpop.f32.mrb[0].mxu0
        %v2356 = vadd.f32 %v2158, %v2355
        %2357 = vmatprep.mubr.f32.mxu0 0.0
        %2358 = vmatmul.mubr.f32.gmra.mrb[0].mxu0 %v2204
        %v2359 = vpop.f32.mrb[0].mxu0
        %v2360 = vadd.f32 %v2154, %v2359
        %v2361 = vpop.f32.mrb[0].mxu0
        %v2362 = vadd.f32 %v2158, %v2361
        %2363 = vmatprep.mubr.f32.mxu0 0.0
        %2364 = vmatmul.mubr.f32.gmra.mrb[0].mxu0 %v2207
        %v2365 = vpop.f32.mrb[0].mxu0
        %v2366 = vadd.f32 %v2154, %v2365
        %v2367 = vpop.f32.mrb[0].mxu0
        %v2368 = vadd.f32 %v2158, %v2367
        %2369 = vdwg.mxu0
        %v2370 = vsub.f32 0.0, %v2010
        %v2371 = vlaneseq
        %v2372 = vshrl.u32 %v2371, 7
        %v2373 = vsub.s32 0, %v2372
        %v2374 = vrot.slane %v2051, %v2373
        %2376 = vbcast.lane.b32.xlu0 %v2374, 256
        %v2377 = vpop.permute.xlu0 %2376
        %s2379 = sor.u32 256, 8
        %2380 = vbcast.lane.b32.xlu0 %v2374, %s2379
        %v2381 = vpop.permute.xlu0 %2380
        %v2382 = vlaneseq
        %v2383 = vshrl.u32 %v2382, 7
        %v2384 = vsub.s32 1, %v2383
        %v2385 = vrot.slane %v2051, %v2384
        %2387 = vbcast.lane.b32.xlu0 %v2385, 256
        %v2388 = vpop.permute.xlu0 %2387
        %s2390 = sor.u32 256, 8
        %2391 = vbcast.lane.b32.xlu0 %v2385, %s2390
        %v2392 = vpop.permute.xlu0 %2391
        %v2393 = vlaneseq
        %v2394 = vshrl.u32 %v2393, 7
        %v2395 = vsub.s32 2, %v2394
        %v2396 = vrot.slane %v2051, %v2395
        %2398 = vbcast.lane.b32.xlu0 %v2396, 256
        %v2399 = vpop.permute.xlu0 %2398
        %s2401 = sor.u32 256, 8
        %2402 = vbcast.lane.b32.xlu0 %v2396, %s2401
        %v2403 = vpop.permute.xlu0 %2402
        %v2404 = vlaneseq
        %v2405 = vshrl.u32 %v2404, 7
        %v2406 = vsub.s32 3, %v2405
        %v2407 = vrot.slane %v2051, %v2406
        %2409 = vbcast.lane.b32.xlu0 %v2407, 256
        %v2410 = vpop.permute.xlu0 %2409
        %s2412 = sor.u32 256, 8
        %2413 = vbcast.lane.b32.xlu0 %v2407, %s2412
        %v2414 = vpop.permute.xlu0 %2413
        %v2415 = vlaneseq
        %v2416 = vshrl.u32 %v2415, 7
        %v2417 = vsub.s32 4, %v2416
        %v2418 = vrot.slane %v2051, %v2417
        %2420 = vbcast.lane.b32.xlu0 %v2418, 256
        %v2421 = vpop.permute.xlu0 %2420
        %s2423 = sor.u32 256, 8
        %2424 = vbcast.lane.b32.xlu0 %v2418, %s2423
        %v2425 = vpop.permute.xlu0 %2424
        %v2426 = vlaneseq
        %v2427 = vshrl.u32 %v2426, 7
        %v2428 = vsub.s32 5, %v2427
        %v2429 = vrot.slane %v2051, %v2428
        %2431 = vbcast.lane.b32.xlu0 %v2429, 256
        %v2432 = vpop.permute.xlu0 %2431
        %s2434 = sor.u32 256, 8
        %2435 = vbcast.lane.b32.xlu0 %v2429, %s2434
        %v2436 = vpop.permute.xlu0 %2435
        %v2437 = vlaneseq
        %v2438 = vshrl.u32 %v2437, 7
        %v2439 = vsub.s32 6, %v2438
        %v2440 = vrot.slane %v2051, %v2439
        %2442 = vbcast.lane.b32.xlu0 %v2440, 256
        %v2443 = vpop.permute.xlu0 %2442
        %s2445 = sor.u32 256, 8
        %2446 = vbcast.lane.b32.xlu0 %v2440, %s2445
        %v2447 = vpop.permute.xlu0 %2446
        %v2448 = vlaneseq
        %v2449 = vshrl.u32 %v2448, 7
        %v2450 = vsub.s32 7, %v2449
        %v2451 = vrot.slane %v2051, %v2450
        %2453 = vbcast.lane.b32.xlu0 %v2451, 256
        %v2454 = vpop.permute.xlu0 %2453
        %s2456 = sor.u32 256, 8
        %2457 = vbcast.lane.b32.xlu0 %v2451, %s2456
        %v2458 = vpop.permute.xlu0 %2457
        %vm2459 = vcmp.eq.s32.totalorder %v1311, 0
        %v2460 = vlaneseq
        %v2461 = vshrl.u32 %v2460, 7
        %v2462 = vsub.s32 0, %v2461
        %v2463 = vrot.slane %v2370, %v2462
        %2465 = vbcast.lane.b32.xlu0 %v2463, 256
        %v2466 = vpop.permute.xlu0 %2465
        %s2468 = sor.u32 256, 8
        %2469 = vbcast.lane.b32.xlu0 %v2463, %s2468
        %v2470 = vpop.permute.xlu0 %2469
        %v2471 = vlaneseq
        %v2472 = vshrl.u32 %v2471, 7
        %v2473 = vsub.s32 1, %v2472
        %v2474 = vrot.slane %v2370, %v2473
        %2476 = vbcast.lane.b32.xlu0 %v2474, 256
        %v2477 = vpop.permute.xlu0 %2476
        %s2479 = sor.u32 256, 8
        %2480 = vbcast.lane.b32.xlu0 %v2474, %s2479
        %v2481 = vpop.permute.xlu0 %2480
        %v2482 = vlaneseq
        %v2483 = vshrl.u32 %v2482, 7
        %v2484 = vsub.s32 2, %v2483
        %v2485 = vrot.slane %v2370, %v2484
        %2487 = vbcast.lane.b32.xlu0 %v2485, 256
        %v2488 = vpop.permute.xlu0 %2487
        %s2490 = sor.u32 256, 8
        %2491 = vbcast.lane.b32.xlu0 %v2485, %s2490
        %v2492 = vpop.permute.xlu0 %2491
        %v2493 = vlaneseq
        %v2494 = vshrl.u32 %v2493, 7
        %v2495 = vsub.s32 3, %v2494
        %v2496 = vrot.slane %v2370, %v2495
        %2498 = vbcast.lane.b32.xlu0 %v2496, 256
        %v2499 = vpop.permute.xlu0 %2498
        %s2501 = sor.u32 256, 8
        %2502 = vbcast.lane.b32.xlu0 %v2496, %s2501
        %v2503 = vpop.permute.xlu0 %2502
        %v2504 = vlaneseq
        %v2505 = vshrl.u32 %v2504, 7
        %v2506 = vsub.s32 4, %v2505
        %v2507 = vrot.slane %v2370, %v2506
        %2509 = vbcast.lane.b32.xlu0 %v2507, 256
        %v2510 = vpop.permute.xlu0 %2509
        %s2512 = sor.u32 256, 8
        %2513 = vbcast.lane.b32.xlu0 %v2507, %s2512
        %v2514 = vpop.permute.xlu0 %2513
        %v2515 = vlaneseq
        %v2516 = vshrl.u32 %v2515, 7
        %v2517 = vsub.s32 5, %v2516
        %v2518 = vrot.slane %v2370, %v2517
        %2520 = vbcast.lane.b32.xlu0 %v2518, 256
        %v2521 = vpop.permute.xlu0 %2520
        %s2523 = sor.u32 256, 8
        %2524 = vbcast.lane.b32.xlu0 %v2518, %s2523
        %v2525 = vpop.permute.xlu0 %2524
        %v2526 = vlaneseq
        %v2527 = vshrl.u32 %v2526, 7
        %v2528 = vsub.s32 6, %v2527
        %v2529 = vrot.slane %v2370, %v2528
        %2531 = vbcast.lane.b32.xlu0 %v2529, 256
        %v2532 = vpop.permute.xlu0 %2531
        %s2534 = sor.u32 256, 8
        %2535 = vbcast.lane.b32.xlu0 %v2529, %s2534
        %v2536 = vpop.permute.xlu0 %2535
        %v2537 = vlaneseq
        %v2538 = vshrl.u32 %v2537, 7
        %v2539 = vsub.s32 7, %v2538
        %v2540 = vrot.slane %v2370, %v2539
        %2542 = vbcast.lane.b32.xlu0 %v2540, 256
        %v2543 = vpop.permute.xlu0 %2542
        %s2545 = sor.u32 256, 8
        %2546 = vbcast.lane.b32.xlu0 %v2540, %s2545
        %v2547 = vpop.permute.xlu0 %2546
        %v2548 = vsel %vm2459, %v2466, %v2377
        %v2549 = vsel %vm2459, %v2470, %v2381
        %v2550 = vsel %vm2459, %v2477, %v2388
        %v2551 = vsel %vm2459, %v2481, %v2392
        %v2552 = vsel %vm2459, %v2488, %v2399
        %v2553 = vsel %vm2459, %v2492, %v2403
        %v2554 = vsel %vm2459, %v2499, %v2410
        %v2555 = vsel %vm2459, %v2503, %v2414
        %v2556 = vsel %vm2459, %v2510, %v2421
        %v2557 = vsel %vm2459, %v2514, %v2425
        %v2558 = vsel %vm2459, %v2521, %v2432
        %v2559 = vsel %vm2459, %v2525, %v2436
        %v2560 = vsel %vm2459, %v2532, %v2443
        %v2561 = vsel %vm2459, %v2536, %v2447
        %v2562 = vsel %vm2459, %v2543, %v2454
        %v2563 = vsel %vm2459, %v2547, %v2458
        %v2564 = vld [vmem:[%s41] sm:$0x3]
        %vm2565 = vcmask 15360
        %v2567 = vsel %vm2565, %v2548, 0
        %v2570 = vsel %vm2565, %v2549, 0
        %v2573 = vsel %vm2565, %v2550, 0
        %v2576 = vsel %vm2565, %v2551, 0
        %v2579 = vsel %vm2565, %v2552, 0
        %v2582 = vsel %vm2565, %v2553, 0
        %v2585 = vsel %vm2565, %v2554, 0
        %v2588 = vsel %vm2565, %v2555, 0
        %v2591 = vsel %vm2565, %v2556, 0
        %v2594 = vsel %vm2565, %v2557, 0
        %v2597 = vsel %vm2565, %v2558, 0
        %v2600 = vsel %vm2565, %v2559, 0
        %v2603 = vsel %vm2565, %v2560, 0
        %v2606 = vsel %vm2565, %v2561, 0
        %v2609 = vsel %vm2565, %v2562, 0
        %v2612 = vsel %vm2565, %v2563, 0
        %vm2614 = vcmask 1041408
        %v2616 = vsel %vm2614, %v2564, 0
        %2618 = vmatprep.subr.mxu0 0.0
        %2619 = vmatpush1.msra.mxu0 %v2616
        %2620 = vmatprep.subr.mxu0 0.0
        %2621 = vmatpush1.msra.mxu0 0.0
        %2622 = vmatprep.subr.mxu0 0.0
        %2623 = vmatpush1.msra.mxu0 0.0
        %2624 = vmatprep.subr.mxu0 0.0
        %2625 = vmatpush1.msra.mxu0 0.0
        %2626 = vmatprep.subr.mxu0 0.0
        %2627 = vmatpush1.msra.mxu0 0.0
        %2628 = vmatprep.subr.mxu0 0.0
        %2629 = vmatpush1.msra.mxu0 0.0
        %2630 = vmatprep.subr.mxu0 0.0
        %2631 = vmatpush1.msra.mxu0 0.0
        %2632 = vmatprep.subr.mxu0 0.0
        %2633 = vmatpush1.msra.mxu0 0.0
        %2634 = vmatprep.subr.mxu0 0.0
        %2635 = vmatpush1.msra.mxu0 0.0
        %2636 = vmatprep.subr.mxu0 0.0
        %2637 = vmatpush1.msra.mxu0 0.0
        %2638 = vmatprep.subr.mxu0 0.0
        %2639 = vmatpush1.msra.mxu0 0.0
        %2640 = vmatprep.subr.mxu0 0.0
        %2641 = vmatpush1.msra.mxu0 0.0
        %2642 = vmatprep.subr.mxu0 0.0
        %2643 = vmatpush1.msra.mxu0 0.0
        %2644 = vmatprep.subr.mxu0 0.0
        %2645 = vmatpush1.msra.mxu0 0.0
        %2646 = vmatprep.subr.mxu0 0.0
        %2647 = vmatpush1.msra.mxu0 0.0
        %2648 = vmatprep.subr.mxu0 0.0
        %2649 = vmatpush1.msra.mxu0 0.0
        %2650 = vmatprep.subr.mxu0 0.0
        %2651 = vmatpush1.msra.mxu0 0.0
        %2652 = vmatprep.subr.mxu0 0.0
        %2653 = vmatpush1.msra.mxu0 0.0
        %2654 = vmatprep.subr.mxu0 0.0
        %2655 = vmatpush1.msra.mxu0 0.0
        %2656 = vmatprep.subr.mxu0 0.0
        %2657 = vmatpush1.msra.mxu0 0.0
        %2658 = vmatprep.subr.mxu0 0.0
        %2659 = vmatpush1.msra.mxu0 0.0
        %2660 = vmatprep.subr.mxu0 0.0
        %2661 = vmatpush1.msra.mxu0 0.0
        %2662 = vmatprep.subr.mxu0 0.0
        %2663 = vmatpush1.msra.mxu0 0.0
        %2664 = vmatprep.subr.mxu0 0.0
        %2665 = vmatpush1.msra.mxu0 0.0
        %2666 = vmatprep.subr.mxu0 0.0
        %2667 = vmatpush1.msra.mxu0 0.0
        %2668 = vmatprep.subr.mxu0 0.0
        %2669 = vmatpush1.msra.mxu0 0.0
        %2670 = vmatprep.subr.mxu0 0.0
        %2671 = vmatpush1.msra.mxu0 0.0
        %2672 = vmatprep.subr.mxu0 0.0
        %2673 = vmatpush1.msra.mxu0 0.0
        %2674 = vmatprep.subr.mxu0 0.0
        %2675 = vmatpush1.msra.mxu0 0.0
        %2676 = vmatprep.subr.mxu0 0.0
        %2677 = vmatpush1.msra.mxu0 0.0
        %2678 = vmatprep.subr.mxu0 0.0
        %2679 = vmatpush1.msra.mxu0 0.0
        %2680 = vmatprep.subr.mxu0 0.0
        %2681 = vmatpush1.msra.mxu0 0.0
        %2682 = vmatprep.mubr.f32.mxu0 0.0
        %2683 = vmatmul.mubr.f32.gmra.mrb[0].mxu0 %v2567
        %v2684 = vpop.f32.mrb[0].mxu0
        %v2685 = vadd.f32 0.0, %v2684
        %v2686 = vpop.f32.mrb[0].mxu0
        %2687 = vmatprep.mubr.f32.mxu0 0.0
        %2688 = vmatmul.mubr.f32.gmra.mrb[0].mxu0 %v2570
        %v2689 = vpop.f32.mrb[0].mxu0
        %v2690 = vadd.f32 0.0, %v2689
        %v2691 = vpop.f32.mrb[0].mxu0
        %2692 = vmatprep.mubr.f32.mxu0 0.0
        %2693 = vmatmul.mubr.f32.gmra.mrb[0].mxu0 %v2573
        %v2694 = vpop.f32.mrb[0].mxu0
        %v2695 = vadd.f32 0.0, %v2694
        %v2696 = vpop.f32.mrb[0].mxu0
        %2697 = vmatprep.mubr.f32.mxu0 0.0
        %2698 = vmatmul.mubr.f32.gmra.mrb[0].mxu0 %v2576
        %v2699 = vpop.f32.mrb[0].mxu0
        %v2700 = vadd.f32 0.0, %v2699
        %v2701 = vpop.f32.mrb[0].mxu0
        %2702 = vmatprep.mubr.f32.mxu0 0.0
        %2703 = vmatmul.mubr.f32.gmra.mrb[0].mxu0 %v2579
        %v2704 = vpop.f32.mrb[0].mxu0
        %v2705 = vadd.f32 0.0, %v2704
        %v2706 = vpop.f32.mrb[0].mxu0
        %2707 = vmatprep.mubr.f32.mxu0 0.0
        %2708 = vmatmul.mubr.f32.gmra.mrb[0].mxu0 %v2582
        %v2709 = vpop.f32.mrb[0].mxu0
        %v2710 = vadd.f32 0.0, %v2709
        %v2711 = vpop.f32.mrb[0].mxu0
        %2712 = vmatprep.mubr.f32.mxu0 0.0
        %2713 = vmatmul.mubr.f32.gmra.mrb[0].mxu0 %v2585
        %v2714 = vpop.f32.mrb[0].mxu0
        %v2715 = vadd.f32 0.0, %v2714
        %v2716 = vpop.f32.mrb[0].mxu0
        %2717 = vmatprep.mubr.f32.mxu0 0.0
        %2718 = vmatmul.mubr.f32.gmra.mrb[0].mxu0 %v2588
        %v2719 = vpop.f32.mrb[0].mxu0
        %v2720 = vadd.f32 0.0, %v2719
        %v2721 = vpop.f32.mrb[0].mxu0
        %2722 = vmatprep.mubr.f32.mxu0 0.0
        %2723 = vmatmul.mubr.f32.gmra.mrb[0].mxu0 %v2591
        %v2724 = vpop.f32.mrb[0].mxu0
        %v2725 = vadd.f32 0.0, %v2724
        %v2726 = vpop.f32.mrb[0].mxu0
        %2727 = vmatprep.mubr.f32.mxu0 0.0
        %2728 = vmatmul.mubr.f32.gmra.mrb[0].mxu0 %v2594
        %v2729 = vpop.f32.mrb[0].mxu0
        %v2730 = vadd.f32 0.0, %v2729
        %v2731 = vpop.f32.mrb[0].mxu0
        %2732 = vmatprep.mubr.f32.mxu0 0.0
        %2733 = vmatmul.mubr.f32.gmra.mrb[0].mxu0 %v2597
        %v2734 = vpop.f32.mrb[0].mxu0
        %v2735 = vadd.f32 0.0, %v2734
        %v2736 = vpop.f32.mrb[0].mxu0
        %2737 = vmatprep.mubr.f32.mxu0 0.0
        %2738 = vmatmul.mubr.f32.gmra.mrb[0].mxu0 %v2600
        %v2739 = vpop.f32.mrb[0].mxu0
        %v2740 = vadd.f32 0.0, %v2739
        %v2741 = vpop.f32.mrb[0].mxu0
        %2742 = vmatprep.mubr.f32.mxu0 0.0
        %2743 = vmatmul.mubr.f32.gmra.mrb[0].mxu0 %v2603
        %v2744 = vpop.f32.mrb[0].mxu0
        %v2745 = vadd.f32 0.0, %v2744
        %v2746 = vpop.f32.mrb[0].mxu0
        %2747 = vmatprep.mubr.f32.mxu0 0.0
        %2748 = vmatmul.mubr.f32.gmra.mrb[0].mxu0 %v2606
        %v2749 = vpop.f32.mrb[0].mxu0
        %v2750 = vadd.f32 0.0, %v2749
        %v2751 = vpop.f32.mrb[0].mxu0
        %2752 = vmatprep.mubr.f32.mxu0 0.0
        %2753 = vmatmul.mubr.f32.gmra.mrb[0].mxu0 %v2609
        %v2754 = vpop.f32.mrb[0].mxu0
        %v2755 = vadd.f32 0.0, %v2754
        %v2756 = vpop.f32.mrb[0].mxu0
        %2757 = vmatprep.mubr.f32.mxu0 0.0
        %2758 = vmatmul.mubr.f32.gmra.mrb[0].mxu0 %v2612
        %v2759 = vpop.f32.mrb[0].mxu0
        %v2760 = vadd.f32 0.0, %v2759
        %v2761 = vpop.f32.mrb[0].mxu0
        %2762 = vdwg.mxu0
        %v2763 = vadd.f32 %v2276, %v2685
        %v2764 = vadd.f32 %v2282, %v2690
        %v2765 = vadd.f32 %v2288, %v2695
        %v2766 = vadd.f32 %v2294, %v2700
        %v2767 = vadd.f32 %v2300, %v2705
        %v2768 = vadd.f32 %v2306, %v2710
        %v2769 = vadd.f32 %v2312, %v2715
        %v2770 = vadd.f32 %v2318, %v2720
        %v2771 = vadd.f32 %v2324, %v2725
        %v2772 = vadd.f32 %v2330, %v2730
        %v2773 = vadd.f32 %v2336, %v2735
        %v2774 = vadd.f32 %v2342, %v2740
        %v2775 = vadd.f32 %v2348, %v2745
        %v2776 = vadd.f32 %v2354, %v2750
        %v2777 = vadd.f32 %v2360, %v2755
        %v2778 = vadd.f32 %v2366, %v2760
        %v2779 = vmax.f32 %v2763, 0.0
        %v2780 = vmax.f32 %v2764, 0.0
        %v2781 = vmax.f32 %v2765, 0.0
        %v2782 = vmax.f32 %v2766, 0.0
        %v2783 = vmax.f32 %v2767, 0.0
        %v2784 = vmax.f32 %v2768, 0.0
        %v2785 = vmax.f32 %v2769, 0.0
        %v2786 = vmax.f32 %v2770, 0.0
        %v2787 = vmax.f32 %v2771, 0.0
        %v2788 = vmax.f32 %v2772, 0.0
        %v2789 = vmax.f32 %v2773, 0.0
        %v2790 = vmax.f32 %v2774, 0.0
        %v2791 = vmax.f32 %v2775, 0.0
        %v2792 = vmax.f32 %v2776, 0.0
        %v2793 = vmax.f32 %v2777, 0.0
        %v2794 = vmax.f32 %v2778, 0.0
        %v2795 = vld [vmem:[%s43] sm:$0xff]
        %v2796 = vld [vmem:[%s43 + $0x8] sm:$0xff]
        %v2797 = vld [vmem:[%s43 + $0x10] sm:$0xff]
        %v2798 = vld [vmem:[%s43 + $0x18] sm:$0xff]
        %v2799 = vld [vmem:[%s43 + $0x20] sm:$0xff]
        %v2800 = vld [vmem:[%s43 + $0x28] sm:$0xff]
        %v2801 = vld [vmem:[%s43 + $0x30] sm:$0xff]
        %v2802 = vld [vmem:[%s43 + $0x38] sm:$0xff]
        %v2803 = vld [vmem:[#allocation2] sm:$0x1]
        %v2805 = vlaneseq
        %v2806 = vshrl.u32 %v2805, 7
        %v2807 = vsub.s32 0, %v2806
        %v2808 = vrot.slane %v2803, %v2807
        %v2811 = vsel %vm1784, %v2779, 0
        %v2814 = vsel %vm1784, %v2780, 0
        %v2817 = vsel %vm1784, %v2781, 0
        %v2820 = vsel %vm1784, %v2782, 0
        %v2823 = vsel %vm1784, %v2783, 0
        %v2826 = vsel %vm1784, %v2784, 0
        %v2829 = vsel %vm1784, %v2785, 0
        %v2832 = vsel %vm1784, %v2786, 0
        %v2835 = vsel %vm1784, %v2787, 0
        %v2838 = vsel %vm1784, %v2788, 0
        %v2841 = vsel %vm1784, %v2789, 0
        %v2844 = vsel %vm1784, %v2790, 0
        %v2847 = vsel %vm1784, %v2791, 0
        %v2850 = vsel %vm1784, %v2792, 0
        %v2853 = vsel %vm1784, %v2793, 0
        %v2856 = vsel %vm1784, %v2794, 0
        %2858 = vmatprep.subr.mxu0 0.0
        %2859 = vmatpush1.msra.mxu0 %v2795
        %2860 = vmatprep.subr.mxu0 0.0
        %2861 = vmatpush1.msra.mxu0 %v2796
        %2862 = vmatprep.subr.mxu0 0.0
        %2863 = vmatpush1.msra.mxu0 %v2797
        %2864 = vmatprep.subr.mxu0 0.0
        %2865 = vmatpush1.msra.mxu0 %v2798
        %2866 = vmatprep.subr.mxu0 0.0
        %2867 = vmatpush1.msra.mxu0 %v2799
        %2868 = vmatprep.subr.mxu0 0.0
        %2869 = vmatpush1.msra.mxu0 %v2800
        %2870 = vmatprep.subr.mxu0 0.0
        %2871 = vmatpush1.msra.mxu0 %v2801
        %2872 = vmatprep.subr.mxu0 0.0
        %2873 = vmatpush1.msra.mxu0 %v2802
        %2874 = vmatprep.subr.mxu0 0.0
        %2875 = vmatpush1.msra.mxu0 0.0
        %2876 = vmatprep.subr.mxu0 0.0
        %2877 = vmatpush1.msra.mxu0 0.0
        %2878 = vmatprep.subr.mxu0 0.0
        %2879 = vmatpush1.msra.mxu0 0.0
        %2880 = vmatprep.subr.mxu0 0.0
        %2881 = vmatpush1.msra.mxu0 0.0
        %2882 = vmatprep.subr.mxu0 0.0
        %2883 = vmatpush1.msra.mxu0 0.0
        %2884 = vmatprep.subr.mxu0 0.0
        %2885 = vmatpush1.msra.mxu0 0.0
        %2886 = vmatprep.subr.mxu0 0.0
        %2887 = vmatpush1.msra.mxu0 0.0
        %2888 = vmatprep.subr.mxu0 0.0
        %2889 = vmatpush1.msra.mxu0 0.0
        %2890 = vmatprep.subr.mxu0 0.0
        %2891 = vmatpush1.msra.mxu0 0.0
        %2892 = vmatprep.subr.mxu0 0.0
        %2893 = vmatpush1.msra.mxu0 0.0
        %2894 = vmatprep.subr.mxu0 0.0
        %2895 = vmatpush1.msra.mxu0 0.0
        %2896 = vmatprep.subr.mxu0 0.0
        %2897 = vmatpush1.msra.mxu0 0.0
        %2898 = vmatprep.subr.mxu0 0.0
        %2899 = vmatpush1.msra.mxu0 0.0
        %2900 = vmatprep.subr.mxu0 0.0
        %2901 = vmatpush1.msra.mxu0 0.0
        %2902 = vmatprep.subr.mxu0 0.0
        %2903 = vmatpush1.msra.mxu0 0.0
        %2904 = vmatprep.subr.mxu0 0.0
        %2905 = vmatpush1.msra.mxu0 0.0
        %2906 = vmatprep.subr.mxu0 0.0
        %2907 = vmatpush1.msra.mxu0 0.0
        %2908 = vmatprep.subr.mxu0 0.0
        %2909 = vmatpush1.msra.mxu0 0.0
        %2910 = vmatprep.subr.mxu0 0.0
        %2911 = vmatpush1.msra.mxu0 0.0
        %2912 = vmatprep.subr.mxu0 0.0
        %2913 = vmatpush1.msra.mxu0 0.0
        %2914 = vmatprep.subr.mxu0 0.0
        %2915 = vmatpush1.msra.mxu0 0.0
        %2916 = vmatprep.subr.mxu0 0.0
        %2917 = vmatpush1.msra.mxu0 0.0
        %2918 = vmatprep.subr.mxu0 0.0
        %2919 = vmatpush1.msra.mxu0 0.0
        %2920 = vmatprep.subr.mxu0 0.0
        %2921 = vmatpush1.msra.mxu0 0.0
        %2922 = vmatprep.mubr.f32.mxu0 0.0
        %2923 = vmatmul.mubr.f32.gmra.mrb[0].mxu0 %v2811
        %v2924 = vpop.f32.mrb[0].mxu0
        %v2925 = vadd.f32 %v2808, %v2924
        %v2926 = vpop.f32.mrb[0].mxu0
        %2927 = vmatprep.mubr.f32.mxu0 0.0
        %2928 = vmatmul.mubr.f32.gmra.mrb[0].mxu0 %v2814
        %v2929 = vpop.f32.mrb[0].mxu0
        %v2930 = vadd.f32 %v2808, %v2929
        %v2931 = vpop.f32.mrb[0].mxu0
        %2932 = vmatprep.mubr.f32.mxu0 0.0
        %2933 = vmatmul.mubr.f32.gmra.mrb[0].mxu0 %v2817
        %v2934 = vpop.f32.mrb[0].mxu0
        %v2935 = vadd.f32 %v2808, %v2934
        %v2936 = vpop.f32.mrb[0].mxu0
        %2937 = vmatprep.mubr.f32.mxu0 0.0
        %2938 = vmatmul.mubr.f32.gmra.mrb[0].mxu0 %v2820
        %v2939 = vpop.f32.mrb[0].mxu0
        %v2940 = vadd.f32 %v2808, %v2939
        %v2941 = vpop.f32.mrb[0].mxu0
        %2942 = vmatprep.mubr.f32.mxu0 0.0
        %2943 = vmatmul.mubr.f32.gmra.mrb[0].mxu0 %v2823
        %v2944 = vpop.f32.mrb[0].mxu0
        %v2945 = vadd.f32 %v2808, %v2944
        %v2946 = vpop.f32.mrb[0].mxu0
        %2947 = vmatprep.mubr.f32.mxu0 0.0
        %2948 = vmatmul.mubr.f32.gmra.mrb[0].mxu0 %v2826
        %v2949 = vpop.f32.mrb[0].mxu0
        %v2950 = vadd.f32 %v2808, %v2949
        %v2951 = vpop.f32.mrb[0].mxu0
        %2952 = vmatprep.mubr.f32.mxu0 0.0
        %2953 = vmatmul.mubr.f32.gmra.mrb[0].mxu0 %v2829
        %v2954 = vpop.f32.mrb[0].mxu0
        %v2955 = vadd.f32 %v2808, %v2954
        %v2956 = vpop.f32.mrb[0].mxu0
        %2957 = vmatprep.mubr.f32.mxu0 0.0
        %2958 = vmatmul.mubr.f32.gmra.mrb[0].mxu0 %v2832
        %v2959 = vpop.f32.mrb[0].mxu0
        %v2960 = vadd.f32 %v2808, %v2959
        %v2961 = vpop.f32.mrb[0].mxu0
        %2962 = vmatprep.mubr.f32.mxu0 0.0
        %2963 = vmatmul.mubr.f32.gmra.mrb[0].mxu0 %v2835
        %v2964 = vpop.f32.mrb[0].mxu0
        %v2965 = vadd.f32 %v2808, %v2964
        %v2966 = vpop.f32.mrb[0].mxu0
        %2967 = vmatprep.mubr.f32.mxu0 0.0
        %2968 = vmatmul.mubr.f32.gmra.mrb[0].mxu0 %v2838
        %v2969 = vpop.f32.mrb[0].mxu0
        %v2970 = vadd.f32 %v2808, %v2969
        %v2971 = vpop.f32.mrb[0].mxu0
        %2972 = vmatprep.mubr.f32.mxu0 0.0
        %2973 = vmatmul.mubr.f32.gmra.mrb[0].mxu0 %v2841
        %v2974 = vpop.f32.mrb[0].mxu0
        %v2975 = vadd.f32 %v2808, %v2974
        %v2976 = vpop.f32.mrb[0].mxu0
        %2977 = vmatprep.mubr.f32.mxu0 0.0
        %2978 = vmatmul.mubr.f32.gmra.mrb[0].mxu0 %v2844
        %v2979 = vpop.f32.mrb[0].mxu0
        %v2980 = vadd.f32 %v2808, %v2979
        %v2981 = vpop.f32.mrb[0].mxu0
        %2982 = vmatprep.mubr.f32.mxu0 0.0
        %2983 = vmatmul.mubr.f32.gmra.mrb[0].mxu0 %v2847
        %v2984 = vpop.f32.mrb[0].mxu0
        %v2985 = vadd.f32 %v2808, %v2984
        %v2986 = vpop.f32.mrb[0].mxu0
        %2987 = vmatprep.mubr.f32.mxu0 0.0
        %2988 = vmatmul.mubr.f32.gmra.mrb[0].mxu0 %v2850
        %v2989 = vpop.f32.mrb[0].mxu0
        %v2990 = vadd.f32 %v2808, %v2989
        %v2991 = vpop.f32.mrb[0].mxu0
        %2992 = vmatprep.mubr.f32.mxu0 0.0
        %2993 = vmatmul.mubr.f32.gmra.mrb[0].mxu0 %v2853
        %v2994 = vpop.f32.mrb[0].mxu0
        %v2995 = vadd.f32 %v2808, %v2994
        %v2996 = vpop.f32.mrb[0].mxu0
        %2997 = vmatprep.mubr.f32.mxu0 0.0
        %2998 = vmatmul.mubr.f32.gmra.mrb[0].mxu0 %v2856
        %v2999 = vpop.f32.mrb[0].mxu0
        %v3000 = vadd.f32 %v2808, %v2999
        %v3001 = vpop.f32.mrb[0].mxu0
        %3002 = vdwg.mxu0
        %v3003 = vadd.f32 %v2925, 0.0
        %v3004 = vadd.f32 %v2930, 0.0
        %v3005 = vadd.f32 %v2935, 0.0
        %v3006 = vadd.f32 %v2940, 0.0
        %v3007 = vadd.f32 %v2945, 0.0
        %v3008 = vadd.f32 %v2950, 0.0
        %v3009 = vadd.f32 %v2955, 0.0
        %v3010 = vadd.f32 %v2960, 0.0
        %v3011 = vadd.f32 %v2965, 0.0
        %v3012 = vadd.f32 %v2970, 0.0
        %v3013 = vadd.f32 %v2975, 0.0
        %v3014 = vadd.f32 %v2980, 0.0
        %v3015 = vadd.f32 %v2985, 0.0
        %v3016 = vadd.f32 %v2990, 0.0
        %v3017 = vadd.f32 %v2995, 0.0
        %v3018 = vadd.f32 %v3000, 0.0
        %v3019 = vsub.f32 1.0, %v1325
        %v3020 = vmul.f32 %v3019, 1e+09
        %v3022 = vlaneseq
        %v3023 = vshrl.u32 %v3022, 7
        %v3024 = vsub.s32 0, %v3023
        %v3025 = vrot.slane %v3020, %v3024
        %3027 = vbcast.lane.b32.xlu0 %v3025, 256
        %v3028 = vpop.permute.xlu0 %3027
        %s3030 = sor.u32 256, 8
        %3031 = vbcast.lane.b32.xlu0 %v3025, %s3030
        %v3032 = vpop.permute.xlu0 %3031
        %v3033 = vlaneseq
        %v3034 = vshrl.u32 %v3033, 7
        %v3035 = vsub.s32 1, %v3034
        %v3036 = vrot.slane %v3020, %v3035
        %3038 = vbcast.lane.b32.xlu0 %v3036, 256
        %v3039 = vpop.permute.xlu0 %3038
        %s3041 = sor.u32 256, 8
        %3042 = vbcast.lane.b32.xlu0 %v3036, %s3041
        %v3043 = vpop.permute.xlu0 %3042
        %v3044 = vlaneseq
        %v3045 = vshrl.u32 %v3044, 7
        %v3046 = vsub.s32 2, %v3045
        %v3047 = vrot.slane %v3020, %v3046
        %3049 = vbcast.lane.b32.xlu0 %v3047, 256
        %v3050 = vpop.permute.xlu0 %3049
        %s3052 = sor.u32 256, 8
        %3053 = vbcast.lane.b32.xlu0 %v3047, %s3052
        %v3054 = vpop.permute.xlu0 %3053
        %v3055 = vlaneseq
        %v3056 = vshrl.u32 %v3055, 7
        %v3057 = vsub.s32 3, %v3056
        %v3058 = vrot.slane %v3020, %v3057
        %3060 = vbcast.lane.b32.xlu0 %v3058, 256
        %v3061 = vpop.permute.xlu0 %3060
        %s3063 = sor.u32 256, 8
        %3064 = vbcast.lane.b32.xlu0 %v3058, %s3063
        %v3065 = vpop.permute.xlu0 %3064
        %v3066 = vlaneseq
        %v3067 = vshrl.u32 %v3066, 7
        %v3068 = vsub.s32 4, %v3067
        %v3069 = vrot.slane %v3020, %v3068
        %3071 = vbcast.lane.b32.xlu0 %v3069, 256
        %v3072 = vpop.permute.xlu0 %3071
        %s3074 = sor.u32 256, 8
        %3075 = vbcast.lane.b32.xlu0 %v3069, %s3074
        %v3076 = vpop.permute.xlu0 %3075
        %v3077 = vlaneseq
        %v3078 = vshrl.u32 %v3077, 7
        %v3079 = vsub.s32 5, %v3078
        %v3080 = vrot.slane %v3020, %v3079
        %3082 = vbcast.lane.b32.xlu0 %v3080, 256
        %v3083 = vpop.permute.xlu0 %3082
        %s3085 = sor.u32 256, 8
        %3086 = vbcast.lane.b32.xlu0 %v3080, %s3085
        %v3087 = vpop.permute.xlu0 %3086
        %v3088 = vlaneseq
        %v3089 = vshrl.u32 %v3088, 7
        %v3090 = vsub.s32 6, %v3089
        %v3091 = vrot.slane %v3020, %v3090
        %3093 = vbcast.lane.b32.xlu0 %v3091, 256
        %v3094 = vpop.permute.xlu0 %3093
        %s3096 = sor.u32 256, 8
        %3097 = vbcast.lane.b32.xlu0 %v3091, %s3096
        %v3098 = vpop.permute.xlu0 %3097
        %v3099 = vlaneseq
        %v3100 = vshrl.u32 %v3099, 7
        %v3101 = vsub.s32 7, %v3100
        %v3102 = vrot.slane %v3020, %v3101
        %3104 = vbcast.lane.b32.xlu0 %v3102, 256
        %v3105 = vpop.permute.xlu0 %3104
        %s3107 = sor.u32 256, 8
        %3108 = vbcast.lane.b32.xlu0 %v3102, %s3107
        %v3109 = vpop.permute.xlu0 %3108
        %v3126 = vsub.f32 %v3003, %v3028
        %v3127 = vsub.f32 %v3004, %v3032
        %v3128 = vsub.f32 %v3005, %v3039
        %v3129 = vsub.f32 %v3006, %v3043
        %v3130 = vsub.f32 %v3007, %v3050
        %v3131 = vsub.f32 %v3008, %v3054
        %v3132 = vsub.f32 %v3009, %v3061
        %v3133 = vsub.f32 %v3010, %v3065
        %v3134 = vsub.f32 %v3011, %v3072
        %v3135 = vsub.f32 %v3012, %v3076
        %v3136 = vsub.f32 %v3013, %v3083
        %v3137 = vsub.f32 %v3014, %v3087
        %v3138 = vsub.f32 %v3015, %v3094
        %v3139 = vsub.f32 %v3016, %v3098
        %v3140 = vsub.f32 %v3017, %v3105
        %v3141 = vsub.f32 %v3018, %v3109
        %3158 = vset.pattern.permute.xlu0 0
        %3159 = vperm.xlu0 %3158, %v3126
        %v3160 = vpop.permute.xlu0 %3159
        %3161 = vset.pattern.permute.xlu0 0
        %3162 = vperm.xlu0 %3161, %v3127
        %v3163 = vpop.permute.xlu0 %3162
        %3164 = vset.pattern.permute.xlu0 0
        %3165 = vperm.xlu0 %3164, %v3128
        %v3166 = vpop.permute.xlu0 %3165
        %3167 = vset.pattern.permute.xlu0 0
        %3168 = vperm.xlu0 %3167, %v3129
        %v3169 = vpop.permute.xlu0 %3168
        %3170 = vset.pattern.permute.xlu0 0
        %3171 = vperm.xlu0 %3170, %v3130
        %v3172 = vpop.permute.xlu0 %3171
        %3173 = vset.pattern.permute.xlu0 0
        %3174 = vperm.xlu0 %3173, %v3131
        %v3175 = vpop.permute.xlu0 %3174
        %3176 = vset.pattern.permute.xlu0 0
        %3177 = vperm.xlu0 %3176, %v3132
        %v3178 = vpop.permute.xlu0 %3177
        %3179 = vset.pattern.permute.xlu0 0
        %3180 = vperm.xlu0 %3179, %v3133
        %v3181 = vpop.permute.xlu0 %3180
        %3182 = vset.pattern.permute.xlu0 0
        %3183 = vperm.xlu0 %3182, %v3134
        %v3184 = vpop.permute.xlu0 %3183
        %3185 = vset.pattern.permute.xlu0 0
        %3186 = vperm.xlu0 %3185, %v3135
        %v3187 = vpop.permute.xlu0 %3186
        %3188 = vset.pattern.permute.xlu0 0
        %3189 = vperm.xlu0 %3188, %v3136
        %v3190 = vpop.permute.xlu0 %3189
        %3191 = vset.pattern.permute.xlu0 0
        %3192 = vperm.xlu0 %3191, %v3137
        %v3193 = vpop.permute.xlu0 %3192
        %3194 = vset.pattern.permute.xlu0 0
        %3195 = vperm.xlu0 %3194, %v3138
        %v3196 = vpop.permute.xlu0 %3195
        %3197 = vset.pattern.permute.xlu0 0
        %3198 = vperm.xlu0 %3197, %v3139
        %v3199 = vpop.permute.xlu0 %3198
        %3200 = vset.pattern.permute.xlu0 0
        %3201 = vperm.xlu0 %3200, %v3140
        %v3202 = vpop.permute.xlu0 %3201
        %3203 = vset.pattern.permute.xlu0 0
        %3204 = vperm.xlu0 %3203, %v3141
        %v3205 = vpop.permute.xlu0 %3204
        %v3206 = vlaneseq
        %v3207 = vshrl.u32 %v3206, 7
        %v3208 = vsub.s32 %v1311, %v3207
        %v3209 = vrot.slane %v3160, %v3208
        %v3210 = vadd.s32 %v1311, 4294967288
        %v3211 = vlaneseq
        %v3212 = vshrl.u32 %v3211, 7
        %v3213 = vsub.s32 %v3210, %v3212
        %v3214 = vrot.slane %v3163, %v3213
        %vm3215 = vcmask 130112
        %v3216 = vsel %vm3215, %v3214, %v3209
        %v3217 = vlaneseq
        %v3218 = vshrl.u32 %v3217, 7
        %v3219 = vsub.s32 %v1311, %v3218
        %v3220 = vrot.slane %v3166, %v3219
        %v3221 = vlaneseq
        %v3222 = vshrl.u32 %v3221, 7
        %v3223 = vsub.s32 %v3210, %v3222
        %v3224 = vrot.slane %v3169, %v3223
        %v3225 = vsel %vm3215, %v3224, %v3220
        %v3226 = vlaneseq
        %v3227 = vshrl.u32 %v3226, 7
        %v3228 = vsub.s32 %v1311, %v3227
        %v3229 = vrot.slane %v3172, %v3228
        %v3230 = vlaneseq
        %v3231 = vshrl.u32 %v3230, 7
        %v3232 = vsub.s32 %v3210, %v3231
        %v3233 = vrot.slane %v3175, %v3232
        %v3234 = vsel %vm3215, %v3233, %v3229
        %v3235 = vlaneseq
        %v3236 = vshrl.u32 %v3235, 7
        %v3237 = vsub.s32 %v1311, %v3236
        %v3238 = vrot.slane %v3178, %v3237
        %v3239 = vlaneseq
        %v3240 = vshrl.u32 %v3239, 7
        %v3241 = vsub.s32 %v3210, %v3240
        %v3242 = vrot.slane %v3181, %v3241
        %v3243 = vsel %vm3215, %v3242, %v3238
        %v3244 = vlaneseq
        %v3245 = vshrl.u32 %v3244, 7
        %v3246 = vsub.s32 %v1311, %v3245
        %v3247 = vrot.slane %v3184, %v3246
        %v3248 = vlaneseq
        %v3249 = vshrl.u32 %v3248, 7
        %v3250 = vsub.s32 %v3210, %v3249
        %v3251 = vrot.slane %v3187, %v3250
        %v3252 = vsel %vm3215, %v3251, %v3247
        %v3253 = vlaneseq
        %v3254 = vshrl.u32 %v3253, 7
        %v3255 = vsub.s32 %v1311, %v3254
        %v3256 = vrot.slane %v3190, %v3255
        %v3257 = vlaneseq
        %v3258 = vshrl.u32 %v3257, 7
        %v3259 = vsub.s32 %v3210, %v3258
        %v3260 = vrot.slane %v3193, %v3259
        %v3261 = vsel %vm3215, %v3260, %v3256
        %v3262 = vlaneseq
        %v3263 = vshrl.u32 %v3262, 7
        %v3264 = vsub.s32 %v1311, %v3263
        %v3265 = vrot.slane %v3196, %v3264
        %v3266 = vlaneseq
        %v3267 = vshrl.u32 %v3266, 7
        %v3268 = vsub.s32 %v3210, %v3267
        %v3269 = vrot.slane %v3199, %v3268
        %v3270 = vsel %vm3215, %v3269, %v3265
        %v3271 = vlaneseq
        %v3272 = vshrl.u32 %v3271, 7
        %v3273 = vsub.s32 %v1311, %v3272
        %v3274 = vrot.slane %v3202, %v3273
        %v3275 = vlaneseq
        %v3276 = vshrl.u32 %v3275, 7
        %v3277 = vsub.s32 %v3210, %v3276
        %v3278 = vrot.slane %v3205, %v3277
        %v3279 = vsel %vm3215, %v3278, %v3274
        %vm3280 = vcmask 1041409
        %v3281 = vsel %vm3280, %v3225, %v3216
        %vm3282 = vcmask 1042434
        %v3283 = vsel %vm3282, %v3234, %v3281
        %vm3284 = vcmask 1043459
        %v3285 = vsel %vm3284, %v3243, %v3283
        %vm3286 = vcmask 1044484
        %v3287 = vsel %vm3286, %v3252, %v3285
        %vm3288 = vcmask 1045509
        %v3289 = vsel %vm3288, %v3261, %v3287
        %vm3290 = vcmask 1046534
        %v3291 = vsel %vm3290, %v3270, %v3289
        %vm3292 = vcmask 1047559
        %v3293 = vsel %vm3292, %v3279, %v3291
        %v3295 = vsel %vm1328, %v3293, -inf
        %3296 = vmax.xlane.f32.xlu0 %v3295
        %v3297 = vpop.xlane.xlu0 %3296
        %v3299 = vlaneseq
        %v3300 = vshrl.u32 %v3299, 7
        %v3301 = vsub.s32 0, %v3300
        %v3302 = vrot.slane %v3297, %v3301
        %v3303 = vlaneseq
        %v3304 = vshrl.u32 %v3303, 7
        %v3305 = vsub.s32 1, %v3304
        %v3306 = vrot.slane %v3297, %v3305
        %v3307 = vlaneseq
        %v3308 = vshrl.u32 %v3307, 7
        %v3309 = vsub.s32 2, %v3308
        %v3310 = vrot.slane %v3297, %v3309
        %v3311 = vlaneseq
        %v3312 = vshrl.u32 %v3311, 7
        %v3313 = vsub.s32 3, %v3312
        %v3314 = vrot.slane %v3297, %v3313
        %v3315 = vlaneseq
        %v3316 = vshrl.u32 %v3315, 7
        %v3317 = vsub.s32 4, %v3316
        %v3318 = vrot.slane %v3297, %v3317
        %v3319 = vlaneseq
        %v3320 = vshrl.u32 %v3319, 7
        %v3321 = vsub.s32 5, %v3320
        %v3322 = vrot.slane %v3297, %v3321
        %v3323 = vlaneseq
        %v3324 = vshrl.u32 %v3323, 7
        %v3325 = vsub.s32 6, %v3324
        %v3326 = vrot.slane %v3297, %v3325
        %v3327 = vlaneseq
        %v3328 = vshrl.u32 %v3327, 7
        %v3329 = vsub.s32 7, %v3328
        %v3330 = vrot.slane %v3297, %v3329
        %v3339 = vsub.f32 %v3126, %v3302
        %v3340 = vsub.f32 %v3127, %v3302
        %v3341 = vsub.f32 %v3128, %v3306
        %v3342 = vsub.f32 %v3129, %v3306
        %v3343 = vsub.f32 %v3130, %v3310
        %v3344 = vsub.f32 %v3131, %v3310
        %v3345 = vsub.f32 %v3132, %v3314
        %v3346 = vsub.f32 %v3133, %v3314
        %v3347 = vsub.f32 %v3134, %v3318
        %v3348 = vsub.f32 %v3135, %v3318
        %v3349 = vsub.f32 %v3136, %v3322
        %v3350 = vsub.f32 %v3137, %v3322
        %v3351 = vsub.f32 %v3138, %v3326
        %v3352 = vsub.f32 %v3139, %v3326
        %v3353 = vsub.f32 %v3140, %v3330
        %v3354 = vsub.f32 %v3141, %v3330
        %v3355 = vmul.f32 %v3339, 1.442695
        %v3356 = vpow.pop %v3355
        %v3357 = vmul.f32 %v3340, 1.442695
        %v3358 = vpow.pop %v3357
        %v3359 = vmul.f32 %v3341, 1.442695
        %v3360 = vpow.pop %v3359
        %v3361 = vmul.f32 %v3342, 1.442695
        %v3362 = vpow.pop %v3361
        %v3363 = vmul.f32 %v3343, 1.442695
        %v3364 = vpow.pop %v3363
        %v3365 = vmul.f32 %v3344, 1.442695
        %v3366 = vpow.pop %v3365
        %v3367 = vmul.f32 %v3345, 1.442695
        %v3368 = vpow.pop %v3367
        %v3369 = vmul.f32 %v3346, 1.442695
        %v3370 = vpow.pop %v3369
        %v3371 = vmul.f32 %v3347, 1.442695
        %v3372 = vpow.pop %v3371
        %v3373 = vmul.f32 %v3348, 1.442695
        %v3374 = vpow.pop %v3373
        %v3375 = vmul.f32 %v3349, 1.442695
        %v3376 = vpow.pop %v3375
        %v3377 = vmul.f32 %v3350, 1.442695
        %v3378 = vpow.pop %v3377
        %v3379 = vmul.f32 %v3351, 1.442695
        %v3380 = vpow.pop %v3379
        %v3381 = vmul.f32 %v3352, 1.442695
        %v3382 = vpow.pop %v3381
        %v3383 = vmul.f32 %v3353, 1.442695
        %v3384 = vpow.pop %v3383
        %v3385 = vmul.f32 %v3354, 1.442695
        %v3386 = vpow.pop %v3385
        %3403 = vset.pattern.permute.xlu0 0
        %3404 = vperm.xlu0 %3403, %v3356
        %v3405 = vpop.permute.xlu0 %3404
        %3406 = vset.pattern.permute.xlu0 0
        %3407 = vperm.xlu0 %3406, %v3358
        %v3408 = vpop.permute.xlu0 %3407
        %3409 = vset.pattern.permute.xlu0 0
        %3410 = vperm.xlu0 %3409, %v3360
        %v3411 = vpop.permute.xlu0 %3410
        %3412 = vset.pattern.permute.xlu0 0
        %3413 = vperm.xlu0 %3412, %v3362
        %v3414 = vpop.permute.xlu0 %3413
        %3415 = vset.pattern.permute.xlu0 0
        %3416 = vperm.xlu0 %3415, %v3364
        %v3417 = vpop.permute.xlu0 %3416
        %3418 = vset.pattern.permute.xlu0 0
        %3419 = vperm.xlu0 %3418, %v3366
        %v3420 = vpop.permute.xlu0 %3419
        %3421 = vset.pattern.permute.xlu0 0
        %3422 = vperm.xlu0 %3421, %v3368
        %v3423 = vpop.permute.xlu0 %3422
        %3424 = vset.pattern.permute.xlu0 0
        %3425 = vperm.xlu0 %3424, %v3370
        %v3426 = vpop.permute.xlu0 %3425
        %3427 = vset.pattern.permute.xlu0 0
        %3428 = vperm.xlu0 %3427, %v3372
        %v3429 = vpop.permute.xlu0 %3428
        %3430 = vset.pattern.permute.xlu0 0
        %3431 = vperm.xlu0 %3430, %v3374
        %v3432 = vpop.permute.xlu0 %3431
        %3433 = vset.pattern.permute.xlu0 0
        %3434 = vperm.xlu0 %3433, %v3376
        %v3435 = vpop.permute.xlu0 %3434
        %3436 = vset.pattern.permute.xlu0 0
        %3437 = vperm.xlu0 %3436, %v3378
        %v3438 = vpop.permute.xlu0 %3437
        %3439 = vset.pattern.permute.xlu0 0
        %3440 = vperm.xlu0 %3439, %v3380
        %v3441 = vpop.permute.xlu0 %3440
        %3442 = vset.pattern.permute.xlu0 0
        %3443 = vperm.xlu0 %3442, %v3382
        %v3444 = vpop.permute.xlu0 %3443
        %3445 = vset.pattern.permute.xlu0 0
        %3446 = vperm.xlu0 %3445, %v3384
        %v3447 = vpop.permute.xlu0 %3446
        %3448 = vset.pattern.permute.xlu0 0
        %3449 = vperm.xlu0 %3448, %v3386
        %v3450 = vpop.permute.xlu0 %3449
        %v3451 = vlaneseq
        %v3452 = vshrl.u32 %v3451, 7
        %v3453 = vsub.s32 %v1311, %v3452
        %v3454 = vrot.slane %v3405, %v3453
        %v3455 = vlaneseq
        %v3456 = vshrl.u32 %v3455, 7
        %v3457 = vsub.s32 %v3210, %v3456
        %v3458 = vrot.slane %v3408, %v3457
        %v3459 = vsel %vm3215, %v3458, %v3454
        %v3460 = vlaneseq
        %v3461 = vshrl.u32 %v3460, 7
        %v3462 = vsub.s32 %v1311, %v3461
        %v3463 = vrot.slane %v3411, %v3462
        %v3464 = vlaneseq
        %v3465 = vshrl.u32 %v3464, 7
        %v3466 = vsub.s32 %v3210, %v3465
        %v3467 = vrot.slane %v3414, %v3466
        %v3468 = vsel %vm3215, %v3467, %v3463
        %v3469 = vlaneseq
        %v3470 = vshrl.u32 %v3469, 7
        %v3471 = vsub.s32 %v1311, %v3470
        %v3472 = vrot.slane %v3417, %v3471
        %v3473 = vlaneseq
        %v3474 = vshrl.u32 %v3473, 7
        %v3475 = vsub.s32 %v3210, %v3474
        %v3476 = vrot.slane %v3420, %v3475
        %v3477 = vsel %vm3215, %v3476, %v3472
        %v3478 = vlaneseq
        %v3479 = vshrl.u32 %v3478, 7
        %v3480 = vsub.s32 %v1311, %v3479
        %v3481 = vrot.slane %v3423, %v3480
        %v3482 = vlaneseq
        %v3483 = vshrl.u32 %v3482, 7
        %v3484 = vsub.s32 %v3210, %v3483
        %v3485 = vrot.slane %v3426, %v3484
        %v3486 = vsel %vm3215, %v3485, %v3481
        %v3487 = vlaneseq
        %v3488 = vshrl.u32 %v3487, 7
        %v3489 = vsub.s32 %v1311, %v3488
        %v3490 = vrot.slane %v3429, %v3489
        %v3491 = vlaneseq
        %v3492 = vshrl.u32 %v3491, 7
        %v3493 = vsub.s32 %v3210, %v3492
        %v3494 = vrot.slane %v3432, %v3493
        %v3495 = vsel %vm3215, %v3494, %v3490
        %v3496 = vlaneseq
        %v3497 = vshrl.u32 %v3496, 7
        %v3498 = vsub.s32 %v1311, %v3497
        %v3499 = vrot.slane %v3435, %v3498
        %v3500 = vlaneseq
        %v3501 = vshrl.u32 %v3500, 7
        %v3502 = vsub.s32 %v3210, %v3501
        %v3503 = vrot.slane %v3438, %v3502
        %v3504 = vsel %vm3215, %v3503, %v3499
        %v3505 = vlaneseq
        %v3506 = vshrl.u32 %v3505, 7
        %v3507 = vsub.s32 %v1311, %v3506
        %v3508 = vrot.slane %v3441, %v3507
        %v3509 = vlaneseq
        %v3510 = vshrl.u32 %v3509, 7
        %v3511 = vsub.s32 %v3210, %v3510
        %v3512 = vrot.slane %v3444, %v3511
        %v3513 = vsel %vm3215, %v3512, %v3508
        %v3514 = vlaneseq
        %v3515 = vshrl.u32 %v3514, 7
        %v3516 = vsub.s32 %v1311, %v3515
        %v3517 = vrot.slane %v3447, %v3516
        %v3518 = vlaneseq
        %v3519 = vshrl.u32 %v3518, 7
        %v3520 = vsub.s32 %v3210, %v3519
        %v3521 = vrot.slane %v3450, %v3520
        %v3522 = vsel %vm3215, %v3521, %v3517
        %v3523 = vsel %vm3280, %v3468, %v3459
        %v3524 = vsel %vm3282, %v3477, %v3523
        %v3525 = vsel %vm3284, %v3486, %v3524
        %v3526 = vsel %vm3286, %v3495, %v3525
        %v3527 = vsel %vm3288, %v3504, %v3526
        %v3528 = vsel %vm3290, %v3513, %v3527
        %v3529 = vsel %vm3292, %v3522, %v3528
        %v3531 = vsel %vm1328, %v3529, 0.0
        %3532 = vadd.xlane.f32.xlu0 %v3531
        %v3533 = vpop.xlane.xlu0 %3532
        %v3534 = vrcp.pop %v3533
        %v3536 = vlaneseq
        %v3537 = vshrl.u32 %v3536, 7
        %v3538 = vsub.s32 0, %v3537
        %v3539 = vrot.slane %v3534, %v3538
        %v3540 = vlaneseq
        %v3541 = vshrl.u32 %v3540, 7
        %v3542 = vsub.s32 1, %v3541
        %v3543 = vrot.slane %v3534, %v3542
        %v3544 = vlaneseq
        %v3545 = vshrl.u32 %v3544, 7
        %v3546 = vsub.s32 2, %v3545
        %v3547 = vrot.slane %v3534, %v3546
        %v3548 = vlaneseq
        %v3549 = vshrl.u32 %v3548, 7
        %v3550 = vsub.s32 3, %v3549
        %v3551 = vrot.slane %v3534, %v3550
        %v3552 = vlaneseq
        %v3553 = vshrl.u32 %v3552, 7
        %v3554 = vsub.s32 4, %v3553
        %v3555 = vrot.slane %v3534, %v3554
        %v3556 = vlaneseq
        %v3557 = vshrl.u32 %v3556, 7
        %v3558 = vsub.s32 5, %v3557
        %v3559 = vrot.slane %v3534, %v3558
        %v3560 = vlaneseq
        %v3561 = vshrl.u32 %v3560, 7
        %v3562 = vsub.s32 6, %v3561
        %v3563 = vrot.slane %v3534, %v3562
        %v3564 = vlaneseq
        %v3565 = vshrl.u32 %v3564, 7
        %v3566 = vsub.s32 7, %v3565
        %v3567 = vrot.slane %v3534, %v3566
        %v3576 = vmul.f32 %v3356, %v3539
        %v3577 = vmul.f32 %v3358, %v3539
        %v3578 = vmul.f32 %v3360, %v3543
        %v3579 = vmul.f32 %v3362, %v3543
        %v3580 = vmul.f32 %v3364, %v3547
        %v3581 = vmul.f32 %v3366, %v3547
        %v3582 = vmul.f32 %v3368, %v3551
        %v3583 = vmul.f32 %v3370, %v3551
        %v3584 = vmul.f32 %v3372, %v3555
        %v3585 = vmul.f32 %v3374, %v3555
        %v3586 = vmul.f32 %v3376, %v3559
        %v3587 = vmul.f32 %v3378, %v3559
        %v3588 = vmul.f32 %v3380, %v3563
        %v3589 = vmul.f32 %v3382, %v3563
        %v3590 = vmul.f32 %v3384, %v3567
        %v3591 = vmul.f32 %v3386, %v3567
        %v3592 = vsel %vm1328, %v1900, 0.0
        %v3593 = vsel %vm1328, %v1905, 0.0
        %v3594 = vadd.f32 %v3592, %v3593
        %v3595 = vrot.slane %v3594, 4
        %v3596 = vadd.f32 %v3594, %v3595
        %v3597 = vrot.slane %v3596, 2
        %v3598 = vadd.f32 %v3596, %v3597
        %v3599 = vrot.slane %v3598, 1
        %v3600 = vadd.f32 %v3598, %v3599
        %v3601 = vsel %vm1328, %v1910, 0.0
        %v3602 = vsel %vm1328, %v1915, 0.0
        %v3603 = vadd.f32 %v3601, %v3602
        %v3604 = vrot.slane %v3603, 4
        %v3605 = vadd.f32 %v3603, %v3604
        %v3606 = vrot.slane %v3605, 2
        %v3607 = vadd.f32 %v3605, %v3606
        %v3608 = vrot.slane %v3607, 1
        %v3609 = vadd.f32 %v3607, %v3608
        %v3610 = vsel %vm1328, %v1920, 0.0
        %v3611 = vsel %vm1328, %v1925, 0.0
        %v3612 = vadd.f32 %v3610, %v3611
        %v3613 = vrot.slane %v3612, 4
        %v3614 = vadd.f32 %v3612, %v3613
        %v3615 = vrot.slane %v3614, 2
        %v3616 = vadd.f32 %v3614, %v3615
        %v3617 = vrot.slane %v3616, 1
        %v3618 = vadd.f32 %v3616, %v3617
        %v3619 = vsel %vm1328, %v1930, 0.0
        %v3620 = vsel %vm1328, %v1935, 0.0
        %v3621 = vadd.f32 %v3619, %v3620
        %v3622 = vrot.slane %v3621, 4
        %v3623 = vadd.f32 %v3621, %v3622
        %v3624 = vrot.slane %v3623, 2
        %v3625 = vadd.f32 %v3623, %v3624
        %v3626 = vrot.slane %v3625, 1
        %v3627 = vadd.f32 %v3625, %v3626
        %v3628 = vsel %vm1328, %v1940, 0.0
        %v3629 = vsel %vm1328, %v1945, 0.0
        %v3630 = vadd.f32 %v3628, %v3629
        %v3631 = vrot.slane %v3630, 4
        %v3632 = vadd.f32 %v3630, %v3631
        %v3633 = vrot.slane %v3632, 2
        %v3634 = vadd.f32 %v3632, %v3633
        %v3635 = vrot.slane %v3634, 1
        %v3636 = vadd.f32 %v3634, %v3635
        %v3637 = vsel %vm1328, %v1950, 0.0
        %v3638 = vsel %vm1328, %v1955, 0.0
        %v3639 = vadd.f32 %v3637, %v3638
        %v3640 = vrot.slane %v3639, 4
        %v3641 = vadd.f32 %v3639, %v3640
        %v3642 = vrot.slane %v3641, 2
        %v3643 = vadd.f32 %v3641, %v3642
        %v3644 = vrot.slane %v3643, 1
        %v3645 = vadd.f32 %v3643, %v3644
        %v3646 = vsel %vm1328, %v1960, 0.0
        %v3647 = vsel %vm1328, %v1965, 0.0
        %v3648 = vadd.f32 %v3646, %v3647
        %v3649 = vrot.slane %v3648, 4
        %v3650 = vadd.f32 %v3648, %v3649
        %v3651 = vrot.slane %v3650, 2
        %v3652 = vadd.f32 %v3650, %v3651
        %v3653 = vrot.slane %v3652, 1
        %v3654 = vadd.f32 %v3652, %v3653
        %v3655 = vsel %vm1328, %v1970, 0.0
        %v3656 = vsel %vm1328, %v1975, 0.0
        %v3657 = vadd.f32 %v3655, %v3656
        %v3658 = vrot.slane %v3657, 4
        %v3659 = vadd.f32 %v3657, %v3658
        %v3660 = vrot.slane %v3659, 2
        %v3661 = vadd.f32 %v3659, %v3660
        %v3662 = vrot.slane %v3661, 1
        %v3663 = vadd.f32 %v3661, %v3662
        %v3664 = vld [vmem:[%s63] sm:$0xff]
        %v3665 = vld [vmem:[%s63 + $0x8] sm:$0xff]
        %v3666 = vld [vmem:[%s65] sm:$0xff]
        %v3667 = vld [vmem:[%s65 + $0x8] sm:$0xff]
        %v3676 = vsel %vm3280, %v3609, %v3600
        %v3677 = vsel %vm3282, %v3618, %v3676
        %v3678 = vsel %vm3284, %v3627, %v3677
        %v3679 = vsel %vm3286, %v3636, %v3678
        %v3680 = vsel %vm3288, %v3645, %v3679
        %v3681 = vsel %vm3290, %v3654, %v3680
        %v3682 = vsel %vm3292, %v3663, %v3681
        %v3683 = vsel %vm1328, %v3682, 0
        %3685 = vmatprep.subr.mxu0 0.0
        %3686 = vmatpush1.msra.mxu0 %v3666
        %3687 = vmatprep.subr.mxu0 0.0
        %3688 = vmatpush1.msra.mxu0 %v3667
        %3689 = vmatprep.subr.mxu0 0.0
        %3690 = vmatpush1.msra.mxu0 0.0
        %3691 = vmatprep.subr.mxu0 0.0
        %3692 = vmatpush1.msra.mxu0 0.0
        %3693 = vmatprep.subr.mxu0 0.0
        %3694 = vmatpush1.msra.mxu0 0.0
        %3695 = vmatprep.subr.mxu0 0.0
        %3696 = vmatpush1.msra.mxu0 0.0
        %3697 = vmatprep.subr.mxu0 0.0
        %3698 = vmatpush1.msra.mxu0 0.0
        %3699 = vmatprep.subr.mxu0 0.0
        %3700 = vmatpush1.msra.mxu0 0.0
        %3701 = vmatprep.subr.mxu0 0.0
        %3702 = vmatpush1.msra.mxu0 0.0
        %3703 = vmatprep.subr.mxu0 0.0
        %3704 = vmatpush1.msra.mxu0 0.0
        %3705 = vmatprep.subr.mxu0 0.0
        %3706 = vmatpush1.msra.mxu0 0.0
        %3707 = vmatprep.subr.mxu0 0.0
        %3708 = vmatpush1.msra.mxu0 0.0
        %3709 = vmatprep.subr.mxu0 0.0
        %3710 = vmatpush1.msra.mxu0 0.0
        %3711 = vmatprep.subr.mxu0 0.0
        %3712 = vmatpush1.msra.mxu0 0.0
        %3713 = vmatprep.subr.mxu0 0.0
        %3714 = vmatpush1.msra.mxu0 0.0
        %3715 = vmatprep.subr.mxu0 0.0
        %3716 = vmatpush1.msra.mxu0 0.0
        %3717 = vmatprep.subr.mxu0 0.0
        %3718 = vmatpush1.msra.mxu0 0.0
        %3719 = vmatprep.subr.mxu0 0.0
        %3720 = vmatpush1.msra.mxu0 0.0
        %3721 = vmatprep.subr.mxu0 0.0
        %3722 = vmatpush1.msra.mxu0 0.0
        %3723 = vmatprep.subr.mxu0 0.0
        %3724 = vmatpush1.msra.mxu0 0.0
        %3725 = vmatprep.subr.mxu0 0.0
        %3726 = vmatpush1.msra.mxu0 0.0
        %3727 = vmatprep.subr.mxu0 0.0
        %3728 = vmatpush1.msra.mxu0 0.0
        %3729 = vmatprep.subr.mxu0 0.0
        %3730 = vmatpush1.msra.mxu0 0.0
        %3731 = vmatprep.subr.mxu0 0.0
        %3732 = vmatpush1.msra.mxu0 0.0
        %3733 = vmatprep.subr.mxu0 0.0
        %3734 = vmatpush1.msra.mxu0 0.0
        %3735 = vmatprep.subr.mxu0 0.0
        %3736 = vmatpush1.msra.mxu0 0.0
        %3737 = vmatprep.subr.mxu0 0.0
        %3738 = vmatpush1.msra.mxu0 0.0
        %3739 = vmatprep.subr.mxu0 0.0
        %3740 = vmatpush1.msra.mxu0 0.0
        %3741 = vmatprep.subr.mxu0 0.0
        %3742 = vmatpush1.msra.mxu0 0.0
        %3743 = vmatprep.subr.mxu0 0.0
        %3744 = vmatpush1.msra.mxu0 0.0
        %3745 = vmatprep.subr.mxu0 0.0
        %3746 = vmatpush1.msra.mxu0 0.0
        %3747 = vmatprep.subr.mxu0 0.0
        %3748 = vmatpush1.msra.mxu0 0.0
        %3749 = vmatprep.mubr.f32.mxu0 0.0
        %3750 = vmatmul.mubr.f32.gmra.mrb[0].mxu0 %v3683
        %v3751 = vpop.f32.mrb[0].mxu0
        %v3752 = vadd.f32 0.0, %v3751
        %v3753 = vpop.f32.mrb[0].mxu0
        %3754 = vdwg.mxu0
        %3755 = vmatprep.subr.mxu0 0.0
        %3756 = vmatpush1.msra.mxu0 %v3664
        %3757 = vmatprep.subr.mxu0 0.0
        %3758 = vmatpush1.msra.mxu0 %v3665
        %3759 = vmatprep.subr.mxu0 0.0
        %3760 = vmatpush1.msra.mxu0 0.0
        %3761 = vmatprep.subr.mxu0 0.0
        %3762 = vmatpush1.msra.mxu0 0.0
        %3763 = vmatprep.subr.mxu0 0.0
        %3764 = vmatpush1.msra.mxu0 0.0
        %3765 = vmatprep.subr.mxu0 0.0
        %3766 = vmatpush1.msra.mxu0 0.0
        %3767 = vmatprep.subr.mxu0 0.0
        %3768 = vmatpush1.msra.mxu0 0.0
        %3769 = vmatprep.subr.mxu0 0.0
        %3770 = vmatpush1.msra.mxu0 0.0
        %3771 = vmatprep.subr.mxu0 0.0
        %3772 = vmatpush1.msra.mxu0 0.0
        %3773 = vmatprep.subr.mxu0 0.0
        %3774 = vmatpush1.msra.mxu0 0.0
        %3775 = vmatprep.subr.mxu0 0.0
        %3776 = vmatpush1.msra.mxu0 0.0
        %3777 = vmatprep.subr.mxu0 0.0
        %3778 = vmatpush1.msra.mxu0 0.0
        %3779 = vmatprep.subr.mxu0 0.0
        %3780 = vmatpush1.msra.mxu0 0.0
        %3781 = vmatprep.subr.mxu0 0.0
        %3782 = vmatpush1.msra.mxu0 0.0
        %3783 = vmatprep.subr.mxu0 0.0
        %3784 = vmatpush1.msra.mxu0 0.0
        %3785 = vmatprep.subr.mxu0 0.0
        %3786 = vmatpush1.msra.mxu0 0.0
        %3787 = vmatprep.subr.mxu0 0.0
        %3788 = vmatpush1.msra.mxu0 0.0
        %3789 = vmatprep.subr.mxu0 0.0
        %3790 = vmatpush1.msra.mxu0 0.0
        %3791 = vmatprep.subr.mxu0 0.0
        %3792 = vmatpush1.msra.mxu0 0.0
        %3793 = vmatprep.subr.mxu0 0.0
        %3794 = vmatpush1.msra.mxu0 0.0
        %3795 = vmatprep.subr.mxu0 0.0
        %3796 = vmatpush1.msra.mxu0 0.0
        %3797 = vmatprep.subr.mxu0 0.0
        %3798 = vmatpush1.msra.mxu0 0.0
        %3799 = vmatprep.subr.mxu0 0.0
        %3800 = vmatpush1.msra.mxu0 0.0
        %3801 = vmatprep.subr.mxu0 0.0
        %3802 = vmatpush1.msra.mxu0 0.0
        %3803 = vmatprep.subr.mxu0 0.0
        %3804 = vmatpush1.msra.mxu0 0.0
        %3805 = vmatprep.subr.mxu0 0.0
        %3806 = vmatpush1.msra.mxu0 0.0
        %3807 = vmatprep.subr.mxu0 0.0
        %3808 = vmatpush1.msra.mxu0 0.0
        %3809 = vmatprep.subr.mxu0 0.0
        %3810 = vmatpush1.msra.mxu0 0.0
        %3811 = vmatprep.subr.mxu0 0.0
        %3812 = vmatpush1.msra.mxu0 0.0
        %3813 = vmatprep.subr.mxu0 0.0
        %3814 = vmatpush1.msra.mxu0 0.0
        %3815 = vmatprep.subr.mxu0 0.0
        %3816 = vmatpush1.msra.mxu0 0.0
        %3817 = vmatprep.subr.mxu0 0.0
        %3818 = vmatpush1.msra.mxu0 0.0
        %3819 = vmatprep.mubr.f32.mxu0 0.0
        %3820 = vmatmul.mubr.f32.gmra.mrb[0].mxu0 %v1330
        %v3821 = vpop.f32.mrb[0].mxu0
        %v3822 = vadd.f32 %v3752, %v3821
        %v3823 = vpop.f32.mrb[0].mxu0
        %3824 = vdwg.mxu0
        %v3825 = vld [vmem:[%s67] sm:$0x1]
        %v3827 = vlaneseq
        %v3828 = vshrl.u32 %v3827, 7
        %v3829 = vsub.s32 0, %v3828
        %v3830 = vrot.slane %v3825, %v3829
        %v3832 = vadd.f32 %v3822, %v3830
        %v3833 = vmax.f32 %v3832, 0.0
        %v3834 = vld [vmem:[%s69] sm:$0xff]
        %v3835 = vld [vmem:[%s69 + $0x8] sm:$0xff]
        %v3836 = vld [vmem:[%s69 + $0x10] sm:$0xff]
        %v3837 = vld [vmem:[%s69 + $0x18] sm:$0xff]
        %v3838 = vld [vmem:[%s69 + $0x20] sm:$0xff]
        %v3839 = vld [vmem:[%s69 + $0x28] sm:$0xff]
        %v3840 = vld [vmem:[%s69 + $0x30] sm:$0xff]
        %v3841 = vld [vmem:[%s69 + $0x38] sm:$0xff]
        %v3842 = vld [vmem:[%s71] sm:$0x1]
        %v3844 = vlaneseq
        %v3845 = vshrl.u32 %v3844, 7
        %v3846 = vsub.s32 0, %v3845
        %v3847 = vrot.slane %v3842, %v3846
        %v3850 = vsel %vm1784, %v3833, 0
        %3852 = vmatprep.subr.mxu0 0.0
        %3853 = vmatpush1.msra.mxu0 %v3834
        %3854 = vmatprep.subr.mxu0 0.0
        %3855 = vmatpush1.msra.mxu0 %v3835
        %3856 = vmatprep.subr.mxu0 0.0
        %3857 = vmatpush1.msra.mxu0 %v3836
        %3858 = vmatprep.subr.mxu0 0.0
        %3859 = vmatpush1.msra.mxu0 %v3837
        %3860 = vmatprep.subr.mxu0 0.0
        %3861 = vmatpush1.msra.mxu0 %v3838
        %3862 = vmatprep.subr.mxu0 0.0
        %3863 = vmatpush1.msra.mxu0 %v3839
        %3864 = vmatprep.subr.mxu0 0.0
        %3865 = vmatpush1.msra.mxu0 %v3840
        %3866 = vmatprep.subr.mxu0 0.0
        %3867 = vmatpush1.msra.mxu0 %v3841
        %3868 = vmatprep.subr.mxu0 0.0
        %3869 = vmatpush1.msra.mxu0 0.0
        %3870 = vmatprep.subr.mxu0 0.0
        %3871 = vmatpush1.msra.mxu0 0.0
        %3872 = vmatprep.subr.mxu0 0.0
        %3873 = vmatpush1.msra.mxu0 0.0
        %3874 = vmatprep.subr.mxu0 0.0
        %3875 = vmatpush1.msra.mxu0 0.0
        %3876 = vmatprep.subr.mxu0 0.0
        %3877 = vmatpush1.msra.mxu0 0.0
        %3878 = vmatprep.subr.mxu0 0.0
        %3879 = vmatpush1.msra.mxu0 0.0
        %3880 = vmatprep.subr.mxu0 0.0
        %3881 = vmatpush1.msra.mxu0 0.0
        %3882 = vmatprep.subr.mxu0 0.0
        %3883 = vmatpush1.msra.mxu0 0.0
        %3884 = vmatprep.subr.mxu0 0.0
        %3885 = vmatpush1.msra.mxu0 0.0
        %3886 = vmatprep.subr.mxu0 0.0
        %3887 = vmatpush1.msra.mxu0 0.0
        %3888 = vmatprep.subr.mxu0 0.0
        %3889 = vmatpush1.msra.mxu0 0.0
        %3890 = vmatprep.subr.mxu0 0.0
        %3891 = vmatpush1.msra.mxu0 0.0
        %3892 = vmatprep.subr.mxu0 0.0
        %3893 = vmatpush1.msra.mxu0 0.0
        %3894 = vmatprep.subr.mxu0 0.0
        %3895 = vmatpush1.msra.mxu0 0.0
        %3896 = vmatprep.subr.mxu0 0.0
        %3897 = vmatpush1.msra.mxu0 0.0
        %3898 = vmatprep.subr.mxu0 0.0
        %3899 = vmatpush1.msra.mxu0 0.0
        %3900 = vmatprep.subr.mxu0 0.0
        %3901 = vmatpush1.msra.mxu0 0.0
        %3902 = vmatprep.subr.mxu0 0.0
        %3903 = vmatpush1.msra.mxu0 0.0
        %3904 = vmatprep.subr.mxu0 0.0
        %3905 = vmatpush1.msra.mxu0 0.0
        %3906 = vmatprep.subr.mxu0 0.0
        %3907 = vmatpush1.msra.mxu0 0.0
        %3908 = vmatprep.subr.mxu0 0.0
        %3909 = vmatpush1.msra.mxu0 0.0
        %3910 = vmatprep.subr.mxu0 0.0
        %3911 = vmatpush1.msra.mxu0 0.0
        %3912 = vmatprep.subr.mxu0 0.0
        %3913 = vmatpush1.msra.mxu0 0.0
        %3914 = vmatprep.subr.mxu0 0.0
        %3915 = vmatpush1.msra.mxu0 0.0
        %3916 = vmatprep.mubr.f32.mxu0 0.0
        %3917 = vmatmul.mubr.f32.gmra.mrb[0].mxu0 %v3850
        %v3918 = vpop.f32.mrb[0].mxu0
        %v3919 = vadd.f32 %v3847, %v3918
        %v3920 = vpop.f32.mrb[0].mxu0
        %3921 = vdwg.mxu0
        %v3922 = vlaneseq
        %v3923 = vshrl.u32 %v3922, 7
        %v3924 = vsub.s32 0, %v3923
        %v3925 = vrot.slane %v2144, %v3924
        %3927 = vbcast.lane.b32.xlu0 %v3925, 256
        %v3928 = vpop.permute.xlu0 %3927
        %s3930 = sor.u32 256, 8
        %3931 = vbcast.lane.b32.xlu0 %v3925, %s3930
        %v3932 = vpop.permute.xlu0 %3931
        %v3933 = vlaneseq
        %v3934 = vshrl.u32 %v3933, 7
        %v3935 = vsub.s32 1, %v3934
        %v3936 = vrot.slane %v2144, %v3935
        %3938 = vbcast.lane.b32.xlu0 %v3936, 256
        %v3939 = vpop.permute.xlu0 %3938
        %s3941 = sor.u32 256, 8
        %3942 = vbcast.lane.b32.xlu0 %v3936, %s3941
        %v3943 = vpop.permute.xlu0 %3942
        %v3944 = vlaneseq
        %v3945 = vshrl.u32 %v3944, 7
        %v3946 = vsub.s32 2, %v3945
        %v3947 = vrot.slane %v2144, %v3946
        %3949 = vbcast.lane.b32.xlu0 %v3947, 256
        %v3950 = vpop.permute.xlu0 %3949
        %s3952 = sor.u32 256, 8
        %3953 = vbcast.lane.b32.xlu0 %v3947, %s3952
        %v3954 = vpop.permute.xlu0 %3953
        %v3955 = vlaneseq
        %v3956 = vshrl.u32 %v3955, 7
        %v3957 = vsub.s32 3, %v3956
        %v3958 = vrot.slane %v2144, %v3957
        %3960 = vbcast.lane.b32.xlu0 %v3958, 256
        %v3961 = vpop.permute.xlu0 %3960
        %s3963 = sor.u32 256, 8
        %3964 = vbcast.lane.b32.xlu0 %v3958, %s3963
        %v3965 = vpop.permute.xlu0 %3964
        %v3966 = vlaneseq
        %v3967 = vshrl.u32 %v3966, 7
        %v3968 = vsub.s32 4, %v3967
        %v3969 = vrot.slane %v2144, %v3968
        %3971 = vbcast.lane.b32.xlu0 %v3969, 256
        %v3972 = vpop.permute.xlu0 %3971
        %s3974 = sor.u32 256, 8
        %3975 = vbcast.lane.b32.xlu0 %v3969, %s3974
        %v3976 = vpop.permute.xlu0 %3975
        %v3977 = vlaneseq
        %v3978 = vshrl.u32 %v3977, 7
        %v3979 = vsub.s32 5, %v3978
        %v3980 = vrot.slane %v2144, %v3979
        %3982 = vbcast.lane.b32.xlu0 %v3980, 256
        %v3983 = vpop.permute.xlu0 %3982
        %s3985 = sor.u32 256, 8
        %3986 = vbcast.lane.b32.xlu0 %v3980, %s3985
        %v3987 = vpop.permute.xlu0 %3986
        %v3988 = vlaneseq
        %v3989 = vshrl.u32 %v3988, 7
        %v3990 = vsub.s32 6, %v3989
        %v3991 = vrot.slane %v2144, %v3990
        %3993 = vbcast.lane.b32.xlu0 %v3991, 256
        %v3994 = vpop.permute.xlu0 %3993
        %s3996 = sor.u32 256, 8
        %3997 = vbcast.lane.b32.xlu0 %v3991, %s3996
        %v3998 = vpop.permute.xlu0 %3997
        %v3999 = vlaneseq
        %v4000 = vshrl.u32 %v3999, 7
        %v4001 = vsub.s32 7, %v4000
        %v4002 = vrot.slane %v2144, %v4001
        %4004 = vbcast.lane.b32.xlu0 %v4002, 256
        %v4005 = vpop.permute.xlu0 %4004
        %s4007 = sor.u32 256, 8
        %4008 = vbcast.lane.b32.xlu0 %v4002, %s4007
        %v4009 = vpop.permute.xlu0 %4008
        %vm4010 = vcmp.eq.s32.totalorder %v1311, 2
        %v4011 = vlaneseq
        %v4012 = vshrl.u32 %v4011, 7
        %v4013 = vsub.s32 0, %v4012
        %v4014 = vrot.slane %v2137, %v4013
        %4016 = vbcast.lane.b32.xlu0 %v4014, 256
        %v4017 = vpop.permute.xlu0 %4016
        %s4019 = sor.u32 256, 8
        %4020 = vbcast.lane.b32.xlu0 %v4014, %s4019
        %v4021 = vpop.permute.xlu0 %4020
        %v4022 = vlaneseq
        %v4023 = vshrl.u32 %v4022, 7
        %v4024 = vsub.s32 1, %v4023
        %v4025 = vrot.slane %v2137, %v4024
        %4027 = vbcast.lane.b32.xlu0 %v4025, 256
        %v4028 = vpop.permute.xlu0 %4027
        %s4030 = sor.u32 256, 8
        %4031 = vbcast.lane.b32.xlu0 %v4025, %s4030
        %v4032 = vpop.permute.xlu0 %4031
        %v4033 = vlaneseq
        %v4034 = vshrl.u32 %v4033, 7
        %v4035 = vsub.s32 2, %v4034
        %v4036 = vrot.slane %v2137, %v4035
        %4038 = vbcast.lane.b32.xlu0 %v4036, 256
        %v4039 = vpop.permute.xlu0 %4038
        %s4041 = sor.u32 256, 8
        %4042 = vbcast.lane.b32.xlu0 %v4036, %s4041
        %v4043 = vpop.permute.xlu0 %4042
        %v4044 = vlaneseq
        %v4045 = vshrl.u32 %v4044, 7
        %v4046 = vsub.s32 3, %v4045
        %v4047 = vrot.slane %v2137, %v4046
        %4049 = vbcast.lane.b32.xlu0 %v4047, 256
        %v4050 = vpop.permute.xlu0 %4049
        %s4052 = sor.u32 256, 8
        %4053 = vbcast.lane.b32.xlu0 %v4047, %s4052
        %v4054 = vpop.permute.xlu0 %4053
        %v4055 = vlaneseq
        %v4056 = vshrl.u32 %v4055, 7
        %v4057 = vsub.s32 4, %v4056
        %v4058 = vrot.slane %v2137, %v4057
        %4060 = vbcast.lane.b32.xlu0 %v4058, 256
        %v4061 = vpop.permute.xlu0 %4060
        %s4063 = sor.u32 256, 8
        %4064 = vbcast.lane.b32.xlu0 %v4058, %s4063
        %v4065 = vpop.permute.xlu0 %4064
        %v4066 = vlaneseq
        %v4067 = vshrl.u32 %v4066, 7
        %v4068 = vsub.s32 5, %v4067
        %v4069 = vrot.slane %v2137, %v4068
        %4071 = vbcast.lane.b32.xlu0 %v4069, 256
        %v4072 = vpop.permute.xlu0 %4071
        %s4074 = sor.u32 256, 8
        %4075 = vbcast.lane.b32.xlu0 %v4069, %s4074
        %v4076 = vpop.permute.xlu0 %4075
        %v4077 = vlaneseq
        %v4078 = vshrl.u32 %v4077, 7
        %v4079 = vsub.s32 6, %v4078
        %v4080 = vrot.slane %v2137, %v4079
        %4082 = vbcast.lane.b32.xlu0 %v4080, 256
        %v4083 = vpop.permute.xlu0 %4082
        %s4085 = sor.u32 256, 8
        %4086 = vbcast.lane.b32.xlu0 %v4080, %s4085
        %v4087 = vpop.permute.xlu0 %4086
        %v4088 = vlaneseq
        %v4089 = vshrl.u32 %v4088, 7
        %v4090 = vsub.s32 7, %v4089
        %v4091 = vrot.slane %v2137, %v4090
        %4093 = vbcast.lane.b32.xlu0 %v4091, 256
        %v4094 = vpop.permute.xlu0 %4093
        %s4096 = sor.u32 256, 8
        %4097 = vbcast.lane.b32.xlu0 %v4091, %s4096
        %v4098 = vpop.permute.xlu0 %4097
        %v4099 = vsel %vm4010, %v4017, %v3928
        %v4100 = vsel %vm4010, %v4021, %v3932
        %v4101 = vsel %vm4010, %v4028, %v3939
        %v4102 = vsel %vm4010, %v4032, %v3943
        %v4103 = vsel %vm4010, %v4039, %v3950
        %v4104 = vsel %vm4010, %v4043, %v3954
        %v4105 = vsel %vm4010, %v4050, %v3961
        %v4106 = vsel %vm4010, %v4054, %v3965
        %v4107 = vsel %vm4010, %v4061, %v3972
        %v4108 = vsel %vm4010, %v4065, %v3976
        %v4109 = vsel %vm4010, %v4072, %v3983
        %v4110 = vsel %vm4010, %v4076, %v3987
        %v4111 = vsel %vm4010, %v4083, %v3994
        %v4112 = vsel %vm4010, %v4087, %v3998
        %v4113 = vsel %vm4010, %v4094, %v4005
        %v4114 = vsel %vm4010, %v4098, %v4009
        %vm4115 = vcmp.eq.s32.totalorder %v1311, 1
        %v4116 = vlaneseq
        %v4117 = vshrl.u32 %v4116, 7
        %v4118 = vsub.s32 0, %v4117
        %v4119 = vrot.slane %v2130, %v4118
        %4121 = vbcast.lane.b32.xlu0 %v4119, 256
        %v4122 = vpop.permute.xlu0 %4121
        %s4124 = sor.u32 256, 8
        %4125 = vbcast.lane.b32.xlu0 %v4119, %s4124
        %v4126 = vpop.permute.xlu0 %4125
        %v4127 = vlaneseq
        %v4128 = vshrl.u32 %v4127, 7
        %v4129 = vsub.s32 1, %v4128
        %v4130 = vrot.slane %v2130, %v4129
        %4132 = vbcast.lane.b32.xlu0 %v4130, 256
        %v4133 = vpop.permute.xlu0 %4132
        %s4135 = sor.u32 256, 8
        %4136 = vbcast.lane.b32.xlu0 %v4130, %s4135
        %v4137 = vpop.permute.xlu0 %4136
        %v4138 = vlaneseq
        %v4139 = vshrl.u32 %v4138, 7
        %v4140 = vsub.s32 2, %v4139
        %v4141 = vrot.slane %v2130, %v4140
        %4143 = vbcast.lane.b32.xlu0 %v4141, 256
        %v4144 = vpop.permute.xlu0 %4143
        %s4146 = sor.u32 256, 8
        %4147 = vbcast.lane.b32.xlu0 %v4141, %s4146
        %v4148 = vpop.permute.xlu0 %4147
        %v4149 = vlaneseq
        %v4150 = vshrl.u32 %v4149, 7
        %v4151 = vsub.s32 3, %v4150
        %v4152 = vrot.slane %v2130, %v4151
        %4154 = vbcast.lane.b32.xlu0 %v4152, 256
        %v4155 = vpop.permute.xlu0 %4154
        %s4157 = sor.u32 256, 8
        %4158 = vbcast.lane.b32.xlu0 %v4152, %s4157
        %v4159 = vpop.permute.xlu0 %4158
        %v4160 = vlaneseq
        %v4161 = vshrl.u32 %v4160, 7
        %v4162 = vsub.s32 4, %v4161
        %v4163 = vrot.slane %v2130, %v4162
        %4165 = vbcast.lane.b32.xlu0 %v4163, 256
        %v4166 = vpop.permute.xlu0 %4165
        %s4168 = sor.u32 256, 8
        %4169 = vbcast.lane.b32.xlu0 %v4163, %s4168
        %v4170 = vpop.permute.xlu0 %4169
        %v4171 = vlaneseq
        %v4172 = vshrl.u32 %v4171, 7
        %v4173 = vsub.s32 5, %v4172
        %v4174 = vrot.slane %v2130, %v4173
        %4176 = vbcast.lane.b32.xlu0 %v4174, 256
        %v4177 = vpop.permute.xlu0 %4176
        %s4179 = sor.u32 256, 8
        %4180 = vbcast.lane.b32.xlu0 %v4174, %s4179
        %v4181 = vpop.permute.xlu0 %4180
        %v4182 = vlaneseq
        %v4183 = vshrl.u32 %v4182, 7
        %v4184 = vsub.s32 6, %v4183
        %v4185 = vrot.slane %v2130, %v4184
        %4187 = vbcast.lane.b32.xlu0 %v4185, 256
        %v4188 = vpop.permute.xlu0 %4187
        %s4190 = sor.u32 256, 8
        %4191 = vbcast.lane.b32.xlu0 %v4185, %s4190
        %v4192 = vpop.permute.xlu0 %4191
        %v4193 = vlaneseq
        %v4194 = vshrl.u32 %v4193, 7
        %v4195 = vsub.s32 7, %v4194
        %v4196 = vrot.slane %v2130, %v4195
        %4198 = vbcast.lane.b32.xlu0 %v4196, 256
        %v4199 = vpop.permute.xlu0 %4198
        %s4201 = sor.u32 256, 8
        %4202 = vbcast.lane.b32.xlu0 %v4196, %s4201
        %v4203 = vpop.permute.xlu0 %4202
        %v4204 = vsel %vm4115, %v4122, %v4099
        %v4205 = vsel %vm4115, %v4126, %v4100
        %v4206 = vsel %vm4115, %v4133, %v4101
        %v4207 = vsel %vm4115, %v4137, %v4102
        %v4208 = vsel %vm4115, %v4144, %v4103
        %v4209 = vsel %vm4115, %v4148, %v4104
        %v4210 = vsel %vm4115, %v4155, %v4105
        %v4211 = vsel %vm4115, %v4159, %v4106
        %v4212 = vsel %vm4115, %v4166, %v4107
        %v4213 = vsel %vm4115, %v4170, %v4108
        %v4214 = vsel %vm4115, %v4177, %v4109
        %v4215 = vsel %vm4115, %v4181, %v4110
        %v4216 = vsel %vm4115, %v4188, %v4111
        %v4217 = vsel %vm4115, %v4192, %v4112
        %v4218 = vsel %vm4115, %v4199, %v4113
        %v4219 = vsel %vm4115, %v4203, %v4114
        %v4220 = vlaneseq
        %v4221 = vshrl.u32 %v4220, 7
        %v4222 = vsub.s32 0, %v4221
        %v4223 = vrot.slane %v2123, %v4222
        %4225 = vbcast.lane.b32.xlu0 %v4223, 256
        %v4226 = vpop.permute.xlu0 %4225
        %s4228 = sor.u32 256, 8
        %4229 = vbcast.lane.b32.xlu0 %v4223, %s4228
        %v4230 = vpop.permute.xlu0 %4229
        %v4231 = vlaneseq
        %v4232 = vshrl.u32 %v4231, 7
        %v4233 = vsub.s32 1, %v4232
        %v4234 = vrot.slane %v2123, %v4233
        %4236 = vbcast.lane.b32.xlu0 %v4234, 256
        %v4237 = vpop.permute.xlu0 %4236
        %s4239 = sor.u32 256, 8
        %4240 = vbcast.lane.b32.xlu0 %v4234, %s4239
        %v4241 = vpop.permute.xlu0 %4240
        %v4242 = vlaneseq
        %v4243 = vshrl.u32 %v4242, 7
        %v4244 = vsub.s32 2, %v4243
        %v4245 = vrot.slane %v2123, %v4244
        %4247 = vbcast.lane.b32.xlu0 %v4245, 256
        %v4248 = vpop.permute.xlu0 %4247
        %s4250 = sor.u32 256, 8
        %4251 = vbcast.lane.b32.xlu0 %v4245, %s4250
        %v4252 = vpop.permute.xlu0 %4251
        %v4253 = vlaneseq
        %v4254 = vshrl.u32 %v4253, 7
        %v4255 = vsub.s32 3, %v4254
        %v4256 = vrot.slane %v2123, %v4255
        %4258 = vbcast.lane.b32.xlu0 %v4256, 256
        %v4259 = vpop.permute.xlu0 %4258
        %s4261 = sor.u32 256, 8
        %4262 = vbcast.lane.b32.xlu0 %v4256, %s4261
        %v4263 = vpop.permute.xlu0 %4262
        %v4264 = vlaneseq
        %v4265 = vshrl.u32 %v4264, 7
        %v4266 = vsub.s32 4, %v4265
        %v4267 = vrot.slane %v2123, %v4266
        %4269 = vbcast.lane.b32.xlu0 %v4267, 256
        %v4270 = vpop.permute.xlu0 %4269
        %s4272 = sor.u32 256, 8
        %4273 = vbcast.lane.b32.xlu0 %v4267, %s4272
        %v4274 = vpop.permute.xlu0 %4273
        %v4275 = vlaneseq
        %v4276 = vshrl.u32 %v4275, 7
        %v4277 = vsub.s32 5, %v4276
        %v4278 = vrot.slane %v2123, %v4277
        %4280 = vbcast.lane.b32.xlu0 %v4278, 256
        %v4281 = vpop.permute.xlu0 %4280
        %s4283 = sor.u32 256, 8
        %4284 = vbcast.lane.b32.xlu0 %v4278, %s4283
        %v4285 = vpop.permute.xlu0 %4284
        %v4286 = vlaneseq
        %v4287 = vshrl.u32 %v4286, 7
        %v4288 = vsub.s32 6, %v4287
        %v4289 = vrot.slane %v2123, %v4288
        %4291 = vbcast.lane.b32.xlu0 %v4289, 256
        %v4292 = vpop.permute.xlu0 %4291
        %s4294 = sor.u32 256, 8
        %4295 = vbcast.lane.b32.xlu0 %v4289, %s4294
        %v4296 = vpop.permute.xlu0 %4295
        %v4297 = vlaneseq
        %v4298 = vshrl.u32 %v4297, 7
        %v4299 = vsub.s32 7, %v4298
        %v4300 = vrot.slane %v2123, %v4299
        %4302 = vbcast.lane.b32.xlu0 %v4300, 256
        %v4303 = vpop.permute.xlu0 %4302
        %s4305 = sor.u32 256, 8
        %4306 = vbcast.lane.b32.xlu0 %v4300, %s4305
        %v4307 = vpop.permute.xlu0 %4306
        %v4308 = vsel %vm2459, %v4226, %v4204
        %v4309 = vsel %vm2459, %v4230, %v4205
        %v4310 = vsel %vm2459, %v4237, %v4206
        %v4311 = vsel %vm2459, %v4241, %v4207
        %v4312 = vsel %vm2459, %v4248, %v4208
        %v4313 = vsel %vm2459, %v4252, %v4209
        %v4314 = vsel %vm2459, %v4259, %v4210
        %v4315 = vsel %vm2459, %v4263, %v4211
        %v4316 = vsel %vm2459, %v4270, %v4212
        %v4317 = vsel %vm2459, %v4274, %v4213
        %v4318 = vsel %vm2459, %v4281, %v4214
        %v4319 = vsel %vm2459, %v4285, %v4215
        %v4320 = vsel %vm2459, %v4292, %v4216
        %v4321 = vsel %vm2459, %v4296, %v4217
        %v4322 = vsel %vm2459, %v4303, %v4218
        %v4323 = vsel %vm2459, %v4307, %v4219
        %v4324 = vld [vmem:[%s47] sm:$0xf]
        %vm4325 = vcmask 31744
        %v4327 = vsel %vm4325, %v4308, 0
        %v4330 = vsel %vm4325, %v4309, 0
        %v4333 = vsel %vm4325, %v4310, 0
        %v4336 = vsel %vm4325, %v4311, 0
        %v4339 = vsel %vm4325, %v4312, 0
        %v4342 = vsel %vm4325, %v4313, 0
        %v4345 = vsel %vm4325, %v4314, 0
        %v4348 = vsel %vm4325, %v4315, 0
        %v4351 = vsel %vm4325, %v4316, 0
        %v4354 = vsel %vm4325, %v4317, 0
        %v4357 = vsel %vm4325, %v4318, 0
        %v4360 = vsel %vm4325, %v4319, 0
        %v4363 = vsel %vm4325, %v4320, 0
        %v4366 = vsel %vm4325, %v4321, 0
        %v4369 = vsel %vm4325, %v4322, 0
        %v4372 = vsel %vm4325, %v4323, 0
        %vm4374 = vcmask 1043456
        %v4376 = vsel %vm4374, %v4324, 0
        %4378 = vmatprep.subr.mxu0 0.0
        %4379 = vmatpush1.msra.mxu0 %v4376
        %4380 = vmatprep.subr.mxu0 0.0
        %4381 = vmatpush1.msra.mxu0 0.0
        %4382 = vmatprep.subr.mxu0 0.0
        %4383 = vmatpush1.msra.mxu0 0.0
        %4384 = vmatprep.subr.mxu0 0.0
        %4385 = vmatpush1.msra.mxu0 0.0
        %4386 = vmatprep.subr.mxu0 0.0
        %4387 = vmatpush1.msra.mxu0 0.0
        %4388 = vmatprep.subr.mxu0 0.0
        %4389 = vmatpush1.msra.mxu0 0.0
        %4390 = vmatprep.subr.mxu0 0.0
        %4391 = vmatpush1.msra.mxu0 0.0
        %4392 = vmatprep.subr.mxu0 0.0
        %4393 = vmatpush1.msra.mxu0 0.0
        %4394 = vmatprep.subr.mxu0 0.0
        %4395 = vmatpush1.msra.mxu0 0.0
        %4396 = vmatprep.subr.mxu0 0.0
        %4397 = vmatpush1.msra.mxu0 0.0
        %4398 = vmatprep.subr.mxu0 0.0
        %4399 = vmatpush1.msra.mxu0 0.0
        %4400 = vmatprep.subr.mxu0 0.0
        %4401 = vmatpush1.msra.mxu0 0.0
        %4402 = vmatprep.subr.mxu0 0.0
        %4403 = vmatpush1.msra.mxu0 0.0
        %4404 = vmatprep.subr.mxu0 0.0
        %4405 = vmatpush1.msra.mxu0 0.0
        %4406 = vmatprep.subr.mxu0 0.0
        %4407 = vmatpush1.msra.mxu0 0.0
        %4408 = vmatprep.subr.mxu0 0.0
        %4409 = vmatpush1.msra.mxu0 0.0
        %4410 = vmatprep.subr.mxu0 0.0
        %4411 = vmatpush1.msra.mxu0 0.0
        %4412 = vmatprep.subr.mxu0 0.0
        %4413 = vmatpush1.msra.mxu0 0.0
        %4414 = vmatprep.subr.mxu0 0.0
        %4415 = vmatpush1.msra.mxu0 0.0
        %4416 = vmatprep.subr.mxu0 0.0
        %4417 = vmatpush1.msra.mxu0 0.0
        %4418 = vmatprep.subr.mxu0 0.0
        %4419 = vmatpush1.msra.mxu0 0.0
        %4420 = vmatprep.subr.mxu0 0.0
        %4421 = vmatpush1.msra.mxu0 0.0
        %4422 = vmatprep.subr.mxu0 0.0
        %4423 = vmatpush1.msra.mxu0 0.0
        %4424 = vmatprep.subr.mxu0 0.0
        %4425 = vmatpush1.msra.mxu0 0.0
        %4426 = vmatprep.subr.mxu0 0.0
        %4427 = vmatpush1.msra.mxu0 0.0
        %4428 = vmatprep.subr.mxu0 0.0
        %4429 = vmatpush1.msra.mxu0 0.0
        %4430 = vmatprep.subr.mxu0 0.0
        %4431 = vmatpush1.msra.mxu0 0.0
        %4432 = vmatprep.subr.mxu0 0.0
        %4433 = vmatpush1.msra.mxu0 0.0
        %4434 = vmatprep.subr.mxu0 0.0
        %4435 = vmatpush1.msra.mxu0 0.0
        %4436 = vmatprep.subr.mxu0 0.0
        %4437 = vmatpush1.msra.mxu0 0.0
        %4438 = vmatprep.subr.mxu0 0.0
        %4439 = vmatpush1.msra.mxu0 0.0
        %4440 = vmatprep.subr.mxu0 0.0
        %4441 = vmatpush1.msra.mxu0 0.0
        %4442 = vmatprep.mubr.f32.mxu0 0.0
        %4443 = vmatmul.mubr.f32.gmra.mrb[0].mxu0 %v4327
        %v4444 = vpop.f32.mrb[0].mxu0
        %v4445 = vadd.f32 0.0, %v4444
        %v4446 = vpop.f32.mrb[0].mxu0
        %4447 = vmatprep.mubr.f32.mxu0 0.0
        %4448 = vmatmul.mubr.f32.gmra.mrb[0].mxu0 %v4330
        %v4449 = vpop.f32.mrb[0].mxu0
        %v4450 = vadd.f32 0.0, %v4449
        %v4451 = vpop.f32.mrb[0].mxu0
        %4452 = vmatprep.mubr.f32.mxu0 0.0
        %4453 = vmatmul.mubr.f32.gmra.mrb[0].mxu0 %v4333
        %v4454 = vpop.f32.mrb[0].mxu0
        %v4455 = vadd.f32 0.0, %v4454
        %v4456 = vpop.f32.mrb[0].mxu0
        %4457 = vmatprep.mubr.f32.mxu0 0.0
        %4458 = vmatmul.mubr.f32.gmra.mrb[0].mxu0 %v4336
        %v4459 = vpop.f32.mrb[0].mxu0
        %v4460 = vadd.f32 0.0, %v4459
        %v4461 = vpop.f32.mrb[0].mxu0
        %4462 = vmatprep.mubr.f32.mxu0 0.0
        %4463 = vmatmul.mubr.f32.gmra.mrb[0].mxu0 %v4339
        %v4464 = vpop.f32.mrb[0].mxu0
        %v4465 = vadd.f32 0.0, %v4464
        %v4466 = vpop.f32.mrb[0].mxu0
        %4467 = vmatprep.mubr.f32.mxu0 0.0
        %4468 = vmatmul.mubr.f32.gmra.mrb[0].mxu0 %v4342
        %v4469 = vpop.f32.mrb[0].mxu0
        %v4470 = vadd.f32 0.0, %v4469
        %v4471 = vpop.f32.mrb[0].mxu0
        %4472 = vmatprep.mubr.f32.mxu0 0.0
        %4473 = vmatmul.mubr.f32.gmra.mrb[0].mxu0 %v4345
        %v4474 = vpop.f32.mrb[0].mxu0
        %v4475 = vadd.f32 0.0, %v4474
        %v4476 = vpop.f32.mrb[0].mxu0
        %4477 = vmatprep.mubr.f32.mxu0 0.0
        %4478 = vmatmul.mubr.f32.gmra.mrb[0].mxu0 %v4348
        %v4479 = vpop.f32.mrb[0].mxu0
        %v4480 = vadd.f32 0.0, %v4479
        %v4481 = vpop.f32.mrb[0].mxu0
        %4482 = vmatprep.mubr.f32.mxu0 0.0
        %4483 = vmatmul.mubr.f32.gmra.mrb[0].mxu0 %v4351
        %v4484 = vpop.f32.mrb[0].mxu0
        %v4485 = vadd.f32 0.0, %v4484
        %v4486 = vpop.f32.mrb[0].mxu0
        %4487 = vmatprep.mubr.f32.mxu0 0.0
        %4488 = vmatmul.mubr.f32.gmra.mrb[0].mxu0 %v4354
        %v4489 = vpop.f32.mrb[0].mxu0
        %v4490 = vadd.f32 0.0, %v4489
        %v4491 = vpop.f32.mrb[0].mxu0
        %4492 = vmatprep.mubr.f32.mxu0 0.0
        %4493 = vmatmul.mubr.f32.gmra.mrb[0].mxu0 %v4357
        %v4494 = vpop.f32.mrb[0].mxu0
        %v4495 = vadd.f32 0.0, %v4494
        %v4496 = vpop.f32.mrb[0].mxu0
        %4497 = vmatprep.mubr.f32.mxu0 0.0
        %4498 = vmatmul.mubr.f32.gmra.mrb[0].mxu0 %v4360
        %v4499 = vpop.f32.mrb[0].mxu0
        %v4500 = vadd.f32 0.0, %v4499
        %v4501 = vpop.f32.mrb[0].mxu0
        %4502 = vmatprep.mubr.f32.mxu0 0.0
        %4503 = vmatmul.mubr.f32.gmra.mrb[0].mxu0 %v4363
        %v4504 = vpop.f32.mrb[0].mxu0
        %v4505 = vadd.f32 0.0, %v4504
        %v4506 = vpop.f32.mrb[0].mxu0
        %4507 = vmatprep.mubr.f32.mxu0 0.0
        %4508 = vmatmul.mubr.f32.gmra.mrb[0].mxu0 %v4366
        %v4509 = vpop.f32.mrb[0].mxu0
        %v4510 = vadd.f32 0.0, %v4509
        %v4511 = vpop.f32.mrb[0].mxu0
        %4512 = vmatprep.mubr.f32.mxu0 0.0
        %4513 = vmatmul.mubr.f32.gmra.mrb[0].mxu0 %v4369
        %v4514 = vpop.f32.mrb[0].mxu0
        %v4515 = vadd.f32 0.0, %v4514
        %v4516 = vpop.f32.mrb[0].mxu0
        %4517 = vmatprep.mubr.f32.mxu0 0.0
        %4518 = vmatmul.mubr.f32.gmra.mrb[0].mxu0 %v4372
        %v4519 = vpop.f32.mrb[0].mxu0
        %v4520 = vadd.f32 0.0, %v4519
        %v4521 = vpop.f32.mrb[0].mxu0
        %4522 = vdwg.mxu0
        %4539 = vrot.lane.b32.xlu0 %v4445, 64
        %v4540 = vpop.permute.xlu0 %4539
        %4541 = vrot.lane.b32.xlu0 %v4450, 64
        %v4542 = vpop.permute.xlu0 %4541
        %4543 = vrot.lane.b32.xlu0 %v4455, 64
        %v4544 = vpop.permute.xlu0 %4543
        %4545 = vrot.lane.b32.xlu0 %v4460, 64
        %v4546 = vpop.permute.xlu0 %4545
        %4547 = vrot.lane.b32.xlu0 %v4465, 64
        %v4548 = vpop.permute.xlu0 %4547
        %4549 = vrot.lane.b32.xlu0 %v4470, 64
        %v4550 = vpop.permute.xlu0 %4549
        %4551 = vrot.lane.b32.xlu0 %v4475, 64
        %v4552 = vpop.permute.xlu0 %4551
        %4553 = vrot.lane.b32.xlu0 %v4480, 64
        %v4554 = vpop.permute.xlu0 %4553
        %4555 = vrot.lane.b32.xlu0 %v4485, 64
        %v4556 = vpop.permute.xlu0 %4555
        %4557 = vrot.lane.b32.xlu0 %v4490, 64
        %v4558 = vpop.permute.xlu0 %4557
        %4559 = vrot.lane.b32.xlu0 %v4495, 64
        %v4560 = vpop.permute.xlu0 %4559
        %4561 = vrot.lane.b32.xlu0 %v4500, 64
        %v4562 = vpop.permute.xlu0 %4561
        %4563 = vrot.lane.b32.xlu0 %v4505, 64
        %v4564 = vpop.permute.xlu0 %4563
        %4565 = vrot.lane.b32.xlu0 %v4510, 64
        %v4566 = vpop.permute.xlu0 %4565
        %4567 = vrot.lane.b32.xlu0 %v4515, 64
        %v4568 = vpop.permute.xlu0 %4567
        %4569 = vrot.lane.b32.xlu0 %v4520, 64
        %v4570 = vpop.permute.xlu0 %4569
        %v4587 = vadd.f32 %v2276, %v4540
        %v4588 = vadd.f32 %v2282, %v4542
        %v4589 = vadd.f32 %v2288, %v4544
        %v4590 = vadd.f32 %v2294, %v4546
        %v4591 = vadd.f32 %v2300, %v4548
        %v4592 = vadd.f32 %v2306, %v4550
        %v4593 = vadd.f32 %v2312, %v4552
        %v4594 = vadd.f32 %v2318, %v4554
        %v4595 = vadd.f32 %v2324, %v4556
        %v4596 = vadd.f32 %v2330, %v4558
        %v4597 = vadd.f32 %v2336, %v4560
        %v4598 = vadd.f32 %v2342, %v4562
        %v4599 = vadd.f32 %v2348, %v4564
        %v4600 = vadd.f32 %v2354, %v4566
        %v4601 = vadd.f32 %v2360, %v4568
        %v4602 = vadd.f32 %v2366, %v4570
        %v4603 = vmax.f32 %v4587, 0.0
        %v4604 = vmax.f32 %v4588, 0.0
        %v4605 = vmax.f32 %v4589, 0.0
        %v4606 = vmax.f32 %v4590, 0.0
        %v4607 = vmax.f32 %v4591, 0.0
        %v4608 = vmax.f32 %v4592, 0.0
        %v4609 = vmax.f32 %v4593, 0.0
        %v4610 = vmax.f32 %v4594, 0.0
        %v4611 = vmax.f32 %v4595, 0.0
        %v4612 = vmax.f32 %v4596, 0.0
        %v4613 = vmax.f32 %v4597, 0.0
        %v4614 = vmax.f32 %v4598, 0.0
        %v4615 = vmax.f32 %v4599, 0.0
        %v4616 = vmax.f32 %v4600, 0.0
        %v4617 = vmax.f32 %v4601, 0.0
        %v4618 = vmax.f32 %v4602, 0.0
        %v4619 = vld [vmem:[%s49] sm:$0xff]
        %v4620 = vld [vmem:[%s49 + $0x8] sm:$0xff]
        %v4621 = vld [vmem:[%s49 + $0x10] sm:$0xff]
        %v4622 = vld [vmem:[%s49 + $0x18] sm:$0xff]
        %v4623 = vld [vmem:[%s49 + $0x20] sm:$0xff]
        %v4624 = vld [vmem:[%s49 + $0x28] sm:$0xff]
        %v4625 = vld [vmem:[%s49 + $0x30] sm:$0xff]
        %v4626 = vld [vmem:[%s49 + $0x38] sm:$0xff]
        %v4627 = vld [vmem:[%s51] sm:$0x1]
        %v4629 = vlaneseq
        %v4630 = vshrl.u32 %v4629, 7
        %v4631 = vsub.s32 0, %v4630
        %v4632 = vrot.slane %v4627, %v4631
        %4650 = vrot.lane.b32.xlu0 %v4603, 64
        %v4651 = vpop.permute.xlu0 %4650
        %4652 = vrot.lane.b32.xlu0 %v4604, 64
        %v4653 = vpop.permute.xlu0 %4652
        %4654 = vrot.lane.b32.xlu0 %v4605, 64
        %v4655 = vpop.permute.xlu0 %4654
        %4656 = vrot.lane.b32.xlu0 %v4606, 64
        %v4657 = vpop.permute.xlu0 %4656
        %4658 = vrot.lane.b32.xlu0 %v4607, 64
        %v4659 = vpop.permute.xlu0 %4658
        %4660 = vrot.lane.b32.xlu0 %v4608, 64
        %v4661 = vpop.permute.xlu0 %4660
        %4662 = vrot.lane.b32.xlu0 %v4609, 64
        %v4663 = vpop.permute.xlu0 %4662
        %4664 = vrot.lane.b32.xlu0 %v4610, 64
        %v4665 = vpop.permute.xlu0 %4664
        %4666 = vrot.lane.b32.xlu0 %v4611, 64
        %v4667 = vpop.permute.xlu0 %4666
        %4668 = vrot.lane.b32.xlu0 %v4612, 64
        %v4669 = vpop.permute.xlu0 %4668
        %4670 = vrot.lane.b32.xlu0 %v4613, 64
        %v4671 = vpop.permute.xlu0 %4670
        %4672 = vrot.lane.b32.xlu0 %v4614, 64
        %v4673 = vpop.permute.xlu0 %4672
        %4674 = vrot.lane.b32.xlu0 %v4615, 64
        %v4675 = vpop.permute.xlu0 %4674
        %4676 = vrot.lane.b32.xlu0 %v4616, 64
        %v4677 = vpop.permute.xlu0 %4676
        %4678 = vrot.lane.b32.xlu0 %v4617, 64
        %v4679 = vpop.permute.xlu0 %4678
        %4680 = vrot.lane.b32.xlu0 %v4618, 64
        %v4681 = vpop.permute.xlu0 %4680
        %v4682 = vsel %vm1784, %v4651, 0
        %v4684 = vsel %vm1784, %v4653, 0
        %v4686 = vsel %vm1784, %v4655, 0
        %v4688 = vsel %vm1784, %v4657, 0
        %v4690 = vsel %vm1784, %v4659, 0
        %v4692 = vsel %vm1784, %v4661, 0
        %v4694 = vsel %vm1784, %v4663, 0
        %v4696 = vsel %vm1784, %v4665, 0
        %v4698 = vsel %vm1784, %v4667, 0
        %v4700 = vsel %vm1784, %v4669, 0
        %v4702 = vsel %vm1784, %v4671, 0
        %v4704 = vsel %vm1784, %v4673, 0
        %v4706 = vsel %vm1784, %v4675, 0
        %v4708 = vsel %vm1784, %v4677, 0
        %v4710 = vsel %vm1784, %v4679, 0
        %v4712 = vsel %vm1784, %v4681, 0
        %4714 = vmatprep.subr.mxu0 0.0
        %4715 = vmatpush1.msra.mxu0 %v4619
        %4716 = vmatprep.subr.mxu0 0.0
        %4717 = vmatpush1.msra.mxu0 %v4620
        %4718 = vmatprep.subr.mxu0 0.0
        %4719 = vmatpush1.msra.mxu0 %v4621
        %4720 = vmatprep.subr.mxu0 0.0
        %4721 = vmatpush1.msra.mxu0 %v4622
        %4722 = vmatprep.subr.mxu0 0.0
        %4723 = vmatpush1.msra.mxu0 %v4623
        %4724 = vmatprep.subr.mxu0 0.0
        %4725 = vmatpush1.msra.mxu0 %v4624
        %4726 = vmatprep.subr.mxu0 0.0
        %4727 = vmatpush1.msra.mxu0 %v4625
        %4728 = vmatprep.subr.mxu0 0.0
        %4729 = vmatpush1.msra.mxu0 %v4626
        %4730 = vmatprep.subr.mxu0 0.0
        %4731 = vmatpush1.msra.mxu0 0.0
        %4732 = vmatprep.subr.mxu0 0.0
        %4733 = vmatpush1.msra.mxu0 0.0
        %4734 = vmatprep.subr.mxu0 0.0
        %4735 = vmatpush1.msra.mxu0 0.0
        %4736 = vmatprep.subr.mxu0 0.0
        %4737 = vmatpush1.msra.mxu0 0.0
        %4738 = vmatprep.subr.mxu0 0.0
        %4739 = vmatpush1.msra.mxu0 0.0
        %4740 = vmatprep.subr.mxu0 0.0
        %4741 = vmatpush1.msra.mxu0 0.0
        %4742 = vmatprep.subr.mxu0 0.0
        %4743 = vmatpush1.msra.mxu0 0.0
        %4744 = vmatprep.subr.mxu0 0.0
        %4745 = vmatpush1.msra.mxu0 0.0
        %4746 = vmatprep.subr.mxu0 0.0
        %4747 = vmatpush1.msra.mxu0 0.0
        %4748 = vmatprep.subr.mxu0 0.0
        %4749 = vmatpush1.msra.mxu0 0.0
        %4750 = vmatprep.subr.mxu0 0.0
        %4751 = vmatpush1.msra.mxu0 0.0
        %4752 = vmatprep.subr.mxu0 0.0
        %4753 = vmatpush1.msra.mxu0 0.0
        %4754 = vmatprep.subr.mxu0 0.0
        %4755 = vmatpush1.msra.mxu0 0.0
        %4756 = vmatprep.subr.mxu0 0.0
        %4757 = vmatpush1.msra.mxu0 0.0
        %4758 = vmatprep.subr.mxu0 0.0
        %4759 = vmatpush1.msra.mxu0 0.0
        %4760 = vmatprep.subr.mxu0 0.0
        %4761 = vmatpush1.msra.mxu0 0.0
        %4762 = vmatprep.subr.mxu0 0.0
        %4763 = vmatpush1.msra.mxu0 0.0
        %4764 = vmatprep.subr.mxu0 0.0
        %4765 = vmatpush1.msra.mxu0 0.0
        %4766 = vmatprep.subr.mxu0 0.0
        %4767 = vmatpush1.msra.mxu0 0.0
        %4768 = vmatprep.subr.mxu0 0.0
        %4769 = vmatpush1.msra.mxu0 0.0
        %4770 = vmatprep.subr.mxu0 0.0
        %4771 = vmatpush1.msra.mxu0 0.0
        %4772 = vmatprep.subr.mxu0 0.0
        %4773 = vmatpush1.msra.mxu0 0.0
        %4774 = vmatprep.subr.mxu0 0.0
        %4775 = vmatpush1.msra.mxu0 0.0
        %4776 = vmatprep.subr.mxu0 0.0
        %4777 = vmatpush1.msra.mxu0 0.0
        %4778 = vmatprep.mubr.f32.mxu0 0.0
        %4779 = vmatmul.mubr.f32.gmra.mrb[0].mxu0 %v4682
        %v4780 = vpop.f32.mrb[0].mxu0
        %v4781 = vadd.f32 %v4632, %v4780
        %v4782 = vpop.f32.mrb[0].mxu0
        %4783 = vmatprep.mubr.f32.mxu0 0.0
        %4784 = vmatmul.mubr.f32.gmra.mrb[0].mxu0 %v4684
        %v4785 = vpop.f32.mrb[0].mxu0
        %v4786 = vadd.f32 %v4632, %v4785
        %v4787 = vpop.f32.mrb[0].mxu0
        %4788 = vmatprep.mubr.f32.mxu0 0.0
        %4789 = vmatmul.mubr.f32.gmra.mrb[0].mxu0 %v4686
        %v4790 = vpop.f32.mrb[0].mxu0
        %v4791 = vadd.f32 %v4632, %v4790
        %v4792 = vpop.f32.mrb[0].mxu0
        %4793 = vmatprep.mubr.f32.mxu0 0.0
        %4794 = vmatmul.mubr.f32.gmra.mrb[0].mxu0 %v4688
        %v4795 = vpop.f32.mrb[0].mxu0
        %v4796 = vadd.f32 %v4632, %v4795
        %v4797 = vpop.f32.mrb[0].mxu0
        %4798 = vmatprep.mubr.f32.mxu0 0.0
        %4799 = vmatmul.mubr.f32.gmra.mrb[0].mxu0 %v4690
        %v4800 = vpop.f32.mrb[0].mxu0
        %v4801 = vadd.f32 %v4632, %v4800
        %v4802 = vpop.f32.mrb[0].mxu0
        %4803 = vmatprep.mubr.f32.mxu0 0.0
        %4804 = vmatmul.mubr.f32.gmra.mrb[0].mxu0 %v4692
        %v4805 = vpop.f32.mrb[0].mxu0
        %v4806 = vadd.f32 %v4632, %v4805
        %v4807 = vpop.f32.mrb[0].mxu0
        %4808 = vmatprep.mubr.f32.mxu0 0.0
        %4809 = vmatmul.mubr.f32.gmra.mrb[0].mxu0 %v4694
        %v4810 = vpop.f32.mrb[0].mxu0
        %v4811 = vadd.f32 %v4632, %v4810
        %v4812 = vpop.f32.mrb[0].mxu0
        %4813 = vmatprep.mubr.f32.mxu0 0.0
        %4814 = vmatmul.mubr.f32.gmra.mrb[0].mxu0 %v4696
        %v4815 = vpop.f32.mrb[0].mxu0
        %v4816 = vadd.f32 %v4632, %v4815
        %v4817 = vpop.f32.mrb[0].mxu0
        %4818 = vmatprep.mubr.f32.mxu0 0.0
        %4819 = vmatmul.mubr.f32.gmra.mrb[0].mxu0 %v4698
        %v4820 = vpop.f32.mrb[0].mxu0
        %v4821 = vadd.f32 %v4632, %v4820
        %v4822 = vpop.f32.mrb[0].mxu0
        %4823 = vmatprep.mubr.f32.mxu0 0.0
        %4824 = vmatmul.mubr.f32.gmra.mrb[0].mxu0 %v4700
        %v4825 = vpop.f32.mrb[0].mxu0
        %v4826 = vadd.f32 %v4632, %v4825
        %v4827 = vpop.f32.mrb[0].mxu0
        %4828 = vmatprep.mubr.f32.mxu0 0.0
        %4829 = vmatmul.mubr.f32.gmra.mrb[0].mxu0 %v4702
        %v4830 = vpop.f32.mrb[0].mxu0
        %v4831 = vadd.f32 %v4632, %v4830
        %v4832 = vpop.f32.mrb[0].mxu0
        %4833 = vmatprep.mubr.f32.mxu0 0.0
        %4834 = vmatmul.mubr.f32.gmra.mrb[0].mxu0 %v4704
        %v4835 = vpop.f32.mrb[0].mxu0
        %v4836 = vadd.f32 %v4632, %v4835
        %v4837 = vpop.f32.mrb[0].mxu0
        %4838 = vmatprep.mubr.f32.mxu0 0.0
        %4839 = vmatmul.mubr.f32.gmra.mrb[0].mxu0 %v4706
        %v4840 = vpop.f32.mrb[0].mxu0
        %v4841 = vadd.f32 %v4632, %v4840
        %v4842 = vpop.f32.mrb[0].mxu0
        %4843 = vmatprep.mubr.f32.mxu0 0.0
        %4844 = vmatmul.mubr.f32.gmra.mrb[0].mxu0 %v4708
        %v4845 = vpop.f32.mrb[0].mxu0
        %v4846 = vadd.f32 %v4632, %v4845
        %v4847 = vpop.f32.mrb[0].mxu0
        %4848 = vmatprep.mubr.f32.mxu0 0.0
        %4849 = vmatmul.mubr.f32.gmra.mrb[0].mxu0 %v4710
        %v4850 = vpop.f32.mrb[0].mxu0
        %v4851 = vadd.f32 %v4632, %v4850
        %v4852 = vpop.f32.mrb[0].mxu0
        %4853 = vmatprep.mubr.f32.mxu0 0.0
        %4854 = vmatmul.mubr.f32.gmra.mrb[0].mxu0 %v4712
        %v4855 = vpop.f32.mrb[0].mxu0
        %v4856 = vadd.f32 %v4632, %v4855
        %v4857 = vpop.f32.mrb[0].mxu0
        %4858 = vdwg.mxu0
        %v4859 = vxor.u32 %v4781, 2147483648
        %v4860 = vxor.u32 %v4786, 2147483648
        %v4861 = vxor.u32 %v4791, 2147483648
        %v4862 = vxor.u32 %v4796, 2147483648
        %v4863 = vxor.u32 %v4801, 2147483648
        %v4864 = vxor.u32 %v4806, 2147483648
        %v4865 = vxor.u32 %v4811, 2147483648
        %v4866 = vxor.u32 %v4816, 2147483648
        %v4867 = vxor.u32 %v4821, 2147483648
        %v4868 = vxor.u32 %v4826, 2147483648
        %v4869 = vxor.u32 %v4831, 2147483648
        %v4870 = vxor.u32 %v4836, 2147483648
        %v4871 = vxor.u32 %v4841, 2147483648
        %v4872 = vxor.u32 %v4846, 2147483648
        %v4873 = vxor.u32 %v4851, 2147483648
        %v4874 = vxor.u32 %v4856, 2147483648
        %v4875 = vmul.f32 %v4859, 1.442695
        %v4876 = vpow.pop %v4875
        %v4877 = vmul.f32 %v4860, 1.442695
        %v4878 = vpow.pop %v4877
        %v4879 = vmul.f32 %v4861, 1.442695
        %v4880 = vpow.pop %v4879
        %v4881 = vmul.f32 %v4862, 1.442695
        %v4882 = vpow.pop %v4881
        %v4883 = vmul.f32 %v4863, 1.442695
        %v4884 = vpow.pop %v4883
        %v4885 = vmul.f32 %v4864, 1.442695
        %v4886 = vpow.pop %v4885
        %v4887 = vmul.f32 %v4865, 1.442695
        %v4888 = vpow.pop %v4887
        %v4889 = vmul.f32 %v4866, 1.442695
        %v4890 = vpow.pop %v4889
        %v4891 = vmul.f32 %v4867, 1.442695
        %v4892 = vpow.pop %v4891
        %v4893 = vmul.f32 %v4868, 1.442695
        %v4894 = vpow.pop %v4893
        %v4895 = vmul.f32 %v4869, 1.442695
        %v4896 = vpow.pop %v4895
        %v4897 = vmul.f32 %v4870, 1.442695
        %v4898 = vpow.pop %v4897
        %v4899 = vmul.f32 %v4871, 1.442695
        %v4900 = vpow.pop %v4899
        %v4901 = vmul.f32 %v4872, 1.442695
        %v4902 = vpow.pop %v4901
        %v4903 = vmul.f32 %v4873, 1.442695
        %v4904 = vpow.pop %v4903
        %v4905 = vmul.f32 %v4874, 1.442695
        %v4906 = vpow.pop %v4905
        %v4907 = vadd.f32 %v4876, 1.0
        %v4908 = vadd.f32 %v4878, 1.0
        %v4909 = vadd.f32 %v4880, 1.0
        %v4910 = vadd.f32 %v4882, 1.0
        %v4911 = vadd.f32 %v4884, 1.0
        %v4912 = vadd.f32 %v4886, 1.0
        %v4913 = vadd.f32 %v4888, 1.0
        %v4914 = vadd.f32 %v4890, 1.0
        %v4915 = vadd.f32 %v4892, 1.0
        %v4916 = vadd.f32 %v4894, 1.0
        %v4917 = vadd.f32 %v4896, 1.0
        %v4918 = vadd.f32 %v4898, 1.0
        %v4919 = vadd.f32 %v4900, 1.0
        %v4920 = vadd.f32 %v4902, 1.0
        %v4921 = vadd.f32 %v4904, 1.0
        %v4922 = vadd.f32 %v4906, 1.0
        %v4923 = vrcp.pop %v4907
        %v4924 = vmul.f32 1.0, %v4923
        %v4925 = vrcp.pop %v4908
        %v4926 = vmul.f32 1.0, %v4925
        %v4927 = vrcp.pop %v4909
        %v4928 = vmul.f32 1.0, %v4927
        %v4929 = vrcp.pop %v4910
        %v4930 = vmul.f32 1.0, %v4929
        %v4931 = vrcp.pop %v4911
        %v4932 = vmul.f32 1.0, %v4931
        %v4933 = vrcp.pop %v4912
        %v4934 = vmul.f32 1.0, %v4933
        %v4935 = vrcp.pop %v4913
        %v4936 = vmul.f32 1.0, %v4935
        %v4937 = vrcp.pop %v4914
        %v4938 = vmul.f32 1.0, %v4937
        %v4939 = vrcp.pop %v4915
        %v4940 = vmul.f32 1.0, %v4939
        %v4941 = vrcp.pop %v4916
        %v4942 = vmul.f32 1.0, %v4941
        %v4943 = vrcp.pop %v4917
        %v4944 = vmul.f32 1.0, %v4943
        %v4945 = vrcp.pop %v4918
        %v4946 = vmul.f32 1.0, %v4945
        %v4947 = vrcp.pop %v4919
        %v4948 = vmul.f32 1.0, %v4947
        %v4949 = vrcp.pop %v4920
        %v4950 = vmul.f32 1.0, %v4949
        %v4951 = vrcp.pop %v4921
        %v4952 = vmul.f32 1.0, %v4951
        %v4953 = vrcp.pop %v4922
        %v4954 = vmul.f32 1.0, %v4953
        %v4955 = vadd.f32 %v4924, 0.0
        %v4956 = vadd.f32 %v4926, 0.0
        %v4957 = vadd.f32 %v4928, 0.0
        %v4958 = vadd.f32 %v4930, 0.0
        %v4959 = vadd.f32 %v4932, 0.0
        %v4960 = vadd.f32 %v4934, 0.0
        %v4961 = vadd.f32 %v4936, 0.0
        %v4962 = vadd.f32 %v4938, 0.0
        %v4963 = vadd.f32 %v4940, 0.0
        %v4964 = vadd.f32 %v4942, 0.0
        %v4965 = vadd.f32 %v4944, 0.0
        %v4966 = vadd.f32 %v4946, 0.0
        %v4967 = vadd.f32 %v4948, 0.0
        %v4968 = vadd.f32 %v4950, 0.0
        %v4969 = vadd.f32 %v4952, 0.0
        %v4970 = vadd.f32 %v4954, 0.0
        %4973 = vbcast.lane.b32.xlu0 %v2104, 256
        %v4974 = vpop.permute.xlu0 %4973
        %s4976 = sor.u32 256, 8
        %4977 = vbcast.lane.b32.xlu0 %v2104, %s4976
        %v4978 = vpop.permute.xlu0 %4977
        %v4981 = vmul.f32 %v4955, %v4974
        %v4982 = vmul.f32 %v4956, %v4978
        %v4983 = vmul.f32 %v4957, %v4974
        %v4984 = vmul.f32 %v4958, %v4978
        %v4985 = vmul.f32 %v4959, %v4974
        %v4986 = vmul.f32 %v4960, %v4978
        %v4987 = vmul.f32 %v4961, %v4974
        %v4988 = vmul.f32 %v4962, %v4978
        %v4989 = vmul.f32 %v4963, %v4974
        %v4990 = vmul.f32 %v4964, %v4978
        %v4991 = vmul.f32 %v4965, %v4974
        %v4992 = vmul.f32 %v4966, %v4978
        %v4993 = vmul.f32 %v4967, %v4974
        %v4994 = vmul.f32 %v4968, %v4978
        %v4995 = vmul.f32 %v4969, %v4974
        %v4996 = vmul.f32 %v4970, %v4978
        %4999 = vbcast.lane.b32.xlu0 %v2109, 256
        %v5000 = vpop.permute.xlu0 %4999
        %s5002 = sor.u32 256, 8
        %5003 = vbcast.lane.b32.xlu0 %v2109, %s5002
        %v5004 = vpop.permute.xlu0 %5003
        %v5007 = vmul.f32 %v4955, %v5000
        %v5008 = vmul.f32 %v4956, %v5004
        %v5009 = vmul.f32 %v4957, %v5000
        %v5010 = vmul.f32 %v4958, %v5004
        %v5011 = vmul.f32 %v4959, %v5000
        %v5012 = vmul.f32 %v4960, %v5004
        %v5013 = vmul.f32 %v4961, %v5000
        %v5014 = vmul.f32 %v4962, %v5004
        %v5015 = vmul.f32 %v4963, %v5000
        %v5016 = vmul.f32 %v4964, %v5004
        %v5017 = vmul.f32 %v4965, %v5000
        %v5018 = vmul.f32 %v4966, %v5004
        %v5019 = vmul.f32 %v4967, %v5000
        %v5020 = vmul.f32 %v4968, %v5004
        %v5021 = vmul.f32 %v4969, %v5000
        %v5022 = vmul.f32 %v4970, %v5004
        %5039 = vrot.lane.b32.xlu0 %v5007, 127
        %v5040 = vpop.permute.xlu0 %5039
        %5041 = vrot.lane.b32.xlu0 %v5008, 127
        %v5042 = vpop.permute.xlu0 %5041
        %5043 = vrot.lane.b32.xlu0 %v5009, 127
        %v5044 = vpop.permute.xlu0 %5043
        %5045 = vrot.lane.b32.xlu0 %v5010, 127
        %v5046 = vpop.permute.xlu0 %5045
        %5047 = vrot.lane.b32.xlu0 %v5011, 127
        %v5048 = vpop.permute.xlu0 %5047
        %5049 = vrot.lane.b32.xlu0 %v5012, 127
        %v5050 = vpop.permute.xlu0 %5049
        %5051 = vrot.lane.b32.xlu0 %v5013, 127
        %v5052 = vpop.permute.xlu0 %5051
        %5053 = vrot.lane.b32.xlu0 %v5014, 127
        %v5054 = vpop.permute.xlu0 %5053
        %5055 = vrot.lane.b32.xlu0 %v5015, 127
        %v5056 = vpop.permute.xlu0 %5055
        %5057 = vrot.lane.b32.xlu0 %v5016, 127
        %v5058 = vpop.permute.xlu0 %5057
        %5059 = vrot.lane.b32.xlu0 %v5017, 127
        %v5060 = vpop.permute.xlu0 %5059
        %5061 = vrot.lane.b32.xlu0 %v5018, 127
        %v5062 = vpop.permute.xlu0 %5061
        %5063 = vrot.lane.b32.xlu0 %v5019, 127
        %v5064 = vpop.permute.xlu0 %5063
        %5065 = vrot.lane.b32.xlu0 %v5020, 127
        %v5066 = vpop.permute.xlu0 %5065
        %5067 = vrot.lane.b32.xlu0 %v5021, 127
        %v5068 = vpop.permute.xlu0 %5067
        %5069 = vrot.lane.b32.xlu0 %v5022, 127
        %v5070 = vpop.permute.xlu0 %5069
        %v5087 = vsub.f32 %v4981, %v5040
        %v5088 = vsub.f32 %v4982, %v5042
        %v5089 = vsub.f32 %v4983, %v5044
        %v5090 = vsub.f32 %v4984, %v5046
        %v5091 = vsub.f32 %v4985, %v5048
        %v5092 = vsub.f32 %v4986, %v5050
        %v5093 = vsub.f32 %v4987, %v5052
        %v5094 = vsub.f32 %v4988, %v5054
        %v5095 = vsub.f32 %v4989, %v5056
        %v5096 = vsub.f32 %v4990, %v5058
        %v5097 = vsub.f32 %v4991, %v5060
        %v5098 = vsub.f32 %v4992, %v5062
        %v5099 = vsub.f32 %v4993, %v5064
        %v5100 = vsub.f32 %v4994, %v5066
        %v5101 = vsub.f32 %v4995, %v5068
        %v5102 = vsub.f32 %v4996, %v5070
        %5105 = vbcast.lane.b32.xlu0 %v2115, 256
        %v5106 = vpop.permute.xlu0 %5105
        %s5108 = sor.u32 256, 8
        %5109 = vbcast.lane.b32.xlu0 %v2115, %s5108
        %v5110 = vpop.permute.xlu0 %5109
        %v5113 = vmul.f32 %v4955, %v5106
        %v5114 = vmul.f32 %v4956, %v5110
        %v5115 = vmul.f32 %v4957, %v5106
        %v5116 = vmul.f32 %v4958, %v5110
        %v5117 = vmul.f32 %v4959, %v5106
        %v5118 = vmul.f32 %v4960, %v5110
        %v5119 = vmul.f32 %v4961, %v5106
        %v5120 = vmul.f32 %v4962, %v5110
        %v5121 = vmul.f32 %v4963, %v5106
        %v5122 = vmul.f32 %v4964, %v5110
        %v5123 = vmul.f32 %v4965, %v5106
        %v5124 = vmul.f32 %v4966, %v5110
        %v5125 = vmul.f32 %v4967, %v5106
        %v5126 = vmul.f32 %v4968, %v5110
        %v5127 = vmul.f32 %v4969, %v5106
        %v5128 = vmul.f32 %v4970, %v5110
        %5145 = vrot.lane.b32.xlu0 %v5113, 126
        %v5146 = vpop.permute.xlu0 %5145
        %5147 = vrot.lane.b32.xlu0 %v5114, 126
        %v5148 = vpop.permute.xlu0 %5147
        %5149 = vrot.lane.b32.xlu0 %v5115, 126
        %v5150 = vpop.permute.xlu0 %5149
        %5151 = vrot.lane.b32.xlu0 %v5116, 126
        %v5152 = vpop.permute.xlu0 %5151
        %5153 = vrot.lane.b32.xlu0 %v5117, 126
        %v5154 = vpop.permute.xlu0 %5153
        %5155 = vrot.lane.b32.xlu0 %v5118, 126
        %v5156 = vpop.permute.xlu0 %5155
        %5157 = vrot.lane.b32.xlu0 %v5119, 126
        %v5158 = vpop.permute.xlu0 %5157
        %5159 = vrot.lane.b32.xlu0 %v5120, 126
        %v5160 = vpop.permute.xlu0 %5159
        %5161 = vrot.lane.b32.xlu0 %v5121, 126
        %v5162 = vpop.permute.xlu0 %5161
        %5163 = vrot.lane.b32.xlu0 %v5122, 126
        %v5164 = vpop.permute.xlu0 %5163
        %5165 = vrot.lane.b32.xlu0 %v5123, 126
        %v5166 = vpop.permute.xlu0 %5165
        %5167 = vrot.lane.b32.xlu0 %v5124, 126
        %v5168 = vpop.permute.xlu0 %5167
        %5169 = vrot.lane.b32.xlu0 %v5125, 126
        %v5170 = vpop.permute.xlu0 %5169
        %5171 = vrot.lane.b32.xlu0 %v5126, 126
        %v5172 = vpop.permute.xlu0 %5171
        %5173 = vrot.lane.b32.xlu0 %v5127, 126
        %v5174 = vpop.permute.xlu0 %5173
        %5175 = vrot.lane.b32.xlu0 %v5128, 126
        %v5176 = vpop.permute.xlu0 %5175
        %v5193 = vsub.f32 %v5087, %v5146
        %v5194 = vsub.f32 %v5088, %v5148
        %v5195 = vsub.f32 %v5089, %v5150
        %v5196 = vsub.f32 %v5090, %v5152
        %v5197 = vsub.f32 %v5091, %v5154
        %v5198 = vsub.f32 %v5092, %v5156
        %v5199 = vsub.f32 %v5093, %v5158
        %v5200 = vsub.f32 %v5094, %v5160
        %v5201 = vsub.f32 %v5095, %v5162
        %v5202 = vsub.f32 %v5096, %v5164
        %v5203 = vsub.f32 %v5097, %v5166
        %v5204 = vsub.f32 %v5098, %v5168
        %v5205 = vsub.f32 %v5099, %v5170
        %v5206 = vsub.f32 %v5100, %v5172
        %v5207 = vsub.f32 %v5101, %v5174
        %v5208 = vsub.f32 %v5102, %v5176
        %5211 = vbcast.lane.b32.xlu0 %v2121, 256
        %v5212 = vpop.permute.xlu0 %5211
        %s5214 = sor.u32 256, 8
        %5215 = vbcast.lane.b32.xlu0 %v2121, %s5214
        %v5216 = vpop.permute.xlu0 %5215
        %v5219 = vmul.f32 %v4955, %v5212
        %v5220 = vmul.f32 %v4956, %v5216
        %v5221 = vmul.f32 %v4957, %v5212
        %v5222 = vmul.f32 %v4958, %v5216
        %v5223 = vmul.f32 %v4959, %v5212
        %v5224 = vmul.f32 %v4960, %v5216
        %v5225 = vmul.f32 %v4961, %v5212
        %v5226 = vmul.f32 %v4962, %v5216
        %v5227 = vmul.f32 %v4963, %v5212
        %v5228 = vmul.f32 %v4964, %v5216
        %v5229 = vmul.f32 %v4965, %v5212
        %v5230 = vmul.f32 %v4966, %v5216
        %v5231 = vmul.f32 %v4967, %v5212
        %v5232 = vmul.f32 %v4968, %v5216
        %v5233 = vmul.f32 %v4969, %v5212
        %v5234 = vmul.f32 %v4970, %v5216
        %5251 = vrot.lane.b32.xlu0 %v5219, 125
        %v5252 = vpop.permute.xlu0 %5251
        %5253 = vrot.lane.b32.xlu0 %v5220, 125
        %v5254 = vpop.permute.xlu0 %5253
        %5255 = vrot.lane.b32.xlu0 %v5221, 125
        %v5256 = vpop.permute.xlu0 %5255
        %5257 = vrot.lane.b32.xlu0 %v5222, 125
        %v5258 = vpop.permute.xlu0 %5257
        %5259 = vrot.lane.b32.xlu0 %v5223, 125
        %v5260 = vpop.permute.xlu0 %5259
        %5261 = vrot.lane.b32.xlu0 %v5224, 125
        %v5262 = vpop.permute.xlu0 %5261
        %5263 = vrot.lane.b32.xlu0 %v5225, 125
        %v5264 = vpop.permute.xlu0 %5263
        %5265 = vrot.lane.b32.xlu0 %v5226, 125
        %v5266 = vpop.permute.xlu0 %5265
        %5267 = vrot.lane.b32.xlu0 %v5227, 125
        %v5268 = vpop.permute.xlu0 %5267
        %5269 = vrot.lane.b32.xlu0 %v5228, 125
        %v5270 = vpop.permute.xlu0 %5269
        %5271 = vrot.lane.b32.xlu0 %v5229, 125
        %v5272 = vpop.permute.xlu0 %5271
        %5273 = vrot.lane.b32.xlu0 %v5230, 125
        %v5274 = vpop.permute.xlu0 %5273
        %5275 = vrot.lane.b32.xlu0 %v5231, 125
        %v5276 = vpop.permute.xlu0 %5275
        %5277 = vrot.lane.b32.xlu0 %v5232, 125
        %v5278 = vpop.permute.xlu0 %5277
        %5279 = vrot.lane.b32.xlu0 %v5233, 125
        %v5280 = vpop.permute.xlu0 %5279
        %5281 = vrot.lane.b32.xlu0 %v5234, 125
        %v5282 = vpop.permute.xlu0 %5281
        %v5299 = vsub.f32 %v5193, %v5252
        %v5300 = vsub.f32 %v5194, %v5254
        %v5301 = vsub.f32 %v5195, %v5256
        %v5302 = vsub.f32 %v5196, %v5258
        %v5303 = vsub.f32 %v5197, %v5260
        %v5304 = vsub.f32 %v5198, %v5262
        %v5305 = vsub.f32 %v5199, %v5264
        %v5306 = vsub.f32 %v5200, %v5266
        %v5307 = vsub.f32 %v5201, %v5268
        %v5308 = vsub.f32 %v5202, %v5270
        %v5309 = vsub.f32 %v5203, %v5272
        %v5310 = vsub.f32 %v5204, %v5274
        %v5311 = vsub.f32 %v5205, %v5276
        %v5312 = vsub.f32 %v5206, %v5278
        %v5313 = vsub.f32 %v5207, %v5280
        %v5314 = vsub.f32 %v5208, %v5282
        %5331 = vrot.lane.b32.xlu0 %v4981, 127
        %v5332 = vpop.permute.xlu0 %5331
        %5333 = vrot.lane.b32.xlu0 %v4982, 127
        %v5334 = vpop.permute.xlu0 %5333
        %5335 = vrot.lane.b32.xlu0 %v4983, 127
        %v5336 = vpop.permute.xlu0 %5335
        %5337 = vrot.lane.b32.xlu0 %v4984, 127
        %v5338 = vpop.permute.xlu0 %5337
        %5339 = vrot.lane.b32.xlu0 %v4985, 127
        %v5340 = vpop.permute.xlu0 %5339
        %5341 = vrot.lane.b32.xlu0 %v4986, 127
        %v5342 = vpop.permute.xlu0 %5341
        %5343 = vrot.lane.b32.xlu0 %v4987, 127
        %v5344 = vpop.permute.xlu0 %5343
        %5345 = vrot.lane.b32.xlu0 %v4988, 127
        %v5346 = vpop.permute.xlu0 %5345
        %5347 = vrot.lane.b32.xlu0 %v4989, 127
        %v5348 = vpop.permute.xlu0 %5347
        %5349 = vrot.lane.b32.xlu0 %v4990, 127
        %v5350 = vpop.permute.xlu0 %5349
        %5351 = vrot.lane.b32.xlu0 %v4991, 127
        %v5352 = vpop.permute.xlu0 %5351
        %5353 = vrot.lane.b32.xlu0 %v4992, 127
        %v5354 = vpop.permute.xlu0 %5353
        %5355 = vrot.lane.b32.xlu0 %v4993, 127
        %v5356 = vpop.permute.xlu0 %5355
        %5357 = vrot.lane.b32.xlu0 %v4994, 127
        %v5358 = vpop.permute.xlu0 %5357
        %5359 = vrot.lane.b32.xlu0 %v4995, 127
        %v5360 = vpop.permute.xlu0 %5359
        %5361 = vrot.lane.b32.xlu0 %v4996, 127
        %v5362 = vpop.permute.xlu0 %5361
        %v5379 = vadd.f32 %v5007, %v5332
        %v5380 = vadd.f32 %v5008, %v5334
        %v5381 = vadd.f32 %v5009, %v5336
        %v5382 = vadd.f32 %v5010, %v5338
        %v5383 = vadd.f32 %v5011, %v5340
        %v5384 = vadd.f32 %v5012, %v5342
        %v5385 = vadd.f32 %v5013, %v5344
        %v5386 = vadd.f32 %v5014, %v5346
        %v5387 = vadd.f32 %v5015, %v5348
        %v5388 = vadd.f32 %v5016, %v5350
        %v5389 = vadd.f32 %v5017, %v5352
        %v5390 = vadd.f32 %v5018, %v5354
        %v5391 = vadd.f32 %v5019, %v5356
        %v5392 = vadd.f32 %v5020, %v5358
        %v5393 = vadd.f32 %v5021, %v5360
        %v5394 = vadd.f32 %v5022, %v5362
        %5395 = vrot.lane.b32.xlu0 %v5219, 126
        %v5396 = vpop.permute.xlu0 %5395
        %5397 = vrot.lane.b32.xlu0 %v5220, 126
        %v5398 = vpop.permute.xlu0 %5397
        %5399 = vrot.lane.b32.xlu0 %v5221, 126
        %v5400 = vpop.permute.xlu0 %5399
        %5401 = vrot.lane.b32.xlu0 %v5222, 126
        %v5402 = vpop.permute.xlu0 %5401
        %5403 = vrot.lane.b32.xlu0 %v5223, 126
        %v5404 = vpop.permute.xlu0 %5403
        %5405 = vrot.lane.b32.xlu0 %v5224, 126
        %v5406 = vpop.permute.xlu0 %5405
        %5407 = vrot.lane.b32.xlu0 %v5225, 126
        %v5408 = vpop.permute.xlu0 %5407
        %5409 = vrot.lane.b32.xlu0 %v5226, 126
        %v5410 = vpop.permute.xlu0 %5409
        %5411 = vrot.lane.b32.xlu0 %v5227, 126
        %v5412 = vpop.permute.xlu0 %5411
        %5413 = vrot.lane.b32.xlu0 %v5228, 126
        %v5414 = vpop.permute.xlu0 %5413
        %5415 = vrot.lane.b32.xlu0 %v5229, 126
        %v5416 = vpop.permute.xlu0 %5415
        %5417 = vrot.lane.b32.xlu0 %v5230, 126
        %v5418 = vpop.permute.xlu0 %5417
        %5419 = vrot.lane.b32.xlu0 %v5231, 126
        %v5420 = vpop.permute.xlu0 %5419
        %5421 = vrot.lane.b32.xlu0 %v5232, 126
        %v5422 = vpop.permute.xlu0 %5421
        %5423 = vrot.lane.b32.xlu0 %v5233, 126
        %v5424 = vpop.permute.xlu0 %5423
        %5425 = vrot.lane.b32.xlu0 %v5234, 126
        %v5426 = vpop.permute.xlu0 %5425
        %v5443 = vadd.f32 %v5379, %v5396
        %v5444 = vadd.f32 %v5380, %v5398
        %v5445 = vadd.f32 %v5381, %v5400
        %v5446 = vadd.f32 %v5382, %v5402
        %v5447 = vadd.f32 %v5383, %v5404
        %v5448 = vadd.f32 %v5384, %v5406
        %v5449 = vadd.f32 %v5385, %v5408
        %v5450 = vadd.f32 %v5386, %v5410
        %v5451 = vadd.f32 %v5387, %v5412
        %v5452 = vadd.f32 %v5388, %v5414
        %v5453 = vadd.f32 %v5389, %v5416
        %v5454 = vadd.f32 %v5390, %v5418
        %v5455 = vadd.f32 %v5391, %v5420
        %v5456 = vadd.f32 %v5392, %v5422
        %v5457 = vadd.f32 %v5393, %v5424
        %v5458 = vadd.f32 %v5394, %v5426
        %5459 = vrot.lane.b32.xlu0 %v5113, 125
        %v5460 = vpop.permute.xlu0 %5459
        %5461 = vrot.lane.b32.xlu0 %v5114, 125
        %v5462 = vpop.permute.xlu0 %5461
        %5463 = vrot.lane.b32.xlu0 %v5115, 125
        %v5464 = vpop.permute.xlu0 %5463
        %5465 = vrot.lane.b32.xlu0 %v5116, 125
        %v5466 = vpop.permute.xlu0 %5465
        %5467 = vrot.lane.b32.xlu0 %v5117, 125
        %v5468 = vpop.permute.xlu0 %5467
        %5469 = vrot.lane.b32.xlu0 %v5118, 125
        %v5470 = vpop.permute.xlu0 %5469
        %5471 = vrot.lane.b32.xlu0 %v5119, 125
        %v5472 = vpop.permute.xlu0 %5471
        %5473 = vrot.lane.b32.xlu0 %v5120, 125
        %v5474 = vpop.permute.xlu0 %5473
        %5475 = vrot.lane.b32.xlu0 %v5121, 125
        %v5476 = vpop.permute.xlu0 %5475
        %5477 = vrot.lane.b32.xlu0 %v5122, 125
        %v5478 = vpop.permute.xlu0 %5477
        %5479 = vrot.lane.b32.xlu0 %v5123, 125
        %v5480 = vpop.permute.xlu0 %5479
        %5481 = vrot.lane.b32.xlu0 %v5124, 125
        %v5482 = vpop.permute.xlu0 %5481
        %5483 = vrot.lane.b32.xlu0 %v5125, 125
        %v5484 = vpop.permute.xlu0 %5483
        %5485 = vrot.lane.b32.xlu0 %v5126, 125
        %v5486 = vpop.permute.xlu0 %5485
        %5487 = vrot.lane.b32.xlu0 %v5127, 125
        %v5488 = vpop.permute.xlu0 %5487
        %5489 = vrot.lane.b32.xlu0 %v5128, 125
        %v5490 = vpop.permute.xlu0 %5489
        %v5507 = vsub.f32 %v5443, %v5460
        %v5508 = vsub.f32 %v5444, %v5462
        %v5509 = vsub.f32 %v5445, %v5464
        %v5510 = vsub.f32 %v5446, %v5466
        %v5511 = vsub.f32 %v5447, %v5468
        %v5512 = vsub.f32 %v5448, %v5470
        %v5513 = vsub.f32 %v5449, %v5472
        %v5514 = vsub.f32 %v5450, %v5474
        %v5515 = vsub.f32 %v5451, %v5476
        %v5516 = vsub.f32 %v5452, %v5478
        %v5517 = vsub.f32 %v5453, %v5480
        %v5518 = vsub.f32 %v5454, %v5482
        %v5519 = vsub.f32 %v5455, %v5484
        %v5520 = vsub.f32 %v5456, %v5486
        %v5521 = vsub.f32 %v5457, %v5488
        %v5522 = vsub.f32 %v5458, %v5490
        %5523 = vrot.lane.b32.xlu0 %v5219, 127
        %v5524 = vpop.permute.xlu0 %5523
        %5525 = vrot.lane.b32.xlu0 %v5220, 127
        %v5526 = vpop.permute.xlu0 %5525
        %5527 = vrot.lane.b32.xlu0 %v5221, 127
        %v5528 = vpop.permute.xlu0 %5527
        %5529 = vrot.lane.b32.xlu0 %v5222, 127
        %v5530 = vpop.permute.xlu0 %5529
        %5531 = vrot.lane.b32.xlu0 %v5223, 127
        %v5532 = vpop.permute.xlu0 %5531
        %5533 = vrot.lane.b32.xlu0 %v5224, 127
        %v5534 = vpop.permute.xlu0 %5533
        %5535 = vrot.lane.b32.xlu0 %v5225, 127
        %v5536 = vpop.permute.xlu0 %5535
        %5537 = vrot.lane.b32.xlu0 %v5226, 127
        %v5538 = vpop.permute.xlu0 %5537
        %5539 = vrot.lane.b32.xlu0 %v5227, 127
        %v5540 = vpop.permute.xlu0 %5539
        %5541 = vrot.lane.b32.xlu0 %v5228, 127
        %v5542 = vpop.permute.xlu0 %5541
        %5543 = vrot.lane.b32.xlu0 %v5229, 127
        %v5544 = vpop.permute.xlu0 %5543
        %5545 = vrot.lane.b32.xlu0 %v5230, 127
        %v5546 = vpop.permute.xlu0 %5545
        %5547 = vrot.lane.b32.xlu0 %v5231, 127
        %v5548 = vpop.permute.xlu0 %5547
        %5549 = vrot.lane.b32.xlu0 %v5232, 127
        %v5550 = vpop.permute.xlu0 %5549
        %5551 = vrot.lane.b32.xlu0 %v5233, 127
        %v5552 = vpop.permute.xlu0 %5551
        %5553 = vrot.lane.b32.xlu0 %v5234, 127
        %v5554 = vpop.permute.xlu0 %5553
        %v5571 = vsub.f32 %v5113, %v5524
        %v5572 = vsub.f32 %v5114, %v5526
        %v5573 = vsub.f32 %v5115, %v5528
        %v5574 = vsub.f32 %v5116, %v5530
        %v5575 = vsub.f32 %v5117, %v5532
        %v5576 = vsub.f32 %v5118, %v5534
        %v5577 = vsub.f32 %v5119, %v5536
        %v5578 = vsub.f32 %v5120, %v5538
        %v5579 = vsub.f32 %v5121, %v5540
        %v5580 = vsub.f32 %v5122, %v5542
        %v5581 = vsub.f32 %v5123, %v5544
        %v5582 = vsub.f32 %v5124, %v5546
        %v5583 = vsub.f32 %v5125, %v5548
        %v5584 = vsub.f32 %v5126, %v5550
        %v5585 = vsub.f32 %v5127, %v5552
        %v5586 = vsub.f32 %v5128, %v5554
        %5587 = vrot.lane.b32.xlu0 %v4981, 126
        %v5588 = vpop.permute.xlu0 %5587
        %5589 = vrot.lane.b32.xlu0 %v4982, 126
        %v5590 = vpop.permute.xlu0 %5589
        %5591 = vrot.lane.b32.xlu0 %v4983, 126
        %v5592 = vpop.permute.xlu0 %5591
        %5593 = vrot.lane.b32.xlu0 %v4984, 126
        %v5594 = vpop.permute.xlu0 %5593
        %5595 = vrot.lane.b32.xlu0 %v4985, 126
        %v5596 = vpop.permute.xlu0 %5595
        %5597 = vrot.lane.b32.xlu0 %v4986, 126
        %v5598 = vpop.permute.xlu0 %5597
        %5599 = vrot.lane.b32.xlu0 %v4987, 126
        %v5600 = vpop.permute.xlu0 %5599
        %5601 = vrot.lane.b32.xlu0 %v4988, 126
        %v5602 = vpop.permute.xlu0 %5601
        %5603 = vrot.lane.b32.xlu0 %v4989, 126
        %v5604 = vpop.permute.xlu0 %5603
        %5605 = vrot.lane.b32.xlu0 %v4990, 126
        %v5606 = vpop.permute.xlu0 %5605
        %5607 = vrot.lane.b32.xlu0 %v4991, 126
        %v5608 = vpop.permute.xlu0 %5607
        %5609 = vrot.lane.b32.xlu0 %v4992, 126
        %v5610 = vpop.permute.xlu0 %5609
        %5611 = vrot.lane.b32.xlu0 %v4993, 126
        %v5612 = vpop.permute.xlu0 %5611
        %5613 = vrot.lane.b32.xlu0 %v4994, 126
        %v5614 = vpop.permute.xlu0 %5613
        %5615 = vrot.lane.b32.xlu0 %v4995, 126
        %v5616 = vpop.permute.xlu0 %5615
        %5617 = vrot.lane.b32.xlu0 %v4996, 126
        %v5618 = vpop.permute.xlu0 %5617
        %v5635 = vadd.f32 %v5571, %v5588
        %v5636 = vadd.f32 %v5572, %v5590
        %v5637 = vadd.f32 %v5573, %v5592
        %v5638 = vadd.f32 %v5574, %v5594
        %v5639 = vadd.f32 %v5575, %v5596
        %v5640 = vadd.f32 %v5576, %v5598
        %v5641 = vadd.f32 %v5577, %v5600
        %v5642 = vadd.f32 %v5578, %v5602
        %v5643 = vadd.f32 %v5579, %v5604
        %v5644 = vadd.f32 %v5580, %v5606
        %v5645 = vadd.f32 %v5581, %v5608
        %v5646 = vadd.f32 %v5582, %v5610
        %v5647 = vadd.f32 %v5583, %v5612
        %v5648 = vadd.f32 %v5584, %v5614
        %v5649 = vadd.f32 %v5585, %v5616
        %v5650 = vadd.f32 %v5586, %v5618
        %5651 = vrot.lane.b32.xlu0 %v5007, 125
        %v5652 = vpop.permute.xlu0 %5651
        %5653 = vrot.lane.b32.xlu0 %v5008, 125
        %v5654 = vpop.permute.xlu0 %5653
        %5655 = vrot.lane.b32.xlu0 %v5009, 125
        %v5656 = vpop.permute.xlu0 %5655
        %5657 = vrot.lane.b32.xlu0 %v5010, 125
        %v5658 = vpop.permute.xlu0 %5657
        %5659 = vrot.lane.b32.xlu0 %v5011, 125
        %v5660 = vpop.permute.xlu0 %5659
        %5661 = vrot.lane.b32.xlu0 %v5012, 125
        %v5662 = vpop.permute.xlu0 %5661
        %5663 = vrot.lane.b32.xlu0 %v5013, 125
        %v5664 = vpop.permute.xlu0 %5663
        %5665 = vrot.lane.b32.xlu0 %v5014, 125
        %v5666 = vpop.permute.xlu0 %5665
        %5667 = vrot.lane.b32.xlu0 %v5015, 125
        %v5668 = vpop.permute.xlu0 %5667
        %5669 = vrot.lane.b32.xlu0 %v5016, 125
        %v5670 = vpop.permute.xlu0 %5669
        %5671 = vrot.lane.b32.xlu0 %v5017, 125
        %v5672 = vpop.permute.xlu0 %5671
        %5673 = vrot.lane.b32.xlu0 %v5018, 125
        %v5674 = vpop.permute.xlu0 %5673
        %5675 = vrot.lane.b32.xlu0 %v5019, 125
        %v5676 = vpop.permute.xlu0 %5675
        %5677 = vrot.lane.b32.xlu0 %v5020, 125
        %v5678 = vpop.permute.xlu0 %5677
        %5679 = vrot.lane.b32.xlu0 %v5021, 125
        %v5680 = vpop.permute.xlu0 %5679
        %5681 = vrot.lane.b32.xlu0 %v5022, 125
        %v5682 = vpop.permute.xlu0 %5681
        %v5699 = vadd.f32 %v5635, %v5652
        %v5700 = vadd.f32 %v5636, %v5654
        %v5701 = vadd.f32 %v5637, %v5656
        %v5702 = vadd.f32 %v5638, %v5658
        %v5703 = vadd.f32 %v5639, %v5660
        %v5704 = vadd.f32 %v5640, %v5662
        %v5705 = vadd.f32 %v5641, %v5664
        %v5706 = vadd.f32 %v5642, %v5666
        %v5707 = vadd.f32 %v5643, %v5668
        %v5708 = vadd.f32 %v5644, %v5670
        %v5709 = vadd.f32 %v5645, %v5672
        %v5710 = vadd.f32 %v5646, %v5674
        %v5711 = vadd.f32 %v5647, %v5676
        %v5712 = vadd.f32 %v5648, %v5678
        %v5713 = vadd.f32 %v5649, %v5680
        %v5714 = vadd.f32 %v5650, %v5682
        %5715 = vrot.lane.b32.xlu0 %v5113, 127
        %v5716 = vpop.permute.xlu0 %5715
        %5717 = vrot.lane.b32.xlu0 %v5114, 127
        %v5718 = vpop.permute.xlu0 %5717
        %5719 = vrot.lane.b32.xlu0 %v5115, 127
        %v5720 = vpop.permute.xlu0 %5719
        %5721 = vrot.lane.b32.xlu0 %v5116, 127
        %v5722 = vpop.permute.xlu0 %5721
        %5723 = vrot.lane.b32.xlu0 %v5117, 127
        %v5724 = vpop.permute.xlu0 %5723
        %5725 = vrot.lane.b32.xlu0 %v5118, 127
        %v5726 = vpop.permute.xlu0 %5725
        %5727 = vrot.lane.b32.xlu0 %v5119, 127
        %v5728 = vpop.permute.xlu0 %5727
        %5729 = vrot.lane.b32.xlu0 %v5120, 127
        %v5730 = vpop.permute.xlu0 %5729
        %5731 = vrot.lane.b32.xlu0 %v5121, 127
        %v5732 = vpop.permute.xlu0 %5731
        %5733 = vrot.lane.b32.xlu0 %v5122, 127
        %v5734 = vpop.permute.xlu0 %5733
        %5735 = vrot.lane.b32.xlu0 %v5123, 127
        %v5736 = vpop.permute.xlu0 %5735
        %5737 = vrot.lane.b32.xlu0 %v5124, 127
        %v5738 = vpop.permute.xlu0 %5737
        %5739 = vrot.lane.b32.xlu0 %v5125, 127
        %v5740 = vpop.permute.xlu0 %5739
        %5741 = vrot.lane.b32.xlu0 %v5126, 127
        %v5742 = vpop.permute.xlu0 %5741
        %5743 = vrot.lane.b32.xlu0 %v5127, 127
        %v5744 = vpop.permute.xlu0 %5743
        %5745 = vrot.lane.b32.xlu0 %v5128, 127
        %v5746 = vpop.permute.xlu0 %5745
        %v5763 = vadd.f32 %v5219, %v5716
        %v5764 = vadd.f32 %v5220, %v5718
        %v5765 = vadd.f32 %v5221, %v5720
        %v5766 = vadd.f32 %v5222, %v5722
        %v5767 = vadd.f32 %v5223, %v5724
        %v5768 = vadd.f32 %v5224, %v5726
        %v5769 = vadd.f32 %v5225, %v5728
        %v5770 = vadd.f32 %v5226, %v5730
        %v5771 = vadd.f32 %v5227, %v5732
        %v5772 = vadd.f32 %v5228, %v5734
        %v5773 = vadd.f32 %v5229, %v5736
        %v5774 = vadd.f32 %v5230, %v5738
        %v5775 = vadd.f32 %v5231, %v5740
        %v5776 = vadd.f32 %v5232, %v5742
        %v5777 = vadd.f32 %v5233, %v5744
        %v5778 = vadd.f32 %v5234, %v5746
        %5779 = vrot.lane.b32.xlu0 %v5007, 126
        %v5780 = vpop.permute.xlu0 %5779
        %5781 = vrot.lane.b32.xlu0 %v5008, 126
        %v5782 = vpop.permute.xlu0 %5781
        %5783 = vrot.lane.b32.xlu0 %v5009, 126
        %v5784 = vpop.permute.xlu0 %5783
        %5785 = vrot.lane.b32.xlu0 %v5010, 126
        %v5786 = vpop.permute.xlu0 %5785
        %5787 = vrot.lane.b32.xlu0 %v5011, 126
        %v5788 = vpop.permute.xlu0 %5787
        %5789 = vrot.lane.b32.xlu0 %v5012, 126
        %v5790 = vpop.permute.xlu0 %5789
        %5791 = vrot.lane.b32.xlu0 %v5013, 126
        %v5792 = vpop.permute.xlu0 %5791
        %5793 = vrot.lane.b32.xlu0 %v5014, 126
        %v5794 = vpop.permute.xlu0 %5793
        %5795 = vrot.lane.b32.xlu0 %v5015, 126
        %v5796 = vpop.permute.xlu0 %5795
        %5797 = vrot.lane.b32.xlu0 %v5016, 126
        %v5798 = vpop.permute.xlu0 %5797
        %5799 = vrot.lane.b32.xlu0 %v5017, 126
        %v5800 = vpop.permute.xlu0 %5799
        %5801 = vrot.lane.b32.xlu0 %v5018, 126
        %v5802 = vpop.permute.xlu0 %5801
        %5803 = vrot.lane.b32.xlu0 %v5019, 126
        %v5804 = vpop.permute.xlu0 %5803
        %5805 = vrot.lane.b32.xlu0 %v5020, 126
        %v5806 = vpop.permute.xlu0 %5805
        %5807 = vrot.lane.b32.xlu0 %v5021, 126
        %v5808 = vpop.permute.xlu0 %5807
        %5809 = vrot.lane.b32.xlu0 %v5022, 126
        %v5810 = vpop.permute.xlu0 %5809
        %v5827 = vsub.f32 %v5763, %v5780
        %v5828 = vsub.f32 %v5764, %v5782
        %v5829 = vsub.f32 %v5765, %v5784
        %v5830 = vsub.f32 %v5766, %v5786
        %v5831 = vsub.f32 %v5767, %v5788
        %v5832 = vsub.f32 %v5768, %v5790
        %v5833 = vsub.f32 %v5769, %v5792
        %v5834 = vsub.f32 %v5770, %v5794
        %v5835 = vsub.f32 %v5771, %v5796
        %v5836 = vsub.f32 %v5772, %v5798
        %v5837 = vsub.f32 %v5773, %v5800
        %v5838 = vsub.f32 %v5774, %v5802
        %v5839 = vsub.f32 %v5775, %v5804
        %v5840 = vsub.f32 %v5776, %v5806
        %v5841 = vsub.f32 %v5777, %v5808
        %v5842 = vsub.f32 %v5778, %v5810
        %5843 = vrot.lane.b32.xlu0 %v4981, 125
        %v5844 = vpop.permute.xlu0 %5843
        %5845 = vrot.lane.b32.xlu0 %v4982, 125
        %v5846 = vpop.permute.xlu0 %5845
        %5847 = vrot.lane.b32.xlu0 %v4983, 125
        %v5848 = vpop.permute.xlu0 %5847
        %5849 = vrot.lane.b32.xlu0 %v4984, 125
        %v5850 = vpop.permute.xlu0 %5849
        %5851 = vrot.lane.b32.xlu0 %v4985, 125
        %v5852 = vpop.permute.xlu0 %5851
        %5853 = vrot.lane.b32.xlu0 %v4986, 125
        %v5854 = vpop.permute.xlu0 %5853
        %5855 = vrot.lane.b32.xlu0 %v4987, 125
        %v5856 = vpop.permute.xlu0 %5855
        %5857 = vrot.lane.b32.xlu0 %v4988, 125
        %v5858 = vpop.permute.xlu0 %5857
        %5859 = vrot.lane.b32.xlu0 %v4989, 125
        %v5860 = vpop.permute.xlu0 %5859
        %5861 = vrot.lane.b32.xlu0 %v4990, 125
        %v5862 = vpop.permute.xlu0 %5861
        %5863 = vrot.lane.b32.xlu0 %v4991, 125
        %v5864 = vpop.permute.xlu0 %5863
        %5865 = vrot.lane.b32.xlu0 %v4992, 125
        %v5866 = vpop.permute.xlu0 %5865
        %5867 = vrot.lane.b32.xlu0 %v4993, 125
        %v5868 = vpop.permute.xlu0 %5867
        %5869 = vrot.lane.b32.xlu0 %v4994, 125
        %v5870 = vpop.permute.xlu0 %5869
        %5871 = vrot.lane.b32.xlu0 %v4995, 125
        %v5872 = vpop.permute.xlu0 %5871
        %5873 = vrot.lane.b32.xlu0 %v4996, 125
        %v5874 = vpop.permute.xlu0 %5873
        %v5891 = vadd.f32 %v5827, %v5844
        %v5892 = vadd.f32 %v5828, %v5846
        %v5893 = vadd.f32 %v5829, %v5848
        %v5894 = vadd.f32 %v5830, %v5850
        %v5895 = vadd.f32 %v5831, %v5852
        %v5896 = vadd.f32 %v5832, %v5854
        %v5897 = vadd.f32 %v5833, %v5856
        %v5898 = vadd.f32 %v5834, %v5858
        %v5899 = vadd.f32 %v5835, %v5860
        %v5900 = vadd.f32 %v5836, %v5862
        %v5901 = vadd.f32 %v5837, %v5864
        %v5902 = vadd.f32 %v5838, %v5866
        %v5903 = vadd.f32 %v5839, %v5868
        %v5904 = vadd.f32 %v5840, %v5870
        %v5905 = vadd.f32 %v5841, %v5872
        %v5906 = vadd.f32 %v5842, %v5874
        %5923 = vset.pattern.permute.xlu0 0
        %5924 = vperm.xlu0 %5923, %v5299
        %v5925 = vpop.permute.xlu0 %5924
        %5926 = vset.pattern.permute.xlu0 0
        %5927 = vperm.xlu0 %5926, %v5300
        %v5928 = vpop.permute.xlu0 %5927
        %5929 = vset.pattern.permute.xlu0 0
        %5930 = vperm.xlu0 %5929, %v5301
        %v5931 = vpop.permute.xlu0 %5930
        %5932 = vset.pattern.permute.xlu0 0
        %5933 = vperm.xlu0 %5932, %v5302
        %v5934 = vpop.permute.xlu0 %5933
        %5935 = vset.pattern.permute.xlu0 0
        %5936 = vperm.xlu0 %5935, %v5303
        %v5937 = vpop.permute.xlu0 %5936
        %5938 = vset.pattern.permute.xlu0 0
        %5939 = vperm.xlu0 %5938, %v5304
        %v5940 = vpop.permute.xlu0 %5939
        %5941 = vset.pattern.permute.xlu0 0
        %5942 = vperm.xlu0 %5941, %v5305
        %v5943 = vpop.permute.xlu0 %5942
        %5944 = vset.pattern.permute.xlu0 0
        %5945 = vperm.xlu0 %5944, %v5306
        %v5946 = vpop.permute.xlu0 %5945
        %5947 = vset.pattern.permute.xlu0 0
        %5948 = vperm.xlu0 %5947, %v5307
        %v5949 = vpop.permute.xlu0 %5948
        %5950 = vset.pattern.permute.xlu0 0
        %5951 = vperm.xlu0 %5950, %v5308
        %v5952 = vpop.permute.xlu0 %5951
        %5953 = vset.pattern.permute.xlu0 0
        %5954 = vperm.xlu0 %5953, %v5309
        %v5955 = vpop.permute.xlu0 %5954
        %5956 = vset.pattern.permute.xlu0 0
        %5957 = vperm.xlu0 %5956, %v5310
        %v5958 = vpop.permute.xlu0 %5957
        %5959 = vset.pattern.permute.xlu0 0
        %5960 = vperm.xlu0 %5959, %v5311
        %v5961 = vpop.permute.xlu0 %5960
        %5962 = vset.pattern.permute.xlu0 0
        %5963 = vperm.xlu0 %5962, %v5312
        %v5964 = vpop.permute.xlu0 %5963
        %5965 = vset.pattern.permute.xlu0 0
        %5966 = vperm.xlu0 %5965, %v5313
        %v5967 = vpop.permute.xlu0 %5966
        %5968 = vset.pattern.permute.xlu0 0
        %5969 = vperm.xlu0 %5968, %v5314
        %v5970 = vpop.permute.xlu0 %5969
        %v5971 = vlaneseq
        %v5972 = vshrl.u32 %v5971, 7
        %v5973 = vsub.s32 %v1311, %v5972
        %v5974 = vrot.slane %v5925, %v5973
        %v5975 = vlaneseq
        %v5976 = vshrl.u32 %v5975, 7
        %v5977 = vsub.s32 %v3210, %v5976
        %v5978 = vrot.slane %v5928, %v5977
        %v5979 = vsel %vm3215, %v5978, %v5974
        %v5980 = vlaneseq
        %v5981 = vshrl.u32 %v5980, 7
        %v5982 = vsub.s32 %v1311, %v5981
        %v5983 = vrot.slane %v5931, %v5982
        %v5984 = vlaneseq
        %v5985 = vshrl.u32 %v5984, 7
        %v5986 = vsub.s32 %v3210, %v5985
        %v5987 = vrot.slane %v5934, %v5986
        %v5988 = vsel %vm3215, %v5987, %v5983
        %v5989 = vlaneseq
        %v5990 = vshrl.u32 %v5989, 7
        %v5991 = vsub.s32 %v1311, %v5990
        %v5992 = vrot.slane %v5937, %v5991
        %v5993 = vlaneseq
        %v5994 = vshrl.u32 %v5993, 7
        %v5995 = vsub.s32 %v3210, %v5994
        %v5996 = vrot.slane %v5940, %v5995
        %v5997 = vsel %vm3215, %v5996, %v5992
        %v5998 = vlaneseq
        %v5999 = vshrl.u32 %v5998, 7
        %v6000 = vsub.s32 %v1311, %v5999
        %v6001 = vrot.slane %v5943, %v6000
        %v6002 = vlaneseq
        %v6003 = vshrl.u32 %v6002, 7
        %v6004 = vsub.s32 %v3210, %v6003
        %v6005 = vrot.slane %v5946, %v6004
        %v6006 = vsel %vm3215, %v6005, %v6001
        %v6007 = vlaneseq
        %v6008 = vshrl.u32 %v6007, 7
        %v6009 = vsub.s32 %v1311, %v6008
        %v6010 = vrot.slane %v5949, %v6009
        %v6011 = vlaneseq
        %v6012 = vshrl.u32 %v6011, 7
        %v6013 = vsub.s32 %v3210, %v6012
        %v6014 = vrot.slane %v5952, %v6013
        %v6015 = vsel %vm3215, %v6014, %v6010
        %v6016 = vlaneseq
        %v6017 = vshrl.u32 %v6016, 7
        %v6018 = vsub.s32 %v1311, %v6017
        %v6019 = vrot.slane %v5955, %v6018
        %v6020 = vlaneseq
        %v6021 = vshrl.u32 %v6020, 7
        %v6022 = vsub.s32 %v3210, %v6021
        %v6023 = vrot.slane %v5958, %v6022
        %v6024 = vsel %vm3215, %v6023, %v6019
        %v6025 = vlaneseq
        %v6026 = vshrl.u32 %v6025, 7
        %v6027 = vsub.s32 %v1311, %v6026
        %v6028 = vrot.slane %v5961, %v6027
        %v6029 = vlaneseq
        %v6030 = vshrl.u32 %v6029, 7
        %v6031 = vsub.s32 %v3210, %v6030
        %v6032 = vrot.slane %v5964, %v6031
        %v6033 = vsel %vm3215, %v6032, %v6028
        %v6034 = vlaneseq
        %v6035 = vshrl.u32 %v6034, 7
        %v6036 = vsub.s32 %v1311, %v6035
        %v6037 = vrot.slane %v5967, %v6036
        %v6038 = vlaneseq
        %v6039 = vshrl.u32 %v6038, 7
        %v6040 = vsub.s32 %v3210, %v6039
        %v6041 = vrot.slane %v5970, %v6040
        %v6042 = vsel %vm3215, %v6041, %v6037
        %v6043 = vsel %vm3280, %v5988, %v5979
        %v6044 = vsel %vm3282, %v5997, %v6043
        %v6045 = vsel %vm3284, %v6006, %v6044
        %v6046 = vsel %vm3286, %v6015, %v6045
        %v6047 = vsel %vm3288, %v6024, %v6046
        %v6048 = vsel %vm3290, %v6033, %v6047
        %v6049 = vsel %vm3292, %v6042, %v6048
        %v6051 = vmul.f32 %v2019, %v6049
        %6068 = vset.pattern.permute.xlu0 0
        %6069 = vperm.xlu0 %6068, %v5507
        %v6070 = vpop.permute.xlu0 %6069
        %6071 = vset.pattern.permute.xlu0 0
        %6072 = vperm.xlu0 %6071, %v5508
        %v6073 = vpop.permute.xlu0 %6072
        %6074 = vset.pattern.permute.xlu0 0
        %6075 = vperm.xlu0 %6074, %v5509
        %v6076 = vpop.permute.xlu0 %6075
        %6077 = vset.pattern.permute.xlu0 0
        %6078 = vperm.xlu0 %6077, %v5510
        %v6079 = vpop.permute.xlu0 %6078
        %6080 = vset.pattern.permute.xlu0 0
        %6081 = vperm.xlu0 %6080, %v5511
        %v6082 = vpop.permute.xlu0 %6081
        %6083 = vset.pattern.permute.xlu0 0
        %6084 = vperm.xlu0 %6083, %v5512
        %v6085 = vpop.permute.xlu0 %6084
        %6086 = vset.pattern.permute.xlu0 0
        %6087 = vperm.xlu0 %6086, %v5513
        %v6088 = vpop.permute.xlu0 %6087
        %6089 = vset.pattern.permute.xlu0 0
        %6090 = vperm.xlu0 %6089, %v5514
        %v6091 = vpop.permute.xlu0 %6090
        %6092 = vset.pattern.permute.xlu0 0
        %6093 = vperm.xlu0 %6092, %v5515
        %v6094 = vpop.permute.xlu0 %6093
        %6095 = vset.pattern.permute.xlu0 0
        %6096 = vperm.xlu0 %6095, %v5516
        %v6097 = vpop.permute.xlu0 %6096
        %6098 = vset.pattern.permute.xlu0 0
        %6099 = vperm.xlu0 %6098, %v5517
        %v6100 = vpop.permute.xlu0 %6099
        %6101 = vset.pattern.permute.xlu0 0
        %6102 = vperm.xlu0 %6101, %v5518
        %v6103 = vpop.permute.xlu0 %6102
        %6104 = vset.pattern.permute.xlu0 0
        %6105 = vperm.xlu0 %6104, %v5519
        %v6106 = vpop.permute.xlu0 %6105
        %6107 = vset.pattern.permute.xlu0 0
        %6108 = vperm.xlu0 %6107, %v5520
        %v6109 = vpop.permute.xlu0 %6108
        %6110 = vset.pattern.permute.xlu0 0
        %6111 = vperm.xlu0 %6110, %v5521
        %v6112 = vpop.permute.xlu0 %6111
        %6113 = vset.pattern.permute.xlu0 0
        %6114 = vperm.xlu0 %6113, %v5522
        %v6115 = vpop.permute.xlu0 %6114
        %v6116 = vlaneseq
        %v6117 = vshrl.u32 %v6116, 7
        %v6118 = vsub.s32 %v1311, %v6117
        %v6119 = vrot.slane %v6070, %v6118
        %v6120 = vlaneseq
        %v6121 = vshrl.u32 %v6120, 7
        %v6122 = vsub.s32 %v3210, %v6121
        %v6123 = vrot.slane %v6073, %v6122
        %v6124 = vsel %vm3215, %v6123, %v6119
        %v6125 = vlaneseq
        %v6126 = vshrl.u32 %v6125, 7
        %v6127 = vsub.s32 %v1311, %v6126
        %v6128 = vrot.slane %v6076, %v6127
        %v6129 = vlaneseq
        %v6130 = vshrl.u32 %v6129, 7
        %v6131 = vsub.s32 %v3210, %v6130
        %v6132 = vrot.slane %v6079, %v6131
        %v6133 = vsel %vm3215, %v6132, %v6128
        %v6134 = vlaneseq
        %v6135 = vshrl.u32 %v6134, 7
        %v6136 = vsub.s32 %v1311, %v6135
        %v6137 = vrot.slane %v6082, %v6136
        %v6138 = vlaneseq
        %v6139 = vshrl.u32 %v6138, 7
        %v6140 = vsub.s32 %v3210, %v6139
        %v6141 = vrot.slane %v6085, %v6140
        %v6142 = vsel %vm3215, %v6141, %v6137
        %v6143 = vlaneseq
        %v6144 = vshrl.u32 %v6143, 7
        %v6145 = vsub.s32 %v1311, %v6144
        %v6146 = vrot.slane %v6088, %v6145
        %v6147 = vlaneseq
        %v6148 = vshrl.u32 %v6147, 7
        %v6149 = vsub.s32 %v3210, %v6148
        %v6150 = vrot.slane %v6091, %v6149
        %v6151 = vsel %vm3215, %v6150, %v6146
        %v6152 = vlaneseq
        %v6153 = vshrl.u32 %v6152, 7
        %v6154 = vsub.s32 %v1311, %v6153
        %v6155 = vrot.slane %v6094, %v6154
        %v6156 = vlaneseq
        %v6157 = vshrl.u32 %v6156, 7
        %v6158 = vsub.s32 %v3210, %v6157
        %v6159 = vrot.slane %v6097, %v6158
        %v6160 = vsel %vm3215, %v6159, %v6155
        %v6161 = vlaneseq
        %v6162 = vshrl.u32 %v6161, 7
        %v6163 = vsub.s32 %v1311, %v6162
        %v6164 = vrot.slane %v6100, %v6163
        %v6165 = vlaneseq
        %v6166 = vshrl.u32 %v6165, 7
        %v6167 = vsub.s32 %v3210, %v6166
        %v6168 = vrot.slane %v6103, %v6167
        %v6169 = vsel %vm3215, %v6168, %v6164
        %v6170 = vlaneseq
        %v6171 = vshrl.u32 %v6170, 7
        %v6172 = vsub.s32 %v1311, %v6171
        %v6173 = vrot.slane %v6106, %v6172
        %v6174 = vlaneseq
        %v6175 = vshrl.u32 %v6174, 7
        %v6176 = vsub.s32 %v3210, %v6175
        %v6177 = vrot.slane %v6109, %v6176
        %v6178 = vsel %vm3215, %v6177, %v6173
        %v6179 = vlaneseq
        %v6180 = vshrl.u32 %v6179, 7
        %v6181 = vsub.s32 %v1311, %v6180
        %v6182 = vrot.slane %v6112, %v6181
        %v6183 = vlaneseq
        %v6184 = vshrl.u32 %v6183, 7
        %v6185 = vsub.s32 %v3210, %v6184
        %v6186 = vrot.slane %v6115, %v6185
        %v6187 = vsel %vm3215, %v6186, %v6182
        %v6188 = vsel %vm3280, %v6133, %v6124
        %v6189 = vsel %vm3282, %v6142, %v6188
        %v6190 = vsel %vm3284, %v6151, %v6189
        %v6191 = vsel %vm3286, %v6160, %v6190
        %v6192 = vsel %vm3288, %v6169, %v6191
        %v6193 = vsel %vm3290, %v6178, %v6192
        %v6194 = vsel %vm3292, %v6187, %v6193
        %v6196 = vmul.f32 %v2028, %v6194
        %v6197 = vsub.f32 %v6051, %v6196
        %6214 = vset.pattern.permute.xlu0 0
        %6215 = vperm.xlu0 %6214, %v5699
        %v6216 = vpop.permute.xlu0 %6215
        %6217 = vset.pattern.permute.xlu0 0
        %6218 = vperm.xlu0 %6217, %v5700
        %v6219 = vpop.permute.xlu0 %6218
        %6220 = vset.pattern.permute.xlu0 0
        %6221 = vperm.xlu0 %6220, %v5701
        %v6222 = vpop.permute.xlu0 %6221
        %6223 = vset.pattern.permute.xlu0 0
        %6224 = vperm.xlu0 %6223, %v5702
        %v6225 = vpop.permute.xlu0 %6224
        %6226 = vset.pattern.permute.xlu0 0
        %6227 = vperm.xlu0 %6226, %v5703
        %v6228 = vpop.permute.xlu0 %6227
        %6229 = vset.pattern.permute.xlu0 0
        %6230 = vperm.xlu0 %6229, %v5704
        %v6231 = vpop.permute.xlu0 %6230
        %6232 = vset.pattern.permute.xlu0 0
        %6233 = vperm.xlu0 %6232, %v5705
        %v6234 = vpop.permute.xlu0 %6233
        %6235 = vset.pattern.permute.xlu0 0
        %6236 = vperm.xlu0 %6235, %v5706
        %v6237 = vpop.permute.xlu0 %6236
        %6238 = vset.pattern.permute.xlu0 0
        %6239 = vperm.xlu0 %6238, %v5707
        %v6240 = vpop.permute.xlu0 %6239
        %6241 = vset.pattern.permute.xlu0 0
        %6242 = vperm.xlu0 %6241, %v5708
        %v6243 = vpop.permute.xlu0 %6242
        %6244 = vset.pattern.permute.xlu0 0
        %6245 = vperm.xlu0 %6244, %v5709
        %v6246 = vpop.permute.xlu0 %6245
        %6247 = vset.pattern.permute.xlu0 0
        %6248 = vperm.xlu0 %6247, %v5710
        %v6249 = vpop.permute.xlu0 %6248
        %6250 = vset.pattern.permute.xlu0 0
        %6251 = vperm.xlu0 %6250, %v5711
        %v6252 = vpop.permute.xlu0 %6251
        %6253 = vset.pattern.permute.xlu0 0
        %6254 = vperm.xlu0 %6253, %v5712
        %v6255 = vpop.permute.xlu0 %6254
        %6256 = vset.pattern.permute.xlu0 0
        %6257 = vperm.xlu0 %6256, %v5713
        %v6258 = vpop.permute.xlu0 %6257
        %6259 = vset.pattern.permute.xlu0 0
        %6260 = vperm.xlu0 %6259, %v5714
        %v6261 = vpop.permute.xlu0 %6260
        %v6262 = vlaneseq
        %v6263 = vshrl.u32 %v6262, 7
        %v6264 = vsub.s32 %v1311, %v6263
        %v6265 = vrot.slane %v6216, %v6264
        %v6266 = vlaneseq
        %v6267 = vshrl.u32 %v6266, 7
        %v6268 = vsub.s32 %v3210, %v6267
        %v6269 = vrot.slane %v6219, %v6268
        %v6270 = vsel %vm3215, %v6269, %v6265
        %v6271 = vlaneseq
        %v6272 = vshrl.u32 %v6271, 7
        %v6273 = vsub.s32 %v1311, %v6272
        %v6274 = vrot.slane %v6222, %v6273
        %v6275 = vlaneseq
        %v6276 = vshrl.u32 %v6275, 7
        %v6277 = vsub.s32 %v3210, %v6276
        %v6278 = vrot.slane %v6225, %v6277
        %v6279 = vsel %vm3215, %v6278, %v6274
        %v6280 = vlaneseq
        %v6281 = vshrl.u32 %v6280, 7
        %v6282 = vsub.s32 %v1311, %v6281
        %v6283 = vrot.slane %v6228, %v6282
        %v6284 = vlaneseq
        %v6285 = vshrl.u32 %v6284, 7
        %v6286 = vsub.s32 %v3210, %v6285
        %v6287 = vrot.slane %v6231, %v6286
        %v6288 = vsel %vm3215, %v6287, %v6283
        %v6289 = vlaneseq
        %v6290 = vshrl.u32 %v6289, 7
        %v6291 = vsub.s32 %v1311, %v6290
        %v6292 = vrot.slane %v6234, %v6291
        %v6293 = vlaneseq
        %v6294 = vshrl.u32 %v6293, 7
        %v6295 = vsub.s32 %v3210, %v6294
        %v6296 = vrot.slane %v6237, %v6295
        %v6297 = vsel %vm3215, %v6296, %v6292
        %v6298 = vlaneseq
        %v6299 = vshrl.u32 %v6298, 7
        %v6300 = vsub.s32 %v1311, %v6299
        %v6301 = vrot.slane %v6240, %v6300
        %v6302 = vlaneseq
        %v6303 = vshrl.u32 %v6302, 7
        %v6304 = vsub.s32 %v3210, %v6303
        %v6305 = vrot.slane %v6243, %v6304
        %v6306 = vsel %vm3215, %v6305, %v6301
        %v6307 = vlaneseq
        %v6308 = vshrl.u32 %v6307, 7
        %v6309 = vsub.s32 %v1311, %v6308
        %v6310 = vrot.slane %v6246, %v6309
        %v6311 = vlaneseq
        %v6312 = vshrl.u32 %v6311, 7
        %v6313 = vsub.s32 %v3210, %v6312
        %v6314 = vrot.slane %v6249, %v6313
        %v6315 = vsel %vm3215, %v6314, %v6310
        %v6316 = vlaneseq
        %v6317 = vshrl.u32 %v6316, 7
        %v6318 = vsub.s32 %v1311, %v6317
        %v6319 = vrot.slane %v6252, %v6318
        %v6320 = vlaneseq
        %v6321 = vshrl.u32 %v6320, 7
        %v6322 = vsub.s32 %v3210, %v6321
        %v6323 = vrot.slane %v6255, %v6322
        %v6324 = vsel %vm3215, %v6323, %v6319
        %v6325 = vlaneseq
        %v6326 = vshrl.u32 %v6325, 7
        %v6327 = vsub.s32 %v1311, %v6326
        %v6328 = vrot.slane %v6258, %v6327
        %v6329 = vlaneseq
        %v6330 = vshrl.u32 %v6329, 7
        %v6331 = vsub.s32 %v3210, %v6330
        %v6332 = vrot.slane %v6261, %v6331
        %v6333 = vsel %vm3215, %v6332, %v6328
        %v6334 = vsel %vm3280, %v6279, %v6270
        %v6335 = vsel %vm3282, %v6288, %v6334
        %v6336 = vsel %vm3284, %v6297, %v6335
        %v6337 = vsel %vm3286, %v6306, %v6336
        %v6338 = vsel %vm3288, %v6315, %v6337
        %v6339 = vsel %vm3290, %v6324, %v6338
        %v6340 = vsel %vm3292, %v6333, %v6339
        %v6342 = vmul.f32 %v2038, %v6340
        %v6343 = vsub.f32 %v6197, %v6342
        %6360 = vset.pattern.permute.xlu0 0
        %6361 = vperm.xlu0 %6360, %v5891
        %v6362 = vpop.permute.xlu0 %6361
        %6363 = vset.pattern.permute.xlu0 0
        %6364 = vperm.xlu0 %6363, %v5892
        %v6365 = vpop.permute.xlu0 %6364
        %6366 = vset.pattern.permute.xlu0 0
        %6367 = vperm.xlu0 %6366, %v5893
        %v6368 = vpop.permute.xlu0 %6367
        %6369 = vset.pattern.permute.xlu0 0
        %6370 = vperm.xlu0 %6369, %v5894
        %v6371 = vpop.permute.xlu0 %6370
        %6372 = vset.pattern.permute.xlu0 0
        %6373 = vperm.xlu0 %6372, %v5895
        %v6374 = vpop.permute.xlu0 %6373
        %6375 = vset.pattern.permute.xlu0 0
        %6376 = vperm.xlu0 %6375, %v5896
        %v6377 = vpop.permute.xlu0 %6376
        %6378 = vset.pattern.permute.xlu0 0
        %6379 = vperm.xlu0 %6378, %v5897
        %v6380 = vpop.permute.xlu0 %6379
        %6381 = vset.pattern.permute.xlu0 0
        %6382 = vperm.xlu0 %6381, %v5898
        %v6383 = vpop.permute.xlu0 %6382
        %6384 = vset.pattern.permute.xlu0 0
        %6385 = vperm.xlu0 %6384, %v5899
        %v6386 = vpop.permute.xlu0 %6385
        %6387 = vset.pattern.permute.xlu0 0
        %6388 = vperm.xlu0 %6387, %v5900
        %v6389 = vpop.permute.xlu0 %6388
        %6390 = vset.pattern.permute.xlu0 0
        %6391 = vperm.xlu0 %6390, %v5901
        %v6392 = vpop.permute.xlu0 %6391
        %6393 = vset.pattern.permute.xlu0 0
        %6394 = vperm.xlu0 %6393, %v5902
        %v6395 = vpop.permute.xlu0 %6394
        %6396 = vset.pattern.permute.xlu0 0
        %6397 = vperm.xlu0 %6396, %v5903
        %v6398 = vpop.permute.xlu0 %6397
        %6399 = vset.pattern.permute.xlu0 0
        %6400 = vperm.xlu0 %6399, %v5904
        %v6401 = vpop.permute.xlu0 %6400
        %6402 = vset.pattern.permute.xlu0 0
        %6403 = vperm.xlu0 %6402, %v5905
        %v6404 = vpop.permute.xlu0 %6403
        %6405 = vset.pattern.permute.xlu0 0
        %6406 = vperm.xlu0 %6405, %v5906
        %v6407 = vpop.permute.xlu0 %6406
        %v6408 = vlaneseq
        %v6409 = vshrl.u32 %v6408, 7
        %v6410 = vsub.s32 %v1311, %v6409
        %v6411 = vrot.slane %v6362, %v6410
        %v6412 = vlaneseq
        %v6413 = vshrl.u32 %v6412, 7
        %v6414 = vsub.s32 %v3210, %v6413
        %v6415 = vrot.slane %v6365, %v6414
        %v6416 = vsel %vm3215, %v6415, %v6411
        %v6417 = vlaneseq
        %v6418 = vshrl.u32 %v6417, 7
        %v6419 = vsub.s32 %v1311, %v6418
        %v6420 = vrot.slane %v6368, %v6419
        %v6421 = vlaneseq
        %v6422 = vshrl.u32 %v6421, 7
        %v6423 = vsub.s32 %v3210, %v6422
        %v6424 = vrot.slane %v6371, %v6423
        %v6425 = vsel %vm3215, %v6424, %v6420
        %v6426 = vlaneseq
        %v6427 = vshrl.u32 %v6426, 7
        %v6428 = vsub.s32 %v1311, %v6427
        %v6429 = vrot.slane %v6374, %v6428
        %v6430 = vlaneseq
        %v6431 = vshrl.u32 %v6430, 7
        %v6432 = vsub.s32 %v3210, %v6431
        %v6433 = vrot.slane %v6377, %v6432
        %v6434 = vsel %vm3215, %v6433, %v6429
        %v6435 = vlaneseq
        %v6436 = vshrl.u32 %v6435, 7
        %v6437 = vsub.s32 %v1311, %v6436
        %v6438 = vrot.slane %v6380, %v6437
        %v6439 = vlaneseq
        %v6440 = vshrl.u32 %v6439, 7
        %v6441 = vsub.s32 %v3210, %v6440
        %v6442 = vrot.slane %v6383, %v6441
        %v6443 = vsel %vm3215, %v6442, %v6438
        %v6444 = vlaneseq
        %v6445 = vshrl.u32 %v6444, 7
        %v6446 = vsub.s32 %v1311, %v6445
        %v6447 = vrot.slane %v6386, %v6446
        %v6448 = vlaneseq
        %v6449 = vshrl.u32 %v6448, 7
        %v6450 = vsub.s32 %v3210, %v6449
        %v6451 = vrot.slane %v6389, %v6450
        %v6452 = vsel %vm3215, %v6451, %v6447
        %v6453 = vlaneseq
        %v6454 = vshrl.u32 %v6453, 7
        %v6455 = vsub.s32 %v1311, %v6454
        %v6456 = vrot.slane %v6392, %v6455
        %v6457 = vlaneseq
        %v6458 = vshrl.u32 %v6457, 7
        %v6459 = vsub.s32 %v3210, %v6458
        %v6460 = vrot.slane %v6395, %v6459
        %v6461 = vsel %vm3215, %v6460, %v6456
        %v6462 = vlaneseq
        %v6463 = vshrl.u32 %v6462, 7
        %v6464 = vsub.s32 %v1311, %v6463
        %v6465 = vrot.slane %v6398, %v6464
        %v6466 = vlaneseq
        %v6467 = vshrl.u32 %v6466, 7
        %v6468 = vsub.s32 %v3210, %v6467
        %v6469 = vrot.slane %v6401, %v6468
        %v6470 = vsel %vm3215, %v6469, %v6465
        %v6471 = vlaneseq
        %v6472 = vshrl.u32 %v6471, 7
        %v6473 = vsub.s32 %v1311, %v6472
        %v6474 = vrot.slane %v6404, %v6473
        %v6475 = vlaneseq
        %v6476 = vshrl.u32 %v6475, 7
        %v6477 = vsub.s32 %v3210, %v6476
        %v6478 = vrot.slane %v6407, %v6477
        %v6479 = vsel %vm3215, %v6478, %v6474
        %v6480 = vsel %vm3280, %v6425, %v6416
        %v6481 = vsel %vm3282, %v6434, %v6480
        %v6482 = vsel %vm3284, %v6443, %v6481
        %v6483 = vsel %vm3286, %v6452, %v6482
        %v6484 = vsel %vm3288, %v6461, %v6483
        %v6485 = vsel %vm3290, %v6470, %v6484
        %v6486 = vsel %vm3292, %v6479, %v6485
        %v6488 = vmul.f32 %v2048, %v6486
        %v6489 = vsub.f32 %v6343, %v6488
        %v6490 = vmul.f32 %v2019, %v6194
        %v6491 = vmul.f32 %v2028, %v6049
        %v6492 = vadd.f32 %v6490, %v6491
        %v6493 = vmul.f32 %v2038, %v6486
        %v6494 = vadd.f32 %v6492, %v6493
        %v6495 = vmul.f32 %v2048, %v6340
        %v6496 = vsub.f32 %v6494, %v6495
        %v6497 = vmul.f32 %v2019, %v6340
        %v6498 = vmul.f32 %v2028, %v6486
        %v6499 = vsub.f32 %v6497, %v6498
        %v6500 = vmul.f32 %v2038, %v6049
        %v6501 = vadd.f32 %v6499, %v6500
        %v6502 = vmul.f32 %v2048, %v6194
        %v6503 = vadd.f32 %v6501, %v6502
        %v6504 = vmul.f32 %v2019, %v6486
        %v6505 = vmul.f32 %v2028, %v6340
        %v6506 = vadd.f32 %v6504, %v6505
        %v6507 = vmul.f32 %v2038, %v6194
        %v6508 = vsub.f32 %v6506, %v6507
        %v6509 = vmul.f32 %v2048, %v6049
        %v6510 = vadd.f32 %v6508, %v6509
        %6527 = vset.pattern.permute.xlu0 0
        %6528 = vperm.xlu0 %6527, %v3576
        %v6529 = vpop.permute.xlu0 %6528
        %6530 = vset.pattern.permute.xlu0 0
        %6531 = vperm.xlu0 %6530, %v3577
        %v6532 = vpop.permute.xlu0 %6531
        %6533 = vset.pattern.permute.xlu0 0
        %6534 = vperm.xlu0 %6533, %v3578
        %v6535 = vpop.permute.xlu0 %6534
        %6536 = vset.pattern.permute.xlu0 0
        %6537 = vperm.xlu0 %6536, %v3579
        %v6538 = vpop.permute.xlu0 %6537
        %6539 = vset.pattern.permute.xlu0 0
        %6540 = vperm.xlu0 %6539, %v3580
        %v6541 = vpop.permute.xlu0 %6540
        %6542 = vset.pattern.permute.xlu0 0
        %6543 = vperm.xlu0 %6542, %v3581
        %v6544 = vpop.permute.xlu0 %6543
        %6545 = vset.pattern.permute.xlu0 0
        %6546 = vperm.xlu0 %6545, %v3582
        %v6547 = vpop.permute.xlu0 %6546
        %6548 = vset.pattern.permute.xlu0 0
        %6549 = vperm.xlu0 %6548, %v3583
        %v6550 = vpop.permute.xlu0 %6549
        %6551 = vset.pattern.permute.xlu0 0
        %6552 = vperm.xlu0 %6551, %v3584
        %v6553 = vpop.permute.xlu0 %6552
        %6554 = vset.pattern.permute.xlu0 0
        %6555 = vperm.xlu0 %6554, %v3585
        %v6556 = vpop.permute.xlu0 %6555
        %6557 = vset.pattern.permute.xlu0 0
        %6558 = vperm.xlu0 %6557, %v3586
        %v6559 = vpop.permute.xlu0 %6558
        %6560 = vset.pattern.permute.xlu0 0
        %6561 = vperm.xlu0 %6560, %v3587
        %v6562 = vpop.permute.xlu0 %6561
        %6563 = vset.pattern.permute.xlu0 0
        %6564 = vperm.xlu0 %6563, %v3588
        %v6565 = vpop.permute.xlu0 %6564
        %6566 = vset.pattern.permute.xlu0 0
        %6567 = vperm.xlu0 %6566, %v3589
        %v6568 = vpop.permute.xlu0 %6567
        %6569 = vset.pattern.permute.xlu0 0
        %6570 = vperm.xlu0 %6569, %v3590
        %v6571 = vpop.permute.xlu0 %6570
        %6572 = vset.pattern.permute.xlu0 0
        %6573 = vperm.xlu0 %6572, %v3591
        %v6574 = vpop.permute.xlu0 %6573
        %v6575 = vlaneseq
        %v6576 = vshrl.u32 %v6575, 7
        %v6577 = vsub.s32 %v1311, %v6576
        %v6578 = vrot.slane %v6529, %v6577
        %v6579 = vlaneseq
        %v6580 = vshrl.u32 %v6579, 7
        %v6581 = vsub.s32 %v3210, %v6580
        %v6582 = vrot.slane %v6532, %v6581
        %v6583 = vsel %vm3215, %v6582, %v6578
        %v6584 = vlaneseq
        %v6585 = vshrl.u32 %v6584, 7
        %v6586 = vsub.s32 %v1311, %v6585
        %v6587 = vrot.slane %v6535, %v6586
        %v6588 = vlaneseq
        %v6589 = vshrl.u32 %v6588, 7
        %v6590 = vsub.s32 %v3210, %v6589
        %v6591 = vrot.slane %v6538, %v6590
        %v6592 = vsel %vm3215, %v6591, %v6587
        %v6593 = vlaneseq
        %v6594 = vshrl.u32 %v6593, 7
        %v6595 = vsub.s32 %v1311, %v6594
        %v6596 = vrot.slane %v6541, %v6595
        %v6597 = vlaneseq
        %v6598 = vshrl.u32 %v6597, 7
        %v6599 = vsub.s32 %v3210, %v6598
        %v6600 = vrot.slane %v6544, %v6599
        %v6601 = vsel %vm3215, %v6600, %v6596
        %v6602 = vlaneseq
        %v6603 = vshrl.u32 %v6602, 7
        %v6604 = vsub.s32 %v1311, %v6603
        %v6605 = vrot.slane %v6547, %v6604
        %v6606 = vlaneseq
        %v6607 = vshrl.u32 %v6606, 7
        %v6608 = vsub.s32 %v3210, %v6607
        %v6609 = vrot.slane %v6550, %v6608
        %v6610 = vsel %vm3215, %v6609, %v6605
        %v6611 = vlaneseq
        %v6612 = vshrl.u32 %v6611, 7
        %v6613 = vsub.s32 %v1311, %v6612
        %v6614 = vrot.slane %v6553, %v6613
        %v6615 = vlaneseq
        %v6616 = vshrl.u32 %v6615, 7
        %v6617 = vsub.s32 %v3210, %v6616
        %v6618 = vrot.slane %v6556, %v6617
        %v6619 = vsel %vm3215, %v6618, %v6614
        %v6620 = vlaneseq
        %v6621 = vshrl.u32 %v6620, 7
        %v6622 = vsub.s32 %v1311, %v6621
        %v6623 = vrot.slane %v6559, %v6622
        %v6624 = vlaneseq
        %v6625 = vshrl.u32 %v6624, 7
        %v6626 = vsub.s32 %v3210, %v6625
        %v6627 = vrot.slane %v6562, %v6626
        %v6628 = vsel %vm3215, %v6627, %v6623
        %v6629 = vlaneseq
        %v6630 = vshrl.u32 %v6629, 7
        %v6631 = vsub.s32 %v1311, %v6630
        %v6632 = vrot.slane %v6565, %v6631
        %v6633 = vlaneseq
        %v6634 = vshrl.u32 %v6633, 7
        %v6635 = vsub.s32 %v3210, %v6634
        %v6636 = vrot.slane %v6568, %v6635
        %v6637 = vsel %vm3215, %v6636, %v6632
        %v6638 = vlaneseq
        %v6639 = vshrl.u32 %v6638, 7
        %v6640 = vsub.s32 %v1311, %v6639
        %v6641 = vrot.slane %v6571, %v6640
        %v6642 = vlaneseq
        %v6643 = vshrl.u32 %v6642, 7
        %v6644 = vsub.s32 %v3210, %v6643
        %v6645 = vrot.slane %v6574, %v6644
        %v6646 = vsel %vm3215, %v6645, %v6641
        %v6647 = vsel %vm3280, %v6592, %v6583
        %v6648 = vsel %vm3282, %v6601, %v6647
        %v6649 = vsel %vm3284, %v6610, %v6648
        %v6650 = vsel %vm3286, %v6619, %v6649
        %v6651 = vsel %vm3288, %v6628, %v6650
        %v6652 = vsel %vm3290, %v6637, %v6651
        %v6653 = vsel %vm3292, %v6646, %v6652
        %v6655 = vmul.f32 %v6489, %v6653
        %v6656 = vsel %vm1328, %v6655, 0.0
        %6657 = vadd.xlane.f32.xlu0 %v6656
        %v6658 = vpop.xlane.xlu0 %6657
        %v6659 = vmul.f32 %v6496, %v6653
        %v6660 = vsel %vm1328, %v6659, 0.0
        %6661 = vadd.xlane.f32.xlu0 %v6660
        %v6662 = vpop.xlane.xlu0 %6661
        %v6663 = vmul.f32 %v6503, %v6653
        %v6664 = vsel %vm1328, %v6663, 0.0
        %6665 = vadd.xlane.f32.xlu0 %v6664
        %v6666 = vpop.xlane.xlu0 %6665
        %v6667 = vmul.f32 %v6510, %v6653
        %v6668 = vsel %vm1328, %v6667, 0.0
        %6669 = vadd.xlane.f32.xlu0 %v6668
        %v6670 = vpop.xlane.xlu0 %6669
        %v6671 = vsel %vm1328, %v1325, 0.0
        %6672 = vadd.xlane.f32.xlu0 %v6671
        %v6673 = vpop.xlane.xlu0 %6672
        %vm6674 = vcmp.gt.f32.partialorder %v6673, 0.0
        %v6675 = vsel %vm6674, %v6658, 1.0
        %v6676 = vsel %vm6674, %v6662, 0.0
        %v6677 = vsel %vm6674, %v6666, 0.0
        %v6678 = vsel %vm6674, %v6670, 0.0
        %v6679 = vmul.f32 %v6675, %v6675
        %v6680 = vmul.f32 %v6676, %v6676
        %v6681 = vadd.f32 %v6679, %v6680
        %v6682 = vmul.f32 %v6677, %v6677
        %v6683 = vadd.f32 %v6681, %v6682
        %v6684 = vmul.f32 %v6678, %v6678
        %v6685 = vadd.f32 %v6683, %v6684
        %v6686 = vmax.f32 %v6685, 1e-24
        %v6687 = vrsqrt.pop %v6686
        %v6688 = vmul.f32 %v6675, %v6687
        %v6689 = vmul.f32 %v6676, %v6687
        %v6690 = vmul.f32 %v6677, %v6687
        %v6691 = vmul.f32 %v6678, %v6687
        %v6692 = vmul.f32 %v6688, %v1288
        %v6693 = vmul.f32 %v6689, %v1288
        %6695 = vrot.lane.b32.xlu0 %v6693, 127
        %v6696 = vpop.permute.xlu0 %6695
        %v6698 = vsub.f32 %v6692, %v6696
        %v6699 = vmul.f32 %v6690, %v1288
        %6701 = vrot.lane.b32.xlu0 %v6699, 126
        %v6702 = vpop.permute.xlu0 %6701
        %v6704 = vsub.f32 %v6698, %v6702
        %v6705 = vmul.f32 %v6691, %v1288
        %6707 = vrot.lane.b32.xlu0 %v6705, 125
        %v6708 = vpop.permute.xlu0 %6707
        %v6710 = vsub.f32 %v6704, %v6708
        %6711 = vrot.lane.b32.xlu0 %v6693, 1
        %v6712 = vpop.permute.xlu0 %6711
        %v6714 = vadd.f32 %v6692, %v6712
        %v6715 = vadd.f32 %v6714, %v6702
        %6716 = vrot.lane.b32.xlu0 %v6705, 127
        %v6717 = vpop.permute.xlu0 %6716
        %v6719 = vsub.f32 %v6715, %v6717
        %6720 = vrot.lane.b32.xlu0 %v6699, 2
        %v6721 = vpop.permute.xlu0 %6720
        %v6723 = vadd.f32 %v6698, %v6721
        %6724 = vrot.lane.b32.xlu0 %v6705, 1
        %v6725 = vpop.permute.xlu0 %6724
        %v6727 = vadd.f32 %v6723, %v6725
        %v6728 = vsub.f32 %v6714, %v6721
        %6729 = vrot.lane.b32.xlu0 %v6705, 3
        %v6730 = vpop.permute.xlu0 %6729
        %v6732 = vadd.f32 %v6728, %v6730
        %v6733 = vmul.f32 %v6710, %v6710
        %v6734 = vmul.f32 %v6719, %v6719
        %6736 = vrot.lane.b32.xlu0 %v6734, 127
        %v6737 = vpop.permute.xlu0 %6736
        %v6739 = vadd.f32 %v6733, %v6737
        %v6740 = vmul.f32 %v6727, %v6727
        %6742 = vrot.lane.b32.xlu0 %v6740, 126
        %v6743 = vpop.permute.xlu0 %6742
        %v6745 = vadd.f32 %v6739, %v6743
        %v6746 = vmul.f32 %v6732, %v6732
        %6748 = vrot.lane.b32.xlu0 %v6746, 125
        %v6749 = vpop.permute.xlu0 %6748
        %v6751 = vadd.f32 %v6745, %v6749
        %v6752 = vmax.f32 %v6751, 1e-24
        %v6753 = vrsqrt.pop %v6752
        %v6754 = vmul.f32 %v6710, %v6753
        %vm6755 = vcmask 7168
        %6756 = vst.msk [vmem:[%s1238] sm:$0xff] %vm6755, %v6754
        %6758 = vrot.lane.b32.xlu0 %v6753, 1
        %v6759 = vpop.permute.xlu0 %6758
        %v6761 = vmul.f32 %v6719, %v6759
        %vm6762 = vcmask 15368
        %6763 = vst.msk [vmem:[%s1238] sm:$0xff] %vm6762, %v6761
        %6764 = vrot.lane.b32.xlu0 %v6753, 2
        %v6765 = vpop.permute.xlu0 %6764
        %v6767 = vmul.f32 %v6727, %v6765
        %vm6768 = vcmask 23568
        %6769 = vst.msk [vmem:[%s1238] sm:$0xff] %vm6768, %v6767
        %6770 = vrot.lane.b32.xlu0 %v6753, 3
        %v6771 = vpop.permute.xlu0 %6770
        %v6773 = vmul.f32 %v6732, %v6771
        %vm6774 = vcmask 31768
        %6775 = vst.msk [vmem:[%s1238] sm:$0xff] %vm6774, %v6773
        %v6776 = vmax.f32 %v2278, 0.0
        %v6777 = vmax.f32 %v2284, 0.0
        %v6778 = vmax.f32 %v2290, 0.0
        %v6779 = vmax.f32 %v2296, 0.0
        %v6780 = vmax.f32 %v2302, 0.0
        %v6781 = vmax.f32 %v2308, 0.0
        %v6782 = vmax.f32 %v2314, 0.0
        %v6783 = vmax.f32 %v2320, 0.0
        %v6784 = vmax.f32 %v2326, 0.0
        %v6785 = vmax.f32 %v2332, 0.0
        %v6786 = vmax.f32 %v2338, 0.0
        %v6787 = vmax.f32 %v2344, 0.0
        %v6788 = vmax.f32 %v2350, 0.0
        %v6789 = vmax.f32 %v2356, 0.0
        %v6790 = vmax.f32 %v2362, 0.0
        %v6791 = vmax.f32 %v2368, 0.0
        %v6792 = vld [vmem:[%s59] sm:$0xff]
        %v6793 = vld [vmem:[%s59 + $0x8] sm:$0xff]
        %v6794 = vld [vmem:[%s59 + $0x10] sm:$0xff]
        %v6795 = vld [vmem:[%s59 + $0x18] sm:$0xff]
        %v6796 = vld [vmem:[%s59 + $0x20] sm:$0xff]
        %v6797 = vld [vmem:[%s59 + $0x28] sm:$0xff]
        %v6798 = vld [vmem:[%s59 + $0x30] sm:$0xff]
        %v6799 = vld [vmem:[%s59 + $0x38] sm:$0xff]
        %v6800 = vld [vmem:[#allocation3] sm:$0x1]
        %v6802 = vlaneseq
        %v6803 = vshrl.u32 %v6802, 7
        %v6804 = vsub.s32 0, %v6803
        %v6805 = vrot.slane %v6800, %v6804
        %6823 = vrot.lane.b32.xlu0 %v6776, 64
        %v6824 = vpop.permute.xlu0 %6823
        %6825 = vrot.lane.b32.xlu0 %v6777, 64
        %v6826 = vpop.permute.xlu0 %6825
        %6827 = vrot.lane.b32.xlu0 %v6778, 64
        %v6828 = vpop.permute.xlu0 %6827
        %6829 = vrot.lane.b32.xlu0 %v6779, 64
        %v6830 = vpop.permute.xlu0 %6829
        %6831 = vrot.lane.b32.xlu0 %v6780, 64
        %v6832 = vpop.permute.xlu0 %6831
        %6833 = vrot.lane.b32.xlu0 %v6781, 64
        %v6834 = vpop.permute.xlu0 %6833
        %6835 = vrot.lane.b32.xlu0 %v6782, 64
        %v6836 = vpop.permute.xlu0 %6835
        %6837 = vrot.lane.b32.xlu0 %v6783, 64
        %v6838 = vpop.permute.xlu0 %6837
        %6839 = vrot.lane.b32.xlu0 %v6784, 64
        %v6840 = vpop.permute.xlu0 %6839
        %6841 = vrot.lane.b32.xlu0 %v6785, 64
        %v6842 = vpop.permute.xlu0 %6841
        %6843 = vrot.lane.b32.xlu0 %v6786, 64
        %v6844 = vpop.permute.xlu0 %6843
        %6845 = vrot.lane.b32.xlu0 %v6787, 64
        %v6846 = vpop.permute.xlu0 %6845
        %6847 = vrot.lane.b32.xlu0 %v6788, 64
        %v6848 = vpop.permute.xlu0 %6847
        %6849 = vrot.lane.b32.xlu0 %v6789, 64
        %v6850 = vpop.permute.xlu0 %6849
        %6851 = vrot.lane.b32.xlu0 %v6790, 64
        %v6852 = vpop.permute.xlu0 %6851
        %6853 = vrot.lane.b32.xlu0 %v6791, 64
        %v6854 = vpop.permute.xlu0 %6853
        %v6855 = vsel %vm1784, %v6824, 0
        %v6857 = vsel %vm1784, %v6826, 0
        %v6859 = vsel %vm1784, %v6828, 0
        %v6861 = vsel %vm1784, %v6830, 0
        %v6863 = vsel %vm1784, %v6832, 0
        %v6865 = vsel %vm1784, %v6834, 0
        %v6867 = vsel %vm1784, %v6836, 0
        %v6869 = vsel %vm1784, %v6838, 0
        %v6871 = vsel %vm1784, %v6840, 0
        %v6873 = vsel %vm1784, %v6842, 0
        %v6875 = vsel %vm1784, %v6844, 0
        %v6877 = vsel %vm1784, %v6846, 0
        %v6879 = vsel %vm1784, %v6848, 0
        %v6881 = vsel %vm1784, %v6850, 0
        %v6883 = vsel %vm1784, %v6852, 0
        %v6885 = vsel %vm1784, %v6854, 0
        %6887 = vmatprep.subr.mxu0 0.0
        %6888 = vmatpush1.msra.mxu0 %v6792
        %6889 = vmatprep.subr.mxu0 0.0
        %6890 = vmatpush1.msra.mxu0 %v6793
        %6891 = vmatprep.subr.mxu0 0.0
        %6892 = vmatpush1.msra.mxu0 %v6794
        %6893 = vmatprep.subr.mxu0 0.0
        %6894 = vmatpush1.msra.mxu0 %v6795
        %6895 = vmatprep.subr.mxu0 0.0
        %6896 = vmatpush1.msra.mxu0 %v6796
        %6897 = vmatprep.subr.mxu0 0.0
        %6898 = vmatpush1.msra.mxu0 %v6797
        %6899 = vmatprep.subr.mxu0 0.0
        %6900 = vmatpush1.msra.mxu0 %v6798
        %6901 = vmatprep.subr.mxu0 0.0
        %6902 = vmatpush1.msra.mxu0 %v6799
        %6903 = vmatprep.subr.mxu0 0.0
        %6904 = vmatpush1.msra.mxu0 0.0
        %6905 = vmatprep.subr.mxu0 0.0
        %6906 = vmatpush1.msra.mxu0 0.0
        %6907 = vmatprep.subr.mxu0 0.0
        %6908 = vmatpush1.msra.mxu0 0.0
        %6909 = vmatprep.subr.mxu0 0.0
        %6910 = vmatpush1.msra.mxu0 0.0
        %6911 = vmatprep.subr.mxu0 0.0
        %6912 = vmatpush1.msra.mxu0 0.0
        %6913 = vmatprep.subr.mxu0 0.0
        %6914 = vmatpush1.msra.mxu0 0.0
        %6915 = vmatprep.subr.mxu0 0.0
        %6916 = vmatpush1.msra.mxu0 0.0
        %6917 = vmatprep.subr.mxu0 0.0
        %6918 = vmatpush1.msra.mxu0 0.0
        %6919 = vmatprep.subr.mxu0 0.0
        %6920 = vmatpush1.msra.mxu0 0.0
        %6921 = vmatprep.subr.mxu0 0.0
        %6922 = vmatpush1.msra.mxu0 0.0
        %6923 = vmatprep.subr.mxu0 0.0
        %6924 = vmatpush1.msra.mxu0 0.0
        %6925 = vmatprep.subr.mxu0 0.0
        %6926 = vmatpush1.msra.mxu0 0.0
        %6927 = vmatprep.subr.mxu0 0.0
        %6928 = vmatpush1.msra.mxu0 0.0
        %6929 = vmatprep.subr.mxu0 0.0
        %6930 = vmatpush1.msra.mxu0 0.0
        %6931 = vmatprep.subr.mxu0 0.0
        %6932 = vmatpush1.msra.mxu0 0.0
        %6933 = vmatprep.subr.mxu0 0.0
        %6934 = vmatpush1.msra.mxu0 0.0
        %6935 = vmatprep.subr.mxu0 0.0
        %6936 = vmatpush1.msra.mxu0 0.0
        %6937 = vmatprep.subr.mxu0 0.0
        %6938 = vmatpush1.msra.mxu0 0.0
        %6939 = vmatprep.subr.mxu0 0.0
        %6940 = vmatpush1.msra.mxu0 0.0
        %6941 = vmatprep.subr.mxu0 0.0
        %6942 = vmatpush1.msra.mxu0 0.0
        %6943 = vmatprep.subr.mxu0 0.0
        %6944 = vmatpush1.msra.mxu0 0.0
        %6945 = vmatprep.subr.mxu0 0.0
        %6946 = vmatpush1.msra.mxu0 0.0
        %6947 = vmatprep.subr.mxu0 0.0
        %6948 = vmatpush1.msra.mxu0 0.0
        %6949 = vmatprep.subr.mxu0 0.0
        %6950 = vmatpush1.msra.mxu0 0.0
        %6951 = vmatprep.mubr.f32.mxu0 0.0
        %6952 = vmatmul.mubr.f32.gmra.mrb[0].mxu0 %v6855
        %v6953 = vpop.f32.mrb[0].mxu0
        %v6954 = vadd.f32 %v6805, %v6953
        %v6955 = vpop.f32.mrb[0].mxu0
        %6956 = vmatprep.mubr.f32.mxu0 0.0
        %6957 = vmatmul.mubr.f32.gmra.mrb[0].mxu0 %v6857
        %v6958 = vpop.f32.mrb[0].mxu0
        %v6959 = vadd.f32 %v6805, %v6958
        %v6960 = vpop.f32.mrb[0].mxu0
        %6961 = vmatprep.mubr.f32.mxu0 0.0
        %6962 = vmatmul.mubr.f32.gmra.mrb[0].mxu0 %v6859
        %v6963 = vpop.f32.mrb[0].mxu0
        %v6964 = vadd.f32 %v6805, %v6963
        %v6965 = vpop.f32.mrb[0].mxu0
        %6966 = vmatprep.mubr.f32.mxu0 0.0
        %6967 = vmatmul.mubr.f32.gmra.mrb[0].mxu0 %v6861
        %v6968 = vpop.f32.mrb[0].mxu0
        %v6969 = vadd.f32 %v6805, %v6968
        %v6970 = vpop.f32.mrb[0].mxu0
        %6971 = vmatprep.mubr.f32.mxu0 0.0
        %6972 = vmatmul.mubr.f32.gmra.mrb[0].mxu0 %v6863
        %v6973 = vpop.f32.mrb[0].mxu0
        %v6974 = vadd.f32 %v6805, %v6973
        %v6975 = vpop.f32.mrb[0].mxu0
        %6976 = vmatprep.mubr.f32.mxu0 0.0
        %6977 = vmatmul.mubr.f32.gmra.mrb[0].mxu0 %v6865
        %v6978 = vpop.f32.mrb[0].mxu0
        %v6979 = vadd.f32 %v6805, %v6978
        %v6980 = vpop.f32.mrb[0].mxu0
        %6981 = vmatprep.mubr.f32.mxu0 0.0
        %6982 = vmatmul.mubr.f32.gmra.mrb[0].mxu0 %v6867
        %v6983 = vpop.f32.mrb[0].mxu0
        %v6984 = vadd.f32 %v6805, %v6983
        %v6985 = vpop.f32.mrb[0].mxu0
        %6986 = vmatprep.mubr.f32.mxu0 0.0
        %6987 = vmatmul.mubr.f32.gmra.mrb[0].mxu0 %v6869
        %v6988 = vpop.f32.mrb[0].mxu0
        %v6989 = vadd.f32 %v6805, %v6988
        %v6990 = vpop.f32.mrb[0].mxu0
        %6991 = vmatprep.mubr.f32.mxu0 0.0
        %6992 = vmatmul.mubr.f32.gmra.mrb[0].mxu0 %v6871
        %v6993 = vpop.f32.mrb[0].mxu0
        %v6994 = vadd.f32 %v6805, %v6993
        %v6995 = vpop.f32.mrb[0].mxu0
        %6996 = vmatprep.mubr.f32.mxu0 0.0
        %6997 = vmatmul.mubr.f32.gmra.mrb[0].mxu0 %v6873
        %v6998 = vpop.f32.mrb[0].mxu0
        %v6999 = vadd.f32 %v6805, %v6998
        %v7000 = vpop.f32.mrb[0].mxu0
        %7001 = vmatprep.mubr.f32.mxu0 0.0
        %7002 = vmatmul.mubr.f32.gmra.mrb[0].mxu0 %v6875
        %v7003 = vpop.f32.mrb[0].mxu0
        %v7004 = vadd.f32 %v6805, %v7003
        %v7005 = vpop.f32.mrb[0].mxu0
        %7006 = vmatprep.mubr.f32.mxu0 0.0
        %7007 = vmatmul.mubr.f32.gmra.mrb[0].mxu0 %v6877
        %v7008 = vpop.f32.mrb[0].mxu0
        %v7009 = vadd.f32 %v6805, %v7008
        %v7010 = vpop.f32.mrb[0].mxu0
        %7011 = vmatprep.mubr.f32.mxu0 0.0
        %7012 = vmatmul.mubr.f32.gmra.mrb[0].mxu0 %v6879
        %v7013 = vpop.f32.mrb[0].mxu0
        %v7014 = vadd.f32 %v6805, %v7013
        %v7015 = vpop.f32.mrb[0].mxu0
        %7016 = vmatprep.mubr.f32.mxu0 0.0
        %7017 = vmatmul.mubr.f32.gmra.mrb[0].mxu0 %v6881
        %v7018 = vpop.f32.mrb[0].mxu0
        %v7019 = vadd.f32 %v6805, %v7018
        %v7020 = vpop.f32.mrb[0].mxu0
        %7021 = vmatprep.mubr.f32.mxu0 0.0
        %7022 = vmatmul.mubr.f32.gmra.mrb[0].mxu0 %v6883
        %v7023 = vpop.f32.mrb[0].mxu0
        %v7024 = vadd.f32 %v6805, %v7023
        %v7025 = vpop.f32.mrb[0].mxu0
        %7026 = vmatprep.mubr.f32.mxu0 0.0
        %7027 = vmatmul.mubr.f32.gmra.mrb[0].mxu0 %v6885
        %v7028 = vpop.f32.mrb[0].mxu0
        %v7029 = vadd.f32 %v6805, %v7028
        %v7030 = vpop.f32.mrb[0].mxu0
        %7031 = vdwg.mxu0
        %v7032 = vadd.f32 %v6954, 0.0
        %v7033 = vadd.f32 %v6959, 0.0
        %v7034 = vadd.f32 %v6964, 0.0
        %v7035 = vadd.f32 %v6969, 0.0
        %v7036 = vadd.f32 %v6974, 0.0
        %v7037 = vadd.f32 %v6979, 0.0
        %v7038 = vadd.f32 %v6984, 0.0
        %v7039 = vadd.f32 %v6989, 0.0
        %v7040 = vadd.f32 %v6994, 0.0
        %v7041 = vadd.f32 %v6999, 0.0
        %v7042 = vadd.f32 %v7004, 0.0
        %v7043 = vadd.f32 %v7009, 0.0
        %v7044 = vadd.f32 %v7014, 0.0
        %v7045 = vadd.f32 %v7019, 0.0
        %v7046 = vadd.f32 %v7024, 0.0
        %v7047 = vadd.f32 %v7029, 0.0
        %v7048 = vmul.f32 %v3576, %v7032
        %v7049 = vmul.f32 %v3577, %v7033
        %v7050 = vmul.f32 %v3578, %v7034
        %v7051 = vmul.f32 %v3579, %v7035
        %v7052 = vmul.f32 %v3580, %v7036
        %v7053 = vmul.f32 %v3581, %v7037
        %v7054 = vmul.f32 %v3582, %v7038
        %v7055 = vmul.f32 %v3583, %v7039
        %v7056 = vmul.f32 %v3584, %v7040
        %v7057 = vmul.f32 %v3585, %v7041
        %v7058 = vmul.f32 %v3586, %v7042
        %v7059 = vmul.f32 %v3587, %v7043
        %v7060 = vmul.f32 %v3588, %v7044
        %v7061 = vmul.f32 %v3589, %v7045
        %v7062 = vmul.f32 %v3590, %v7046
        %v7063 = vmul.f32 %v3591, %v7047
        %v7065 = vlaneseq
        %v7066 = vshrl.u32 %v7065, 7
        %v7067 = vsub.s32 0, %v7066
        %v7068 = vrot.slane %v1987, %v7067
        %7070 = vbcast.lane.b32.xlu0 %v7068, 256
        %v7071 = vpop.permute.xlu0 %7070
        %s7073 = sor.u32 256, 8
        %7074 = vbcast.lane.b32.xlu0 %v7068, %s7073
        %v7075 = vpop.permute.xlu0 %7074
        %v7076 = vlaneseq
        %v7077 = vshrl.u32 %v7076, 7
        %v7078 = vsub.s32 1, %v7077
        %v7079 = vrot.slane %v1987, %v7078
        %7081 = vbcast.lane.b32.xlu0 %v7079, 256
        %v7082 = vpop.permute.xlu0 %7081
        %s7084 = sor.u32 256, 8
        %7085 = vbcast.lane.b32.xlu0 %v7079, %s7084
        %v7086 = vpop.permute.xlu0 %7085
        %v7087 = vlaneseq
        %v7088 = vshrl.u32 %v7087, 7
        %v7089 = vsub.s32 2, %v7088
        %v7090 = vrot.slane %v1987, %v7089
        %7092 = vbcast.lane.b32.xlu0 %v7090, 256
        %v7093 = vpop.permute.xlu0 %7092
        %s7095 = sor.u32 256, 8
        %7096 = vbcast.lane.b32.xlu0 %v7090, %s7095
        %v7097 = vpop.permute.xlu0 %7096
        %v7098 = vlaneseq
        %v7099 = vshrl.u32 %v7098, 7
        %v7100 = vsub.s32 3, %v7099
        %v7101 = vrot.slane %v1987, %v7100
        %7103 = vbcast.lane.b32.xlu0 %v7101, 256
        %v7104 = vpop.permute.xlu0 %7103
        %s7106 = sor.u32 256, 8
        %7107 = vbcast.lane.b32.xlu0 %v7101, %s7106
        %v7108 = vpop.permute.xlu0 %7107
        %v7109 = vlaneseq
        %v7110 = vshrl.u32 %v7109, 7
        %v7111 = vsub.s32 4, %v7110
        %v7112 = vrot.slane %v1987, %v7111
        %7114 = vbcast.lane.b32.xlu0 %v7112, 256
        %v7115 = vpop.permute.xlu0 %7114
        %s7117 = sor.u32 256, 8
        %7118 = vbcast.lane.b32.xlu0 %v7112, %s7117
        %v7119 = vpop.permute.xlu0 %7118
        %v7120 = vlaneseq
        %v7121 = vshrl.u32 %v7120, 7
        %v7122 = vsub.s32 5, %v7121
        %v7123 = vrot.slane %v1987, %v7122
        %7125 = vbcast.lane.b32.xlu0 %v7123, 256
        %v7126 = vpop.permute.xlu0 %7125
        %s7128 = sor.u32 256, 8
        %7129 = vbcast.lane.b32.xlu0 %v7123, %s7128
        %v7130 = vpop.permute.xlu0 %7129
        %v7131 = vlaneseq
        %v7132 = vshrl.u32 %v7131, 7
        %v7133 = vsub.s32 6, %v7132
        %v7134 = vrot.slane %v1987, %v7133
        %7136 = vbcast.lane.b32.xlu0 %v7134, 256
        %v7137 = vpop.permute.xlu0 %7136
        %s7139 = sor.u32 256, 8
        %7140 = vbcast.lane.b32.xlu0 %v7134, %s7139
        %v7141 = vpop.permute.xlu0 %7140
        %v7142 = vlaneseq
        %v7143 = vshrl.u32 %v7142, 7
        %v7144 = vsub.s32 7, %v7143
        %v7145 = vrot.slane %v1987, %v7144
        %7147 = vbcast.lane.b32.xlu0 %v7145, 256
        %v7148 = vpop.permute.xlu0 %7147
        %s7150 = sor.u32 256, 8
        %7151 = vbcast.lane.b32.xlu0 %v7145, %s7150
        %v7152 = vpop.permute.xlu0 %7151
        %v7169 = vmul.f32 %v7048, %v7071
        %v7170 = vmul.f32 %v7049, %v7075
        %v7171 = vmul.f32 %v7050, %v7082
        %v7172 = vmul.f32 %v7051, %v7086
        %v7173 = vmul.f32 %v7052, %v7093
        %v7174 = vmul.f32 %v7053, %v7097
        %v7175 = vmul.f32 %v7054, %v7104
        %v7176 = vmul.f32 %v7055, %v7108
        %v7177 = vmul.f32 %v7056, %v7115
        %v7178 = vmul.f32 %v7057, %v7119
        %v7179 = vmul.f32 %v7058, %v7126
        %v7180 = vmul.f32 %v7059, %v7130
        %v7181 = vmul.f32 %v7060, %v7137
        %v7182 = vmul.f32 %v7061, %v7141
        %v7183 = vmul.f32 %v7062, %v7148
        %v7184 = vmul.f32 %v7063, %v7152
        %7201 = vset.pattern.permute.xlu0 0
        %7202 = vperm.xlu0 %7201, %v7169
        %v7203 = vpop.permute.xlu0 %7202
        %7204 = vset.pattern.permute.xlu0 0
        %7205 = vperm.xlu0 %7204, %v7170
        %v7206 = vpop.permute.xlu0 %7205
        %7207 = vset.pattern.permute.xlu0 0
        %7208 = vperm.xlu0 %7207, %v7171
        %v7209 = vpop.permute.xlu0 %7208
        %7210 = vset.pattern.permute.xlu0 0
        %7211 = vperm.xlu0 %7210, %v7172
        %v7212 = vpop.permute.xlu0 %7211
        %7213 = vset.pattern.permute.xlu0 0
        %7214 = vperm.xlu0 %7213, %v7173
        %v7215 = vpop.permute.xlu0 %7214
        %7216 = vset.pattern.permute.xlu0 0
        %7217 = vperm.xlu0 %7216, %v7174
        %v7218 = vpop.permute.xlu0 %7217
        %7219 = vset.pattern.permute.xlu0 0
        %7220 = vperm.xlu0 %7219, %v7175
        %v7221 = vpop.permute.xlu0 %7220
        %7222 = vset.pattern.permute.xlu0 0
        %7223 = vperm.xlu0 %7222, %v7176
        %v7224 = vpop.permute.xlu0 %7223
        %7225 = vset.pattern.permute.xlu0 0
        %7226 = vperm.xlu0 %7225, %v7177
        %v7227 = vpop.permute.xlu0 %7226
        %7228 = vset.pattern.permute.xlu0 0
        %7229 = vperm.xlu0 %7228, %v7178
        %v7230 = vpop.permute.xlu0 %7229
        %7231 = vset.pattern.permute.xlu0 0
        %7232 = vperm.xlu0 %7231, %v7179
        %v7233 = vpop.permute.xlu0 %7232
        %7234 = vset.pattern.permute.xlu0 0
        %7235 = vperm.xlu0 %7234, %v7180
        %v7236 = vpop.permute.xlu0 %7235
        %7237 = vset.pattern.permute.xlu0 0
        %7238 = vperm.xlu0 %7237, %v7181
        %v7239 = vpop.permute.xlu0 %7238
        %7240 = vset.pattern.permute.xlu0 0
        %7241 = vperm.xlu0 %7240, %v7182
        %v7242 = vpop.permute.xlu0 %7241
        %7243 = vset.pattern.permute.xlu0 0
        %7244 = vperm.xlu0 %7243, %v7183
        %v7245 = vpop.permute.xlu0 %7244
        %7246 = vset.pattern.permute.xlu0 0
        %7247 = vperm.xlu0 %7246, %v7184
        %v7248 = vpop.permute.xlu0 %7247
        %v7249 = vlaneseq
        %v7250 = vshrl.u32 %v7249, 7
        %v7251 = vsub.s32 %v1311, %v7250
        %v7252 = vrot.slane %v7203, %v7251
        %v7253 = vlaneseq
        %v7254 = vshrl.u32 %v7253, 7
        %v7255 = vsub.s32 %v3210, %v7254
        %v7256 = vrot.slane %v7206, %v7255
        %v7257 = vsel %vm3215, %v7256, %v7252
        %v7258 = vlaneseq
        %v7259 = vshrl.u32 %v7258, 7
        %v7260 = vsub.s32 %v1311, %v7259
        %v7261 = vrot.slane %v7209, %v7260
        %v7262 = vlaneseq
        %v7263 = vshrl.u32 %v7262, 7
        %v7264 = vsub.s32 %v3210, %v7263
        %v7265 = vrot.slane %v7212, %v7264
        %v7266 = vsel %vm3215, %v7265, %v7261
        %v7267 = vlaneseq
        %v7268 = vshrl.u32 %v7267, 7
        %v7269 = vsub.s32 %v1311, %v7268
        %v7270 = vrot.slane %v7215, %v7269
        %v7271 = vlaneseq
        %v7272 = vshrl.u32 %v7271, 7
        %v7273 = vsub.s32 %v3210, %v7272
        %v7274 = vrot.slane %v7218, %v7273
        %v7275 = vsel %vm3215, %v7274, %v7270
        %v7276 = vlaneseq
        %v7277 = vshrl.u32 %v7276, 7
        %v7278 = vsub.s32 %v1311, %v7277
        %v7279 = vrot.slane %v7221, %v7278
        %v7280 = vlaneseq
        %v7281 = vshrl.u32 %v7280, 7
        %v7282 = vsub.s32 %v3210, %v7281
        %v7283 = vrot.slane %v7224, %v7282
        %v7284 = vsel %vm3215, %v7283, %v7279
        %v7285 = vlaneseq
        %v7286 = vshrl.u32 %v7285, 7
        %v7287 = vsub.s32 %v1311, %v7286
        %v7288 = vrot.slane %v7227, %v7287
        %v7289 = vlaneseq
        %v7290 = vshrl.u32 %v7289, 7
        %v7291 = vsub.s32 %v3210, %v7290
        %v7292 = vrot.slane %v7230, %v7291
        %v7293 = vsel %vm3215, %v7292, %v7288
        %v7294 = vlaneseq
        %v7295 = vshrl.u32 %v7294, 7
        %v7296 = vsub.s32 %v1311, %v7295
        %v7297 = vrot.slane %v7233, %v7296
        %v7298 = vlaneseq
        %v7299 = vshrl.u32 %v7298, 7
        %v7300 = vsub.s32 %v3210, %v7299
        %v7301 = vrot.slane %v7236, %v7300
        %v7302 = vsel %vm3215, %v7301, %v7297
        %v7303 = vlaneseq
        %v7304 = vshrl.u32 %v7303, 7
        %v7305 = vsub.s32 %v1311, %v7304
        %v7306 = vrot.slane %v7239, %v7305
        %v7307 = vlaneseq
        %v7308 = vshrl.u32 %v7307, 7
        %v7309 = vsub.s32 %v3210, %v7308
        %v7310 = vrot.slane %v7242, %v7309
        %v7311 = vsel %vm3215, %v7310, %v7306
        %v7312 = vlaneseq
        %v7313 = vshrl.u32 %v7312, 7
        %v7314 = vsub.s32 %v1311, %v7313
        %v7315 = vrot.slane %v7245, %v7314
        %v7316 = vlaneseq
        %v7317 = vshrl.u32 %v7316, 7
        %v7318 = vsub.s32 %v3210, %v7317
        %v7319 = vrot.slane %v7248, %v7318
        %v7320 = vsel %vm3215, %v7319, %v7315
        %v7321 = vsel %vm3280, %v7266, %v7257
        %v7322 = vsel %vm3282, %v7275, %v7321
        %v7323 = vsel %vm3284, %v7284, %v7322
        %v7324 = vsel %vm3286, %v7293, %v7323
        %v7325 = vsel %vm3288, %v7302, %v7324
        %v7326 = vsel %vm3290, %v7311, %v7325
        %v7327 = vsel %vm3292, %v7320, %v7326
        %v7329 = vsel %vm1328, %v7327, 0.0
        %7330 = vadd.xlane.f32.xlu0 %v7329
        %v7331 = vpop.xlane.xlu0 %7330
        %v7332 = vadd.f32 %v1289, %v7331
        %7334 = vrot.lane.b32.xlu0 %v7332, 4
        %v7335 = vpop.permute.xlu0 %7334
        %vm7337 = vcmask 39968
        %7338 = vst.msk [vmem:[%s1238] sm:$0xff] %vm7337, %v7335
        %v7340 = vlaneseq
        %v7341 = vshrl.u32 %v7340, 7
        %v7342 = vsub.s32 0, %v7341
        %v7343 = vrot.slane %v1996, %v7342
        %7345 = vbcast.lane.b32.xlu0 %v7343, 256
        %v7346 = vpop.permute.xlu0 %7345
        %s7348 = sor.u32 256, 8
        %7349 = vbcast.lane.b32.xlu0 %v7343, %s7348
        %v7350 = vpop.permute.xlu0 %7349
        %v7351 = vlaneseq
        %v7352 = vshrl.u32 %v7351, 7
        %v7353 = vsub.s32 1, %v7352
        %v7354 = vrot.slane %v1996, %v7353
        %7356 = vbcast.lane.b32.xlu0 %v7354, 256
        %v7357 = vpop.permute.xlu0 %7356
        %s7359 = sor.u32 256, 8
        %7360 = vbcast.lane.b32.xlu0 %v7354, %s7359
        %v7361 = vpop.permute.xlu0 %7360
        %v7362 = vlaneseq
        %v7363 = vshrl.u32 %v7362, 7
        %v7364 = vsub.s32 2, %v7363
        %v7365 = vrot.slane %v1996, %v7364
        %7367 = vbcast.lane.b32.xlu0 %v7365, 256
        %v7368 = vpop.permute.xlu0 %7367
        %s7370 = sor.u32 256, 8
        %7371 = vbcast.lane.b32.xlu0 %v7365, %s7370
        %v7372 = vpop.permute.xlu0 %7371
        %v7373 = vlaneseq
        %v7374 = vshrl.u32 %v7373, 7
        %v7375 = vsub.s32 3, %v7374
        %v7376 = vrot.slane %v1996, %v7375
        %7378 = vbcast.lane.b32.xlu0 %v7376, 256
        %v7379 = vpop.permute.xlu0 %7378
        %s7381 = sor.u32 256, 8
        %7382 = vbcast.lane.b32.xlu0 %v7376, %s7381
        %v7383 = vpop.permute.xlu0 %7382
        %v7384 = vlaneseq
        %v7385 = vshrl.u32 %v7384, 7
        %v7386 = vsub.s32 4, %v7385
        %v7387 = vrot.slane %v1996, %v7386
        %7389 = vbcast.lane.b32.xlu0 %v7387, 256
        %v7390 = vpop.permute.xlu0 %7389
        %s7392 = sor.u32 256, 8
        %7393 = vbcast.lane.b32.xlu0 %v7387, %s7392
        %v7394 = vpop.permute.xlu0 %7393
        %v7395 = vlaneseq
        %v7396 = vshrl.u32 %v7395, 7
        %v7397 = vsub.s32 5, %v7396
        %v7398 = vrot.slane %v1996, %v7397
        %7400 = vbcast.lane.b32.xlu0 %v7398, 256
        %v7401 = vpop.permute.xlu0 %7400
        %s7403 = sor.u32 256, 8
        %7404 = vbcast.lane.b32.xlu0 %v7398, %s7403
        %v7405 = vpop.permute.xlu0 %7404
        %v7406 = vlaneseq
        %v7407 = vshrl.u32 %v7406, 7
        %v7408 = vsub.s32 6, %v7407
        %v7409 = vrot.slane %v1996, %v7408
        %7411 = vbcast.lane.b32.xlu0 %v7409, 256
        %v7412 = vpop.permute.xlu0 %7411
        %s7414 = sor.u32 256, 8
        %7415 = vbcast.lane.b32.xlu0 %v7409, %s7414
        %v7416 = vpop.permute.xlu0 %7415
        %v7417 = vlaneseq
        %v7418 = vshrl.u32 %v7417, 7
        %v7419 = vsub.s32 7, %v7418
        %v7420 = vrot.slane %v1996, %v7419
        %7422 = vbcast.lane.b32.xlu0 %v7420, 256
        %v7423 = vpop.permute.xlu0 %7422
        %s7425 = sor.u32 256, 8
        %7426 = vbcast.lane.b32.xlu0 %v7420, %s7425
        %v7427 = vpop.permute.xlu0 %7426
        %v7444 = vmul.f32 %v7048, %v7346
        %v7445 = vmul.f32 %v7049, %v7350
        %v7446 = vmul.f32 %v7050, %v7357
        %v7447 = vmul.f32 %v7051, %v7361
        %v7448 = vmul.f32 %v7052, %v7368
        %v7449 = vmul.f32 %v7053, %v7372
        %v7450 = vmul.f32 %v7054, %v7379
        %v7451 = vmul.f32 %v7055, %v7383
        %v7452 = vmul.f32 %v7056, %v7390
        %v7453 = vmul.f32 %v7057, %v7394
        %v7454 = vmul.f32 %v7058, %v7401
        %v7455 = vmul.f32 %v7059, %v7405
        %v7456 = vmul.f32 %v7060, %v7412
        %v7457 = vmul.f32 %v7061, %v7416
        %v7458 = vmul.f32 %v7062, %v7423
        %v7459 = vmul.f32 %v7063, %v7427
        %7476 = vset.pattern.permute.xlu0 0
        %7477 = vperm.xlu0 %7476, %v7444
        %v7478 = vpop.permute.xlu0 %7477
        %7479 = vset.pattern.permute.xlu0 0
        %7480 = vperm.xlu0 %7479, %v7445
        %v7481 = vpop.permute.xlu0 %7480
        %7482 = vset.pattern.permute.xlu0 0
        %7483 = vperm.xlu0 %7482, %v7446
        %v7484 = vpop.permute.xlu0 %7483
        %7485 = vset.pattern.permute.xlu0 0
        %7486 = vperm.xlu0 %7485, %v7447
        %v7487 = vpop.permute.xlu0 %7486
        %7488 = vset.pattern.permute.xlu0 0
        %7489 = vperm.xlu0 %7488, %v7448
        %v7490 = vpop.permute.xlu0 %7489
        %7491 = vset.pattern.permute.xlu0 0
        %7492 = vperm.xlu0 %7491, %v7449
        %v7493 = vpop.permute.xlu0 %7492
        %7494 = vset.pattern.permute.xlu0 0
        %7495 = vperm.xlu0 %7494, %v7450
        %v7496 = vpop.permute.xlu0 %7495
        %7497 = vset.pattern.permute.xlu0 0
        %7498 = vperm.xlu0 %7497, %v7451
        %v7499 = vpop.permute.xlu0 %7498
        %7500 = vset.pattern.permute.xlu0 0
        %7501 = vperm.xlu0 %7500, %v7452
        %v7502 = vpop.permute.xlu0 %7501
        %7503 = vset.pattern.permute.xlu0 0
        %7504 = vperm.xlu0 %7503, %v7453
        %v7505 = vpop.permute.xlu0 %7504
        %7506 = vset.pattern.permute.xlu0 0
        %7507 = vperm.xlu0 %7506, %v7454
        %v7508 = vpop.permute.xlu0 %7507
        %7509 = vset.pattern.permute.xlu0 0
        %7510 = vperm.xlu0 %7509, %v7455
        %v7511 = vpop.permute.xlu0 %7510
        %7512 = vset.pattern.permute.xlu0 0
        %7513 = vperm.xlu0 %7512, %v7456
        %v7514 = vpop.permute.xlu0 %7513
        %7515 = vset.pattern.permute.xlu0 0
        %7516 = vperm.xlu0 %7515, %v7457
        %v7517 = vpop.permute.xlu0 %7516
        %7518 = vset.pattern.permute.xlu0 0
        %7519 = vperm.xlu0 %7518, %v7458
        %v7520 = vpop.permute.xlu0 %7519
        %7521 = vset.pattern.permute.xlu0 0
        %7522 = vperm.xlu0 %7521, %v7459
        %v7523 = vpop.permute.xlu0 %7522
        %v7524 = vlaneseq
        %v7525 = vshrl.u32 %v7524, 7
        %v7526 = vsub.s32 %v1311, %v7525
        %v7527 = vrot.slane %v7478, %v7526
        %v7528 = vlaneseq
        %v7529 = vshrl.u32 %v7528, 7
        %v7530 = vsub.s32 %v3210, %v7529
        %v7531 = vrot.slane %v7481, %v7530
        %v7532 = vsel %vm3215, %v7531, %v7527
        %v7533 = vlaneseq
        %v7534 = vshrl.u32 %v7533, 7
        %v7535 = vsub.s32 %v1311, %v7534
        %v7536 = vrot.slane %v7484, %v7535
        %v7537 = vlaneseq
        %v7538 = vshrl.u32 %v7537, 7
        %v7539 = vsub.s32 %v3210, %v7538
        %v7540 = vrot.slane %v7487, %v7539
        %v7541 = vsel %vm3215, %v7540, %v7536
        %v7542 = vlaneseq
        %v7543 = vshrl.u32 %v7542, 7
        %v7544 = vsub.s32 %v1311, %v7543
        %v7545 = vrot.slane %v7490, %v7544
        %v7546 = vlaneseq
        %v7547 = vshrl.u32 %v7546, 7
        %v7548 = vsub.s32 %v3210, %v7547
        %v7549 = vrot.slane %v7493, %v7548
        %v7550 = vsel %vm3215, %v7549, %v7545
        %v7551 = vlaneseq
        %v7552 = vshrl.u32 %v7551, 7
        %v7553 = vsub.s32 %v1311, %v7552
        %v7554 = vrot.slane %v7496, %v7553
        %v7555 = vlaneseq
        %v7556 = vshrl.u32 %v7555, 7
        %v7557 = vsub.s32 %v3210, %v7556
        %v7558 = vrot.slane %v7499, %v7557
        %v7559 = vsel %vm3215, %v7558, %v7554
        %v7560 = vlaneseq
        %v7561 = vshrl.u32 %v7560, 7
        %v7562 = vsub.s32 %v1311, %v7561
        %v7563 = vrot.slane %v7502, %v7562
        %v7564 = vlaneseq
        %v7565 = vshrl.u32 %v7564, 7
        %v7566 = vsub.s32 %v3210, %v7565
        %v7567 = vrot.slane %v7505, %v7566
        %v7568 = vsel %vm3215, %v7567, %v7563
        %v7569 = vlaneseq
        %v7570 = vshrl.u32 %v7569, 7
        %v7571 = vsub.s32 %v1311, %v7570
        %v7572 = vrot.slane %v7508, %v7571
        %v7573 = vlaneseq
        %v7574 = vshrl.u32 %v7573, 7
        %v7575 = vsub.s32 %v3210, %v7574
        %v7576 = vrot.slane %v7511, %v7575
        %v7577 = vsel %vm3215, %v7576, %v7572
        %v7578 = vlaneseq
        %v7579 = vshrl.u32 %v7578, 7
        %v7580 = vsub.s32 %v1311, %v7579
        %v7581 = vrot.slane %v7514, %v7580
        %v7582 = vlaneseq
        %v7583 = vshrl.u32 %v7582, 7
        %v7584 = vsub.s32 %v3210, %v7583
        %v7585 = vrot.slane %v7517, %v7584
        %v7586 = vsel %vm3215, %v7585, %v7581
        %v7587 = vlaneseq
        %v7588 = vshrl.u32 %v7587, 7
        %v7589 = vsub.s32 %v1311, %v7588
        %v7590 = vrot.slane %v7520, %v7589
        %v7591 = vlaneseq
        %v7592 = vshrl.u32 %v7591, 7
        %v7593 = vsub.s32 %v3210, %v7592
        %v7594 = vrot.slane %v7523, %v7593
        %v7595 = vsel %vm3215, %v7594, %v7590
        %v7596 = vsel %vm3280, %v7541, %v7532
        %v7597 = vsel %vm3282, %v7550, %v7596
        %v7598 = vsel %vm3284, %v7559, %v7597
        %v7599 = vsel %vm3286, %v7568, %v7598
        %v7600 = vsel %vm3288, %v7577, %v7599
        %v7601 = vsel %vm3290, %v7586, %v7600
        %v7602 = vsel %vm3292, %v7595, %v7601
        %v7604 = vsel %vm1328, %v7602, 0.0
        %7605 = vadd.xlane.f32.xlu0 %v7604
        %v7606 = vpop.xlane.xlu0 %7605
        %v7607 = vadd.f32 %v1289, %v7606
        %7609 = vrot.lane.b32.xlu0 %v7607, 4
        %v7610 = vpop.permute.xlu0 %7609
        %vm7612 = vcmask 48168
        %7613 = vst.msk [vmem:[%s1238] sm:$0xff] %vm7612, %v7610
        %v7615 = vlaneseq
        %v7616 = vshrl.u32 %v7615, 7
        %v7617 = vsub.s32 0, %v7616
        %v7618 = vrot.slane %v2005, %v7617
        %7620 = vbcast.lane.b32.xlu0 %v7618, 256
        %v7621 = vpop.permute.xlu0 %7620
        %s7623 = sor.u32 256, 8
        %7624 = vbcast.lane.b32.xlu0 %v7618, %s7623
        %v7625 = vpop.permute.xlu0 %7624
        %v7626 = vlaneseq
        %v7627 = vshrl.u32 %v7626, 7
        %v7628 = vsub.s32 1, %v7627
        %v7629 = vrot.slane %v2005, %v7628
        %7631 = vbcast.lane.b32.xlu0 %v7629, 256
        %v7632 = vpop.permute.xlu0 %7631
        %s7634 = sor.u32 256, 8
        %7635 = vbcast.lane.b32.xlu0 %v7629, %s7634
        %v7636 = vpop.permute.xlu0 %7635
        %v7637 = vlaneseq
        %v7638 = vshrl.u32 %v7637, 7
        %v7639 = vsub.s32 2, %v7638
        %v7640 = vrot.slane %v2005, %v7639
        %7642 = vbcast.lane.b32.xlu0 %v7640, 256
        %v7643 = vpop.permute.xlu0 %7642
        %s7645 = sor.u32 256, 8
        %7646 = vbcast.lane.b32.xlu0 %v7640, %s7645
        %v7647 = vpop.permute.xlu0 %7646
        %v7648 = vlaneseq
        %v7649 = vshrl.u32 %v7648, 7
        %v7650 = vsub.s32 3, %v7649
        %v7651 = vrot.slane %v2005, %v7650
        %7653 = vbcast.lane.b32.xlu0 %v7651, 256
        %v7654 = vpop.permute.xlu0 %7653
        %s7656 = sor.u32 256, 8
        %7657 = vbcast.lane.b32.xlu0 %v7651, %s7656
        %v7658 = vpop.permute.xlu0 %7657
        %v7659 = vlaneseq
        %v7660 = vshrl.u32 %v7659, 7
        %v7661 = vsub.s32 4, %v7660
        %v7662 = vrot.slane %v2005, %v7661
        %7664 = vbcast.lane.b32.xlu0 %v7662, 256
        %v7665 = vpop.permute.xlu0 %7664
        %s7667 = sor.u32 256, 8
        %7668 = vbcast.lane.b32.xlu0 %v7662, %s7667
        %v7669 = vpop.permute.xlu0 %7668
        %v7670 = vlaneseq
        %v7671 = vshrl.u32 %v7670, 7
        %v7672 = vsub.s32 5, %v7671
        %v7673 = vrot.slane %v2005, %v7672
        %7675 = vbcast.lane.b32.xlu0 %v7673, 256
        %v7676 = vpop.permute.xlu0 %7675
        %s7678 = sor.u32 256, 8
        %7679 = vbcast.lane.b32.xlu0 %v7673, %s7678
        %v7680 = vpop.permute.xlu0 %7679
        %v7681 = vlaneseq
        %v7682 = vshrl.u32 %v7681, 7
        %v7683 = vsub.s32 6, %v7682
        %v7684 = vrot.slane %v2005, %v7683
        %7686 = vbcast.lane.b32.xlu0 %v7684, 256
        %v7687 = vpop.permute.xlu0 %7686
        %s7689 = sor.u32 256, 8
        %7690 = vbcast.lane.b32.xlu0 %v7684, %s7689
        %v7691 = vpop.permute.xlu0 %7690
        %v7692 = vlaneseq
        %v7693 = vshrl.u32 %v7692, 7
        %v7694 = vsub.s32 7, %v7693
        %v7695 = vrot.slane %v2005, %v7694
        %7697 = vbcast.lane.b32.xlu0 %v7695, 256
        %v7698 = vpop.permute.xlu0 %7697
        %s7700 = sor.u32 256, 8
        %7701 = vbcast.lane.b32.xlu0 %v7695, %s7700
        %v7702 = vpop.permute.xlu0 %7701
        %v7719 = vmul.f32 %v7048, %v7621
        %v7720 = vmul.f32 %v7049, %v7625
        %v7721 = vmul.f32 %v7050, %v7632
        %v7722 = vmul.f32 %v7051, %v7636
        %v7723 = vmul.f32 %v7052, %v7643
        %v7724 = vmul.f32 %v7053, %v7647
        %v7725 = vmul.f32 %v7054, %v7654
        %v7726 = vmul.f32 %v7055, %v7658
        %v7727 = vmul.f32 %v7056, %v7665
        %v7728 = vmul.f32 %v7057, %v7669
        %v7729 = vmul.f32 %v7058, %v7676
        %v7730 = vmul.f32 %v7059, %v7680
        %v7731 = vmul.f32 %v7060, %v7687
        %v7732 = vmul.f32 %v7061, %v7691
        %v7733 = vmul.f32 %v7062, %v7698
        %v7734 = vmul.f32 %v7063, %v7702
        %7751 = vset.pattern.permute.xlu0 0
        %7752 = vperm.xlu0 %7751, %v7719
        %v7753 = vpop.permute.xlu0 %7752
        %7754 = vset.pattern.permute.xlu0 0
        %7755 = vperm.xlu0 %7754, %v7720
        %v7756 = vpop.permute.xlu0 %7755
        %7757 = vset.pattern.permute.xlu0 0
        %7758 = vperm.xlu0 %7757, %v7721
        %v7759 = vpop.permute.xlu0 %7758
        %7760 = vset.pattern.permute.xlu0 0
        %7761 = vperm.xlu0 %7760, %v7722
        %v7762 = vpop.permute.xlu0 %7761
        %7763 = vset.pattern.permute.xlu0 0
        %7764 = vperm.xlu0 %7763, %v7723
        %v7765 = vpop.permute.xlu0 %7764
        %7766 = vset.pattern.permute.xlu0 0
        %7767 = vperm.xlu0 %7766, %v7724
        %v7768 = vpop.permute.xlu0 %7767
        %7769 = vset.pattern.permute.xlu0 0
        %7770 = vperm.xlu0 %7769, %v7725
        %v7771 = vpop.permute.xlu0 %7770
        %7772 = vset.pattern.permute.xlu0 0
        %7773 = vperm.xlu0 %7772, %v7726
        %v7774 = vpop.permute.xlu0 %7773
        %7775 = vset.pattern.permute.xlu0 0
        %7776 = vperm.xlu0 %7775, %v7727
        %v7777 = vpop.permute.xlu0 %7776
        %7778 = vset.pattern.permute.xlu0 0
        %7779 = vperm.xlu0 %7778, %v7728
        %v7780 = vpop.permute.xlu0 %7779
        %7781 = vset.pattern.permute.xlu0 0
        %7782 = vperm.xlu0 %7781, %v7729
        %v7783 = vpop.permute.xlu0 %7782
        %7784 = vset.pattern.permute.xlu0 0
        %7785 = vperm.xlu0 %7784, %v7730
        %v7786 = vpop.permute.xlu0 %7785
        %7787 = vset.pattern.permute.xlu0 0
        %7788 = vperm.xlu0 %7787, %v7731
        %v7789 = vpop.permute.xlu0 %7788
        %7790 = vset.pattern.permute.xlu0 0
        %7791 = vperm.xlu0 %7790, %v7732
        %v7792 = vpop.permute.xlu0 %7791
        %7793 = vset.pattern.permute.xlu0 0
        %7794 = vperm.xlu0 %7793, %v7733
        %v7795 = vpop.permute.xlu0 %7794
        %7796 = vset.pattern.permute.xlu0 0
        %7797 = vperm.xlu0 %7796, %v7734
        %v7798 = vpop.permute.xlu0 %7797
        %v7799 = vlaneseq
        %v7800 = vshrl.u32 %v7799, 7
        %v7801 = vsub.s32 %v1311, %v7800
        %v7802 = vrot.slane %v7753, %v7801
        %v7803 = vlaneseq
        %v7804 = vshrl.u32 %v7803, 7
        %v7805 = vsub.s32 %v3210, %v7804
        %v7806 = vrot.slane %v7756, %v7805
        %v7807 = vsel %vm3215, %v7806, %v7802
        %v7808 = vlaneseq
        %v7809 = vshrl.u32 %v7808, 7
        %v7810 = vsub.s32 %v1311, %v7809
        %v7811 = vrot.slane %v7759, %v7810
        %v7812 = vlaneseq
        %v7813 = vshrl.u32 %v7812, 7
        %v7814 = vsub.s32 %v3210, %v7813
        %v7815 = vrot.slane %v7762, %v7814
        %v7816 = vsel %vm3215, %v7815, %v7811
        %v7817 = vlaneseq
        %v7818 = vshrl.u32 %v7817, 7
        %v7819 = vsub.s32 %v1311, %v7818
        %v7820 = vrot.slane %v7765, %v7819
        %v7821 = vlaneseq
        %v7822 = vshrl.u32 %v7821, 7
        %v7823 = vsub.s32 %v3210, %v7822
        %v7824 = vrot.slane %v7768, %v7823
        %v7825 = vsel %vm3215, %v7824, %v7820
        %v7826 = vlaneseq
        %v7827 = vshrl.u32 %v7826, 7
        %v7828 = vsub.s32 %v1311, %v7827
        %v7829 = vrot.slane %v7771, %v7828
        %v7830 = vlaneseq
        %v7831 = vshrl.u32 %v7830, 7
        %v7832 = vsub.s32 %v3210, %v7831
        %v7833 = vrot.slane %v7774, %v7832
        %v7834 = vsel %vm3215, %v7833, %v7829
        %v7835 = vlaneseq
        %v7836 = vshrl.u32 %v7835, 7
        %v7837 = vsub.s32 %v1311, %v7836
        %v7838 = vrot.slane %v7777, %v7837
        %v7839 = vlaneseq
        %v7840 = vshrl.u32 %v7839, 7
        %v7841 = vsub.s32 %v3210, %v7840
        %v7842 = vrot.slane %v7780, %v7841
        %v7843 = vsel %vm3215, %v7842, %v7838
        %v7844 = vlaneseq
        %v7845 = vshrl.u32 %v7844, 7
        %v7846 = vsub.s32 %v1311, %v7845
        %v7847 = vrot.slane %v7783, %v7846
        %v7848 = vlaneseq
        %v7849 = vshrl.u32 %v7848, 7
        %v7850 = vsub.s32 %v3210, %v7849
        %v7851 = vrot.slane %v7786, %v7850
        %v7852 = vsel %vm3215, %v7851, %v7847
        %v7853 = vlaneseq
        %v7854 = vshrl.u32 %v7853, 7
        %v7855 = vsub.s32 %v1311, %v7854
        %v7856 = vrot.slane %v7789, %v7855
        %v7857 = vlaneseq
        %v7858 = vshrl.u32 %v7857, 7
        %v7859 = vsub.s32 %v3210, %v7858
        %v7860 = vrot.slane %v7792, %v7859
        %v7861 = vsel %vm3215, %v7860, %v7856
        %v7862 = vlaneseq
        %v7863 = vshrl.u32 %v7862, 7
        %v7864 = vsub.s32 %v1311, %v7863
        %v7865 = vrot.slane %v7795, %v7864
        %v7866 = vlaneseq
        %v7867 = vshrl.u32 %v7866, 7
        %v7868 = vsub.s32 %v3210, %v7867
        %v7869 = vrot.slane %v7798, %v7868
        %v7870 = vsel %vm3215, %v7869, %v7865
        %v7871 = vsel %vm3280, %v7816, %v7807
        %v7872 = vsel %vm3282, %v7825, %v7871
        %v7873 = vsel %vm3284, %v7834, %v7872
        %v7874 = vsel %vm3286, %v7843, %v7873
        %v7875 = vsel %vm3288, %v7852, %v7874
        %v7876 = vsel %vm3290, %v7861, %v7875
        %v7877 = vsel %vm3292, %v7870, %v7876
        %v7879 = vsel %vm1328, %v7877, 0.0
        %7880 = vadd.xlane.f32.xlu0 %v7879
        %v7881 = vpop.xlane.xlu0 %7880
        %v7882 = vadd.f32 %v1289, %v7881
        %7884 = vrot.lane.b32.xlu0 %v7882, 4
        %v7885 = vpop.permute.xlu0 %7884
        %vm7887 = vcmask 56368
        %7888 = vst.msk [vmem:[%s1238] sm:$0xff] %vm7887, %v7885
        %v7889 = vld [vmem:[%s53] sm:$0xff]
        %v7890 = vld [vmem:[%s53 + $0x8] sm:$0x3f]
        %vm7891 = vcmask 113664
        %v7893 = vsel %vm7891, %v1292, 0
        %vm7895 = vcmask 1045504
        %v7897 = vsel %vm7895, %v7890, 0
        %7899 = vmatprep.subr.mxu0 0.0
        %7900 = vmatpush1.msra.mxu0 %v7889
        %7901 = vmatprep.subr.mxu0 0.0
        %7902 = vmatpush1.msra.mxu0 %v7897
        %7903 = vmatprep.subr.mxu0 0.0
        %7904 = vmatpush1.msra.mxu0 0.0
        %7905 = vmatprep.subr.mxu0 0.0
        %7906 = vmatpush1.msra.mxu0 0.0
        %7907 = vmatprep.subr.mxu0 0.0
        %7908 = vmatpush1.msra.mxu0 0.0
        %7909 = vmatprep.subr.mxu0 0.0
        %7910 = vmatpush1.msra.mxu0 0.0
        %7911 = vmatprep.subr.mxu0 0.0
        %7912 = vmatpush1.msra.mxu0 0.0
        %7913 = vmatprep.subr.mxu0 0.0
        %7914 = vmatpush1.msra.mxu0 0.0
        %7915 = vmatprep.subr.mxu0 0.0
        %7916 = vmatpush1.msra.mxu0 0.0
        %7917 = vmatprep.subr.mxu0 0.0
        %7918 = vmatpush1.msra.mxu0 0.0
        %7919 = vmatprep.subr.mxu0 0.0
        %7920 = vmatpush1.msra.mxu0 0.0
        %7921 = vmatprep.subr.mxu0 0.0
        %7922 = vmatpush1.msra.mxu0 0.0
        %7923 = vmatprep.subr.mxu0 0.0
        %7924 = vmatpush1.msra.mxu0 0.0
        %7925 = vmatprep.subr.mxu0 0.0
        %7926 = vmatpush1.msra.mxu0 0.0
        %7927 = vmatprep.subr.mxu0 0.0
        %7928 = vmatpush1.msra.mxu0 0.0
        %7929 = vmatprep.subr.mxu0 0.0
        %7930 = vmatpush1.msra.mxu0 0.0
        %7931 = vmatprep.subr.mxu0 0.0
        %7932 = vmatpush1.msra.mxu0 0.0
        %7933 = vmatprep.subr.mxu0 0.0
        %7934 = vmatpush1.msra.mxu0 0.0
        %7935 = vmatprep.subr.mxu0 0.0
        %7936 = vmatpush1.msra.mxu0 0.0
        %7937 = vmatprep.subr.mxu0 0.0
        %7938 = vmatpush1.msra.mxu0 0.0
        %7939 = vmatprep.subr.mxu0 0.0
        %7940 = vmatpush1.msra.mxu0 0.0
        %7941 = vmatprep.subr.mxu0 0.0
        %7942 = vmatpush1.msra.mxu0 0.0
        %7943 = vmatprep.subr.mxu0 0.0
        %7944 = vmatpush1.msra.mxu0 0.0
        %7945 = vmatprep.subr.mxu0 0.0
        %7946 = vmatpush1.msra.mxu0 0.0
        %7947 = vmatprep.subr.mxu0 0.0
        %7948 = vmatpush1.msra.mxu0 0.0
        %7949 = vmatprep.subr.mxu0 0.0
        %7950 = vmatpush1.msra.mxu0 0.0
        %7951 = vmatprep.subr.mxu0 0.0
        %7952 = vmatpush1.msra.mxu0 0.0
        %7953 = vmatprep.subr.mxu0 0.0
        %7954 = vmatpush1.msra.mxu0 0.0
        %7955 = vmatprep.subr.mxu0 0.0
        %7956 = vmatpush1.msra.mxu0 0.0
        %7957 = vmatprep.subr.mxu0 0.0
        %7958 = vmatpush1.msra.mxu0 0.0
        %7959 = vmatprep.subr.mxu0 0.0
        %7960 = vmatpush1.msra.mxu0 0.0
        %7961 = vmatprep.subr.mxu0 0.0
        %7962 = vmatpush1.msra.mxu0 0.0
        %7963 = vmatprep.mubr.f32.mxu0 0.0
        %7964 = vmatmul.mubr.f32.gmra.mrb[0].mxu0 %v7893
        %v7965 = vpop.f32.mrb[0].mxu0
        %v7966 = vadd.f32 0.0, %v7965
        %v7967 = vpop.f32.mrb[0].mxu0
        %7968 = vdwg.mxu0
        %v7970 = vcombine.high %v7966, %v7966
        %v7972 = vunpack.c.l.s4 1966171168
        %v7973 = vunpack.c.0.s8 %v7972
        %v7974 = vlaneseq
        %v7975 = vshrl.u32 %v7974, 7
        %v7976 = vsub.s32 %v7973, %v7975
        %v7977 = vrot.slane %v7966, %v7976
        %v7979 = vunpack.c.l.s4 1966171168
        %v7980 = vunpack.c.0.s8 %v7979
        %v7981 = vlaneseq
        %v7982 = vshrl.u32 %v7981, 7
        %v7983 = vsub.s32 %v7980, %v7982
        %v7984 = vrot.slane %v7970, %v7983
        %v7985 = vcombine.high %v7977, %v7977
        %v7986 = vcombine.high %v7984, %v7984
        %v7988 = vunpack.c.l.s4 1966171168
        %v7989 = vunpack.c.0.s8 %v7988
        %v7990 = vlaneseq
        %v7991 = vshrl.u32 %v7990, 7
        %v7992 = vsub.s32 %v7989, %v7991
        %v7993 = vrot.slane %v7977, %v7992
        %v7995 = vunpack.c.l.s4 1966171168
        %v7996 = vunpack.c.0.s8 %v7995
        %v7997 = vlaneseq
        %v7998 = vshrl.u32 %v7997, 7
        %v7999 = vsub.s32 %v7996, %v7998
        %v8000 = vrot.slane %v7984, %v7999
        %v8002 = vunpack.c.l.s4 1966171168
        %v8003 = vunpack.c.0.s8 %v8002
        %v8004 = vlaneseq
        %v8005 = vshrl.u32 %v8004, 7
        %v8006 = vsub.s32 %v8003, %v8005
        %v8007 = vrot.slane %v7985, %v8006
        %v8009 = vunpack.c.l.s4 1966171168
        %v8010 = vunpack.c.0.s8 %v8009
        %v8011 = vlaneseq
        %v8012 = vshrl.u32 %v8011, 7
        %v8013 = vsub.s32 %v8010, %v8012
        %v8014 = vrot.slane %v7986, %v8013
        %v8015 = vcombine.high %v7993, %v7993
        %v8016 = vcombine.high %v8000, %v8000
        %v8017 = vcombine.high %v8007, %v8007
        %v8018 = vcombine.high %v8014, %v8014
        %v8019 = vlaneseq
        %v8020 = vshrl.u32 %v8019, 7
        %v8021 = vsub.s32 0, %v8020
        %v8022 = vrot.slane %v7993, %v8021
        %v8023 = vlaneseq
        %v8024 = vshrl.u32 %v8023, 7
        %v8025 = vsub.s32 0, %v8024
        %v8026 = vrot.slane %v8007, %v8025
        %v8027 = vlaneseq
        %v8028 = vshrl.u32 %v8027, 7
        %v8029 = vsub.s32 0, %v8028
        %v8030 = vrot.slane %v8015, %v8029
        %v8031 = vlaneseq
        %v8032 = vshrl.u32 %v8031, 7
        %v8033 = vsub.s32 0, %v8032
        %v8034 = vrot.slane %v8017, %v8033
        %v8035 = vlaneseq
        %v8036 = vshrl.u32 %v8035, 7
        %v8037 = vsub.s32 0, %v8036
        %v8038 = vrot.slane %v8000, %v8037
        %v8039 = vlaneseq
        %v8040 = vshrl.u32 %v8039, 7
        %v8041 = vsub.s32 0, %v8040
        %v8042 = vrot.slane %v8014, %v8041
        %v8043 = vlaneseq
        %v8044 = vshrl.u32 %v8043, 7
        %v8045 = vsub.s32 0, %v8044
        %v8046 = vrot.slane %v8016, %v8045
        %v8047 = vlaneseq
        %v8048 = vshrl.u32 %v8047, 7
        %v8049 = vsub.s32 0, %v8048
        %v8050 = vrot.slane %v8018, %v8049
        %v8059 = vadd.f32 %v2278, %v8022
        %v8060 = vadd.f32 %v2284, %v8022
        %v8061 = vadd.f32 %v2290, %v8026
        %v8062 = vadd.f32 %v2296, %v8026
        %v8063 = vadd.f32 %v2302, %v8030
        %v8064 = vadd.f32 %v2308, %v8030
        %v8065 = vadd.f32 %v2314, %v8034
        %v8066 = vadd.f32 %v2320, %v8034
        %v8067 = vadd.f32 %v2326, %v8038
        %v8068 = vadd.f32 %v2332, %v8038
        %v8069 = vadd.f32 %v2338, %v8042
        %v8070 = vadd.f32 %v2344, %v8042
        %v8071 = vadd.f32 %v2350, %v8046
        %v8072 = vadd.f32 %v2356, %v8046
        %v8073 = vadd.f32 %v2362, %v8050
        %v8074 = vadd.f32 %v2368, %v8050
        %v8075 = vmax.f32 %v8059, 0.0
        %v8076 = vmax.f32 %v8060, 0.0
        %v8077 = vmax.f32 %v8061, 0.0
        %v8078 = vmax.f32 %v8062, 0.0
        %v8079 = vmax.f32 %v8063, 0.0
        %v8080 = vmax.f32 %v8064, 0.0
        %v8081 = vmax.f32 %v8065, 0.0
        %v8082 = vmax.f32 %v8066, 0.0
        %v8083 = vmax.f32 %v8067, 0.0
        %v8084 = vmax.f32 %v8068, 0.0
        %v8085 = vmax.f32 %v8069, 0.0
        %v8086 = vmax.f32 %v8070, 0.0
        %v8087 = vmax.f32 %v8071, 0.0
        %v8088 = vmax.f32 %v8072, 0.0
        %v8089 = vmax.f32 %v8073, 0.0
        %v8090 = vmax.f32 %v8074, 0.0
        %v8091 = vld [vmem:[%s55] sm:$0xff]
        %v8092 = vld [vmem:[%s55 + $0x8] sm:$0xff]
        %v8093 = vld [vmem:[%s55 + $0x10] sm:$0xff]
        %v8094 = vld [vmem:[%s55 + $0x18] sm:$0xff]
        %v8095 = vld [vmem:[%s55 + $0x20] sm:$0xff]
        %v8096 = vld [vmem:[%s55 + $0x28] sm:$0xff]
        %v8097 = vld [vmem:[%s55 + $0x30] sm:$0xff]
        %v8098 = vld [vmem:[%s55 + $0x38] sm:$0xff]
        %v8099 = vld [vmem:[%s57] sm:$0x1]
        %v8101 = vlaneseq
        %v8102 = vshrl.u32 %v8101, 7
        %v8103 = vsub.s32 0, %v8102
        %v8104 = vrot.slane %v8099, %v8103
        %v8107 = vsel %vm1784, %v8075, 0
        %v8110 = vsel %vm1784, %v8076, 0
        %v8113 = vsel %vm1784, %v8077, 0
        %v8116 = vsel %vm1784, %v8078, 0
        %v8119 = vsel %vm1784, %v8079, 0
        %v8122 = vsel %vm1784, %v8080, 0
        %v8125 = vsel %vm1784, %v8081, 0
        %v8128 = vsel %vm1784, %v8082, 0
        %v8131 = vsel %vm1784, %v8083, 0
        %v8134 = vsel %vm1784, %v8084, 0
        %v8137 = vsel %vm1784, %v8085, 0
        %v8140 = vsel %vm1784, %v8086, 0
        %v8143 = vsel %vm1784, %v8087, 0
        %v8146 = vsel %vm1784, %v8088, 0
        %v8149 = vsel %vm1784, %v8089, 0
        %v8152 = vsel %vm1784, %v8090, 0
        %8154 = vmatprep.subr.mxu0 0.0
        %8155 = vmatpush1.msra.mxu0 %v8091
        %8156 = vmatprep.subr.mxu0 0.0
        %8157 = vmatpush1.msra.mxu0 %v8092
        %8158 = vmatprep.subr.mxu0 0.0
        %8159 = vmatpush1.msra.mxu0 %v8093
        %8160 = vmatprep.subr.mxu0 0.0
        %8161 = vmatpush1.msra.mxu0 %v8094
        %8162 = vmatprep.subr.mxu0 0.0
        %8163 = vmatpush1.msra.mxu0 %v8095
        %8164 = vmatprep.subr.mxu0 0.0
        %8165 = vmatpush1.msra.mxu0 %v8096
        %8166 = vmatprep.subr.mxu0 0.0
        %8167 = vmatpush1.msra.mxu0 %v8097
        %8168 = vmatprep.subr.mxu0 0.0
        %8169 = vmatpush1.msra.mxu0 %v8098
        %8170 = vmatprep.subr.mxu0 0.0
        %8171 = vmatpush1.msra.mxu0 0.0
        %8172 = vmatprep.subr.mxu0 0.0
        %8173 = vmatpush1.msra.mxu0 0.0
        %8174 = vmatprep.subr.mxu0 0.0
        %8175 = vmatpush1.msra.mxu0 0.0
        %8176 = vmatprep.subr.mxu0 0.0
        %8177 = vmatpush1.msra.mxu0 0.0
        %8178 = vmatprep.subr.mxu0 0.0
        %8179 = vmatpush1.msra.mxu0 0.0
        %8180 = vmatprep.subr.mxu0 0.0
        %8181 = vmatpush1.msra.mxu0 0.0
        %8182 = vmatprep.subr.mxu0 0.0
        %8183 = vmatpush1.msra.mxu0 0.0
        %8184 = vmatprep.subr.mxu0 0.0
        %8185 = vmatpush1.msra.mxu0 0.0
        %8186 = vmatprep.subr.mxu0 0.0
        %8187 = vmatpush1.msra.mxu0 0.0
        %8188 = vmatprep.subr.mxu0 0.0
        %8189 = vmatpush1.msra.mxu0 0.0
        %8190 = vmatprep.subr.mxu0 0.0
        %8191 = vmatpush1.msra.mxu0 0.0
        %8192 = vmatprep.subr.mxu0 0.0
        %8193 = vmatpush1.msra.mxu0 0.0
        %8194 = vmatprep.subr.mxu0 0.0
        %8195 = vmatpush1.msra.mxu0 0.0
        %8196 = vmatprep.subr.mxu0 0.0
        %8197 = vmatpush1.msra.mxu0 0.0
        %8198 = vmatprep.subr.mxu0 0.0
        %8199 = vmatpush1.msra.mxu0 0.0
        %8200 = vmatprep.subr.mxu0 0.0
        %8201 = vmatpush1.msra.mxu0 0.0
        %8202 = vmatprep.subr.mxu0 0.0
        %8203 = vmatpush1.msra.mxu0 0.0
        %8204 = vmatprep.subr.mxu0 0.0
        %8205 = vmatpush1.msra.mxu0 0.0
        %8206 = vmatprep.subr.mxu0 0.0
        %8207 = vmatpush1.msra.mxu0 0.0
        %8208 = vmatprep.subr.mxu0 0.0
        %8209 = vmatpush1.msra.mxu0 0.0
        %8210 = vmatprep.subr.mxu0 0.0
        %8211 = vmatpush1.msra.mxu0 0.0
        %8212 = vmatprep.subr.mxu0 0.0
        %8213 = vmatpush1.msra.mxu0 0.0
        %8214 = vmatprep.subr.mxu0 0.0
        %8215 = vmatpush1.msra.mxu0 0.0
        %8216 = vmatprep.subr.mxu0 0.0
        %8217 = vmatpush1.msra.mxu0 0.0
        %8218 = vmatprep.mubr.f32.mxu0 0.0
        %8219 = vmatmul.mubr.f32.gmra.mrb[0].mxu0 %v8107
        %v8220 = vpop.f32.mrb[0].mxu0
        %v8221 = vadd.f32 %v8104, %v8220
        %v8222 = vpop.f32.mrb[0].mxu0
        %8223 = vmatprep.mubr.f32.mxu0 0.0
        %8224 = vmatmul.mubr.f32.gmra.mrb[0].mxu0 %v8110
        %v8225 = vpop.f32.mrb[0].mxu0
        %v8226 = vadd.f32 %v8104, %v8225
        %v8227 = vpop.f32.mrb[0].mxu0
        %8228 = vmatprep.mubr.f32.mxu0 0.0
        %8229 = vmatmul.mubr.f32.gmra.mrb[0].mxu0 %v8113
        %v8230 = vpop.f32.mrb[0].mxu0
        %v8231 = vadd.f32 %v8104, %v8230
        %v8232 = vpop.f32.mrb[0].mxu0
        %8233 = vmatprep.mubr.f32.mxu0 0.0
        %8234 = vmatmul.mubr.f32.gmra.mrb[0].mxu0 %v8116
        %v8235 = vpop.f32.mrb[0].mxu0
        %v8236 = vadd.f32 %v8104, %v8235
        %v8237 = vpop.f32.mrb[0].mxu0
        %8238 = vmatprep.mubr.f32.mxu0 0.0
        %8239 = vmatmul.mubr.f32.gmra.mrb[0].mxu0 %v8119
        %v8240 = vpop.f32.mrb[0].mxu0
        %v8241 = vadd.f32 %v8104, %v8240
        %v8242 = vpop.f32.mrb[0].mxu0
        %8243 = vmatprep.mubr.f32.mxu0 0.0
        %8244 = vmatmul.mubr.f32.gmra.mrb[0].mxu0 %v8122
        %v8245 = vpop.f32.mrb[0].mxu0
        %v8246 = vadd.f32 %v8104, %v8245
        %v8247 = vpop.f32.mrb[0].mxu0
        %8248 = vmatprep.mubr.f32.mxu0 0.0
        %8249 = vmatmul.mubr.f32.gmra.mrb[0].mxu0 %v8125
        %v8250 = vpop.f32.mrb[0].mxu0
        %v8251 = vadd.f32 %v8104, %v8250
        %v8252 = vpop.f32.mrb[0].mxu0
        %8253 = vmatprep.mubr.f32.mxu0 0.0
        %8254 = vmatmul.mubr.f32.gmra.mrb[0].mxu0 %v8128
        %v8255 = vpop.f32.mrb[0].mxu0
        %v8256 = vadd.f32 %v8104, %v8255
        %v8257 = vpop.f32.mrb[0].mxu0
        %8258 = vmatprep.mubr.f32.mxu0 0.0
        %8259 = vmatmul.mubr.f32.gmra.mrb[0].mxu0 %v8131
        %v8260 = vpop.f32.mrb[0].mxu0
        %v8261 = vadd.f32 %v8104, %v8260
        %v8262 = vpop.f32.mrb[0].mxu0
        %8263 = vmatprep.mubr.f32.mxu0 0.0
        %8264 = vmatmul.mubr.f32.gmra.mrb[0].mxu0 %v8134
        %v8265 = vpop.f32.mrb[0].mxu0
        %v8266 = vadd.f32 %v8104, %v8265
        %v8267 = vpop.f32.mrb[0].mxu0
        %8268 = vmatprep.mubr.f32.mxu0 0.0
        %8269 = vmatmul.mubr.f32.gmra.mrb[0].mxu0 %v8137
        %v8270 = vpop.f32.mrb[0].mxu0
        %v8271 = vadd.f32 %v8104, %v8270
        %v8272 = vpop.f32.mrb[0].mxu0
        %8273 = vmatprep.mubr.f32.mxu0 0.0
        %8274 = vmatmul.mubr.f32.gmra.mrb[0].mxu0 %v8140
        %v8275 = vpop.f32.mrb[0].mxu0
        %v8276 = vadd.f32 %v8104, %v8275
        %v8277 = vpop.f32.mrb[0].mxu0
        %8278 = vmatprep.mubr.f32.mxu0 0.0
        %8279 = vmatmul.mubr.f32.gmra.mrb[0].mxu0 %v8143
        %v8280 = vpop.f32.mrb[0].mxu0
        %v8281 = vadd.f32 %v8104, %v8280
        %v8282 = vpop.f32.mrb[0].mxu0
        %8283 = vmatprep.mubr.f32.mxu0 0.0
        %8284 = vmatmul.mubr.f32.gmra.mrb[0].mxu0 %v8146
        %v8285 = vpop.f32.mrb[0].mxu0
        %v8286 = vadd.f32 %v8104, %v8285
        %v8287 = vpop.f32.mrb[0].mxu0
        %8288 = vmatprep.mubr.f32.mxu0 0.0
        %8289 = vmatmul.mubr.f32.gmra.mrb[0].mxu0 %v8149
        %v8290 = vpop.f32.mrb[0].mxu0
        %v8291 = vadd.f32 %v8104, %v8290
        %v8292 = vpop.f32.mrb[0].mxu0
        %8293 = vmatprep.mubr.f32.mxu0 0.0
        %8294 = vmatmul.mubr.f32.gmra.mrb[0].mxu0 %v8152
        %v8295 = vpop.f32.mrb[0].mxu0
        %v8296 = vadd.f32 %v8104, %v8295
        %v8297 = vpop.f32.mrb[0].mxu0
        %8298 = vdwg.mxu0
        %v8315 = vmul.f32 %v8221, %v6529
        %v8316 = vmul.f32 %v8226, %v6532
        %v8317 = vmul.f32 %v8231, %v6535
        %v8318 = vmul.f32 %v8236, %v6538
        %v8319 = vmul.f32 %v8241, %v6541
        %v8320 = vmul.f32 %v8246, %v6544
        %v8321 = vmul.f32 %v8251, %v6547
        %v8322 = vmul.f32 %v8256, %v6550
        %v8323 = vmul.f32 %v8261, %v6553
        %v8324 = vmul.f32 %v8266, %v6556
        %v8325 = vmul.f32 %v8271, %v6559
        %v8326 = vmul.f32 %v8276, %v6562
        %v8327 = vmul.f32 %v8281, %v6565
        %v8328 = vmul.f32 %v8286, %v6568
        %v8329 = vmul.f32 %v8291, %v6571
        %v8330 = vmul.f32 %v8296, %v6574
        %vm8331 = vcmask 56320
        %v8332 = vsel %vm8331, %v8315, 0.0
        %v8333 = vsel %vm8331, %v8316, 0.0
        %v8334 = vadd.f32 %v8332, %v8333
        %v8335 = vrot.slane %v8334, 4
        %v8336 = vadd.f32 %v8334, %v8335
        %v8337 = vrot.slane %v8336, 2
        %v8338 = vadd.f32 %v8336, %v8337
        %v8339 = vrot.slane %v8338, 1
        %v8340 = vadd.f32 %v8338, %v8339
        %v8341 = vsel %vm8331, %v8317, 0.0
        %v8342 = vsel %vm8331, %v8318, 0.0
        %v8343 = vadd.f32 %v8341, %v8342
        %v8344 = vrot.slane %v8343, 4
        %v8345 = vadd.f32 %v8343, %v8344
        %v8346 = vrot.slane %v8345, 2
        %v8347 = vadd.f32 %v8345, %v8346
        %v8348 = vrot.slane %v8347, 1
        %v8349 = vadd.f32 %v8347, %v8348
        %v8350 = vsel %vm8331, %v8319, 0.0
        %v8351 = vsel %vm8331, %v8320, 0.0
        %v8352 = vadd.f32 %v8350, %v8351
        %v8353 = vrot.slane %v8352, 4
        %v8354 = vadd.f32 %v8352, %v8353
        %v8355 = vrot.slane %v8354, 2
        %v8356 = vadd.f32 %v8354, %v8355
        %v8357 = vrot.slane %v8356, 1
        %v8358 = vadd.f32 %v8356, %v8357
        %v8359 = vsel %vm8331, %v8321, 0.0
        %v8360 = vsel %vm8331, %v8322, 0.0
        %v8361 = vadd.f32 %v8359, %v8360
        %v8362 = vrot.slane %v8361, 4
        %v8363 = vadd.f32 %v8361, %v8362
        %v8364 = vrot.slane %v8363, 2
        %v8365 = vadd.f32 %v8363, %v8364
        %v8366 = vrot.slane %v8365, 1
        %v8367 = vadd.f32 %v8365, %v8366
        %v8368 = vsel %vm8331, %v8323, 0.0
        %v8369 = vsel %vm8331, %v8324, 0.0
        %v8370 = vadd.f32 %v8368, %v8369
        %v8371 = vrot.slane %v8370, 4
        %v8372 = vadd.f32 %v8370, %v8371
        %v8373 = vrot.slane %v8372, 2
        %v8374 = vadd.f32 %v8372, %v8373
        %v8375 = vrot.slane %v8374, 1
        %v8376 = vadd.f32 %v8374, %v8375
        %v8377 = vsel %vm8331, %v8325, 0.0
        %v8378 = vsel %vm8331, %v8326, 0.0
        %v8379 = vadd.f32 %v8377, %v8378
        %v8380 = vrot.slane %v8379, 4
        %v8381 = vadd.f32 %v8379, %v8380
        %v8382 = vrot.slane %v8381, 2
        %v8383 = vadd.f32 %v8381, %v8382
        %v8384 = vrot.slane %v8383, 1
        %v8385 = vadd.f32 %v8383, %v8384
        %v8386 = vsel %vm8331, %v8327, 0.0
        %v8387 = vsel %vm8331, %v8328, 0.0
        %v8388 = vadd.f32 %v8386, %v8387
        %v8389 = vrot.slane %v8388, 4
        %v8390 = vadd.f32 %v8388, %v8389
        %v8391 = vrot.slane %v8390, 2
        %v8392 = vadd.f32 %v8390, %v8391
        %v8393 = vrot.slane %v8392, 1
        %v8394 = vadd.f32 %v8392, %v8393
        %v8395 = vsel %vm8331, %v8329, 0.0
        %v8396 = vsel %vm8331, %v8330, 0.0
        %v8397 = vadd.f32 %v8395, %v8396
        %v8398 = vrot.slane %v8397, 4
        %v8399 = vadd.f32 %v8397, %v8398
        %v8400 = vrot.slane %v8399, 2
        %v8401 = vadd.f32 %v8399, %v8400
        %v8402 = vrot.slane %v8401, 1
        %v8403 = vadd.f32 %v8401, %v8402
        %v8404 = vand.u32 2147483647, %v8340
        %vm8405 = vcmp.le.f32.partialorder %v8404, 0.7853982
        %vm8406 = vcmp.lt.s32.totalorder %v8340, 0
        %v8407 = vand.u32 %v8340, 2139095040
        %v8408 = vshrl.u32 %v8407, 23
        %v8409 = vsub.s32 %v8408, 127
        %v8410 = vand.u32 2147483647, %v8340
        %v8411 = vand.u32 %v8410, 8388607
        %v8412 = vor.u32 %v8411, 8388608
        %v8413 = vsub.s32 0, %v8412
        %v8414 = vadd.s32 %v8409, 1
        %vm8415 = vcmp.gt.s32.totalorder %v8414, 0
        %v8416 = vsel %vm8415, %v8414, 0
        %v8417 = vshrl.u32 %v8416, 5
        %v8418 = vand.u32 %v8416, 31
        %v8419 = vsub.s32 32, %v8418
        %v8420 = vshrl.u32 683565275, %v8419
        %v8421 = vshll.u32 683565275, %v8418
        %v8422 = vshrl.u32 2475754826, %v8419
        %v8423 = vor.u32 %v8421, %v8422
        %v8424 = vshll.u32 2475754826, %v8418
        %v8425 = vshrl.u32 2131351028, %v8419
        %v8426 = vor.u32 %v8424, %v8425
        %v8427 = vshll.u32 2131351028, %v8418
        %v8428 = vshrl.u32 2102212464, %v8419
        %v8429 = vor.u32 %v8427, %v8428
        %v8430 = vshll.u32 2102212464, %v8418
        %v8431 = vshrl.u32 920167782, %v8419
        %v8432 = vor.u32 %v8430, %v8431
        %v8433 = vshll.u32 920167782, %v8418
        %v8434 = vshrl.u32 1326507024, %v8419
        %v8435 = vor.u32 %v8433, %v8434
        %vm8436 = vcmp.lt.s32.totalorder %v8417, 1
        %vm8437 = vcmp.lt.s32.totalorder %v8417, 2
        %vm8438 = vcmp.lt.s32.totalorder %v8417, 3
        %vm8439 = vcmp.lt.s32.totalorder %v8417, 4
        %v8440 = vsel %vm8436, %v8420, %v8423
        %v8441 = vsel %vm8439, %v8429, 2102212464
        %v8442 = vsel %vm8438, %v8426, %v8441
        %v8443 = vsel %vm8437, %v8440, %v8442
        %v8444 = vsel %vm8436, %v8423, %v8426
        %v8445 = vsel %vm8439, %v8432, 920167782
        %v8446 = vsel %vm8438, %v8429, %v8445
        %v8447 = vsel %vm8437, %v8444, %v8446
        %v8448 = vsel %vm8436, %v8426, %v8429
        %v8449 = vsel %vm8439, %v8435, 1326507024
        %v8450 = vsel %vm8438, %v8432, %v8449
        %v8451 = vsel %vm8437, %v8448, %v8450
        %v8452 = vshll.u32 %v8412, 8
        %v8453 = vmul.u32.u64.compose %v8452, %v8451
        %v8454 = vextract.low.u32 %v8453
        %v8455 = vextract.high.u32 %v8453
        %v8456 = vmul.u32.u64.compose %v8452, %v8447
        %v8457 = vextract.low.u32 %v8456
        %v8458 = vextract.high.u32 %v8456
        %v8459 = vmul.u32 %v8452, %v8443
        %v8460 = vadd.s32 %v8455, %v8457
        %vm8461 = vc.u32 %v8455, %v8457
        %v8462 = vadd.s32 %v8458, 1
        %v8463 = vsel %vm8461, %v8462, %v8458
        %v8464 = vadd.s32 %v8459, %v8463
        %v8465 = vadd.s32 %v8464, 536870912
        %v8466 = vshrl.u32 %v8465, 30
        %v8467 = vshll.u32 %v8466, 30
        %v8468 = vsub.s32 %v8464, %v8467
        %vm8469 = vcmp.lt.s32.totalorder %v8468, 0
        %v8470 = vsub.s32 0, %v8468
        %v8471 = vsel %vm8469, %v8470, %v8468
        %v8472 = vclz %v8471
        %v8473 = vsub.s32 %v8472, 2
        %vm8474 = vcmp.gt.s32.totalorder 0, %v8473
        %v8475 = vsel %vm8474, 0, %v8473
        %v8476 = vsub.s32 32, %v8475
        %v8477 = vshll.u32 %v8468, %v8475
        %v8478 = vshrl.u32 %v8460, %v8476
        %v8479 = vor.u32 %v8477, %v8478
        %v8480 = vsub.s32 4294967266, %v8475
        %v8481 = vadd.s32 %v8480, 127
        %v8482 = vshll.u32 %v8481, 23
        %v8483 = vor.u32 4788187, %v8482
        %v8484 = vand.u32 2147483647, %v8483
        %v8486 = vcvt.s32.f32 %v8479
        %v8487 = vmul.f32 %v8486, %v8484
        %v8488 = vxor.u32 %v8487, 2147483648
        %v8489 = vsel %vm8406, %v8488, %v8487
        %v8490 = vsub.s32 4, %v8466
        %v8491 = vsel %vm8406, %v8490, %v8466
        %v8492 = vsel %vm8405, %v8340, %v8489
        %v8493 = vsel %vm8405, 0, %v8491
        %v8494 = vcosq.f32.pop %v8492
        %v8495 = vsinq.f32.pop %v8492
        %vm8496 = vweird.f32 %v8340
        %v8497 = vadd.s32 %v8493, 3
        %v8498 = vand.u32 %v8497, 3
        %vm8499 = vcmp.lt.s32.totalorder %v8498, 2
        %vm8500 = vcmp.eq.s32.totalorder %v8498, 0
        %v8501 = vxor.u32 %v8495, 2147483648
        %v8502 = vsel %vm8500, %v8494, %v8501
        %vm8503 = vcmp.eq.s32.totalorder %v8498, 2
        %v8504 = vxor.u32 %v8494, 2147483648
        %v8505 = vsel %vm8503, %v8504, %v8495
        %v8506 = vsel %vm8499, %v8502, %v8505
        %v8507 = vsel %vm8496, nan, %v8506
        %v8508 = vand.u32 2147483647, %v8349
        %vm8509 = vcmp.le.f32.partialorder %v8508, 0.7853982
        %vm8510 = vcmp.lt.s32.totalorder %v8349, 0
        %v8511 = vand.u32 %v8349, 2139095040
        %v8512 = vshrl.u32 %v8511, 23
        %v8513 = vsub.s32 %v8512, 127
        %v8514 = vand.u32 2147483647, %v8349
        %v8515 = vand.u32 %v8514, 8388607
        %v8516 = vor.u32 %v8515, 8388608
        %v8517 = vsub.s32 0, %v8516
        %v8518 = vadd.s32 %v8513, 1
        %vm8519 = vcmp.gt.s32.totalorder %v8518, 0
        %v8520 = vsel %vm8519, %v8518, 0
        %v8521 = vshrl.u32 %v8520, 5
        %v8522 = vand.u32 %v8520, 31
        %v8523 = vsub.s32 32, %v8522
        %v8524 = vshrl.u32 683565275, %v8523
        %v8525 = vshll.u32 683565275, %v8522
        %v8526 = vshrl.u32 2475754826, %v8523
        %v8527 = vor.u32 %v8525, %v8526
        %v8528 = vshll.u32 2475754826, %v8522
        %v8529 = vshrl.u32 2131351028, %v8523
        %v8530 = vor.u32 %v8528, %v8529
        %v8531 = vshll.u32 2131351028, %v8522
        %v8532 = vshrl.u32 2102212464, %v8523
        %v8533 = vor.u32 %v8531, %v8532
        %v8534 = vshll.u32 2102212464, %v8522
        %v8535 = vshrl.u32 920167782, %v8523
        %v8536 = vor.u32 %v8534, %v8535
        %v8537 = vshll.u32 920167782, %v8522
        %v8538 = vshrl.u32 1326507024, %v8523
        %v8539 = vor.u32 %v8537, %v8538
        %vm8540 = vcmp.lt.s32.totalorder %v8521, 1
        %vm8541 = vcmp.lt.s32.totalorder %v8521, 2
        %vm8542 = vcmp.lt.s32.totalorder %v8521, 3
        %vm8543 = vcmp.lt.s32.totalorder %v8521, 4
        %v8544 = vsel %vm8540, %v8524, %v8527
        %v8545 = vsel %vm8543, %v8533, 2102212464
        %v8546 = vsel %vm8542, %v8530, %v8545
        %v8547 = vsel %vm8541, %v8544, %v8546
        %v8548 = vsel %vm8540, %v8527, %v8530
        %v8549 = vsel %vm8543, %v8536, 920167782
        %v8550 = vsel %vm8542, %v8533, %v8549
        %v8551 = vsel %vm8541, %v8548, %v8550
        %v8552 = vsel %vm8540, %v8530, %v8533
        %v8553 = vsel %vm8543, %v8539, 1326507024
        %v8554 = vsel %vm8542, %v8536, %v8553
        %v8555 = vsel %vm8541, %v8552, %v8554
        %v8556 = vshll.u32 %v8516, 8
        %v8557 = vmul.u32.u64.compose %v8556, %v8555
        %v8558 = vextract.low.u32 %v8557
        %v8559 = vextract.high.u32 %v8557
        %v8560 = vmul.u32.u64.compose %v8556, %v8551
        %v8561 = vextract.low.u32 %v8560
        %v8562 = vextract.high.u32 %v8560
        %v8563 = vmul.u32 %v8556, %v8547
        %v8564 = vadd.s32 %v8559, %v8561
        %vm8565 = vc.u32 %v8559, %v8561
        %v8566 = vadd.s32 %v8562, 1
        %v8567 = vsel %vm8565, %v8566, %v8562
        %v8568 = vadd.s32 %v8563, %v8567
        %v8569 = vadd.s32 %v8568, 536870912
        %v8570 = vshrl.u32 %v8569, 30
        %v8571 = vshll.u32 %v8570, 30
        %v8572 = vsub.s32 %v8568, %v8571
        %vm8573 = vcmp.lt.s32.totalorder %v8572, 0
        %v8574 = vsub.s32 0, %v8572
        %v8575 = vsel %vm8573, %v8574, %v8572
        %v8576 = vclz %v8575
        %v8577 = vsub.s32 %v8576, 2
        %vm8578 = vcmp.gt.s32.totalorder 0, %v8577
        %v8579 = vsel %vm8578, 0, %v8577
        %v8580 = vsub.s32 32, %v8579
        %v8581 = vshll.u32 %v8572, %v8579
        %v8582 = vshrl.u32 %v8564, %v8580
        %v8583 = vor.u32 %v8581, %v8582
        %v8584 = vsub.s32 4294967266, %v8579
        %v8585 = vadd.s32 %v8584, 127
        %v8586 = vshll.u32 %v8585, 23
        %v8587 = vor.u32 4788187, %v8586
        %v8588 = vand.u32 2147483647, %v8587
        %v8590 = vcvt.s32.f32 %v8583
        %v8591 = vmul.f32 %v8590, %v8588
        %v8592 = vxor.u32 %v8591, 2147483648
        %v8593 = vsel %vm8510, %v8592, %v8591
        %v8594 = vsub.s32 4, %v8570
        %v8595 = vsel %vm8510, %v8594, %v8570
        %v8596 = vsel %vm8509, %v8349, %v8593
        %v8597 = vsel %vm8509, 0, %v8595
        %v8598 = vcosq.f32.pop %v8596
        %v8599 = vsinq.f32.pop %v8596
        %vm8600 = vweird.f32 %v8349
        %v8601 = vadd.s32 %v8597, 3
        %v8602 = vand.u32 %v8601, 3
        %vm8603 = vcmp.lt.s32.totalorder %v8602, 2
        %vm8604 = vcmp.eq.s32.totalorder %v8602, 0
        %v8605 = vxor.u32 %v8599, 2147483648
        %v8606 = vsel %vm8604, %v8598, %v8605
        %vm8607 = vcmp.eq.s32.totalorder %v8602, 2
        %v8608 = vxor.u32 %v8598, 2147483648
        %v8609 = vsel %vm8607, %v8608, %v8599
        %v8610 = vsel %vm8603, %v8606, %v8609
        %v8611 = vsel %vm8600, nan, %v8610
        %v8612 = vand.u32 2147483647, %v8358
        %vm8613 = vcmp.le.f32.partialorder %v8612, 0.7853982
        %vm8614 = vcmp.lt.s32.totalorder %v8358, 0
        %v8615 = vand.u32 %v8358, 2139095040
        %v8616 = vshrl.u32 %v8615, 23
        %v8617 = vsub.s32 %v8616, 127
        %v8618 = vand.u32 2147483647, %v8358
        %v8619 = vand.u32 %v8618, 8388607
        %v8620 = vor.u32 %v8619, 8388608
        %v8621 = vsub.s32 0, %v8620
        %v8622 = vadd.s32 %v8617, 1
        %vm8623 = vcmp.gt.s32.totalorder %v8622, 0
        %v8624 = vsel %vm8623, %v8622, 0
        %v8625 = vshrl.u32 %v8624, 5
        %v8626 = vand.u32 %v8624, 31
        %v8627 = vsub.s32 32, %v8626
        %v8628 = vshrl.u32 683565275, %v8627
        %v8629 = vshll.u32 683565275, %v8626
        %v8630 = vshrl.u32 2475754826, %v8627
        %v8631 = vor.u32 %v8629, %v8630
        %v8632 = vshll.u32 2475754826, %v8626
        %v8633 = vshrl.u32 2131351028, %v8627
        %v8634 = vor.u32 %v8632, %v8633
        %v8635 = vshll.u32 2131351028, %v8626
        %v8636 = vshrl.u32 2102212464, %v8627
        %v8637 = vor.u32 %v8635, %v8636
        %v8638 = vshll.u32 2102212464, %v8626
        %v8639 = vshrl.u32 920167782, %v8627
        %v8640 = vor.u32 %v8638, %v8639
        %v8641 = vshll.u32 920167782, %v8626
        %v8642 = vshrl.u32 1326507024, %v8627
        %v8643 = vor.u32 %v8641, %v8642
        %vm8644 = vcmp.lt.s32.totalorder %v8625, 1
        %vm8645 = vcmp.lt.s32.totalorder %v8625, 2
        %vm8646 = vcmp.lt.s32.totalorder %v8625, 3
        %vm8647 = vcmp.lt.s32.totalorder %v8625, 4
        %v8648 = vsel %vm8644, %v8628, %v8631
        %v8649 = vsel %vm8647, %v8637, 2102212464
        %v8650 = vsel %vm8646, %v8634, %v8649
        %v8651 = vsel %vm8645, %v8648, %v8650
        %v8652 = vsel %vm8644, %v8631, %v8634
        %v8653 = vsel %vm8647, %v8640, 920167782
        %v8654 = vsel %vm8646, %v8637, %v8653
        %v8655 = vsel %vm8645, %v8652, %v8654
        %v8656 = vsel %vm8644, %v8634, %v8637
        %v8657 = vsel %vm8647, %v8643, 1326507024
        %v8658 = vsel %vm8646, %v8640, %v8657
        %v8659 = vsel %vm8645, %v8656, %v8658
        %v8660 = vshll.u32 %v8620, 8
        %v8661 = vmul.u32.u64.compose %v8660, %v8659
        %v8662 = vextract.low.u32 %v8661
        %v8663 = vextract.high.u32 %v8661
        %v8664 = vmul.u32.u64.compose %v8660, %v8655
        %v8665 = vextract.low.u32 %v8664
        %v8666 = vextract.high.u32 %v8664
        %v8667 = vmul.u32 %v8660, %v8651
        %v8668 = vadd.s32 %v8663, %v8665
        %vm8669 = vc.u32 %v8663, %v8665
        %v8670 = vadd.s32 %v8666, 1
        %v8671 = vsel %vm8669, %v8670, %v8666
        %v8672 = vadd.s32 %v8667, %v8671
        %v8673 = vadd.s32 %v8672, 536870912
        %v8674 = vshrl.u32 %v8673, 30
        %v8675 = vshll.u32 %v8674, 30
        %v8676 = vsub.s32 %v8672, %v8675
        %vm8677 = vcmp.lt.s32.totalorder %v8676, 0
        %v8678 = vsub.s32 0, %v8676
        %v8679 = vsel %vm8677, %v8678, %v8676
        %v8680 = vclz %v8679
        %v8681 = vsub.s32 %v8680, 2
        %vm8682 = vcmp.gt.s32.totalorder 0, %v8681
        %v8683 = vsel %vm8682, 0, %v8681
        %v8684 = vsub.s32 32, %v8683
        %v8685 = vshll.u32 %v8676, %v8683
        %v8686 = vshrl.u32 %v8668, %v8684
        %v8687 = vor.u32 %v8685, %v8686
        %v8688 = vsub.s32 4294967266, %v8683
        %v8689 = vadd.s32 %v8688, 127
        %v8690 = vshll.u32 %v8689, 23
        %v8691 = vor.u32 4788187, %v8690
        %v8692 = vand.u32 2147483647, %v8691
        %v8694 = vcvt.s32.f32 %v8687
        %v8695 = vmul.f32 %v8694, %v8692
        %v8696 = vxor.u32 %v8695, 2147483648
        %v8697 = vsel %vm8614, %v8696, %v8695
        %v8698 = vsub.s32 4, %v8674
        %v8699 = vsel %vm8614, %v8698, %v8674
        %v8700 = vsel %vm8613, %v8358, %v8697
        %v8701 = vsel %vm8613, 0, %v8699
        %v8702 = vcosq.f32.pop %v8700
        %v8703 = vsinq.f32.pop %v8700
        %vm8704 = vweird.f32 %v8358
        %v8705 = vadd.s32 %v8701, 3
        %v8706 = vand.u32 %v8705, 3
        %vm8707 = vcmp.lt.s32.totalorder %v8706, 2
        %vm8708 = vcmp.eq.s32.totalorder %v8706, 0
        %v8709 = vxor.u32 %v8703, 2147483648
        %v8710 = vsel %vm8708, %v8702, %v8709
        %vm8711 = vcmp.eq.s32.totalorder %v8706, 2
        %v8712 = vxor.u32 %v8702, 2147483648
        %v8713 = vsel %vm8711, %v8712, %v8703
        %v8714 = vsel %vm8707, %v8710, %v8713
        %v8715 = vsel %vm8704, nan, %v8714
        %v8716 = vand.u32 2147483647, %v8367
        %vm8717 = vcmp.le.f32.partialorder %v8716, 0.7853982
        %vm8718 = vcmp.lt.s32.totalorder %v8367, 0
        %v8719 = vand.u32 %v8367, 2139095040
        %v8720 = vshrl.u32 %v8719, 23
        %v8721 = vsub.s32 %v8720, 127
        %v8722 = vand.u32 2147483647, %v8367
        %v8723 = vand.u32 %v8722, 8388607
        %v8724 = vor.u32 %v8723, 8388608
        %v8725 = vsub.s32 0, %v8724
        %v8726 = vadd.s32 %v8721, 1
        %vm8727 = vcmp.gt.s32.totalorder %v8726, 0
        %v8728 = vsel %vm8727, %v8726, 0
        %v8729 = vshrl.u32 %v8728, 5
        %v8730 = vand.u32 %v8728, 31
        %v8731 = vsub.s32 32, %v8730
        %v8732 = vshrl.u32 683565275, %v8731
        %v8733 = vshll.u32 683565275, %v8730
        %v8734 = vshrl.u32 2475754826, %v8731
        %v8735 = vor.u32 %v8733, %v8734
        %v8736 = vshll.u32 2475754826, %v8730
        %v8737 = vshrl.u32 2131351028, %v8731
        %v8738 = vor.u32 %v8736, %v8737
        %v8739 = vshll.u32 2131351028, %v8730
        %v8740 = vshrl.u32 2102212464, %v8731
        %v8741 = vor.u32 %v8739, %v8740
        %v8742 = vshll.u32 2102212464, %v8730
        %v8743 = vshrl.u32 920167782, %v8731
        %v8744 = vor.u32 %v8742, %v8743
        %v8745 = vshll.u32 920167782, %v8730
        %v8746 = vshrl.u32 1326507024, %v8731
        %v8747 = vor.u32 %v8745, %v8746
        %vm8748 = vcmp.lt.s32.totalorder %v8729, 1
        %vm8749 = vcmp.lt.s32.totalorder %v8729, 2
        %vm8750 = vcmp.lt.s32.totalorder %v8729, 3
        %vm8751 = vcmp.lt.s32.totalorder %v8729, 4
        %v8752 = vsel %vm8748, %v8732, %v8735
        %v8753 = vsel %vm8751, %v8741, 2102212464
        %v8754 = vsel %vm8750, %v8738, %v8753
        %v8755 = vsel %vm8749, %v8752, %v8754
        %v8756 = vsel %vm8748, %v8735, %v8738
        %v8757 = vsel %vm8751, %v8744, 920167782
        %v8758 = vsel %vm8750, %v8741, %v8757
        %v8759 = vsel %vm8749, %v8756, %v8758
        %v8760 = vsel %vm8748, %v8738, %v8741
        %v8761 = vsel %vm8751, %v8747, 1326507024
        %v8762 = vsel %vm8750, %v8744, %v8761
        %v8763 = vsel %vm8749, %v8760, %v8762
        %v8764 = vshll.u32 %v8724, 8
        %v8765 = vmul.u32.u64.compose %v8764, %v8763
        %v8766 = vextract.low.u32 %v8765
        %v8767 = vextract.high.u32 %v8765
        %v8768 = vmul.u32.u64.compose %v8764, %v8759
        %v8769 = vextract.low.u32 %v8768
        %v8770 = vextract.high.u32 %v8768
        %v8771 = vmul.u32 %v8764, %v8755
        %v8772 = vadd.s32 %v8767, %v8769
        %vm8773 = vc.u32 %v8767, %v8769
        %v8774 = vadd.s32 %v8770, 1
        %v8775 = vsel %vm8773, %v8774, %v8770
        %v8776 = vadd.s32 %v8771, %v8775
        %v8777 = vadd.s32 %v8776, 536870912
        %v8778 = vshrl.u32 %v8777, 30
        %v8779 = vshll.u32 %v8778, 30
        %v8780 = vsub.s32 %v8776, %v8779
        %vm8781 = vcmp.lt.s32.totalorder %v8780, 0
        %v8782 = vsub.s32 0, %v8780
        %v8783 = vsel %vm8781, %v8782, %v8780
        %v8784 = vclz %v8783
        %v8785 = vsub.s32 %v8784, 2
        %vm8786 = vcmp.gt.s32.totalorder 0, %v8785
        %v8787 = vsel %vm8786, 0, %v8785
        %v8788 = vsub.s32 32, %v8787
        %v8789 = vshll.u32 %v8780, %v8787
        %v8790 = vshrl.u32 %v8772, %v8788
        %v8791 = vor.u32 %v8789, %v8790
        %v8792 = vsub.s32 4294967266, %v8787
        %v8793 = vadd.s32 %v8792, 127
        %v8794 = vshll.u32 %v8793, 23
        %v8795 = vor.u32 4788187, %v8794
        %v8796 = vand.u32 2147483647, %v8795
        %v8798 = vcvt.s32.f32 %v8791
        %v8799 = vmul.f32 %v8798, %v8796
        %v8800 = vxor.u32 %v8799, 2147483648
        %v8801 = vsel %vm8718, %v8800, %v8799
        %v8802 = vsub.s32 4, %v8778
        %v8803 = vsel %vm8718, %v8802, %v8778
        %v8804 = vsel %vm8717, %v8367, %v8801
        %v8805 = vsel %vm8717, 0, %v8803
        %v8806 = vcosq.f32.pop %v8804
        %v8807 = vsinq.f32.pop %v8804
        %vm8808 = vweird.f32 %v8367
        %v8809 = vadd.s32 %v8805, 3
        %v8810 = vand.u32 %v8809, 3
        %vm8811 = vcmp.lt.s32.totalorder %v8810, 2
        %vm8812 = vcmp.eq.s32.totalorder %v8810, 0
        %v8813 = vxor.u32 %v8807, 2147483648
        %v8814 = vsel %vm8812, %v8806, %v8813
        %vm8815 = vcmp.eq.s32.totalorder %v8810, 2
        %v8816 = vxor.u32 %v8806, 2147483648
        %v8817 = vsel %vm8815, %v8816, %v8807
        %v8818 = vsel %vm8811, %v8814, %v8817
        %v8819 = vsel %vm8808, nan, %v8818
        %v8820 = vand.u32 2147483647, %v8376
        %vm8821 = vcmp.le.f32.partialorder %v8820, 0.7853982
        %vm8822 = vcmp.lt.s32.totalorder %v8376, 0
        %v8823 = vand.u32 %v8376, 2139095040
        %v8824 = vshrl.u32 %v8823, 23
        %v8825 = vsub.s32 %v8824, 127
        %v8826 = vand.u32 2147483647, %v8376
        %v8827 = vand.u32 %v8826, 8388607
        %v8828 = vor.u32 %v8827, 8388608
        %v8829 = vsub.s32 0, %v8828
        %v8830 = vadd.s32 %v8825, 1
        %vm8831 = vcmp.gt.s32.totalorder %v8830, 0
        %v8832 = vsel %vm8831, %v8830, 0
        %v8833 = vshrl.u32 %v8832, 5
        %v8834 = vand.u32 %v8832, 31
        %v8835 = vsub.s32 32, %v8834
        %v8836 = vshrl.u32 683565275, %v8835
        %v8837 = vshll.u32 683565275, %v8834
        %v8838 = vshrl.u32 2475754826, %v8835
        %v8839 = vor.u32 %v8837, %v8838
        %v8840 = vshll.u32 2475754826, %v8834
        %v8841 = vshrl.u32 2131351028, %v8835
        %v8842 = vor.u32 %v8840, %v8841
        %v8843 = vshll.u32 2131351028, %v8834
        %v8844 = vshrl.u32 2102212464, %v8835
        %v8845 = vor.u32 %v8843, %v8844
        %v8846 = vshll.u32 2102212464, %v8834
        %v8847 = vshrl.u32 920167782, %v8835
        %v8848 = vor.u32 %v8846, %v8847
        %v8849 = vshll.u32 920167782, %v8834
        %v8850 = vshrl.u32 1326507024, %v8835
        %v8851 = vor.u32 %v8849, %v8850
        %vm8852 = vcmp.lt.s32.totalorder %v8833, 1
        %vm8853 = vcmp.lt.s32.totalorder %v8833, 2
        %vm8854 = vcmp.lt.s32.totalorder %v8833, 3
        %vm8855 = vcmp.lt.s32.totalorder %v8833, 4
        %v8856 = vsel %vm8852, %v8836, %v8839
        %v8857 = vsel %vm8855, %v8845, 2102212464
        %v8858 = vsel %vm8854, %v8842, %v8857
        %v8859 = vsel %vm8853, %v8856, %v8858
        %v8860 = vsel %vm8852, %v8839, %v8842
        %v8861 = vsel %vm8855, %v8848, 920167782
        %v8862 = vsel %vm8854, %v8845, %v8861
        %v8863 = vsel %vm8853, %v8860, %v8862
        %v8864 = vsel %vm8852, %v8842, %v8845
        %v8865 = vsel %vm8855, %v8851, 1326507024
        %v8866 = vsel %vm8854, %v8848, %v8865
        %v8867 = vsel %vm8853, %v8864, %v8866
        %v8868 = vshll.u32 %v8828, 8
        %v8869 = vmul.u32.u64.compose %v8868, %v8867
        %v8870 = vextract.low.u32 %v8869
        %v8871 = vextract.high.u32 %v8869
        %v8872 = vmul.u32.u64.compose %v8868, %v8863
        %v8873 = vextract.low.u32 %v8872
        %v8874 = vextract.high.u32 %v8872
        %v8875 = vmul.u32 %v8868, %v8859
        %v8876 = vadd.s32 %v8871, %v8873
        %vm8877 = vc.u32 %v8871, %v8873
        %v8878 = vadd.s32 %v8874, 1
        %v8879 = vsel %vm8877, %v8878, %v8874
        %v8880 = vadd.s32 %v8875, %v8879
        %v8881 = vadd.s32 %v8880, 536870912
        %v8882 = vshrl.u32 %v8881, 30
        %v8883 = vshll.u32 %v8882, 30
        %v8884 = vsub.s32 %v8880, %v8883
        %vm8885 = vcmp.lt.s32.totalorder %v8884, 0
        %v8886 = vsub.s32 0, %v8884
        %v8887 = vsel %vm8885, %v8886, %v8884
        %v8888 = vclz %v8887
        %v8889 = vsub.s32 %v8888, 2
        %vm8890 = vcmp.gt.s32.totalorder 0, %v8889
        %v8891 = vsel %vm8890, 0, %v8889
        %v8892 = vsub.s32 32, %v8891
        %v8893 = vshll.u32 %v8884, %v8891
        %v8894 = vshrl.u32 %v8876, %v8892
        %v8895 = vor.u32 %v8893, %v8894
        %v8896 = vsub.s32 4294967266, %v8891
        %v8897 = vadd.s32 %v8896, 127
        %v8898 = vshll.u32 %v8897, 23
        %v8899 = vor.u32 4788187, %v8898
        %v8900 = vand.u32 2147483647, %v8899
        %v8902 = vcvt.s32.f32 %v8895
        %v8903 = vmul.f32 %v8902, %v8900
        %v8904 = vxor.u32 %v8903, 2147483648
        %v8905 = vsel %vm8822, %v8904, %v8903
        %v8906 = vsub.s32 4, %v8882
        %v8907 = vsel %vm8822, %v8906, %v8882
        %v8908 = vsel %vm8821, %v8376, %v8905
        %v8909 = vsel %vm8821, 0, %v8907
        %v8910 = vcosq.f32.pop %v8908
        %v8911 = vsinq.f32.pop %v8908
        %vm8912 = vweird.f32 %v8376
        %v8913 = vadd.s32 %v8909, 3
        %v8914 = vand.u32 %v8913, 3
        %vm8915 = vcmp.lt.s32.totalorder %v8914, 2
        %vm8916 = vcmp.eq.s32.totalorder %v8914, 0
        %v8917 = vxor.u32 %v8911, 2147483648
        %v8918 = vsel %vm8916, %v8910, %v8917
        %vm8919 = vcmp.eq.s32.totalorder %v8914, 2
        %v8920 = vxor.u32 %v8910, 2147483648
        %v8921 = vsel %vm8919, %v8920, %v8911
        %v8922 = vsel %vm8915, %v8918, %v8921
        %v8923 = vsel %vm8912, nan, %v8922
        %v8924 = vand.u32 2147483647, %v8385
        %vm8925 = vcmp.le.f32.partialorder %v8924, 0.7853982
        %vm8926 = vcmp.lt.s32.totalorder %v8385, 0
        %v8927 = vand.u32 %v8385, 2139095040
        %v8928 = vshrl.u32 %v8927, 23
        %v8929 = vsub.s32 %v8928, 127
        %v8930 = vand.u32 2147483647, %v8385
        %v8931 = vand.u32 %v8930, 8388607
        %v8932 = vor.u32 %v8931, 8388608
        %v8933 = vsub.s32 0, %v8932
        %v8934 = vadd.s32 %v8929, 1
        %vm8935 = vcmp.gt.s32.totalorder %v8934, 0
        %v8936 = vsel %vm8935, %v8934, 0
        %v8937 = vshrl.u32 %v8936, 5
        %v8938 = vand.u32 %v8936, 31
        %v8939 = vsub.s32 32, %v8938
        %v8940 = vshrl.u32 683565275, %v8939
        %v8941 = vshll.u32 683565275, %v8938
        %v8942 = vshrl.u32 2475754826, %v8939
        %v8943 = vor.u32 %v8941, %v8942
        %v8944 = vshll.u32 2475754826, %v8938
        %v8945 = vshrl.u32 2131351028, %v8939
        %v8946 = vor.u32 %v8944, %v8945
        %v8947 = vshll.u32 2131351028, %v8938
        %v8948 = vshrl.u32 2102212464, %v8939
        %v8949 = vor.u32 %v8947, %v8948
        %v8950 = vshll.u32 2102212464, %v8938
        %v8951 = vshrl.u32 920167782, %v8939
        %v8952 = vor.u32 %v8950, %v8951
        %v8953 = vshll.u32 920167782, %v8938
        %v8954 = vshrl.u32 1326507024, %v8939
        %v8955 = vor.u32 %v8953, %v8954
        %vm8956 = vcmp.lt.s32.totalorder %v8937, 1
        %vm8957 = vcmp.lt.s32.totalorder %v8937, 2
        %vm8958 = vcmp.lt.s32.totalorder %v8937, 3
        %vm8959 = vcmp.lt.s32.totalorder %v8937, 4
        %v8960 = vsel %vm8956, %v8940, %v8943
        %v8961 = vsel %vm8959, %v8949, 2102212464
        %v8962 = vsel %vm8958, %v8946, %v8961
        %v8963 = vsel %vm8957, %v8960, %v8962
        %v8964 = vsel %vm8956, %v8943, %v8946
        %v8965 = vsel %vm8959, %v8952, 920167782
        %v8966 = vsel %vm8958, %v8949, %v8965
        %v8967 = vsel %vm8957, %v8964, %v8966
        %v8968 = vsel %vm8956, %v8946, %v8949
        %v8969 = vsel %vm8959, %v8955, 1326507024
        %v8970 = vsel %vm8958, %v8952, %v8969
        %v8971 = vsel %vm8957, %v8968, %v8970
        %v8972 = vshll.u32 %v8932, 8
        %v8973 = vmul.u32.u64.compose %v8972, %v8971
        %v8974 = vextract.low.u32 %v8973
        %v8975 = vextract.high.u32 %v8973
        %v8976 = vmul.u32.u64.compose %v8972, %v8967
        %v8977 = vextract.low.u32 %v8976
        %v8978 = vextract.high.u32 %v8976
        %v8979 = vmul.u32 %v8972, %v8963
        %v8980 = vadd.s32 %v8975, %v8977
        %vm8981 = vc.u32 %v8975, %v8977
        %v8982 = vadd.s32 %v8978, 1
        %v8983 = vsel %vm8981, %v8982, %v8978
        %v8984 = vadd.s32 %v8979, %v8983
        %v8985 = vadd.s32 %v8984, 536870912
        %v8986 = vshrl.u32 %v8985, 30
        %v8987 = vshll.u32 %v8986, 30
        %v8988 = vsub.s32 %v8984, %v8987
        %vm8989 = vcmp.lt.s32.totalorder %v8988, 0
        %v8990 = vsub.s32 0, %v8988
        %v8991 = vsel %vm8989, %v8990, %v8988
        %v8992 = vclz %v8991
        %v8993 = vsub.s32 %v8992, 2
        %vm8994 = vcmp.gt.s32.totalorder 0, %v8993
        %v8995 = vsel %vm8994, 0, %v8993
        %v8996 = vsub.s32 32, %v8995
        %v8997 = vshll.u32 %v8988, %v8995
        %v8998 = vshrl.u32 %v8980, %v8996
        %v8999 = vor.u32 %v8997, %v8998
        %v9000 = vsub.s32 4294967266, %v8995
        %v9001 = vadd.s32 %v9000, 127
        %v9002 = vshll.u32 %v9001, 23
        %v9003 = vor.u32 4788187, %v9002
        %v9004 = vand.u32 2147483647, %v9003
        %v9006 = vcvt.s32.f32 %v8999
        %v9007 = vmul.f32 %v9006, %v9004
        %v9008 = vxor.u32 %v9007, 2147483648
        %v9009 = vsel %vm8926, %v9008, %v9007
        %v9010 = vsub.s32 4, %v8986
        %v9011 = vsel %vm8926, %v9010, %v8986
        %v9012 = vsel %vm8925, %v8385, %v9009
        %v9013 = vsel %vm8925, 0, %v9011
        %v9014 = vcosq.f32.pop %v9012
        %v9015 = vsinq.f32.pop %v9012
        %vm9016 = vweird.f32 %v8385
        %v9017 = vadd.s32 %v9013, 3
        %v9018 = vand.u32 %v9017, 3
        %vm9019 = vcmp.lt.s32.totalorder %v9018, 2
        %vm9020 = vcmp.eq.s32.totalorder %v9018, 0
        %v9021 = vxor.u32 %v9015, 2147483648
        %v9022 = vsel %vm9020, %v9014, %v9021
        %vm9023 = vcmp.eq.s32.totalorder %v9018, 2
        %v9024 = vxor.u32 %v9014, 2147483648
        %v9025 = vsel %vm9023, %v9024, %v9015
        %v9026 = vsel %vm9019, %v9022, %v9025
        %v9027 = vsel %vm9016, nan, %v9026
        %v9028 = vand.u32 2147483647, %v8394
        %vm9029 = vcmp.le.f32.partialorder %v9028, 0.7853982
        %vm9030 = vcmp.lt.s32.totalorder %v8394, 0
        %v9031 = vand.u32 %v8394, 2139095040
        %v9032 = vshrl.u32 %v9031, 23
        %v9033 = vsub.s32 %v9032, 127
        %v9034 = vand.u32 2147483647, %v8394
        %v9035 = vand.u32 %v9034, 8388607
        %v9036 = vor.u32 %v9035, 8388608
        %v9037 = vsub.s32 0, %v9036
        %v9038 = vadd.s32 %v9033, 1
        %vm9039 = vcmp.gt.s32.totalorder %v9038, 0
        %v9040 = vsel %vm9039, %v9038, 0
        %v9041 = vshrl.u32 %v9040, 5
        %v9042 = vand.u32 %v9040, 31
        %v9043 = vsub.s32 32, %v9042
        %v9044 = vshrl.u32 683565275, %v9043
        %v9045 = vshll.u32 683565275, %v9042
        %v9046 = vshrl.u32 2475754826, %v9043
        %v9047 = vor.u32 %v9045, %v9046
        %v9048 = vshll.u32 2475754826, %v9042
        %v9049 = vshrl.u32 2131351028, %v9043
        %v9050 = vor.u32 %v9048, %v9049
        %v9051 = vshll.u32 2131351028, %v9042
        %v9052 = vshrl.u32 2102212464, %v9043
        %v9053 = vor.u32 %v9051, %v9052
        %v9054 = vshll.u32 2102212464, %v9042
        %v9055 = vshrl.u32 920167782, %v9043
        %v9056 = vor.u32 %v9054, %v9055
        %v9057 = vshll.u32 920167782, %v9042
        %v9058 = vshrl.u32 1326507024, %v9043
        %v9059 = vor.u32 %v9057, %v9058
        %vm9060 = vcmp.lt.s32.totalorder %v9041, 1
        %vm9061 = vcmp.lt.s32.totalorder %v9041, 2
        %vm9062 = vcmp.lt.s32.totalorder %v9041, 3
        %vm9063 = vcmp.lt.s32.totalorder %v9041, 4
        %v9064 = vsel %vm9060, %v9044, %v9047
        %v9065 = vsel %vm9063, %v9053, 2102212464
        %v9066 = vsel %vm9062, %v9050, %v9065
        %v9067 = vsel %vm9061, %v9064, %v9066
        %v9068 = vsel %vm9060, %v9047, %v9050
        %v9069 = vsel %vm9063, %v9056, 920167782
        %v9070 = vsel %vm9062, %v9053, %v9069
        %v9071 = vsel %vm9061, %v9068, %v9070
        %v9072 = vsel %vm9060, %v9050, %v9053
        %v9073 = vsel %vm9063, %v9059, 1326507024
        %v9074 = vsel %vm9062, %v9056, %v9073
        %v9075 = vsel %vm9061, %v9072, %v9074
        %v9076 = vshll.u32 %v9036, 8
        %v9077 = vmul.u32.u64.compose %v9076, %v9075
        %v9078 = vextract.low.u32 %v9077
        %v9079 = vextract.high.u32 %v9077
        %v9080 = vmul.u32.u64.compose %v9076, %v9071
        %v9081 = vextract.low.u32 %v9080
        %v9082 = vextract.high.u32 %v9080
        %v9083 = vmul.u32 %v9076, %v9067
        %v9084 = vadd.s32 %v9079, %v9081
        %vm9085 = vc.u32 %v9079, %v9081
        %v9086 = vadd.s32 %v9082, 1
        %v9087 = vsel %vm9085, %v9086, %v9082
        %v9088 = vadd.s32 %v9083, %v9087
        %v9089 = vadd.s32 %v9088, 536870912
        %v9090 = vshrl.u32 %v9089, 30
        %v9091 = vshll.u32 %v9090, 30
        %v9092 = vsub.s32 %v9088, %v9091
        %vm9093 = vcmp.lt.s32.totalorder %v9092, 0
        %v9094 = vsub.s32 0, %v9092
        %v9095 = vsel %vm9093, %v9094, %v9092
        %v9096 = vclz %v9095
        %v9097 = vsub.s32 %v9096, 2
        %vm9098 = vcmp.gt.s32.totalorder 0, %v9097
        %v9099 = vsel %vm9098, 0, %v9097
        %v9100 = vsub.s32 32, %v9099
        %v9101 = vshll.u32 %v9092, %v9099
        %v9102 = vshrl.u32 %v9084, %v9100
        %v9103 = vor.u32 %v9101, %v9102
        %v9104 = vsub.s32 4294967266, %v9099
        %v9105 = vadd.s32 %v9104, 127
        %v9106 = vshll.u32 %v9105, 23
        %v9107 = vor.u32 4788187, %v9106
        %v9108 = vand.u32 2147483647, %v9107
        %v9110 = vcvt.s32.f32 %v9103
        %v9111 = vmul.f32 %v9110, %v9108
        %v9112 = vxor.u32 %v9111, 2147483648
        %v9113 = vsel %vm9030, %v9112, %v9111
        %v9114 = vsub.s32 4, %v9090
        %v9115 = vsel %vm9030, %v9114, %v9090
        %v9116 = vsel %vm9029, %v8394, %v9113
        %v9117 = vsel %vm9029, 0, %v9115
        %v9118 = vcosq.f32.pop %v9116
        %v9119 = vsinq.f32.pop %v9116
        %vm9120 = vweird.f32 %v8394
        %v9121 = vadd.s32 %v9117, 3
        %v9122 = vand.u32 %v9121, 3
        %vm9123 = vcmp.lt.s32.totalorder %v9122, 2
        %vm9124 = vcmp.eq.s32.totalorder %v9122, 0
        %v9125 = vxor.u32 %v9119, 2147483648
        %v9126 = vsel %vm9124, %v9118, %v9125
        %vm9127 = vcmp.eq.s32.totalorder %v9122, 2
        %v9128 = vxor.u32 %v9118, 2147483648
        %v9129 = vsel %vm9127, %v9128, %v9119
        %v9130 = vsel %vm9123, %v9126, %v9129
        %v9131 = vsel %vm9120, nan, %v9130
        %v9132 = vand.u32 2147483647, %v8403
        %vm9133 = vcmp.le.f32.partialorder %v9132, 0.7853982
        %vm9134 = vcmp.lt.s32.totalorder %v8403, 0
        %v9135 = vand.u32 %v8403, 2139095040
        %v9136 = vshrl.u32 %v9135, 23
        %v9137 = vsub.s32 %v9136, 127
        %v9138 = vand.u32 2147483647, %v8403
        %v9139 = vand.u32 %v9138, 8388607
        %v9140 = vor.u32 %v9139, 8388608
        %v9141 = vsub.s32 0, %v9140
        %v9142 = vadd.s32 %v9137, 1
        %vm9143 = vcmp.gt.s32.totalorder %v9142, 0
        %v9144 = vsel %vm9143, %v9142, 0
        %v9145 = vshrl.u32 %v9144, 5
        %v9146 = vand.u32 %v9144, 31
        %v9147 = vsub.s32 32, %v9146
        %v9148 = vshrl.u32 683565275, %v9147
        %v9149 = vshll.u32 683565275, %v9146
        %v9150 = vshrl.u32 2475754826, %v9147
        %v9151 = vor.u32 %v9149, %v9150
        %v9152 = vshll.u32 2475754826, %v9146
        %v9153 = vshrl.u32 2131351028, %v9147
        %v9154 = vor.u32 %v9152, %v9153
        %v9155 = vshll.u32 2131351028, %v9146
        %v9156 = vshrl.u32 2102212464, %v9147
        %v9157 = vor.u32 %v9155, %v9156
        %v9158 = vshll.u32 2102212464, %v9146
        %v9159 = vshrl.u32 920167782, %v9147
        %v9160 = vor.u32 %v9158, %v9159
        %v9161 = vshll.u32 920167782, %v9146
        %v9162 = vshrl.u32 1326507024, %v9147
        %v9163 = vor.u32 %v9161, %v9162
        %vm9164 = vcmp.lt.s32.totalorder %v9145, 1
        %vm9165 = vcmp.lt.s32.totalorder %v9145, 2
        %vm9166 = vcmp.lt.s32.totalorder %v9145, 3
        %vm9167 = vcmp.lt.s32.totalorder %v9145, 4
        %v9168 = vsel %vm9164, %v9148, %v9151
        %v9169 = vsel %vm9167, %v9157, 2102212464
        %v9170 = vsel %vm9166, %v9154, %v9169
        %v9171 = vsel %vm9165, %v9168, %v9170
        %v9172 = vsel %vm9164, %v9151, %v9154
        %v9173 = vsel %vm9167, %v9160, 920167782
        %v9174 = vsel %vm9166, %v9157, %v9173
        %v9175 = vsel %vm9165, %v9172, %v9174
        %v9176 = vsel %vm9164, %v9154, %v9157
        %v9177 = vsel %vm9167, %v9163, 1326507024
        %v9178 = vsel %vm9166, %v9160, %v9177
        %v9179 = vsel %vm9165, %v9176, %v9178
        %v9180 = vshll.u32 %v9140, 8
        %v9181 = vmul.u32.u64.compose %v9180, %v9179
        %v9182 = vextract.low.u32 %v9181
        %v9183 = vextract.high.u32 %v9181
        %v9184 = vmul.u32.u64.compose %v9180, %v9175
        %v9185 = vextract.low.u32 %v9184
        %v9186 = vextract.high.u32 %v9184
        %v9187 = vmul.u32 %v9180, %v9171
        %v9188 = vadd.s32 %v9183, %v9185
        %vm9189 = vc.u32 %v9183, %v9185
        %v9190 = vadd.s32 %v9186, 1
        %v9191 = vsel %vm9189, %v9190, %v9186
        %v9192 = vadd.s32 %v9187, %v9191
        %v9193 = vadd.s32 %v9192, 536870912
        %v9194 = vshrl.u32 %v9193, 30
        %v9195 = vshll.u32 %v9194, 30
        %v9196 = vsub.s32 %v9192, %v9195
        %vm9197 = vcmp.lt.s32.totalorder %v9196, 0
        %v9198 = vsub.s32 0, %v9196
        %v9199 = vsel %vm9197, %v9198, %v9196
        %v9200 = vclz %v9199
        %v9201 = vsub.s32 %v9200, 2
        %vm9202 = vcmp.gt.s32.totalorder 0, %v9201
        %v9203 = vsel %vm9202, 0, %v9201
        %v9204 = vsub.s32 32, %v9203
        %v9205 = vshll.u32 %v9196, %v9203
        %v9206 = vshrl.u32 %v9188, %v9204
        %v9207 = vor.u32 %v9205, %v9206
        %v9208 = vsub.s32 4294967266, %v9203
        %v9209 = vadd.s32 %v9208, 127
        %v9210 = vshll.u32 %v9209, 23
        %v9211 = vor.u32 4788187, %v9210
        %v9212 = vand.u32 2147483647, %v9211
        %v9214 = vcvt.s32.f32 %v9207
        %v9215 = vmul.f32 %v9214, %v9212
        %v9216 = vxor.u32 %v9215, 2147483648
        %v9217 = vsel %vm9134, %v9216, %v9215
        %v9218 = vsub.s32 4, %v9194
        %v9219 = vsel %vm9134, %v9218, %v9194
        %v9220 = vsel %vm9133, %v8403, %v9217
        %v9221 = vsel %vm9133, 0, %v9219
        %v9222 = vcosq.f32.pop %v9220
        %v9223 = vsinq.f32.pop %v9220
        %vm9224 = vweird.f32 %v8403
        %v9225 = vadd.s32 %v9221, 3
        %v9226 = vand.u32 %v9225, 3
        %vm9227 = vcmp.lt.s32.totalorder %v9226, 2
        %vm9228 = vcmp.eq.s32.totalorder %v9226, 0
        %v9229 = vxor.u32 %v9223, 2147483648
        %v9230 = vsel %vm9228, %v9222, %v9229
        %vm9231 = vcmp.eq.s32.totalorder %v9226, 2
        %v9232 = vxor.u32 %v9222, 2147483648
        %v9233 = vsel %vm9231, %v9232, %v9223
        %v9234 = vsel %vm9227, %v9230, %v9233
        %v9235 = vsel %vm9224, nan, %v9234
        %v9236 = vand.u32 2147483647, %v8340
        %vm9237 = vcmp.le.f32.partialorder %v9236, 0.7853982
        %vm9238 = vcmp.lt.s32.totalorder %v8340, 0
        %v9239 = vand.u32 %v8340, 2139095040
        %v9240 = vshrl.u32 %v9239, 23
        %v9241 = vsub.s32 %v9240, 127
        %v9242 = vand.u32 2147483647, %v8340
        %v9243 = vand.u32 %v9242, 8388607
        %v9244 = vor.u32 %v9243, 8388608
        %v9245 = vsub.s32 0, %v9244
        %v9246 = vadd.s32 %v9241, 1
        %vm9247 = vcmp.gt.s32.totalorder %v9246, 0
        %v9248 = vsel %vm9247, %v9246, 0
        %v9249 = vshrl.u32 %v9248, 5
        %v9250 = vand.u32 %v9248, 31
        %v9251 = vsub.s32 32, %v9250
        %v9252 = vshrl.u32 683565275, %v9251
        %v9253 = vshll.u32 683565275, %v9250
        %v9254 = vshrl.u32 2475754826, %v9251
        %v9255 = vor.u32 %v9253, %v9254
        %v9256 = vshll.u32 2475754826, %v9250
        %v9257 = vshrl.u32 2131351028, %v9251
        %v9258 = vor.u32 %v9256, %v9257
        %v9259 = vshll.u32 2131351028, %v9250
        %v9260 = vshrl.u32 2102212464, %v9251
        %v9261 = vor.u32 %v9259, %v9260
        %v9262 = vshll.u32 2102212464, %v9250
        %v9263 = vshrl.u32 920167782, %v9251
        %v9264 = vor.u32 %v9262, %v9263
        %v9265 = vshll.u32 920167782, %v9250
        %v9266 = vshrl.u32 1326507024, %v9251
        %v9267 = vor.u32 %v9265, %v9266
        %vm9268 = vcmp.lt.s32.totalorder %v9249, 1
        %vm9269 = vcmp.lt.s32.totalorder %v9249, 2
        %vm9270 = vcmp.lt.s32.totalorder %v9249, 3
        %vm9271 = vcmp.lt.s32.totalorder %v9249, 4
        %v9272 = vsel %vm9268, %v9252, %v9255
        %v9273 = vsel %vm9271, %v9261, 2102212464
        %v9274 = vsel %vm9270, %v9258, %v9273
        %v9275 = vsel %vm9269, %v9272, %v9274
        %v9276 = vsel %vm9268, %v9255, %v9258
        %v9277 = vsel %vm9271, %v9264, 920167782
        %v9278 = vsel %vm9270, %v9261, %v9277
        %v9279 = vsel %vm9269, %v9276, %v9278
        %v9280 = vsel %vm9268, %v9258, %v9261
        %v9281 = vsel %vm9271, %v9267, 1326507024
        %v9282 = vsel %vm9270, %v9264, %v9281
        %v9283 = vsel %vm9269, %v9280, %v9282
        %v9284 = vshll.u32 %v9244, 8
        %v9285 = vmul.u32.u64.compose %v9284, %v9283
        %v9286 = vextract.low.u32 %v9285
        %v9287 = vextract.high.u32 %v9285
        %v9288 = vmul.u32.u64.compose %v9284, %v9279
        %v9289 = vextract.low.u32 %v9288
        %v9290 = vextract.high.u32 %v9288
        %v9291 = vmul.u32 %v9284, %v9275
        %v9292 = vadd.s32 %v9287, %v9289
        %vm9293 = vc.u32 %v9287, %v9289
        %v9294 = vadd.s32 %v9290, 1
        %v9295 = vsel %vm9293, %v9294, %v9290
        %v9296 = vadd.s32 %v9291, %v9295
        %v9297 = vadd.s32 %v9296, 536870912
        %v9298 = vshrl.u32 %v9297, 30
        %v9299 = vshll.u32 %v9298, 30
        %v9300 = vsub.s32 %v9296, %v9299
        %vm9301 = vcmp.lt.s32.totalorder %v9300, 0
        %v9302 = vsub.s32 0, %v9300
        %v9303 = vsel %vm9301, %v9302, %v9300
        %v9304 = vclz %v9303
        %v9305 = vsub.s32 %v9304, 2
        %vm9306 = vcmp.gt.s32.totalorder 0, %v9305
        %v9307 = vsel %vm9306, 0, %v9305
        %v9308 = vsub.s32 32, %v9307
        %v9309 = vshll.u32 %v9300, %v9307
        %v9310 = vshrl.u32 %v9292, %v9308
        %v9311 = vor.u32 %v9309, %v9310
        %v9312 = vsub.s32 4294967266, %v9307
        %v9313 = vadd.s32 %v9312, 127
        %v9314 = vshll.u32 %v9313, 23
        %v9315 = vor.u32 4788187, %v9314
        %v9316 = vand.u32 2147483647, %v9315
        %v9318 = vcvt.s32.f32 %v9311
        %v9319 = vmul.f32 %v9318, %v9316
        %v9320 = vxor.u32 %v9319, 2147483648
        %v9321 = vsel %vm9238, %v9320, %v9319
        %v9322 = vsub.s32 4, %v9298
        %v9323 = vsel %vm9238, %v9322, %v9298
        %v9324 = vsel %vm9237, %v8340, %v9321
        %v9325 = vsel %vm9237, 0, %v9323
        %v9326 = vcosq.f32.pop %v9324
        %v9327 = vsinq.f32.pop %v9324
        %vm9328 = vweird.f32 %v8340
        %v9329 = vand.u32 %v9325, 3
        %vm9330 = vcmp.lt.s32.totalorder %v9329, 2
        %vm9331 = vcmp.eq.s32.totalorder %v9329, 0
        %v9332 = vxor.u32 %v9327, 2147483648
        %v9333 = vsel %vm9331, %v9326, %v9332
        %vm9334 = vcmp.eq.s32.totalorder %v9329, 2
        %v9335 = vxor.u32 %v9326, 2147483648
        %v9336 = vsel %vm9334, %v9335, %v9327
        %v9337 = vsel %vm9330, %v9333, %v9336
        %v9338 = vsel %vm9328, nan, %v9337
        %v9339 = vand.u32 2147483647, %v8349
        %vm9340 = vcmp.le.f32.partialorder %v9339, 0.7853982
        %vm9341 = vcmp.lt.s32.totalorder %v8349, 0
        %v9342 = vand.u32 %v8349, 2139095040
        %v9343 = vshrl.u32 %v9342, 23
        %v9344 = vsub.s32 %v9343, 127
        %v9345 = vand.u32 2147483647, %v8349
        %v9346 = vand.u32 %v9345, 8388607
        %v9347 = vor.u32 %v9346, 8388608
        %v9348 = vsub.s32 0, %v9347
        %v9349 = vadd.s32 %v9344, 1
        %vm9350 = vcmp.gt.s32.totalorder %v9349, 0
        %v9351 = vsel %vm9350, %v9349, 0
        %v9352 = vshrl.u32 %v9351, 5
        %v9353 = vand.u32 %v9351, 31
        %v9354 = vsub.s32 32, %v9353
        %v9355 = vshrl.u32 683565275, %v9354
        %v9356 = vshll.u32 683565275, %v9353
        %v9357 = vshrl.u32 2475754826, %v9354
        %v9358 = vor.u32 %v9356, %v9357
        %v9359 = vshll.u32 2475754826, %v9353
        %v9360 = vshrl.u32 2131351028, %v9354
        %v9361 = vor.u32 %v9359, %v9360
        %v9362 = vshll.u32 2131351028, %v9353
        %v9363 = vshrl.u32 2102212464, %v9354
        %v9364 = vor.u32 %v9362, %v9363
        %v9365 = vshll.u32 2102212464, %v9353
        %v9366 = vshrl.u32 920167782, %v9354
        %v9367 = vor.u32 %v9365, %v9366
        %v9368 = vshll.u32 920167782, %v9353
        %v9369 = vshrl.u32 1326507024, %v9354
        %v9370 = vor.u32 %v9368, %v9369
        %vm9371 = vcmp.lt.s32.totalorder %v9352, 1
        %vm9372 = vcmp.lt.s32.totalorder %v9352, 2
        %vm9373 = vcmp.lt.s32.totalorder %v9352, 3
        %vm9374 = vcmp.lt.s32.totalorder %v9352, 4
        %v9375 = vsel %vm9371, %v9355, %v9358
        %v9376 = vsel %vm9374, %v9364, 2102212464
        %v9377 = vsel %vm9373, %v9361, %v9376
        %v9378 = vsel %vm9372, %v9375, %v9377
        %v9379 = vsel %vm9371, %v9358, %v9361
        %v9380 = vsel %vm9374, %v9367, 920167782
        %v9381 = vsel %vm9373, %v9364, %v9380
        %v9382 = vsel %vm9372, %v9379, %v9381
        %v9383 = vsel %vm9371, %v9361, %v9364
        %v9384 = vsel %vm9374, %v9370, 1326507024
        %v9385 = vsel %vm9373, %v9367, %v9384
        %v9386 = vsel %vm9372, %v9383, %v9385
        %v9387 = vshll.u32 %v9347, 8
        %v9388 = vmul.u32.u64.compose %v9387, %v9386
        %v9389 = vextract.low.u32 %v9388
        %v9390 = vextract.high.u32 %v9388
        %v9391 = vmul.u32.u64.compose %v9387, %v9382
        %v9392 = vextract.low.u32 %v9391
        %v9393 = vextract.high.u32 %v9391
        %v9394 = vmul.u32 %v9387, %v9378
        %v9395 = vadd.s32 %v9390, %v9392
        %vm9396 = vc.u32 %v9390, %v9392
        %v9397 = vadd.s32 %v9393, 1
        %v9398 = vsel %vm9396, %v9397, %v9393
        %v9399 = vadd.s32 %v9394, %v9398
        %v9400 = vadd.s32 %v9399, 536870912
        %v9401 = vshrl.u32 %v9400, 30
        %v9402 = vshll.u32 %v9401, 30
        %v9403 = vsub.s32 %v9399, %v9402
        %vm9404 = vcmp.lt.s32.totalorder %v9403, 0
        %v9405 = vsub.s32 0, %v9403
        %v9406 = vsel %vm9404, %v9405, %v9403
        %v9407 = vclz %v9406
        %v9408 = vsub.s32 %v9407, 2
        %vm9409 = vcmp.gt.s32.totalorder 0, %v9408
        %v9410 = vsel %vm9409, 0, %v9408
        %v9411 = vsub.s32 32, %v9410
        %v9412 = vshll.u32 %v9403, %v9410
        %v9413 = vshrl.u32 %v9395, %v9411
        %v9414 = vor.u32 %v9412, %v9413
        %v9415 = vsub.s32 4294967266, %v9410
        %v9416 = vadd.s32 %v9415, 127
        %v9417 = vshll.u32 %v9416, 23
        %v9418 = vor.u32 4788187, %v9417
        %v9419 = vand.u32 2147483647, %v9418
        %v9421 = vcvt.s32.f32 %v9414
        %v9422 = vmul.f32 %v9421, %v9419
        %v9423 = vxor.u32 %v9422, 2147483648
        %v9424 = vsel %vm9341, %v9423, %v9422
        %v9425 = vsub.s32 4, %v9401
        %v9426 = vsel %vm9341, %v9425, %v9401
        %v9427 = vsel %vm9340, %v8349, %v9424
        %v9428 = vsel %vm9340, 0, %v9426
        %v9429 = vcosq.f32.pop %v9427
        %v9430 = vsinq.f32.pop %v9427
        %vm9431 = vweird.f32 %v8349
        %v9432 = vand.u32 %v9428, 3
        %vm9433 = vcmp.lt.s32.totalorder %v9432, 2
        %vm9434 = vcmp.eq.s32.totalorder %v9432, 0
        %v9435 = vxor.u32 %v9430, 2147483648
        %v9436 = vsel %vm9434, %v9429, %v9435
        %vm9437 = vcmp.eq.s32.totalorder %v9432, 2
        %v9438 = vxor.u32 %v9429, 2147483648
        %v9439 = vsel %vm9437, %v9438, %v9430
        %v9440 = vsel %vm9433, %v9436, %v9439
        %v9441 = vsel %vm9431, nan, %v9440
        %v9442 = vand.u32 2147483647, %v8358
        %vm9443 = vcmp.le.f32.partialorder %v9442, 0.7853982
        %vm9444 = vcmp.lt.s32.totalorder %v8358, 0
        %v9445 = vand.u32 %v8358, 2139095040
        %v9446 = vshrl.u32 %v9445, 23
        %v9447 = vsub.s32 %v9446, 127
        %v9448 = vand.u32 2147483647, %v8358
        %v9449 = vand.u32 %v9448, 8388607
        %v9450 = vor.u32 %v9449, 8388608
        %v9451 = vsub.s32 0, %v9450
        %v9452 = vadd.s32 %v9447, 1
        %vm9453 = vcmp.gt.s32.totalorder %v9452, 0
        %v9454 = vsel %vm9453, %v9452, 0
        %v9455 = vshrl.u32 %v9454, 5
        %v9456 = vand.u32 %v9454, 31
        %v9457 = vsub.s32 32, %v9456
        %v9458 = vshrl.u32 683565275, %v9457
        %v9459 = vshll.u32 683565275, %v9456
        %v9460 = vshrl.u32 2475754826, %v9457
        %v9461 = vor.u32 %v9459, %v9460
        %v9462 = vshll.u32 2475754826, %v9456
        %v9463 = vshrl.u32 2131351028, %v9457
        %v9464 = vor.u32 %v9462, %v9463
        %v9465 = vshll.u32 2131351028, %v9456
        %v9466 = vshrl.u32 2102212464, %v9457
        %v9467 = vor.u32 %v9465, %v9466
        %v9468 = vshll.u32 2102212464, %v9456
        %v9469 = vshrl.u32 920167782, %v9457
        %v9470 = vor.u32 %v9468, %v9469
        %v9471 = vshll.u32 920167782, %v9456
        %v9472 = vshrl.u32 1326507024, %v9457
        %v9473 = vor.u32 %v9471, %v9472
        %vm9474 = vcmp.lt.s32.totalorder %v9455, 1
        %vm9475 = vcmp.lt.s32.totalorder %v9455, 2
        %vm9476 = vcmp.lt.s32.totalorder %v9455, 3
        %vm9477 = vcmp.lt.s32.totalorder %v9455, 4
        %v9478 = vsel %vm9474, %v9458, %v9461
        %v9479 = vsel %vm9477, %v9467, 2102212464
        %v9480 = vsel %vm9476, %v9464, %v9479
        %v9481 = vsel %vm9475, %v9478, %v9480
        %v9482 = vsel %vm9474, %v9461, %v9464
        %v9483 = vsel %vm9477, %v9470, 920167782
        %v9484 = vsel %vm9476, %v9467, %v9483
        %v9485 = vsel %vm9475, %v9482, %v9484
        %v9486 = vsel %vm9474, %v9464, %v9467
        %v9487 = vsel %vm9477, %v9473, 1326507024
        %v9488 = vsel %vm9476, %v9470, %v9487
        %v9489 = vsel %vm9475, %v9486, %v9488
        %v9490 = vshll.u32 %v9450, 8
        %v9491 = vmul.u32.u64.compose %v9490, %v9489
        %v9492 = vextract.low.u32 %v9491
        %v9493 = vextract.high.u32 %v9491
        %v9494 = vmul.u32.u64.compose %v9490, %v9485
        %v9495 = vextract.low.u32 %v9494
        %v9496 = vextract.high.u32 %v9494
        %v9497 = vmul.u32 %v9490, %v9481
        %v9498 = vadd.s32 %v9493, %v9495
        %vm9499 = vc.u32 %v9493, %v9495
        %v9500 = vadd.s32 %v9496, 1
        %v9501 = vsel %vm9499, %v9500, %v9496
        %v9502 = vadd.s32 %v9497, %v9501
        %v9503 = vadd.s32 %v9502, 536870912
        %v9504 = vshrl.u32 %v9503, 30
        %v9505 = vshll.u32 %v9504, 30
        %v9506 = vsub.s32 %v9502, %v9505
        %vm9507 = vcmp.lt.s32.totalorder %v9506, 0
        %v9508 = vsub.s32 0, %v9506
        %v9509 = vsel %vm9507, %v9508, %v9506
        %v9510 = vclz %v9509
        %v9511 = vsub.s32 %v9510, 2
        %vm9512 = vcmp.gt.s32.totalorder 0, %v9511
        %v9513 = vsel %vm9512, 0, %v9511
        %v9514 = vsub.s32 32, %v9513
        %v9515 = vshll.u32 %v9506, %v9513
        %v9516 = vshrl.u32 %v9498, %v9514
        %v9517 = vor.u32 %v9515, %v9516
        %v9518 = vsub.s32 4294967266, %v9513
        %v9519 = vadd.s32 %v9518, 127
        %v9520 = vshll.u32 %v9519, 23
        %v9521 = vor.u32 4788187, %v9520
        %v9522 = vand.u32 2147483647, %v9521
        %v9524 = vcvt.s32.f32 %v9517
        %v9525 = vmul.f32 %v9524, %v9522
        %v9526 = vxor.u32 %v9525, 2147483648
        %v9527 = vsel %vm9444, %v9526, %v9525
        %v9528 = vsub.s32 4, %v9504
        %v9529 = vsel %vm9444, %v9528, %v9504
        %v9530 = vsel %vm9443, %v8358, %v9527
        %v9531 = vsel %vm9443, 0, %v9529
        %v9532 = vcosq.f32.pop %v9530
        %v9533 = vsinq.f32.pop %v9530
        %vm9534 = vweird.f32 %v8358
        %v9535 = vand.u32 %v9531, 3
        %vm9536 = vcmp.lt.s32.totalorder %v9535, 2
        %vm9537 = vcmp.eq.s32.totalorder %v9535, 0
        %v9538 = vxor.u32 %v9533, 2147483648
        %v9539 = vsel %vm9537, %v9532, %v9538
        %vm9540 = vcmp.eq.s32.totalorder %v9535, 2
        %v9541 = vxor.u32 %v9532, 2147483648
        %v9542 = vsel %vm9540, %v9541, %v9533
        %v9543 = vsel %vm9536, %v9539, %v9542
        %v9544 = vsel %vm9534, nan, %v9543
        %v9545 = vand.u32 2147483647, %v8367
        %vm9546 = vcmp.le.f32.partialorder %v9545, 0.7853982
        %vm9547 = vcmp.lt.s32.totalorder %v8367, 0
        %v9548 = vand.u32 %v8367, 2139095040
        %v9549 = vshrl.u32 %v9548, 23
        %v9550 = vsub.s32 %v9549, 127
        %v9551 = vand.u32 2147483647, %v8367
        %v9552 = vand.u32 %v9551, 8388607
        %v9553 = vor.u32 %v9552, 8388608
        %v9554 = vsub.s32 0, %v9553
        %v9555 = vadd.s32 %v9550, 1
        %vm9556 = vcmp.gt.s32.totalorder %v9555, 0
        %v9557 = vsel %vm9556, %v9555, 0
        %v9558 = vshrl.u32 %v9557, 5
        %v9559 = vand.u32 %v9557, 31
        %v9560 = vsub.s32 32, %v9559
        %v9561 = vshrl.u32 683565275, %v9560
        %v9562 = vshll.u32 683565275, %v9559
        %v9563 = vshrl.u32 2475754826, %v9560
        %v9564 = vor.u32 %v9562, %v9563
        %v9565 = vshll.u32 2475754826, %v9559
        %v9566 = vshrl.u32 2131351028, %v9560
        %v9567 = vor.u32 %v9565, %v9566
        %v9568 = vshll.u32 2131351028, %v9559
        %v9569 = vshrl.u32 2102212464, %v9560
        %v9570 = vor.u32 %v9568, %v9569
        %v9571 = vshll.u32 2102212464, %v9559
        %v9572 = vshrl.u32 920167782, %v9560
        %v9573 = vor.u32 %v9571, %v9572
        %v9574 = vshll.u32 920167782, %v9559
        %v9575 = vshrl.u32 1326507024, %v9560
        %v9576 = vor.u32 %v9574, %v9575
        %vm9577 = vcmp.lt.s32.totalorder %v9558, 1
        %vm9578 = vcmp.lt.s32.totalorder %v9558, 2
        %vm9579 = vcmp.lt.s32.totalorder %v9558, 3
        %vm9580 = vcmp.lt.s32.totalorder %v9558, 4
        %v9581 = vsel %vm9577, %v9561, %v9564
        %v9582 = vsel %vm9580, %v9570, 2102212464
        %v9583 = vsel %vm9579, %v9567, %v9582
        %v9584 = vsel %vm9578, %v9581, %v9583
        %v9585 = vsel %vm9577, %v9564, %v9567
        %v9586 = vsel %vm9580, %v9573, 920167782
        %v9587 = vsel %vm9579, %v9570, %v9586
        %v9588 = vsel %vm9578, %v9585, %v9587
        %v9589 = vsel %vm9577, %v9567, %v9570
        %v9590 = vsel %vm9580, %v9576, 1326507024
        %v9591 = vsel %vm9579, %v9573, %v9590
        %v9592 = vsel %vm9578, %v9589, %v9591
        %v9593 = vshll.u32 %v9553, 8
        %v9594 = vmul.u32.u64.compose %v9593, %v9592
        %v9595 = vextract.low.u32 %v9594
        %v9596 = vextract.high.u32 %v9594
        %v9597 = vmul.u32.u64.compose %v9593, %v9588
        %v9598 = vextract.low.u32 %v9597
        %v9599 = vextract.high.u32 %v9597
        %v9600 = vmul.u32 %v9593, %v9584
        %v9601 = vadd.s32 %v9596, %v9598
        %vm9602 = vc.u32 %v9596, %v9598
        %v9603 = vadd.s32 %v9599, 1
        %v9604 = vsel %vm9602, %v9603, %v9599
        %v9605 = vadd.s32 %v9600, %v9604
        %v9606 = vadd.s32 %v9605, 536870912
        %v9607 = vshrl.u32 %v9606, 30
        %v9608 = vshll.u32 %v9607, 30
        %v9609 = vsub.s32 %v9605, %v9608
        %vm9610 = vcmp.lt.s32.totalorder %v9609, 0
        %v9611 = vsub.s32 0, %v9609
        %v9612 = vsel %vm9610, %v9611, %v9609
        %v9613 = vclz %v9612
        %v9614 = vsub.s32 %v9613, 2
        %vm9615 = vcmp.gt.s32.totalorder 0, %v9614
        %v9616 = vsel %vm9615, 0, %v9614
        %v9617 = vsub.s32 32, %v9616
        %v9618 = vshll.u32 %v9609, %v9616
        %v9619 = vshrl.u32 %v9601, %v9617
        %v9620 = vor.u32 %v9618, %v9619
        %v9621 = vsub.s32 4294967266, %v9616
        %v9622 = vadd.s32 %v9621, 127
        %v9623 = vshll.u32 %v9622, 23
        %v9624 = vor.u32 4788187, %v9623
        %v9625 = vand.u32 2147483647, %v9624
        %v9627 = vcvt.s32.f32 %v9620
        %v9628 = vmul.f32 %v9627, %v9625
        %v9629 = vxor.u32 %v9628, 2147483648
        %v9630 = vsel %vm9547, %v9629, %v9628
        %v9631 = vsub.s32 4, %v9607
        %v9632 = vsel %vm9547, %v9631, %v9607
        %v9633 = vsel %vm9546, %v8367, %v9630
        %v9634 = vsel %vm9546, 0, %v9632
        %v9635 = vcosq.f32.pop %v9633
        %v9636 = vsinq.f32.pop %v9633
        %vm9637 = vweird.f32 %v8367
        %v9638 = vand.u32 %v9634, 3
        %vm9639 = vcmp.lt.s32.totalorder %v9638, 2
        %vm9640 = vcmp.eq.s32.totalorder %v9638, 0
        %v9641 = vxor.u32 %v9636, 2147483648
        %v9642 = vsel %vm9640, %v9635, %v9641
        %vm9643 = vcmp.eq.s32.totalorder %v9638, 2
        %v9644 = vxor.u32 %v9635, 2147483648
        %v9645 = vsel %vm9643, %v9644, %v9636
        %v9646 = vsel %vm9639, %v9642, %v9645
        %v9647 = vsel %vm9637, nan, %v9646
        %v9648 = vand.u32 2147483647, %v8376
        %vm9649 = vcmp.le.f32.partialorder %v9648, 0.7853982
        %vm9650 = vcmp.lt.s32.totalorder %v8376, 0
        %v9651 = vand.u32 %v8376, 2139095040
        %v9652 = vshrl.u32 %v9651, 23
        %v9653 = vsub.s32 %v9652, 127
        %v9654 = vand.u32 2147483647, %v8376
        %v9655 = vand.u32 %v9654, 8388607
        %v9656 = vor.u32 %v9655, 8388608
        %v9657 = vsub.s32 0, %v9656
        %v9658 = vadd.s32 %v9653, 1
        %vm9659 = vcmp.gt.s32.totalorder %v9658, 0
        %v9660 = vsel %vm9659, %v9658, 0
        %v9661 = vshrl.u32 %v9660, 5
        %v9662 = vand.u32 %v9660, 31
        %v9663 = vsub.s32 32, %v9662
        %v9664 = vshrl.u32 683565275, %v9663
        %v9665 = vshll.u32 683565275, %v9662
        %v9666 = vshrl.u32 2475754826, %v9663
        %v9667 = vor.u32 %v9665, %v9666
        %v9668 = vshll.u32 2475754826, %v9662
        %v9669 = vshrl.u32 2131351028, %v9663
        %v9670 = vor.u32 %v9668, %v9669
        %v9671 = vshll.u32 2131351028, %v9662
        %v9672 = vshrl.u32 2102212464, %v9663
        %v9673 = vor.u32 %v9671, %v9672
        %v9674 = vshll.u32 2102212464, %v9662
        %v9675 = vshrl.u32 920167782, %v9663
        %v9676 = vor.u32 %v9674, %v9675
        %v9677 = vshll.u32 920167782, %v9662
        %v9678 = vshrl.u32 1326507024, %v9663
        %v9679 = vor.u32 %v9677, %v9678
        %vm9680 = vcmp.lt.s32.totalorder %v9661, 1
        %vm9681 = vcmp.lt.s32.totalorder %v9661, 2
        %vm9682 = vcmp.lt.s32.totalorder %v9661, 3
        %vm9683 = vcmp.lt.s32.totalorder %v9661, 4
        %v9684 = vsel %vm9680, %v9664, %v9667
        %v9685 = vsel %vm9683, %v9673, 2102212464
        %v9686 = vsel %vm9682, %v9670, %v9685
        %v9687 = vsel %vm9681, %v9684, %v9686
        %v9688 = vsel %vm9680, %v9667, %v9670
        %v9689 = vsel %vm9683, %v9676, 920167782
        %v9690 = vsel %vm9682, %v9673, %v9689
        %v9691 = vsel %vm9681, %v9688, %v9690
        %v9692 = vsel %vm9680, %v9670, %v9673
        %v9693 = vsel %vm9683, %v9679, 1326507024
        %v9694 = vsel %vm9682, %v9676, %v9693
        %v9695 = vsel %vm9681, %v9692, %v9694
        %v9696 = vshll.u32 %v9656, 8
        %v9697 = vmul.u32.u64.compose %v9696, %v9695
        %v9698 = vextract.low.u32 %v9697
        %v9699 = vextract.high.u32 %v9697
        %v9700 = vmul.u32.u64.compose %v9696, %v9691
        %v9701 = vextract.low.u32 %v9700
        %v9702 = vextract.high.u32 %v9700
        %v9703 = vmul.u32 %v9696, %v9687
        %v9704 = vadd.s32 %v9699, %v9701
        %vm9705 = vc.u32 %v9699, %v9701
        %v9706 = vadd.s32 %v9702, 1
        %v9707 = vsel %vm9705, %v9706, %v9702
        %v9708 = vadd.s32 %v9703, %v9707
        %v9709 = vadd.s32 %v9708, 536870912
        %v9710 = vshrl.u32 %v9709, 30
        %v9711 = vshll.u32 %v9710, 30
        %v9712 = vsub.s32 %v9708, %v9711
        %vm9713 = vcmp.lt.s32.totalorder %v9712, 0
        %v9714 = vsub.s32 0, %v9712
        %v9715 = vsel %vm9713, %v9714, %v9712
        %v9716 = vclz %v9715
        %v9717 = vsub.s32 %v9716, 2
        %vm9718 = vcmp.gt.s32.totalorder 0, %v9717
        %v9719 = vsel %vm9718, 0, %v9717
        %v9720 = vsub.s32 32, %v9719
        %v9721 = vshll.u32 %v9712, %v9719
        %v9722 = vshrl.u32 %v9704, %v9720
        %v9723 = vor.u32 %v9721, %v9722
        %v9724 = vsub.s32 4294967266, %v9719
        %v9725 = vadd.s32 %v9724, 127
        %v9726 = vshll.u32 %v9725, 23
        %v9727 = vor.u32 4788187, %v9726
        %v9728 = vand.u32 2147483647, %v9727
        %v9730 = vcvt.s32.f32 %v9723
        %v9731 = vmul.f32 %v9730, %v9728
        %v9732 = vxor.u32 %v9731, 2147483648
        %v9733 = vsel %vm9650, %v9732, %v9731
        %v9734 = vsub.s32 4, %v9710
        %v9735 = vsel %vm9650, %v9734, %v9710
        %v9736 = vsel %vm9649, %v8376, %v9733
        %v9737 = vsel %vm9649, 0, %v9735
        %v9738 = vcosq.f32.pop %v9736
        %v9739 = vsinq.f32.pop %v9736
        %vm9740 = vweird.f32 %v8376
        %v9741 = vand.u32 %v9737, 3
        %vm9742 = vcmp.lt.s32.totalorder %v9741, 2
        %vm9743 = vcmp.eq.s32.totalorder %v9741, 0
        %v9744 = vxor.u32 %v9739, 2147483648
        %v9745 = vsel %vm9743, %v9738, %v9744
        %vm9746 = vcmp.eq.s32.totalorder %v9741, 2
        %v9747 = vxor.u32 %v9738, 2147483648
        %v9748 = vsel %vm9746, %v9747, %v9739
        %v9749 = vsel %vm9742, %v9745, %v9748
        %v9750 = vsel %vm9740, nan, %v9749
        %v9751 = vand.u32 2147483647, %v8385
        %vm9752 = vcmp.le.f32.partialorder %v9751, 0.7853982
        %vm9753 = vcmp.lt.s32.totalorder %v8385, 0
        %v9754 = vand.u32 %v8385, 2139095040
        %v9755 = vshrl.u32 %v9754, 23
        %v9756 = vsub.s32 %v9755, 127
        %v9757 = vand.u32 2147483647, %v8385
        %v9758 = vand.u32 %v9757, 8388607
        %v9759 = vor.u32 %v9758, 8388608
        %v9760 = vsub.s32 0, %v9759
        %v9761 = vadd.s32 %v9756, 1
        %vm9762 = vcmp.gt.s32.totalorder %v9761, 0
        %v9763 = vsel %vm9762, %v9761, 0
        %v9764 = vshrl.u32 %v9763, 5
        %v9765 = vand.u32 %v9763, 31
        %v9766 = vsub.s32 32, %v9765
        %v9767 = vshrl.u32 683565275, %v9766
        %v9768 = vshll.u32 683565275, %v9765
        %v9769 = vshrl.u32 2475754826, %v9766
        %v9770 = vor.u32 %v9768, %v9769
        %v9771 = vshll.u32 2475754826, %v9765
        %v9772 = vshrl.u32 2131351028, %v9766
        %v9773 = vor.u32 %v9771, %v9772
        %v9774 = vshll.u32 2131351028, %v9765
        %v9775 = vshrl.u32 2102212464, %v9766
        %v9776 = vor.u32 %v9774, %v9775
        %v9777 = vshll.u32 2102212464, %v9765
        %v9778 = vshrl.u32 920167782, %v9766
        %v9779 = vor.u32 %v9777, %v9778
        %v9780 = vshll.u32 920167782, %v9765
        %v9781 = vshrl.u32 1326507024, %v9766
        %v9782 = vor.u32 %v9780, %v9781
        %vm9783 = vcmp.lt.s32.totalorder %v9764, 1
        %vm9784 = vcmp.lt.s32.totalorder %v9764, 2
        %vm9785 = vcmp.lt.s32.totalorder %v9764, 3
        %vm9786 = vcmp.lt.s32.totalorder %v9764, 4
        %v9787 = vsel %vm9783, %v9767, %v9770
        %v9788 = vsel %vm9786, %v9776, 2102212464
        %v9789 = vsel %vm9785, %v9773, %v9788
        %v9790 = vsel %vm9784, %v9787, %v9789
        %v9791 = vsel %vm9783, %v9770, %v9773
        %v9792 = vsel %vm9786, %v9779, 920167782
        %v9793 = vsel %vm9785, %v9776, %v9792
        %v9794 = vsel %vm9784, %v9791, %v9793
        %v9795 = vsel %vm9783, %v9773, %v9776
        %v9796 = vsel %vm9786, %v9782, 1326507024
        %v9797 = vsel %vm9785, %v9779, %v9796
        %v9798 = vsel %vm9784, %v9795, %v9797
        %v9799 = vshll.u32 %v9759, 8
        %v9800 = vmul.u32.u64.compose %v9799, %v9798
        %v9801 = vextract.low.u32 %v9800
        %v9802 = vextract.high.u32 %v9800
        %v9803 = vmul.u32.u64.compose %v9799, %v9794
        %v9804 = vextract.low.u32 %v9803
        %v9805 = vextract.high.u32 %v9803
        %v9806 = vmul.u32 %v9799, %v9790
        %v9807 = vadd.s32 %v9802, %v9804
        %vm9808 = vc.u32 %v9802, %v9804
        %v9809 = vadd.s32 %v9805, 1
        %v9810 = vsel %vm9808, %v9809, %v9805
        %v9811 = vadd.s32 %v9806, %v9810
        %v9812 = vadd.s32 %v9811, 536870912
        %v9813 = vshrl.u32 %v9812, 30
        %v9814 = vshll.u32 %v9813, 30
        %v9815 = vsub.s32 %v9811, %v9814
        %vm9816 = vcmp.lt.s32.totalorder %v9815, 0
        %v9817 = vsub.s32 0, %v9815
        %v9818 = vsel %vm9816, %v9817, %v9815
        %v9819 = vclz %v9818
        %v9820 = vsub.s32 %v9819, 2
        %vm9821 = vcmp.gt.s32.totalorder 0, %v9820
        %v9822 = vsel %vm9821, 0, %v9820
        %v9823 = vsub.s32 32, %v9822
        %v9824 = vshll.u32 %v9815, %v9822
        %v9825 = vshrl.u32 %v9807, %v9823
        %v9826 = vor.u32 %v9824, %v9825
        %v9827 = vsub.s32 4294967266, %v9822
        %v9828 = vadd.s32 %v9827, 127
        %v9829 = vshll.u32 %v9828, 23
        %v9830 = vor.u32 4788187, %v9829
        %v9831 = vand.u32 2147483647, %v9830
        %v9833 = vcvt.s32.f32 %v9826
        %v9834 = vmul.f32 %v9833, %v9831
        %v9835 = vxor.u32 %v9834, 2147483648
        %v9836 = vsel %vm9753, %v9835, %v9834
        %v9837 = vsub.s32 4, %v9813
        %v9838 = vsel %vm9753, %v9837, %v9813
        %v9839 = vsel %vm9752, %v8385, %v9836
        %v9840 = vsel %vm9752, 0, %v9838
        %v9841 = vcosq.f32.pop %v9839
        %v9842 = vsinq.f32.pop %v9839
        %vm9843 = vweird.f32 %v8385
        %v9844 = vand.u32 %v9840, 3
        %vm9845 = vcmp.lt.s32.totalorder %v9844, 2
        %vm9846 = vcmp.eq.s32.totalorder %v9844, 0
        %v9847 = vxor.u32 %v9842, 2147483648
        %v9848 = vsel %vm9846, %v9841, %v9847
        %vm9849 = vcmp.eq.s32.totalorder %v9844, 2
        %v9850 = vxor.u32 %v9841, 2147483648
        %v9851 = vsel %vm9849, %v9850, %v9842
        %v9852 = vsel %vm9845, %v9848, %v9851
        %v9853 = vsel %vm9843, nan, %v9852
        %v9854 = vand.u32 2147483647, %v8394
        %vm9855 = vcmp.le.f32.partialorder %v9854, 0.7853982
        %vm9856 = vcmp.lt.s32.totalorder %v8394, 0
        %v9857 = vand.u32 %v8394, 2139095040
        %v9858 = vshrl.u32 %v9857, 23
        %v9859 = vsub.s32 %v9858, 127
        %v9860 = vand.u32 2147483647, %v8394
        %v9861 = vand.u32 %v9860, 8388607
        %v9862 = vor.u32 %v9861, 8388608
        %v9863 = vsub.s32 0, %v9862
        %v9864 = vadd.s32 %v9859, 1
        %vm9865 = vcmp.gt.s32.totalorder %v9864, 0
        %v9866 = vsel %vm9865, %v9864, 0
        %v9867 = vshrl.u32 %v9866, 5
        %v9868 = vand.u32 %v9866, 31
        %v9869 = vsub.s32 32, %v9868
        %v9870 = vshrl.u32 683565275, %v9869
        %v9871 = vshll.u32 683565275, %v9868
        %v9872 = vshrl.u32 2475754826, %v9869
        %v9873 = vor.u32 %v9871, %v9872
        %v9874 = vshll.u32 2475754826, %v9868
        %v9875 = vshrl.u32 2131351028, %v9869
        %v9876 = vor.u32 %v9874, %v9875
        %v9877 = vshll.u32 2131351028, %v9868
        %v9878 = vshrl.u32 2102212464, %v9869
        %v9879 = vor.u32 %v9877, %v9878
        %v9880 = vshll.u32 2102212464, %v9868
        %v9881 = vshrl.u32 920167782, %v9869
        %v9882 = vor.u32 %v9880, %v9881
        %v9883 = vshll.u32 920167782, %v9868
        %v9884 = vshrl.u32 1326507024, %v9869
        %v9885 = vor.u32 %v9883, %v9884
        %vm9886 = vcmp.lt.s32.totalorder %v9867, 1
        %vm9887 = vcmp.lt.s32.totalorder %v9867, 2
        %vm9888 = vcmp.lt.s32.totalorder %v9867, 3
        %vm9889 = vcmp.lt.s32.totalorder %v9867, 4
        %v9890 = vsel %vm9886, %v9870, %v9873
        %v9891 = vsel %vm9889, %v9879, 2102212464
        %v9892 = vsel %vm9888, %v9876, %v9891
        %v9893 = vsel %vm9887, %v9890, %v9892
        %v9894 = vsel %vm9886, %v9873, %v9876
        %v9895 = vsel %vm9889, %v9882, 920167782
        %v9896 = vsel %vm9888, %v9879, %v9895
        %v9897 = vsel %vm9887, %v9894, %v9896
        %v9898 = vsel %vm9886, %v9876, %v9879
        %v9899 = vsel %vm9889, %v9885, 1326507024
        %v9900 = vsel %vm9888, %v9882, %v9899
        %v9901 = vsel %vm9887, %v9898, %v9900
        %v9902 = vshll.u32 %v9862, 8
        %v9903 = vmul.u32.u64.compose %v9902, %v9901
        %v9904 = vextract.low.u32 %v9903
        %v9905 = vextract.high.u32 %v9903
        %v9906 = vmul.u32.u64.compose %v9902, %v9897
        %v9907 = vextract.low.u32 %v9906
        %v9908 = vextract.high.u32 %v9906
        %v9909 = vmul.u32 %v9902, %v9893
        %v9910 = vadd.s32 %v9905, %v9907
        %vm9911 = vc.u32 %v9905, %v9907
        %v9912 = vadd.s32 %v9908, 1
        %v9913 = vsel %vm9911, %v9912, %v9908
        %v9914 = vadd.s32 %v9909, %v9913
        %v9915 = vadd.s32 %v9914, 536870912
        %v9916 = vshrl.u32 %v9915, 30
        %v9917 = vshll.u32 %v9916, 30
        %v9918 = vsub.s32 %v9914, %v9917
        %vm9919 = vcmp.lt.s32.totalorder %v9918, 0
        %v9920 = vsub.s32 0, %v9918
        %v9921 = vsel %vm9919, %v9920, %v9918
        %v9922 = vclz %v9921
        %v9923 = vsub.s32 %v9922, 2
        %vm9924 = vcmp.gt.s32.totalorder 0, %v9923
        %v9925 = vsel %vm9924, 0, %v9923
        %v9926 = vsub.s32 32, %v9925
        %v9927 = vshll.u32 %v9918, %v9925
        %v9928 = vshrl.u32 %v9910, %v9926
        %v9929 = vor.u32 %v9927, %v9928
        %v9930 = vsub.s32 4294967266, %v9925
        %v9931 = vadd.s32 %v9930, 127
        %v9932 = vshll.u32 %v9931, 23
        %v9933 = vor.u32 4788187, %v9932
        %v9934 = vand.u32 2147483647, %v9933
        %v9936 = vcvt.s32.f32 %v9929
        %v9937 = vmul.f32 %v9936, %v9934
        %v9938 = vxor.u32 %v9937, 2147483648
        %v9939 = vsel %vm9856, %v9938, %v9937
        %v9940 = vsub.s32 4, %v9916
        %v9941 = vsel %vm9856, %v9940, %v9916
        %v9942 = vsel %vm9855, %v8394, %v9939
        %v9943 = vsel %vm9855, 0, %v9941
        %v9944 = vcosq.f32.pop %v9942
        %v9945 = vsinq.f32.pop %v9942
        %vm9946 = vweird.f32 %v8394
        %v9947 = vand.u32 %v9943, 3
        %vm9948 = vcmp.lt.s32.totalorder %v9947, 2
        %vm9949 = vcmp.eq.s32.totalorder %v9947, 0
        %v9950 = vxor.u32 %v9945, 2147483648
        %v9951 = vsel %vm9949, %v9944, %v9950
        %vm9952 = vcmp.eq.s32.totalorder %v9947, 2
        %v9953 = vxor.u32 %v9944, 2147483648
        %v9954 = vsel %vm9952, %v9953, %v9945
        %v9955 = vsel %vm9948, %v9951, %v9954
        %v9956 = vsel %vm9946, nan, %v9955
        %v9957 = vand.u32 2147483647, %v8403
        %vm9958 = vcmp.le.f32.partialorder %v9957, 0.7853982
        %vm9959 = vcmp.lt.s32.totalorder %v8403, 0
        %v9960 = vand.u32 %v8403, 2139095040
        %v9961 = vshrl.u32 %v9960, 23
        %v9962 = vsub.s32 %v9961, 127
        %v9963 = vand.u32 2147483647, %v8403
        %v9964 = vand.u32 %v9963, 8388607
        %v9965 = vor.u32 %v9964, 8388608
        %v9966 = vsub.s32 0, %v9965
        %v9967 = vadd.s32 %v9962, 1
        %vm9968 = vcmp.gt.s32.totalorder %v9967, 0
        %v9969 = vsel %vm9968, %v9967, 0
        %v9970 = vshrl.u32 %v9969, 5
        %v9971 = vand.u32 %v9969, 31
        %v9972 = vsub.s32 32, %v9971
        %v9973 = vshrl.u32 683565275, %v9972
        %v9974 = vshll.u32 683565275, %v9971
        %v9975 = vshrl.u32 2475754826, %v9972
        %v9976 = vor.u32 %v9974, %v9975
        %v9977 = vshll.u32 2475754826, %v9971
        %v9978 = vshrl.u32 2131351028, %v9972
        %v9979 = vor.u32 %v9977, %v9978
        %v9980 = vshll.u32 2131351028, %v9971
        %v9981 = vshrl.u32 2102212464, %v9972
        %v9982 = vor.u32 %v9980, %v9981
        %v9983 = vshll.u32 2102212464, %v9971
        %v9984 = vshrl.u32 920167782, %v9972
        %v9985 = vor.u32 %v9983, %v9984
        %v9986 = vshll.u32 920167782, %v9971
        %v9987 = vshrl.u32 1326507024, %v9972
        %v9988 = vor.u32 %v9986, %v9987
        %vm9989 = vcmp.lt.s32.totalorder %v9970, 1
        %vm9990 = vcmp.lt.s32.totalorder %v9970, 2
        %vm9991 = vcmp.lt.s32.totalorder %v9970, 3
        %vm9992 = vcmp.lt.s32.totalorder %v9970, 4
        %v9993 = vsel %vm9989, %v9973, %v9976
        %v9994 = vsel %vm9992, %v9982, 2102212464
        %v9995 = vsel %vm9991, %v9979, %v9994
        %v9996 = vsel %vm9990, %v9993, %v9995
        %v9997 = vsel %vm9989, %v9976, %v9979
        %v9998 = vsel %vm9992, %v9985, 920167782
        %v9999 = vsel %vm9991, %v9982, %v9998
        %v10000 = vsel %vm9990, %v9997, %v9999
        %v10001 = vsel %vm9989, %v9979, %v9982
        %v10002 = vsel %vm9992, %v9988, 1326507024
        %v10003 = vsel %vm9991, %v9985, %v10002
        %v10004 = vsel %vm9990, %v10001, %v10003
        %v10005 = vshll.u32 %v9965, 8
        %v10006 = vmul.u32.u64.compose %v10005, %v10004
        %v10007 = vextract.low.u32 %v10006
        %v10008 = vextract.high.u32 %v10006
        %v10009 = vmul.u32.u64.compose %v10005, %v10000
        %v10010 = vextract.low.u32 %v10009
        %v10011 = vextract.high.u32 %v10009
        %v10012 = vmul.u32 %v10005, %v9996
        %v10013 = vadd.s32 %v10008, %v10010
        %vm10014 = vc.u32 %v10008, %v10010
        %v10015 = vadd.s32 %v10011, 1
        %v10016 = vsel %vm10014, %v10015, %v10011
        %v10017 = vadd.s32 %v10012, %v10016
        %v10018 = vadd.s32 %v10017, 536870912
        %v10019 = vshrl.u32 %v10018, 30
        %v10020 = vshll.u32 %v10019, 30
        %v10021 = vsub.s32 %v10017, %v10020
        %vm10022 = vcmp.lt.s32.totalorder %v10021, 0
        %v10023 = vsub.s32 0, %v10021
        %v10024 = vsel %vm10022, %v10023, %v10021
        %v10025 = vclz %v10024
        %v10026 = vsub.s32 %v10025, 2
        %vm10027 = vcmp.gt.s32.totalorder 0, %v10026
        %v10028 = vsel %vm10027, 0, %v10026
        %v10029 = vsub.s32 32, %v10028
        %v10030 = vshll.u32 %v10021, %v10028
        %v10031 = vshrl.u32 %v10013, %v10029
        %v10032 = vor.u32 %v10030, %v10031
        %v10033 = vsub.s32 4294967266, %v10028
        %v10034 = vadd.s32 %v10033, 127
        %v10035 = vshll.u32 %v10034, 23
        %v10036 = vor.u32 4788187, %v10035
        %v10037 = vand.u32 2147483647, %v10036
        %v10039 = vcvt.s32.f32 %v10032
        %v10040 = vmul.f32 %v10039, %v10037
        %v10041 = vxor.u32 %v10040, 2147483648
        %v10042 = vsel %vm9959, %v10041, %v10040
        %v10043 = vsub.s32 4, %v10019
        %v10044 = vsel %vm9959, %v10043, %v10019
        %v10045 = vsel %vm9958, %v8403, %v10042
        %v10046 = vsel %vm9958, 0, %v10044
        %v10047 = vcosq.f32.pop %v10045
        %v10048 = vsinq.f32.pop %v10045
        %vm10049 = vweird.f32 %v8403
        %v10050 = vand.u32 %v10046, 3
        %vm10051 = vcmp.lt.s32.totalorder %v10050, 2
        %vm10052 = vcmp.eq.s32.totalorder %v10050, 0
        %v10053 = vxor.u32 %v10048, 2147483648
        %v10054 = vsel %vm10052, %v10047, %v10053
        %vm10055 = vcmp.eq.s32.totalorder %v10050, 2
        %v10056 = vxor.u32 %v10047, 2147483648
        %v10057 = vsel %vm10055, %v10056, %v10048
        %v10058 = vsel %vm10051, %v10054, %v10057
        %v10059 = vsel %vm10049, nan, %v10058
        %v10061 = vrot.slane %v1291, 1
        %v10062 = vrot.slane %v1291, 2
        %v10063 = vrot.slane %v1291, 3
        %v10064 = vrot.slane %v1291, 4
        %v10065 = vrot.slane %v1291, 5
        %v10066 = vrot.slane %v1291, 6
        %v10067 = vrot.slane %v1291, 7
        %v10076 = vmul.f32 %v8507, %v1291
        %v10077 = vmul.f32 %v8611, %v10061
        %v10078 = vmul.f32 %v8715, %v10062
        %v10079 = vmul.f32 %v8819, %v10063
        %v10080 = vmul.f32 %v8923, %v10064
        %v10081 = vmul.f32 %v9027, %v10065
        %v10082 = vmul.f32 %v9131, %v10066
        %v10083 = vmul.f32 %v9235, %v10067
        %v10085 = vrot.slane %v1290, 1
        %v10086 = vrot.slane %v1290, 2
        %v10087 = vrot.slane %v1290, 3
        %v10088 = vrot.slane %v1290, 4
        %v10089 = vrot.slane %v1290, 5
        %v10090 = vrot.slane %v1290, 6
        %v10091 = vrot.slane %v1290, 7
        %v10100 = vmul.f32 %v9338, %v1290
        %v10101 = vmul.f32 %v9441, %v10085
        %v10102 = vmul.f32 %v9544, %v10086
        %v10103 = vmul.f32 %v9647, %v10087
        %v10104 = vmul.f32 %v9750, %v10088
        %v10105 = vmul.f32 %v9853, %v10089
        %v10106 = vmul.f32 %v9956, %v10090
        %v10107 = vmul.f32 %v10059, %v10091
        %v10108 = vadd.f32 %v10076, %v10100
        %v10109 = vadd.f32 %v10077, %v10101
        %v10110 = vadd.f32 %v10078, %v10102
        %v10111 = vadd.f32 %v10079, %v10103
        %v10112 = vadd.f32 %v10080, %v10104
        %v10113 = vadd.f32 %v10081, %v10105
        %v10114 = vadd.f32 %v10082, %v10106
        %v10115 = vadd.f32 %v10083, %v10107
        %v10124 = vrot.slane %v10109, 7
        %v10125 = vsel %vm3280, %v10124, %v10108
        %v10126 = vrot.slane %v10110, 6
        %v10127 = vsel %vm3282, %v10126, %v10125
        %v10128 = vrot.slane %v10111, 5
        %v10129 = vsel %vm3284, %v10128, %v10127
        %v10130 = vrot.slane %v10112, 4
        %v10131 = vsel %vm3286, %v10130, %v10129
        %v10132 = vrot.slane %v10113, 3
        %v10133 = vsel %vm3288, %v10132, %v10131
        %v10134 = vrot.slane %v10114, 2
        %v10135 = vsel %vm3290, %v10134, %v10133
        %v10136 = vrot.slane %v10115, 1
        %v10137 = vsel %vm3292, %v10136, %v10135
        %10138 = vrot.lane.b32.xlu0 %v10137, 7
        %v10139 = vpop.permute.xlu0 %10138
        %vm10141 = vcmask 113720
        %10142 = vst.msk [vmem:[%s1238] sm:$0xff] %vm10141, %v10139
        %v10143 = vmul.f32 %v9338, %v1291
        %v10144 = vmul.f32 %v9441, %v10061
        %v10145 = vmul.f32 %v9544, %v10062
        %v10146 = vmul.f32 %v9647, %v10063
        %v10147 = vmul.f32 %v9750, %v10064
        %v10148 = vmul.f32 %v9853, %v10065
        %v10149 = vmul.f32 %v9956, %v10066
        %v10150 = vmul.f32 %v10059, %v10067
        %v10151 = vmul.f32 %v8507, %v1290
        %v10152 = vmul.f32 %v8611, %v10085
        %v10153 = vmul.f32 %v8715, %v10086
        %v10154 = vmul.f32 %v8819, %v10087
        %v10155 = vmul.f32 %v8923, %v10088
        %v10156 = vmul.f32 %v9027, %v10089
        %v10157 = vmul.f32 %v9131, %v10090
        %v10158 = vmul.f32 %v9235, %v10091
        %v10159 = vsub.f32 %v10143, %v10151
        %v10160 = vsub.f32 %v10144, %v10152
        %v10161 = vsub.f32 %v10145, %v10153
        %v10162 = vsub.f32 %v10146, %v10154
        %v10163 = vsub.f32 %v10147, %v10155
        %v10164 = vsub.f32 %v10148, %v10156
        %v10165 = vsub.f32 %v10149, %v10157
        %v10166 = vsub.f32 %v10150, %v10158
        %v10175 = vrot.slane %v10160, 7
        %v10176 = vsel %vm3280, %v10175, %v10159
        %v10177 = vrot.slane %v10161, 6
        %v10178 = vsel %vm3282, %v10177, %v10176
        %v10179 = vrot.slane %v10162, 5
        %v10180 = vsel %vm3284, %v10179, %v10178
        %v10181 = vrot.slane %v10163, 4
        %v10182 = vsel %vm3286, %v10181, %v10180
        %v10183 = vrot.slane %v10164, 3
        %v10184 = vsel %vm3288, %v10183, %v10182
        %v10185 = vrot.slane %v10165, 2
        %v10186 = vsel %vm3290, %v10185, %v10184
        %v10187 = vrot.slane %v10166, 1
        %v10188 = vsel %vm3292, %v10187, %v10186
        %10189 = vrot.lane.b32.xlu0 %v10188, 14
        %v10190 = vpop.permute.xlu0 %10189
        %vm10192 = vcmask 171120
        %10193 = vst.msk [vmem:[%s1238] sm:$0xff] %vm10192, %v10190
        %10195 = vrot.lane.b32.xlu0 %v3919, 21
        %v10196 = vpop.permute.xlu0 %10195
        %vm10198 = vcmask 302248
        %10199 = vst.msk [vmem:[%s1238] sm:$0xff] %vm10198, %v10196
        %s10200 = sand.u32 %s915, 1
        %s10201 = scalar_lea.sflag [#allocation5], %s10200
        %s10202 = sand.u32 %s915, 1
        %s10203 = smul.addr %s10202, 8
        %s10204 = scalar_lea.vmem [#allocation4], %s10203
        // Predicated region
        $region165: #{tpu_custom_call.1} parent=163 // pred_check
          %p10205 = pneg %p925
        $region166: #{tpu_custom_call.1} parent=163 // pred_check_branch
          %10207 = sbr.rel (%p10205) target = $region168
        $region167: #{tpu_custom_call.1} parent=163 // pred_region
          %s10209 = ssub.s32 128, 128
          %10210 = vsyncadd %s10201, %s10209
          %s10211 = smul.addr %s91, 128
          %s10212 = scalar_lea.hbm %s73, %s10211
          %s10214 = sshll.u32 %s10204, 4
          %s10215 = int_to_ptr.vmem [resolvable:$true] %s10214
          %10217 = dma.vmem_to_hbm [thread:$0]  %s10215, 128, %s10212, %s10201
        $region168: #{tpu_custom_call.1} parent=163 // pred_fallthru
          _
      $region164: #{tpu_custom_call.1} parent=5 // pred_fallthru
        _
      %p10218 = scmp.le.s32.totalorder 2, %s86
      // Predicated region
      $region169: #{tpu_custom_call.1} parent=5 // pred_check
        %p10219 = pneg %p10218
      $region170: #{tpu_custom_call.1} parent=5 // pred_check_branch
        %10221 = sbr.rel (%p10219) target = $region172
      $region171: #{tpu_custom_call.1} parent=5 // pred_region
        %s10222 = ssub.s32 %s86, 2
        // Predicated region
        $region173: #{tpu_custom_call.1} parent=171 // pred_check
          %p10223 = pneg %p931
        $region174: #{tpu_custom_call.1} parent=171 // pred_check_branch
          %10225 = sbr.rel (%p10223) target = $region176
        $region175: #{tpu_custom_call.1} parent=171 // pred_region
          %s10226 = sand.u32 %s916, 1
          %s10227 = scalar_lea.sflag [#allocation5], %s10226
          %s10228 = sand.u32 %s916, 1
          %s10229 = smul.addr %s10228, 8
          %s10230 = scalar_lea.vmem [#allocation4], %s10229
          %10231 = dma.done %s10227, 128
        $region176: #{tpu_custom_call.1} parent=171 // pred_fallthru
          _
      $region172: #{tpu_custom_call.1} parent=5 // pred_fallthru
        _
    $region6: #{tpu_custom_call.1} parent=1 // loop_footer
      %s90 = sadd.s32 1, %s86
    $region7: #{tpu_custom_call.1} parent=1 // loop_footer_branch
      %85 = sbr.rel target = $region3
    $region8: #{tpu_custom_call.1} parent=1 // loop_exit
      _
    %10232 = vsyncpa [#allocation5], 1
    %s10233 = scalar_lea.sflag [#allocation5], 1
    %10234 = vsyncpa %s10233, 1

</llo_original>
